<compile_context>
chip_gen: v6e
topology: v6e:2x2x1
jax: 0.10.0
libtpu: 0.0.40
codegen_flags: <defaults>
</compile_context>

<pallas_src>
import functools

import jax
import jax.numpy as jnp
from jax.experimental import pallas as pl
from jax.experimental.pallas import tpu as pltpu


def _round_up(a, b):
    return ((a + b - 1) // b) * b


def ffn_kernel(x_ref, w1_ref, b1_ref, w2_ref, b2_ref, o_ref):
    # x_ref:   (tm, C)  f32 token tile (block index constant over the h axis)
    # w1_ref:  (C, th)  bf16 chunk of first-layer weight
    # b1_ref:  (1, th)  f32  chunk of first-layer bias
    # w2_ref:  (th, C)  bf16 chunk of second-layer weight
    # b2_ref:  (1, C)   f32  second-layer bias
    # o_ref:   (tm, C)  f32 output tile (resident across the h axis)
    h_idx = pl.program_id(1)

    # Cast the f32 token tile to bf16 in-kernel (saves a standalone HBM pass).
    x = x_ref[...].astype(jnp.bfloat16)

    # First matmul on the MXU (bf16 in, f32 accumulate); bias + ReLU in f32.
    hid = jnp.dot(x, w1_ref[...], preferred_element_type=jnp.float32)
    hid = jnp.maximum(hid + b1_ref[...], 0.0)

    # Second matmul: this hidden chunk's contribution to the output tile.
    contrib = jnp.dot(hid.astype(w2_ref.dtype), w2_ref[...],
                      preferred_element_type=jnp.float32)

    @pl.when(h_idx == 0)
    def _():
        # Dropout == identity in eval mode.
        o_ref[...] = contrib + b2_ref[...]

    @pl.when(h_idx > 0)
    def _():
        o_ref[...] += contrib


@functools.partial(jax.jit, static_argnames=("tm", "th"))
def feed_forward(x, w1, b1, w2, b2, *, tm=None, th=None):
    """x: (B, T, C) float32. Returns (B, T, C)."""
    B, T, C = x.shape
    H = w1.shape[1]
    M = B * T

    # ---- token tile selection ----------------------------------------------
    # Multiple of 16 sublanes (bf16 packing); large enough to feed the MXU,
    # but keep >= 2 tiles on the parallel M axis so v7x's two TensorCores
    # (and megacore sharding generally) both get work.
    if tm is None:
        tm = 1024
    m16 = _round_up(M, 16)
    tm = min(tm, m16)
    if m16 >= 32:
        tm = min(tm, _round_up((m16 + 1) // 2, 16))
    tm = _round_up(tm, 16)
    M_pad = _round_up(M, tm)

    # ---- hidden chunk selection --------------------------------------------
    # Prefer fully VMEM-resident weights (th = H): W1/W2 are then fetched from
    # HBM exactly once and only x/out stream.  Fall back to halved chunks that
    # keep the double-buffered working set inside a v7x-safe VMEM budget.
    VMEM_BUDGET = 48 * 1024 * 1024  # safe under v7x's 64 MiB physical VMEM

    def vmem_est(th_):
        w_bytes = 2 * (C * th_ * 2 + th_ * C * 2)   # W1+W2 chunks, bf16, 2 buffers
        x_bytes = 2 * tm * C * 4                    # x tile, f32, 2 buffers
        o_bytes = 2 * tm * C * 4                    # out tile, f32, 2 buffers
        hid_bytes = tm * th_ * 4                    # f32 hidden intermediate
        bias_bytes = 2 * (th_ + C) * 4
        return w_bytes + x_bytes + o_bytes + hid_bytes + bias_bytes

    if th is None:
        th = H
        while vmem_est(th) > VMEM_BUDGET and th % 2 == 0 and th > 256:
            th //= 2
    th = min(th, H)
    assert th % 128 == 0 and H % th == 0, \
        "hidden dim must tile into 128-aligned chunks"

    # ---- operand prep --------------------------------------------------------
    x2d = x.reshape(M, C).astype(jnp.float32)
    if M_pad != M:
        x2d = jnp.pad(x2d, ((0, M_pad - M), (0, 0)))

    w1b = w1.astype(jnp.bfloat16)
    w2b = w2.astype(jnp.bfloat16)
    b1_2d = b1.reshape(1, H).astype(jnp.float32)
    b2_2d = b2.reshape(1, C).astype(jnp.float32)

    num_i = M_pad // tm
    nh = H // th

    weight_bytes = (C * H + H * C) * 2
    weight_fetches = 1 if nh == 1 else num_i      # chunked path re-streams per tile
    cost = pl.CostEstimate(
        flops=4 * M_pad * C * H,                  # two M x C x H matmuls
        transcendentals=0,
        bytes_accessed=(M_pad * C * 4             # x (f32)
                        + weight_fetches * weight_bytes
                        + (H + C) * 4             # biases
                        + M_pad * C * 4),         # output (f32)
    )

    vmem_limit = min(100 * 1024 * 1024,
                     max(32 * 1024 * 1024, int(vmem_est(th) * 3 // 2)))

    out2d = pl.pallas_call(
        ffn_kernel,
        out_shape=jax.ShapeDtypeStruct((M_pad, C), jnp.float32),
        grid_spec=pltpu.PrefetchScalarGridSpec(
            num_scalar_prefetch=0,
            grid=(num_i, nh),                                  # reduction (H) axis last
            in_specs=[
                pl.BlockSpec((tm, C), lambda i, h: (i, 0)),    # x tile (resident over h)
                pl.BlockSpec((C, th), lambda i, h: (0, h)),    # W1 chunk
                pl.BlockSpec((1, th), lambda i, h: (0, h)),    # b1 chunk
                pl.BlockSpec((th, C), lambda i, h: (h, 0)),    # W2 chunk
                pl.BlockSpec((1, C), lambda i, h: (0, 0)),     # b2
            ],
            out_specs=pl.BlockSpec((tm, C), lambda i, h: (i, 0)),
        ),
        compiler_params=pltpu.CompilerParams(
            dimension_semantics=("parallel", "arbitrary"),
            vmem_limit_bytes=vmem_limit,
        ),
        cost_estimate=cost,
    )(x2d, w1b, b1_2d, w2b, b2_2d)

    out2d = out2d[:M].astype(x.dtype)
    return out2d.reshape(B, T, C)


def init_params(key, n_embd):
    """Deterministic init mimicking nn.Linear's uniform(-1/sqrt(fan_in), 1/sqrt(fan_in))."""
    h = 4 * n_embd
    k1, k2, k3, k4 = jax.random.split(key, 4)
    bound1 = 1.0 / jnp.sqrt(n_embd)
    bound2 = 1.0 / jnp.sqrt(h)
    w1 = jax.random.uniform(k1, (n_embd, h), jnp.float32, -bound1, bound1)
    b1 = jax.random.uniform(k2, (h,), jnp.float32, -bound1, bound1)
    w2 = jax.random.uniform(k3, (h, n_embd), jnp.float32, -bound2, bound2)
    b2 = jax.random.uniform(k4, (n_embd,), jnp.float32, -bound2, bound2)
    return w1, b1, w2, b2


if __name__ == "__main__":
    # n_embd matches the module spec (512 -> hidden 2048); M = 256 tokens is
    # small but still exercises two parallel token tiles (tm caps at 128).
    B, T, n_embd = 2, 128, 512

    key = jax.random.PRNGKey(0)
    kx, kp = jax.random.split(key)
    x = jax.random.normal(kx, (B, T, n_embd), jnp.float32)
    w1, b1, w2, b2 = init_params(kp, n_embd)

    out = feed_forward(x, w1, b1, w2, b2)
    out = jax.block_until_ready(out)

    # Reference with matching numerics (bf16 MXU inputs, f32 accumulation,
    # f32 bias/ReLU; dropout = identity in eval mode).
    xb = x.reshape(-1, n_embd).astype(jnp.bfloat16)
    h = jnp.dot(xb, w1.astype(jnp.bfloat16), preferred_element_type=jnp.float32) + b1
    h = jnp.maximum(h, 0.0)
    ref = jnp.dot(h.astype(jnp.bfloat16), w2.astype(jnp.bfloat16),
                  preferred_element_type=jnp.float32) + b2
    ref = ref.reshape(B, T, n_embd)

    assert out.shape == (B, T, n_embd)
    assert jnp.allclose(out, ref, atol=5e-3, rtol=5e-3), \
        float(jnp.max(jnp.abs(out - ref)))

    print("KERNEL_OK")
</pallas_src>

<mosaic_0001>
module attributes {stable_mosaic.version = 11 : i64} {
  func.func @ffn_kernel(%arg0: i32, %arg1: i32, %arg2: memref<128x512xf32, #tpu.memory_space<vmem>>, %arg3: memref<512x2048xbf16, #tpu.memory_space<vmem>>, %arg4: memref<1x2048xf32, #tpu.memory_space<vmem>>, %arg5: memref<2048x512xbf16, #tpu.memory_space<vmem>>, %arg6: memref<1x512xf32, #tpu.memory_space<vmem>>, %arg7: memref<128x512xf32, #tpu.memory_space<vmem>>) attributes {dimension_semantics = [#tpu.dimension_semantics<parallel>, #tpu.dimension_semantics<arbitrary>], iteration_bounds = array<i64: 2, 1>, scalar_prefetch = 0 : i64, scratch_operands = 0 : i64, tpu.core_type = #tpu.core_type<tc>, window_params = [{transform_indices = @transform_0, window_bounds = array<i64: 128, 512>}, {transform_indices = @transform_1, window_bounds = array<i64: 512, 2048>}, {transform_indices = @transform_2, window_bounds = array<i64: 1, 2048>}, {transform_indices = @transform_3, window_bounds = array<i64: 2048, 512>}, {pipeline_mode = #tpu.pipeline_mode<synchronous>, transform_indices = @transform_4, window_bounds = array<i64: 1, 512>}, {transform_indices = @transform_5, window_bounds = array<i64: 128, 512>}]} {
    %c0 = arith.constant 0 : index
    %c0_0 = arith.constant 0 : index
    %0 = vector.load %arg2[%c0, %c0_0] : memref<128x512xf32, #tpu.memory_space<vmem>>, vector<128x512xf32>
    %1 = arith.truncf %0 : vector<128x512xf32> to vector<128x512xbf16>
    %c0_1 = arith.constant 0 : index
    %c0_2 = arith.constant 0 : index
    %2 = vector.load %arg3[%c0_1, %c0_2] : memref<512x2048xbf16, #tpu.memory_space<vmem>>, vector<512x2048xbf16>
    %cst = arith.constant dense<0.000000e+00> : vector<128x2048xf32>
    %3 = tpu.matmul %1, %2, %cst {dimension_numbers = #tpu.dot_dimension_numbers<[1], [0], [0], [1], [0, 0, 1, 1], [], []>} : vector<128x512xbf16>, vector<512x2048xbf16>, vector<128x2048xf32> -> vector<128x2048xf32>
    %c0_3 = arith.constant 0 : index
    %c0_4 = arith.constant 0 : index
    %4 = vector.load %arg4[%c0_3, %c0_4] : memref<1x2048xf32, #tpu.memory_space<vmem>>, vector<1x2048xf32>
    %5 = vector.broadcast %4 : vector<1x2048xf32> to vector<128x2048xf32>
    %6 = arith.addf %3, %5 : vector<128x2048xf32>
    %cst_5 = arith.constant 0.000000e+00 : f32
    %7 = vector.broadcast %cst_5 : f32 to vector<128x2048xf32>
    %8 = arith.maximumf %6, %7 : vector<128x2048xf32>
    %9 = arith.truncf %8 : vector<128x2048xf32> to vector<128x2048xbf16>
    %c0_6 = arith.constant 0 : index
    %c0_7 = arith.constant 0 : index
    %10 = vector.load %arg5[%c0_6, %c0_7] : memref<2048x512xbf16, #tpu.memory_space<vmem>>, vector<2048x512xbf16>
    %cst_8 = arith.constant dense<0.000000e+00> : vector<128x512xf32>
    %11 = tpu.matmul %9, %10, %cst_8 {dimension_numbers = #tpu.dot_dimension_numbers<[1], [0], [0], [1], [0, 0, 1, 1], [], []>} : vector<128x2048xbf16>, vector<2048x512xbf16>, vector<128x512xf32> -> vector<128x512xf32>
    %c0_i32 = arith.constant 0 : i32
    %12 = arith.cmpi eq, %arg1, %c0_i32 : i32
    %13 = arith.extui %12 : i1 to i32
    %c0_i32_9 = arith.constant 0 : i32
    %14 = arith.cmpi ne, %13, %c0_i32_9 : i32
    scf.if %14 {
      %c0_12 = arith.constant 0 : index
      %c0_13 = arith.constant 0 : index
      %18 = vector.load %arg6[%c0_12, %c0_13] : memref<1x512xf32, #tpu.memory_space<vmem>>, vector<1x512xf32>
      %19 = vector.broadcast %18 : vector<1x512xf32> to vector<128x512xf32>
      %20 = arith.addf %11, %19 : vector<128x512xf32>
      %c0_14 = arith.constant 0 : index
      %c0_15 = arith.constant 0 : index
      %21 = vector.load %arg7[%c0_14, %c0_15] : memref<128x512xf32, #tpu.memory_space<vmem>>, vector<128x512xf32>
      tpu.vector_store %arg7[%c0_14, %c0_15], %20 {strides = array<i32>} : memref<128x512xf32, #tpu.memory_space<vmem>>, vector<128x512xf32>,
    } else {
    }
    %c0_i32_10 = arith.constant 0 : i32
    %15 = arith.cmpi sgt, %arg1, %c0_i32_10 : i32
    %16 = arith.extui %15 : i1 to i32
    %c0_i32_11 = arith.constant 0 : i32
    %17 = arith.cmpi ne, %16, %c0_i32_11 : i32
    scf.if %17 {
      %c0_12 = arith.constant 0 : index
      %c0_13 = arith.constant 0 : index
      %18 = vector.load %arg7[%c0_12, %c0_13] : memref<128x512xf32, #tpu.memory_space<vmem>>, vector<128x512xf32>
      %19 = arith.addf %18, %11 : vector<128x512xf32>
      %c0_14 = arith.constant 0 : index
      %c0_15 = arith.constant 0 : index
      %20 = vector.load %arg7[%c0_14, %c0_15] : memref<128x512xf32, #tpu.memory_space<vmem>>, vector<128x512xf32>
      tpu.vector_store %arg7[%c0_14, %c0_15], %19 {strides = array<i32>} : memref<128x512xf32, #tpu.memory_space<vmem>>, vector<128x512xf32>,
    } else {
    }
    return
  }
  func.func @transform_0(%arg0: i32, %arg1: i32) -> (i32, i32) {
    %c0_i32 = arith.constant 0 : i32
    %c0_i32_0 = arith.constant 0 : i32
    return %arg0, %c0_i32 : i32, i32
  }
  func.func @transform_1(%arg0: i32, %arg1: i32) -> (i32, i32) {
    %c0_i32 = arith.constant 0 : i32
    %c0_i32_0 = arith.constant 0 : i32
    return %c0_i32, %arg1 : i32, i32
  }
  func.func @transform_2(%arg0: i32, %arg1: i32) -> (i32, i32) {
    %c0_i32 = arith.constant 0 : i32
    %c0_i32_0 = arith.constant 0 : i32
    return %c0_i32, %arg1 : i32, i32
  }
  func.func @transform_3(%arg0: i32, %arg1: i32) -> (i32, i32) {
    %c0_i32 = arith.constant 0 : i32
    %c0_i32_0 = arith.constant 0 : i32
    return %arg1, %c0_i32 : i32, i32
  }
  func.func @transform_4(%arg0: i32, %arg1: i32) -> (i32, i32) {
    %c0_i32 = arith.constant 0 : i32
    %c0_i32_0 = arith.constant 0 : i32
    %c0_i32_1 = arith.constant 0 : i32
    return %c0_i32, %c0_i32_0 : i32, i32
  }
  func.func @transform_5(%arg0: i32, %arg1: i32) -> (i32, i32) {
    %c0_i32 = arith.constant 0 : i32
    %c0_i32_0 = arith.constant 0 : i32
    return %arg0, %c0_i32 : i32, i32
  }
}

</mosaic_0001>

<llo_original>
// kernel: feed_forward.1
$region0: #{feed_forward.1}
  #allocation0 [shape = 'u32[]', space=smem, size = 0x4, offset = 0x4, fixed_abs, tag = 'smem constant byte address 0x4 - core index']
  #allocation1 [shape = 'u32[144,128]{1,0:T(1,128)}', space=vmem, size = 0x12000, scoped, tag = 'internal scratch']
  %s0 = inlined_call_operand.vmem [shape: f32[256,512], index: 0, kind: input, shape index: {}]
  %s1 = inlined_call_operand.vmem [shape: bf16[512,2048], index: 1, kind: input, shape index: {}]
  %s2 = inlined_call_operand.vmem [shape: f32[1,2048], index: 2, kind: input, shape index: {}]
  %s3 = inlined_call_operand.vmem [shape: bf16[2048,512], index: 3, kind: input, shape index: {}]
  %s4 = inlined_call_operand.vmem [shape: f32[1,512], index: 4, kind: input, shape index: {}]
  %s5 = inlined_call_operand.hbm [shape: f32[256,512], index: 5, kind: output, shape index: {}]
  %s6 = sld [smem:[#allocation0]]
  $region61: #{feed_forward.1} parent=0
    _
  %s8 = ssub.s32 1, %s6
  %s9 = scalar_select 0, %s8, %s6
  $region1: #{feed_forward.1} parent=0
    #allocation2 [shape = 'u8[524288]{0}', space=vmem, size = 0x80000, scoped, tag = 'output window, operand 0']
    #allocation3 [shape = 's32[2]{0}', space=sflag, size = 0x8, scoped, tag = 'scoped memory for feed_forward.1']
    %10 = vsyncpa [#allocation3], 0
    %s11 = scalar_lea.sflag [#allocation3], 1
    %12 = vsyncpa %s11, 0
    loop: start=0, step=1, limit=4
    $region2: #{feed_forward.1} parent=1 // loop_pre_header
      _
    $region3: #{feed_forward.1} parent=1 // loop_header
      %s14 = sphi 0, %s18
      %p15 = scmp.ge.s32.totalorder %s14, 4
      %s21 = sphi 0, %s33
      %s22 = sphi 0, %s29
      %s23 = sphi 0, %s21
      %s24 = sphi 0, %s22
      %s25 = sphi 0, %s23
      %s26 = sphi 0, %s24
      %s36 = sphi 0, %s38
      %s39 = sphi 0, %s36
      %s40 = sphi 0, %s39
      %s56 = sphi 0, %s40
      %s62 = sphi 0, %s64
      %s65 = sphi 0, %s62
      %s66 = sphi 0, %s65
      %s82 = sphi 0, %s66
      %s88 = sphi 0, %s90
      %s91 = sphi 0, %s88
      %s92 = sphi 0, %s91
      %s108 = sphi 0, %s92
      %s114 = sphi 0, %s116
      %s117 = sphi 0, %s114
      %s118 = sphi 0, %s117
      %s134 = sphi 0, %s118
      %s138 = sphi 0, %s138
      %s140 = sphi 0, %s138
      %s141 = sphi 0, %s140
      %s155 = sphi 0, %s141
      %s161 = sphi 0, %s163
      %s164 = sphi 0, %s161
      %s165 = sphi 0, %s164
      %s181 = sphi 0, %s165
    $region4: #{feed_forward.1} parent=1 // loop_header_branch
      %17 = sbr.rel (%p15) target = $region8
    $region5: #{feed_forward.1} parent=1 // loop_body
      %s19 = ssub.s32 %s14, 1
      %s20 = ssub.s32 %s14, 2
      %s27 = sadd.s32 1, %s22
      %p28 = scmp.ge.s32.totalorder %s27, 1
      %s29 = scalar_select %p28, 0, %s27
      %s30 = sadd.s32 1, %s21
      %s31 = scalar_select %p28, %s30, %s21
      %p32 = scmp.ge.s32.totalorder %s31, 2
      %s33 = scalar_select %p32, 0, %s31
      %s34 = ssub.s32 %s21, %s33
      %p35 = scmp.eq.s32.totalorder %s34, 0
      %s37 = sadd.s32 %s36, 1
      %s38 = scalar_select %p35, %s36, %s37
      %p41 = pneg %p35
      %p42 = scmp.eq.s32.totalorder %s14, 1
      %p43 = por %p41, %p42
      %p44 = scmp.ne.s32.totalorder %s36, %s39
      %p45 = scmp.eq.s32.totalorder %s14, 0
      %p46 = por %p44, %p45
      %p47 = scmp.ne.s32.totalorder %s36, %s39
      %p48 = scmp.eq.s32.totalorder %s19, 1
      %p49 = por %p47, %p48
      %p50 = scmp.ne.s32.totalorder %s39, %s40
      %p51 = scmp.eq.s32.totalorder %s19, 0
      %p52 = por %p50, %p51
      %p53 = scmp.ne.s32.totalorder %s39, %s40
      %p54 = scmp.eq.s32.totalorder %s20, 1
      %p55 = por %p53, %p54
      %p57 = scmp.ne.s32.totalorder %s40, %s56
      %p58 = scmp.eq.s32.totalorder %s20, 0
      %p59 = por %p57, %p58
      %s60 = ssub.s32 %s22, %s29
      %p61 = scmp.eq.s32.totalorder %s60, 0
      %s63 = sadd.s32 %s62, 1
      %s64 = scalar_select %p61, %s62, %s63
      %p67 = pneg %p61
      %p68 = scmp.eq.s32.totalorder %s14, 1
      %p69 = por %p67, %p68
      %p70 = scmp.ne.s32.totalorder %s62, %s65
      %p71 = scmp.eq.s32.totalorder %s14, 0
      %p72 = por %p70, %p71
      %p73 = scmp.ne.s32.totalorder %s62, %s65
      %p74 = scmp.eq.s32.totalorder %s19, 1
      %p75 = por %p73, %p74
      %p76 = scmp.ne.s32.totalorder %s65, %s66
      %p77 = scmp.eq.s32.totalorder %s19, 0
      %p78 = por %p76, %p77
      %p79 = scmp.ne.s32.totalorder %s65, %s66
      %p80 = scmp.eq.s32.totalorder %s20, 1
      %p81 = por %p79, %p80
      %p83 = scmp.ne.s32.totalorder %s66, %s82
      %p84 = scmp.eq.s32.totalorder %s20, 0
      %p85 = por %p83, %p84
      %s86 = ssub.s32 %s22, %s29
      %p87 = scmp.eq.s32.totalorder %s86, 0
      %s89 = sadd.s32 %s88, 1
      %s90 = scalar_select %p87, %s88, %s89
      %p93 = pneg %p87
      %p94 = scmp.eq.s32.totalorder %s14, 1
      %p95 = por %p93, %p94
      %p96 = scmp.ne.s32.totalorder %s88, %s91
      %p97 = scmp.eq.s32.totalorder %s14, 0
      %p98 = por %p96, %p97
      %p99 = scmp.ne.s32.totalorder %s88, %s91
      %p100 = scmp.eq.s32.totalorder %s19, 1
      %p101 = por %p99, %p100
      %p102 = scmp.ne.s32.totalorder %s91, %s92
      %p103 = scmp.eq.s32.totalorder %s19, 0
      %p104 = por %p102, %p103
      %p105 = scmp.ne.s32.totalorder %s91, %s92
      %p106 = scmp.eq.s32.totalorder %s20, 1
      %p107 = por %p105, %p106
      %p109 = scmp.ne.s32.totalorder %s92, %s108
      %p110 = scmp.eq.s32.totalorder %s20, 0
      %p111 = por %p109, %p110
      %s112 = ssub.s32 %s22, %s29
      %p113 = scmp.eq.s32.totalorder %s112, 0
      %s115 = sadd.s32 %s114, 1
      %s116 = scalar_select %p113, %s114, %s115
      %p119 = pneg %p113
      %p120 = scmp.eq.s32.totalorder %s14, 1
      %p121 = por %p119, %p120
      %p122 = scmp.ne.s32.totalorder %s114, %s117
      %p123 = scmp.eq.s32.totalorder %s14, 0
      %p124 = por %p122, %p123
      %p125 = scmp.ne.s32.totalorder %s114, %s117
      %p126 = scmp.eq.s32.totalorder %s19, 1
      %p127 = por %p125, %p126
      %p128 = scmp.ne.s32.totalorder %s117, %s118
      %p129 = scmp.eq.s32.totalorder %s19, 0
      %p130 = por %p128, %p129
      %p131 = scmp.ne.s32.totalorder %s117, %s118
      %p132 = scmp.eq.s32.totalorder %s20, 1
      %p133 = por %p131, %p132
      %p135 = scmp.ne.s32.totalorder %s118, %s134
      %p136 = scmp.eq.s32.totalorder %s20, 0
      %p137 = por %p135, %p136
      %s139 = sadd.s32 %s138, 1
      %p142 = scmp.eq.s32.totalorder %s14, 1
      %p143 = scmp.ne.s32.totalorder %s138, %s140
      %p144 = scmp.eq.s32.totalorder %s14, 0
      %p145 = por %p143, %p144
      %p146 = scmp.ne.s32.totalorder %s138, %s140
      %p147 = scmp.eq.s32.totalorder %s19, 1
      %p148 = por %p146, %p147
      %p149 = scmp.ne.s32.totalorder %s140, %s141
      %p150 = scmp.eq.s32.totalorder %s19, 0
      %p151 = por %p149, %p150
      %p152 = scmp.ne.s32.totalorder %s140, %s141
      %p153 = scmp.eq.s32.totalorder %s20, 1
      %p154 = por %p152, %p153
      %p156 = scmp.ne.s32.totalorder %s141, %s155
      %p157 = scmp.eq.s32.totalorder %s20, 0
      %p158 = por %p156, %p157
      %s159 = ssub.s32 %s21, %s33
      %p160 = scmp.eq.s32.totalorder %s159, 0
      %s162 = sadd.s32 %s161, 1
      %s163 = scalar_select %p160, %s161, %s162
      %p166 = pneg %p160
      %p167 = scmp.eq.s32.totalorder %s14, 1
      %p168 = por %p166, %p167
      %p169 = scmp.ne.s32.totalorder %s161, %s164
      %p170 = scmp.eq.s32.totalorder %s14, 0
      %p171 = por %p169, %p170
      %p172 = scmp.ne.s32.totalorder %s161, %s164
      %p173 = scmp.eq.s32.totalorder %s19, 1
      %p174 = por %p172, %p173
      %p175 = scmp.ne.s32.totalorder %s164, %s165
      %p176 = scmp.eq.s32.totalorder %s19, 0
      %p177 = por %p175, %p176
      %p178 = scmp.ne.s32.totalorder %s164, %s165
      %p179 = scmp.eq.s32.totalorder %s20, 1
      %p180 = por %p178, %p179
      %p182 = scmp.ne.s32.totalorder %s165, %s181
      %p183 = scmp.eq.s32.totalorder %s20, 0
      %p184 = por %p182, %p183
      %p185 = scmp.le.s32.totalorder 1, %s14
      %p186 = scmp.lt.s32.totalorder %s14, 3
      %p187 = pnand %p185, %p186
      %p188 = pneg %p187
      // Predicated region
      $region9: #{feed_forward.1} parent=5 // pred_check
        _
      $region10: #{feed_forward.1} parent=5 // pred_check_branch
        %190 = sbr.rel (%p187) target = $region12
      $region11: #{feed_forward.1} parent=5 // pred_region
        %s191 = ssub.s32 %s14, 1
        // Predicated region
        $region13: #{feed_forward.1} parent=11 // pred_check
          %p192 = pneg %p78
        $region14: #{feed_forward.1} parent=11 // pred_check_branch
          %194 = sbr.rel (%p192) target = $region16
        $region15: #{feed_forward.1} parent=11 // pred_region
          %s195 = smul.u32 16, %s24
          %p196 = scmp.lt.s32.totalorder %s195, 15
          %s197 = scalar_select %p196, %s195, 15
          %s198 = smul.addr %s197, 4
          %s199 = scalar_lea.vmem %s1, %s198
          %s200 = smul.u32 16, %s24
        $region16: #{feed_forward.1} parent=11 // pred_fallthru
          _
        // Predicated region
        $region17: #{feed_forward.1} parent=11 // pred_check
          %p201 = pneg %p104
        $region18: #{feed_forward.1} parent=11 // pred_check_branch
          %203 = sbr.rel (%p201) target = $region20
        $region19: #{feed_forward.1} parent=11 // pred_region
          %s204 = smul.u32 16, %s24
          %p205 = scmp.lt.s32.totalorder %s204, 15
          %s206 = scalar_select %p205, %s204, 15
          %s207 = scalar_lea.vmem %s2, %s206
          %s208 = smul.u32 16, %s24
        $region20: #{feed_forward.1} parent=11 // pred_fallthru
          _
        // Predicated region
        $region21: #{feed_forward.1} parent=11 // pred_check
          %p209 = pneg %p130
        $region22: #{feed_forward.1} parent=11 // pred_check_branch
          %211 = sbr.rel (%p209) target = $region24
        $region23: #{feed_forward.1} parent=11 // pred_region
          %s212 = smul.u32 256, %s24
          %p213 = scmp.lt.s32.totalorder %s212, 255
          %s214 = scalar_select %p213, %s212, 255
          %s215 = smul.addr %s214, 4
          %s216 = smul.addr %s215, 4
          %s217 = scalar_lea.vmem %s3, %s216
          %s218 = smul.u32 256, %s24
        $region24: #{feed_forward.1} parent=11 // pred_fallthru
          _
        // Predicated region
        $region25: #{feed_forward.1} parent=11 // pred_check
          %p219 = pneg %p151
        $region26: #{feed_forward.1} parent=11 // pred_check_branch
          %221 = sbr.rel (%p219) target = $region28
        $region27: #{feed_forward.1} parent=11 // pred_region
          _
        $region28: #{feed_forward.1} parent=11 // pred_fallthru
          _
      $region12: #{feed_forward.1} parent=5 // pred_fallthru
        _
      %p222 = scmp.lt.s32.totalorder %s14, 2
      // Predicated region
      $region29: #{feed_forward.1} parent=5 // pred_check
        %p223 = pneg %p222
      $region30: #{feed_forward.1} parent=5 // pred_check_branch
        %225 = sbr.rel (%p223) target = $region32
      $region31: #{feed_forward.1} parent=5 // pred_region
        // Predicated region
        $region33: #{feed_forward.1} parent=31 // pred_check
          %p226 = pneg %p46
        $region34: #{feed_forward.1} parent=31 // pred_check_branch
          %228 = sbr.rel (%p226) target = $region36
        $region35: #{feed_forward.1} parent=31 // pred_region
          %s229 = smul.u32 16, %s21
          %p230 = scmp.lt.s32.totalorder %s229, 31
          %s231 = scalar_select %p230, %s229, 31
          %s232 = smul.addr %s231, 4
          %s233 = smul.addr %s232, 8
          %s234 = scalar_lea.vmem %s0, %s233
          %s235 = smul.u32 16, %s21
        $region36: #{feed_forward.1} parent=31 // pred_fallthru
          _
      $region32: #{feed_forward.1} parent=5 // pred_fallthru
        _
      %p236 = scmp.le.s32.totalorder 1, %s14
      %p237 = scmp.lt.s32.totalorder %s14, 3
      %p238 = pnand %p236, %p237
      %p239 = pneg %p238
      // Predicated region
      $region37: #{feed_forward.1} parent=5 // pred_check
        _
      $region38: #{feed_forward.1} parent=5 // pred_check_branch
        %241 = sbr.rel (%p238) target = $region40
      $region39: #{feed_forward.1} parent=5 // pred_region
        %s242 = ssub.s32 %s14, 1
        %s243 = smul.u32 16, %s23
        %p244 = scmp.lt.s32.totalorder %s243, 31
        %s245 = scalar_select %p244, %s243, 31
        %s246 = smul.addr %s245, 4
        %s247 = smul.addr %s246, 8
        %s248 = scalar_lea.vmem %s0, %s247
        %p249 = pneg %p52
        %p250 = pneg %p49
        %s251 = smul.u32 16, %s24
        %p252 = scmp.lt.s32.totalorder %s251, 15
        %s253 = scalar_select %p252, %s251, 15
        %s254 = smul.addr %s253, 4
        %s255 = scalar_lea.vmem %s1, %s254
        %p256 = pneg %p78
        %p257 = pneg %p75
        %s258 = smul.u32 16, %s24
        %p259 = scmp.lt.s32.totalorder %s258, 15
        %s260 = scalar_select %p259, %s258, 15
        %s261 = scalar_lea.vmem %s2, %s260
        %p262 = pneg %p104
        %p263 = pneg %p101
        %s264 = smul.u32 256, %s24
        %p265 = scmp.lt.s32.totalorder %s264, 255
        %s266 = scalar_select %p265, %s264, 255
        %s267 = smul.addr %s266, 4
        %s268 = smul.addr %s267, 4
        %s269 = scalar_lea.vmem %s3, %s268
        %p270 = pneg %p130
        %p271 = pneg %p127
        %p272 = pneg %p151
        %p273 = pneg %p148
        %p274 = pneg %p177
        %p275 = pneg %p174
        %s276 = sand.u32 %s164, 1
        %s277 = scalar_lea.sflag [#allocation3], %s276
        %s278 = sand.u32 %s164, 1
        %s279 = smul.addr %s278, 512
        %s280 = scalar_lea.vmem [#allocation2], %s279
        %s281 = smul.u32 16, %s23
        %p282 = scmp.lt.s32.totalorder %s281, 31
        %s283 = scalar_select %p282, %s281, 31
        %s284 = smul.addr %s283, 4
        %s285 = smul.addr %s284, 8
        %s286 = scalar_lea.vmem %s0, %s285
        %s287 = smul.u32 16, %s23
        %s288 = smul.u32 16, %s24
        %p289 = scmp.lt.s32.totalorder %s288, 15
        %s290 = scalar_select %p289, %s288, 15
        %s291 = smul.addr %s290, 4
        %s292 = scalar_lea.vmem %s1, %s291
        %s293 = smul.u32 16, %s24
        %s294 = smul.u32 16, %s24
        %p295 = scmp.lt.s32.totalorder %s294, 15
        %s296 = scalar_select %p295, %s294, 15
        %s297 = scalar_lea.vmem %s2, %s296
        %s298 = smul.u32 16, %s24
        %s299 = smul.u32 256, %s24
        %p300 = scmp.lt.s32.totalorder %s299, 255
        %s301 = scalar_select %p300, %s299, 255
        %s302 = smul.addr %s301, 4
        %s303 = smul.addr %s302, 4
        %s304 = scalar_lea.vmem %s3, %s303
        %s305 = smul.u32 256, %s24
        %s306 = smul.u32 16, %s23
        %v307 = vld [vmem:[%s286] sm:$0xff]
        %v308 = vld [vmem:[%s286 + $0x8] sm:$0xff]
        %v309 = vld [vmem:[%s286 + $0x10] sm:$0xff]
        %v310 = vld [vmem:[%s286 + $0x18] sm:$0xff]
        %v311 = vld [vmem:[%s286 + $0x20] sm:$0xff]
        %v312 = vld [vmem:[%s286 + $0x28] sm:$0xff]
        %v313 = vld [vmem:[%s286 + $0x30] sm:$0xff]
        %v314 = vld [vmem:[%s286 + $0x38] sm:$0xff]
        %v315 = vld [vmem:[%s286 + $0x40] sm:$0xff]
        %v316 = vld [vmem:[%s286 + $0x48] sm:$0xff]
        %v317 = vld [vmem:[%s286 + $0x50] sm:$0xff]
        %v318 = vld [vmem:[%s286 + $0x58] sm:$0xff]
        %v319 = vld [vmem:[%s286 + $0x60] sm:$0xff]
        %v320 = vld [vmem:[%s286 + $0x68] sm:$0xff]
        %v321 = vld [vmem:[%s286 + $0x70] sm:$0xff]
        %v322 = vld [vmem:[%s286 + $0x78] sm:$0xff]
        %v323 = vld [vmem:[%s286 + $0x80] sm:$0xff]
        %v324 = vld [vmem:[%s286 + $0x88] sm:$0xff]
        %v325 = vld [vmem:[%s286 + $0x90] sm:$0xff]
        %v326 = vld [vmem:[%s286 + $0x98] sm:$0xff]
        %v327 = vld [vmem:[%s286 + $0xa0] sm:$0xff]
        %v328 = vld [vmem:[%s286 + $0xa8] sm:$0xff]
        %v329 = vld [vmem:[%s286 + $0xb0] sm:$0xff]
        %v330 = vld [vmem:[%s286 + $0xb8] sm:$0xff]
        %v331 = vld [vmem:[%s286 + $0xc0] sm:$0xff]
        %v332 = vld [vmem:[%s286 + $0xc8] sm:$0xff]
        %v333 = vld [vmem:[%s286 + $0xd0] sm:$0xff]
        %v334 = vld [vmem:[%s286 + $0xd8] sm:$0xff]
        %v335 = vld [vmem:[%s286 + $0xe0] sm:$0xff]
        %v336 = vld [vmem:[%s286 + $0xe8] sm:$0xff]
        %v337 = vld [vmem:[%s286 + $0xf0] sm:$0xff]
        %v338 = vld [vmem:[%s286 + $0xf8] sm:$0xff]
        %v339 = vld [vmem:[%s286 + $0x100] sm:$0xff]
        %v340 = vld [vmem:[%s286 + $0x108] sm:$0xff]
        %v341 = vld [vmem:[%s286 + $0x110] sm:$0xff]
        %v342 = vld [vmem:[%s286 + $0x118] sm:$0xff]
        %v343 = vld [vmem:[%s286 + $0x120] sm:$0xff]
        %v344 = vld [vmem:[%s286 + $0x128] sm:$0xff]
        %v345 = vld [vmem:[%s286 + $0x130] sm:$0xff]
        %v346 = vld [vmem:[%s286 + $0x138] sm:$0xff]
        %v347 = vld [vmem:[%s286 + $0x140] sm:$0xff]
        %v348 = vld [vmem:[%s286 + $0x148] sm:$0xff]
        %v349 = vld [vmem:[%s286 + $0x150] sm:$0xff]
        %v350 = vld [vmem:[%s286 + $0x158] sm:$0xff]
        %v351 = vld [vmem:[%s286 + $0x160] sm:$0xff]
        %v352 = vld [vmem:[%s286 + $0x168] sm:$0xff]
        %v353 = vld [vmem:[%s286 + $0x170] sm:$0xff]
        %v354 = vld [vmem:[%s286 + $0x178] sm:$0xff]
        %v355 = vld [vmem:[%s286 + $0x180] sm:$0xff]
        %v356 = vld [vmem:[%s286 + $0x188] sm:$0xff]
        %v357 = vld [vmem:[%s286 + $0x190] sm:$0xff]
        %v358 = vld [vmem:[%s286 + $0x198] sm:$0xff]
        %v359 = vld [vmem:[%s286 + $0x1a0] sm:$0xff]
        %v360 = vld [vmem:[%s286 + $0x1a8] sm:$0xff]
        %v361 = vld [vmem:[%s286 + $0x1b0] sm:$0xff]
        %v362 = vld [vmem:[%s286 + $0x1b8] sm:$0xff]
        %v363 = vld [vmem:[%s286 + $0x1c0] sm:$0xff]
        %v364 = vld [vmem:[%s286 + $0x1c8] sm:$0xff]
        %v365 = vld [vmem:[%s286 + $0x1d0] sm:$0xff]
        %v366 = vld [vmem:[%s286 + $0x1d8] sm:$0xff]
        %v367 = vld [vmem:[%s286 + $0x1e0] sm:$0xff]
        %v368 = vld [vmem:[%s286 + $0x1e8] sm:$0xff]
        %v369 = vld [vmem:[%s286 + $0x1f0] sm:$0xff]
        %v370 = vld [vmem:[%s286 + $0x1f8] sm:$0xff]
        %v371 = vpack.c.bf16 %v311, %v307
        %v372 = vpack.c.bf16 %v312, %v308
        %v373 = vpack.c.bf16 %v313, %v309
        %v374 = vpack.c.bf16 %v314, %v310
        %v375 = vpack.c.bf16 %v319, %v315
        %v376 = vpack.c.bf16 %v320, %v316
        %v377 = vpack.c.bf16 %v321, %v317
        %v378 = vpack.c.bf16 %v322, %v318
        %v379 = vpack.c.bf16 %v327, %v323
        %v380 = vpack.c.bf16 %v328, %v324
        %v381 = vpack.c.bf16 %v329, %v325
        %v382 = vpack.c.bf16 %v330, %v326
        %v383 = vpack.c.bf16 %v335, %v331
        %v384 = vpack.c.bf16 %v336, %v332
        %v385 = vpack.c.bf16 %v337, %v333
        %v386 = vpack.c.bf16 %v338, %v334
        %v387 = vpack.c.bf16 %v343, %v339
        %v388 = vpack.c.bf16 %v344, %v340
        %v389 = vpack.c.bf16 %v345, %v341
        %v390 = vpack.c.bf16 %v346, %v342
        %v391 = vpack.c.bf16 %v351, %v347
        %v392 = vpack.c.bf16 %v352, %v348
        %v393 = vpack.c.bf16 %v353, %v349
        %v394 = vpack.c.bf16 %v354, %v350
        %v395 = vpack.c.bf16 %v359, %v355
        %v396 = vpack.c.bf16 %v360, %v356
        %v397 = vpack.c.bf16 %v361, %v357
        %v398 = vpack.c.bf16 %v362, %v358
        %v399 = vpack.c.bf16 %v367, %v363
        %v400 = vpack.c.bf16 %v368, %v364
        %v401 = vpack.c.bf16 %v369, %v365
        %v402 = vpack.c.bf16 %v370, %v366
        %v403 = vld [vmem:[%s292] sm:$0xff]
        %v404 = vld [vmem:[%s292 + $0x8] sm:$0xff]
        %v405 = vld [vmem:[%s292 + $0x10] sm:$0xff]
        %v406 = vld [vmem:[%s292 + $0x18] sm:$0xff]
        %v407 = vld [vmem:[%s292 + $0x20] sm:$0xff]
        %v408 = vld [vmem:[%s292 + $0x28] sm:$0xff]
        %v409 = vld [vmem:[%s292 + $0x30] sm:$0xff]
        %v410 = vld [vmem:[%s292 + $0x38] sm:$0xff]
        %v411 = vld [vmem:[%s292 + $0x40] sm:$0xff]
        %v412 = vld [vmem:[%s292 + $0x48] sm:$0xff]
        %v413 = vld [vmem:[%s292 + $0x50] sm:$0xff]
        %v414 = vld [vmem:[%s292 + $0x58] sm:$0xff]
        %v415 = vld [vmem:[%s292 + $0x60] sm:$0xff]
        %v416 = vld [vmem:[%s292 + $0x68] sm:$0xff]
        %v417 = vld [vmem:[%s292 + $0x70] sm:$0xff]
        %v418 = vld [vmem:[%s292 + $0x78] sm:$0xff]
        %v419 = vld [vmem:[%s292 + $0x80] sm:$0xff]
        %v420 = vld [vmem:[%s292 + $0x88] sm:$0xff]
        %v421 = vld [vmem:[%s292 + $0x90] sm:$0xff]
        %v422 = vld [vmem:[%s292 + $0x98] sm:$0xff]
        %v423 = vld [vmem:[%s292 + $0xa0] sm:$0xff]
        %v424 = vld [vmem:[%s292 + $0xa8] sm:$0xff]
        %v425 = vld [vmem:[%s292 + $0xb0] sm:$0xff]
        %v426 = vld [vmem:[%s292 + $0xb8] sm:$0xff]
        %v427 = vld [vmem:[%s292 + $0xc0] sm:$0xff]
        %v428 = vld [vmem:[%s292 + $0xc8] sm:$0xff]
        %v429 = vld [vmem:[%s292 + $0xd0] sm:$0xff]
        %v430 = vld [vmem:[%s292 + $0xd8] sm:$0xff]
        %v431 = vld [vmem:[%s292 + $0xe0] sm:$0xff]
        %v432 = vld [vmem:[%s292 + $0xe8] sm:$0xff]
        %v433 = vld [vmem:[%s292 + $0xf0] sm:$0xff]
        %v434 = vld [vmem:[%s292 + $0xf8] sm:$0xff]
        %v435 = vld [vmem:[%s292 + $0x100] sm:$0xff]
        %v436 = vld [vmem:[%s292 + $0x108] sm:$0xff]
        %v437 = vld [vmem:[%s292 + $0x110] sm:$0xff]
        %v438 = vld [vmem:[%s292 + $0x118] sm:$0xff]
        %v439 = vld [vmem:[%s292 + $0x120] sm:$0xff]
        %v440 = vld [vmem:[%s292 + $0x128] sm:$0xff]
        %v441 = vld [vmem:[%s292 + $0x130] sm:$0xff]
        %v442 = vld [vmem:[%s292 + $0x138] sm:$0xff]
        %v443 = vld [vmem:[%s292 + $0x140] sm:$0xff]
        %v444 = vld [vmem:[%s292 + $0x148] sm:$0xff]
        %v445 = vld [vmem:[%s292 + $0x150] sm:$0xff]
        %v446 = vld [vmem:[%s292 + $0x158] sm:$0xff]
        %v447 = vld [vmem:[%s292 + $0x160] sm:$0xff]
        %v448 = vld [vmem:[%s292 + $0x168] sm:$0xff]
        %v449 = vld [vmem:[%s292 + $0x170] sm:$0xff]
        %v450 = vld [vmem:[%s292 + $0x178] sm:$0xff]
        %v451 = vld [vmem:[%s292 + $0x180] sm:$0xff]
        %v452 = vld [vmem:[%s292 + $0x188] sm:$0xff]
        %v453 = vld [vmem:[%s292 + $0x190] sm:$0xff]
        %v454 = vld [vmem:[%s292 + $0x198] sm:$0xff]
        %v455 = vld [vmem:[%s292 + $0x1a0] sm:$0xff]
        %v456 = vld [vmem:[%s292 + $0x1a8] sm:$0xff]
        %v457 = vld [vmem:[%s292 + $0x1b0] sm:$0xff]
        %v458 = vld [vmem:[%s292 + $0x1b8] sm:$0xff]
        %v459 = vld [vmem:[%s292 + $0x1c0] sm:$0xff]
        %v460 = vld [vmem:[%s292 + $0x1c8] sm:$0xff]
        %v461 = vld [vmem:[%s292 + $0x1d0] sm:$0xff]
        %v462 = vld [vmem:[%s292 + $0x1d8] sm:$0xff]
        %v463 = vld [vmem:[%s292 + $0x1e0] sm:$0xff]
        %v464 = vld [vmem:[%s292 + $0x1e8] sm:$0xff]
        %v465 = vld [vmem:[%s292 + $0x1f0] sm:$0xff]
        %v466 = vld [vmem:[%s292 + $0x1f8] sm:$0xff]
        %v467 = vld [vmem:[%s292 + $0x200] sm:$0xff]
        %v468 = vld [vmem:[%s292 + $0x208] sm:$0xff]
        %v469 = vld [vmem:[%s292 + $0x210] sm:$0xff]
        %v470 = vld [vmem:[%s292 + $0x218] sm:$0xff]
        %v471 = vld [vmem:[%s292 + $0x220] sm:$0xff]
        %v472 = vld [vmem:[%s292 + $0x228] sm:$0xff]
        %v473 = vld [vmem:[%s292 + $0x230] sm:$0xff]
        %v474 = vld [vmem:[%s292 + $0x238] sm:$0xff]
        %v475 = vld [vmem:[%s292 + $0x240] sm:$0xff]
        %v476 = vld [vmem:[%s292 + $0x248] sm:$0xff]
        %v477 = vld [vmem:[%s292 + $0x250] sm:$0xff]
        %v478 = vld [vmem:[%s292 + $0x258] sm:$0xff]
        %v479 = vld [vmem:[%s292 + $0x260] sm:$0xff]
        %v480 = vld [vmem:[%s292 + $0x268] sm:$0xff]
        %v481 = vld [vmem:[%s292 + $0x270] sm:$0xff]
        %v482 = vld [vmem:[%s292 + $0x278] sm:$0xff]
        %v483 = vld [vmem:[%s292 + $0x280] sm:$0xff]
        %v484 = vld [vmem:[%s292 + $0x288] sm:$0xff]
        %v485 = vld [vmem:[%s292 + $0x290] sm:$0xff]
        %v486 = vld [vmem:[%s292 + $0x298] sm:$0xff]
        %v487 = vld [vmem:[%s292 + $0x2a0] sm:$0xff]
        %v488 = vld [vmem:[%s292 + $0x2a8] sm:$0xff]
        %v489 = vld [vmem:[%s292 + $0x2b0] sm:$0xff]
        %v490 = vld [vmem:[%s292 + $0x2b8] sm:$0xff]
        %v491 = vld [vmem:[%s292 + $0x2c0] sm:$0xff]
        %v492 = vld [vmem:[%s292 + $0x2c8] sm:$0xff]
        %v493 = vld [vmem:[%s292 + $0x2d0] sm:$0xff]
        %v494 = vld [vmem:[%s292 + $0x2d8] sm:$0xff]
        %v495 = vld [vmem:[%s292 + $0x2e0] sm:$0xff]
        %v496 = vld [vmem:[%s292 + $0x2e8] sm:$0xff]
        %v497 = vld [vmem:[%s292 + $0x2f0] sm:$0xff]
        %v498 = vld [vmem:[%s292 + $0x2f8] sm:$0xff]
        %v499 = vld [vmem:[%s292 + $0x300] sm:$0xff]
        %v500 = vld [vmem:[%s292 + $0x308] sm:$0xff]
        %v501 = vld [vmem:[%s292 + $0x310] sm:$0xff]
        %v502 = vld [vmem:[%s292 + $0x318] sm:$0xff]
        %v503 = vld [vmem:[%s292 + $0x320] sm:$0xff]
        %v504 = vld [vmem:[%s292 + $0x328] sm:$0xff]
        %v505 = vld [vmem:[%s292 + $0x330] sm:$0xff]
        %v506 = vld [vmem:[%s292 + $0x338] sm:$0xff]
        %v507 = vld [vmem:[%s292 + $0x340] sm:$0xff]
        %v508 = vld [vmem:[%s292 + $0x348] sm:$0xff]
        %v509 = vld [vmem:[%s292 + $0x350] sm:$0xff]
        %v510 = vld [vmem:[%s292 + $0x358] sm:$0xff]
        %v511 = vld [vmem:[%s292 + $0x360] sm:$0xff]
        %v512 = vld [vmem:[%s292 + $0x368] sm:$0xff]
        %v513 = vld [vmem:[%s292 + $0x370] sm:$0xff]
        %v514 = vld [vmem:[%s292 + $0x378] sm:$0xff]
        %v515 = vld [vmem:[%s292 + $0x380] sm:$0xff]
        %v516 = vld [vmem:[%s292 + $0x388] sm:$0xff]
        %v517 = vld [vmem:[%s292 + $0x390] sm:$0xff]
        %v518 = vld [vmem:[%s292 + $0x398] sm:$0xff]
        %v519 = vld [vmem:[%s292 + $0x3a0] sm:$0xff]
        %v520 = vld [vmem:[%s292 + $0x3a8] sm:$0xff]
        %v521 = vld [vmem:[%s292 + $0x3b0] sm:$0xff]
        %v522 = vld [vmem:[%s292 + $0x3b8] sm:$0xff]
        %v523 = vld [vmem:[%s292 + $0x3c0] sm:$0xff]
        %v524 = vld [vmem:[%s292 + $0x3c8] sm:$0xff]
        %v525 = vld [vmem:[%s292 + $0x3d0] sm:$0xff]
        %v526 = vld [vmem:[%s292 + $0x3d8] sm:$0xff]
        %v527 = vld [vmem:[%s292 + $0x3e0] sm:$0xff]
        %v528 = vld [vmem:[%s292 + $0x3e8] sm:$0xff]
        %v529 = vld [vmem:[%s292 + $0x3f0] sm:$0xff]
        %v530 = vld [vmem:[%s292 + $0x3f8] sm:$0xff]
        %v531 = vld [vmem:[%s292 + $0x400] sm:$0xff]
        %v532 = vld [vmem:[%s292 + $0x408] sm:$0xff]
        %v533 = vld [vmem:[%s292 + $0x410] sm:$0xff]
        %v534 = vld [vmem:[%s292 + $0x418] sm:$0xff]
        %v535 = vld [vmem:[%s292 + $0x420] sm:$0xff]
        %v536 = vld [vmem:[%s292 + $0x428] sm:$0xff]
        %v537 = vld [vmem:[%s292 + $0x430] sm:$0xff]
        %v538 = vld [vmem:[%s292 + $0x438] sm:$0xff]
        %v539 = vld [vmem:[%s292 + $0x440] sm:$0xff]
        %v540 = vld [vmem:[%s292 + $0x448] sm:$0xff]
        %v541 = vld [vmem:[%s292 + $0x450] sm:$0xff]
        %v542 = vld [vmem:[%s292 + $0x458] sm:$0xff]
        %v543 = vld [vmem:[%s292 + $0x460] sm:$0xff]
        %v544 = vld [vmem:[%s292 + $0x468] sm:$0xff]
        %v545 = vld [vmem:[%s292 + $0x470] sm:$0xff]
        %v546 = vld [vmem:[%s292 + $0x478] sm:$0xff]
        %v547 = vld [vmem:[%s292 + $0x480] sm:$0xff]
        %v548 = vld [vmem:[%s292 + $0x488] sm:$0xff]
        %v549 = vld [vmem:[%s292 + $0x490] sm:$0xff]
        %v550 = vld [vmem:[%s292 + $0x498] sm:$0xff]
        %v551 = vld [vmem:[%s292 + $0x4a0] sm:$0xff]
        %v552 = vld [vmem:[%s292 + $0x4a8] sm:$0xff]
        %v553 = vld [vmem:[%s292 + $0x4b0] sm:$0xff]
        %v554 = vld [vmem:[%s292 + $0x4b8] sm:$0xff]
        %v555 = vld [vmem:[%s292 + $0x4c0] sm:$0xff]
        %v556 = vld [vmem:[%s292 + $0x4c8] sm:$0xff]
        %v557 = vld [vmem:[%s292 + $0x4d0] sm:$0xff]
        %v558 = vld [vmem:[%s292 + $0x4d8] sm:$0xff]
        %v559 = vld [vmem:[%s292 + $0x4e0] sm:$0xff]
        %v560 = vld [vmem:[%s292 + $0x4e8] sm:$0xff]
        %v561 = vld [vmem:[%s292 + $0x4f0] sm:$0xff]
        %v562 = vld [vmem:[%s292 + $0x4f8] sm:$0xff]
        %v563 = vld [vmem:[%s292 + $0x500] sm:$0xff]
        %v564 = vld [vmem:[%s292 + $0x508] sm:$0xff]
        %v565 = vld [vmem:[%s292 + $0x510] sm:$0xff]
        %v566 = vld [vmem:[%s292 + $0x518] sm:$0xff]
        %v567 = vld [vmem:[%s292 + $0x520] sm:$0xff]
        %v568 = vld [vmem:[%s292 + $0x528] sm:$0xff]
        %v569 = vld [vmem:[%s292 + $0x530] sm:$0xff]
        %v570 = vld [vmem:[%s292 + $0x538] sm:$0xff]
        %v571 = vld [vmem:[%s292 + $0x540] sm:$0xff]
        %v572 = vld [vmem:[%s292 + $0x548] sm:$0xff]
        %v573 = vld [vmem:[%s292 + $0x550] sm:$0xff]
        %v574 = vld [vmem:[%s292 + $0x558] sm:$0xff]
        %v575 = vld [vmem:[%s292 + $0x560] sm:$0xff]
        %v576 = vld [vmem:[%s292 + $0x568] sm:$0xff]
        %v577 = vld [vmem:[%s292 + $0x570] sm:$0xff]
        %v578 = vld [vmem:[%s292 + $0x578] sm:$0xff]
        %v579 = vld [vmem:[%s292 + $0x580] sm:$0xff]
        %v580 = vld [vmem:[%s292 + $0x588] sm:$0xff]
        %v581 = vld [vmem:[%s292 + $0x590] sm:$0xff]
        %v582 = vld [vmem:[%s292 + $0x598] sm:$0xff]
        %v583 = vld [vmem:[%s292 + $0x5a0] sm:$0xff]
        %v584 = vld [vmem:[%s292 + $0x5a8] sm:$0xff]
        %v585 = vld [vmem:[%s292 + $0x5b0] sm:$0xff]
        %v586 = vld [vmem:[%s292 + $0x5b8] sm:$0xff]
        %v587 = vld [vmem:[%s292 + $0x5c0] sm:$0xff]
        %v588 = vld [vmem:[%s292 + $0x5c8] sm:$0xff]
        %v589 = vld [vmem:[%s292 + $0x5d0] sm:$0xff]
        %v590 = vld [vmem:[%s292 + $0x5d8] sm:$0xff]
        %v591 = vld [vmem:[%s292 + $0x5e0] sm:$0xff]
        %v592 = vld [vmem:[%s292 + $0x5e8] sm:$0xff]
        %v593 = vld [vmem:[%s292 + $0x5f0] sm:$0xff]
        %v594 = vld [vmem:[%s292 + $0x5f8] sm:$0xff]
        %v595 = vld [vmem:[%s292 + $0x600] sm:$0xff]
        %v596 = vld [vmem:[%s292 + $0x608] sm:$0xff]
        %v597 = vld [vmem:[%s292 + $0x610] sm:$0xff]
        %v598 = vld [vmem:[%s292 + $0x618] sm:$0xff]
        %v599 = vld [vmem:[%s292 + $0x620] sm:$0xff]
        %v600 = vld [vmem:[%s292 + $0x628] sm:$0xff]
        %v601 = vld [vmem:[%s292 + $0x630] sm:$0xff]
        %v602 = vld [vmem:[%s292 + $0x638] sm:$0xff]
        %v603 = vld [vmem:[%s292 + $0x640] sm:$0xff]
        %v604 = vld [vmem:[%s292 + $0x648] sm:$0xff]
        %v605 = vld [vmem:[%s292 + $0x650] sm:$0xff]
        %v606 = vld [vmem:[%s292 + $0x658] sm:$0xff]
        %v607 = vld [vmem:[%s292 + $0x660] sm:$0xff]
        %v608 = vld [vmem:[%s292 + $0x668] sm:$0xff]
        %v609 = vld [vmem:[%s292 + $0x670] sm:$0xff]
        %v610 = vld [vmem:[%s292 + $0x678] sm:$0xff]
        %v611 = vld [vmem:[%s292 + $0x680] sm:$0xff]
        %v612 = vld [vmem:[%s292 + $0x688] sm:$0xff]
        %v613 = vld [vmem:[%s292 + $0x690] sm:$0xff]
        %v614 = vld [vmem:[%s292 + $0x698] sm:$0xff]
        %v615 = vld [vmem:[%s292 + $0x6a0] sm:$0xff]
        %v616 = vld [vmem:[%s292 + $0x6a8] sm:$0xff]
        %v617 = vld [vmem:[%s292 + $0x6b0] sm:$0xff]
        %v618 = vld [vmem:[%s292 + $0x6b8] sm:$0xff]
        %v619 = vld [vmem:[%s292 + $0x6c0] sm:$0xff]
        %v620 = vld [vmem:[%s292 + $0x6c8] sm:$0xff]
        %v621 = vld [vmem:[%s292 + $0x6d0] sm:$0xff]
        %v622 = vld [vmem:[%s292 + $0x6d8] sm:$0xff]
        %v623 = vld [vmem:[%s292 + $0x6e0] sm:$0xff]
        %v624 = vld [vmem:[%s292 + $0x6e8] sm:$0xff]
        %v625 = vld [vmem:[%s292 + $0x6f0] sm:$0xff]
        %v626 = vld [vmem:[%s292 + $0x6f8] sm:$0xff]
        %v627 = vld [vmem:[%s292 + $0x700] sm:$0xff]
        %v628 = vld [vmem:[%s292 + $0x708] sm:$0xff]
        %v629 = vld [vmem:[%s292 + $0x710] sm:$0xff]
        %v630 = vld [vmem:[%s292 + $0x718] sm:$0xff]
        %v631 = vld [vmem:[%s292 + $0x720] sm:$0xff]
        %v632 = vld [vmem:[%s292 + $0x728] sm:$0xff]
        %v633 = vld [vmem:[%s292 + $0x730] sm:$0xff]
        %v634 = vld [vmem:[%s292 + $0x738] sm:$0xff]
        %v635 = vld [vmem:[%s292 + $0x740] sm:$0xff]
        %v636 = vld [vmem:[%s292 + $0x748] sm:$0xff]
        %v637 = vld [vmem:[%s292 + $0x750] sm:$0xff]
        %v638 = vld [vmem:[%s292 + $0x758] sm:$0xff]
        %v639 = vld [vmem:[%s292 + $0x760] sm:$0xff]
        %v640 = vld [vmem:[%s292 + $0x768] sm:$0xff]
        %v641 = vld [vmem:[%s292 + $0x770] sm:$0xff]
        %v642 = vld [vmem:[%s292 + $0x778] sm:$0xff]
        %v643 = vld [vmem:[%s292 + $0x780] sm:$0xff]
        %v644 = vld [vmem:[%s292 + $0x788] sm:$0xff]
        %v645 = vld [vmem:[%s292 + $0x790] sm:$0xff]
        %v646 = vld [vmem:[%s292 + $0x798] sm:$0xff]
        %v647 = vld [vmem:[%s292 + $0x7a0] sm:$0xff]
        %v648 = vld [vmem:[%s292 + $0x7a8] sm:$0xff]
        %v649 = vld [vmem:[%s292 + $0x7b0] sm:$0xff]
        %v650 = vld [vmem:[%s292 + $0x7b8] sm:$0xff]
        %v651 = vld [vmem:[%s292 + $0x7c0] sm:$0xff]
        %v652 = vld [vmem:[%s292 + $0x7c8] sm:$0xff]
        %v653 = vld [vmem:[%s292 + $0x7d0] sm:$0xff]
        %v654 = vld [vmem:[%s292 + $0x7d8] sm:$0xff]
        %v655 = vld [vmem:[%s292 + $0x7e0] sm:$0xff]
        %v656 = vld [vmem:[%s292 + $0x7e8] sm:$0xff]
        %v657 = vld [vmem:[%s292 + $0x7f0] sm:$0xff]
        %v658 = vld [vmem:[%s292 + $0x7f8] sm:$0xff]
        %v659 = vld [vmem:[%s292 + $0x800] sm:$0xff]
        %v660 = vld [vmem:[%s292 + $0x808] sm:$0xff]
        %v661 = vld [vmem:[%s292 + $0x810] sm:$0xff]
        %v662 = vld [vmem:[%s292 + $0x818] sm:$0xff]
        %v663 = vld [vmem:[%s292 + $0x820] sm:$0xff]
        %v664 = vld [vmem:[%s292 + $0x828] sm:$0xff]
        %v665 = vld [vmem:[%s292 + $0x830] sm:$0xff]
        %v666 = vld [vmem:[%s292 + $0x838] sm:$0xff]
        %v667 = vld [vmem:[%s292 + $0x840] sm:$0xff]
        %v668 = vld [vmem:[%s292 + $0x848] sm:$0xff]
        %v669 = vld [vmem:[%s292 + $0x850] sm:$0xff]
        %v670 = vld [vmem:[%s292 + $0x858] sm:$0xff]
        %v671 = vld [vmem:[%s292 + $0x860] sm:$0xff]
        %v672 = vld [vmem:[%s292 + $0x868] sm:$0xff]
        %v673 = vld [vmem:[%s292 + $0x870] sm:$0xff]
        %v674 = vld [vmem:[%s292 + $0x878] sm:$0xff]
        %v675 = vld [vmem:[%s292 + $0x880] sm:$0xff]
        %v676 = vld [vmem:[%s292 + $0x888] sm:$0xff]
        %v677 = vld [vmem:[%s292 + $0x890] sm:$0xff]
        %v678 = vld [vmem:[%s292 + $0x898] sm:$0xff]
        %v679 = vld [vmem:[%s292 + $0x8a0] sm:$0xff]
        %v680 = vld [vmem:[%s292 + $0x8a8] sm:$0xff]
        %v681 = vld [vmem:[%s292 + $0x8b0] sm:$0xff]
        %v682 = vld [vmem:[%s292 + $0x8b8] sm:$0xff]
        %v683 = vld [vmem:[%s292 + $0x8c0] sm:$0xff]
        %v684 = vld [vmem:[%s292 + $0x8c8] sm:$0xff]
        %v685 = vld [vmem:[%s292 + $0x8d0] sm:$0xff]
        %v686 = vld [vmem:[%s292 + $0x8d8] sm:$0xff]
        %v687 = vld [vmem:[%s292 + $0x8e0] sm:$0xff]
        %v688 = vld [vmem:[%s292 + $0x8e8] sm:$0xff]
        %v689 = vld [vmem:[%s292 + $0x8f0] sm:$0xff]
        %v690 = vld [vmem:[%s292 + $0x8f8] sm:$0xff]
        %v691 = vld [vmem:[%s292 + $0x900] sm:$0xff]
        %v692 = vld [vmem:[%s292 + $0x908] sm:$0xff]
        %v693 = vld [vmem:[%s292 + $0x910] sm:$0xff]
        %v694 = vld [vmem:[%s292 + $0x918] sm:$0xff]
        %v695 = vld [vmem:[%s292 + $0x920] sm:$0xff]
        %v696 = vld [vmem:[%s292 + $0x928] sm:$0xff]
        %v697 = vld [vmem:[%s292 + $0x930] sm:$0xff]
        %v698 = vld [vmem:[%s292 + $0x938] sm:$0xff]
        %v699 = vld [vmem:[%s292 + $0x940] sm:$0xff]
        %v700 = vld [vmem:[%s292 + $0x948] sm:$0xff]
        %v701 = vld [vmem:[%s292 + $0x950] sm:$0xff]
        %v702 = vld [vmem:[%s292 + $0x958] sm:$0xff]
        %v703 = vld [vmem:[%s292 + $0x960] sm:$0xff]
        %v704 = vld [vmem:[%s292 + $0x968] sm:$0xff]
        %v705 = vld [vmem:[%s292 + $0x970] sm:$0xff]
        %v706 = vld [vmem:[%s292 + $0x978] sm:$0xff]
        %v707 = vld [vmem:[%s292 + $0x980] sm:$0xff]
        %v708 = vld [vmem:[%s292 + $0x988] sm:$0xff]
        %v709 = vld [vmem:[%s292 + $0x990] sm:$0xff]
        %v710 = vld [vmem:[%s292 + $0x998] sm:$0xff]
        %v711 = vld [vmem:[%s292 + $0x9a0] sm:$0xff]
        %v712 = vld [vmem:[%s292 + $0x9a8] sm:$0xff]
        %v713 = vld [vmem:[%s292 + $0x9b0] sm:$0xff]
        %v714 = vld [vmem:[%s292 + $0x9b8] sm:$0xff]
        %v715 = vld [vmem:[%s292 + $0x9c0] sm:$0xff]
        %v716 = vld [vmem:[%s292 + $0x9c8] sm:$0xff]
        %v717 = vld [vmem:[%s292 + $0x9d0] sm:$0xff]
        %v718 = vld [vmem:[%s292 + $0x9d8] sm:$0xff]
        %v719 = vld [vmem:[%s292 + $0x9e0] sm:$0xff]
        %v720 = vld [vmem:[%s292 + $0x9e8] sm:$0xff]
        %v721 = vld [vmem:[%s292 + $0x9f0] sm:$0xff]
        %v722 = vld [vmem:[%s292 + $0x9f8] sm:$0xff]
        %v723 = vld [vmem:[%s292 + $0xa00] sm:$0xff]
        %v724 = vld [vmem:[%s292 + $0xa08] sm:$0xff]
        %v725 = vld [vmem:[%s292 + $0xa10] sm:$0xff]
        %v726 = vld [vmem:[%s292 + $0xa18] sm:$0xff]
        %v727 = vld [vmem:[%s292 + $0xa20] sm:$0xff]
        %v728 = vld [vmem:[%s292 + $0xa28] sm:$0xff]
        %v729 = vld [vmem:[%s292 + $0xa30] sm:$0xff]
        %v730 = vld [vmem:[%s292 + $0xa38] sm:$0xff]
        %v731 = vld [vmem:[%s292 + $0xa40] sm:$0xff]
        %v732 = vld [vmem:[%s292 + $0xa48] sm:$0xff]
        %v733 = vld [vmem:[%s292 + $0xa50] sm:$0xff]
        %v734 = vld [vmem:[%s292 + $0xa58] sm:$0xff]
        %v735 = vld [vmem:[%s292 + $0xa60] sm:$0xff]
        %v736 = vld [vmem:[%s292 + $0xa68] sm:$0xff]
        %v737 = vld [vmem:[%s292 + $0xa70] sm:$0xff]
        %v738 = vld [vmem:[%s292 + $0xa78] sm:$0xff]
        %v739 = vld [vmem:[%s292 + $0xa80] sm:$0xff]
        %v740 = vld [vmem:[%s292 + $0xa88] sm:$0xff]
        %v741 = vld [vmem:[%s292 + $0xa90] sm:$0xff]
        %v742 = vld [vmem:[%s292 + $0xa98] sm:$0xff]
        %v743 = vld [vmem:[%s292 + $0xaa0] sm:$0xff]
        %v744 = vld [vmem:[%s292 + $0xaa8] sm:$0xff]
        %v745 = vld [vmem:[%s292 + $0xab0] sm:$0xff]
        %v746 = vld [vmem:[%s292 + $0xab8] sm:$0xff]
        %v747 = vld [vmem:[%s292 + $0xac0] sm:$0xff]
        %v748 = vld [vmem:[%s292 + $0xac8] sm:$0xff]
        %v749 = vld [vmem:[%s292 + $0xad0] sm:$0xff]
        %v750 = vld [vmem:[%s292 + $0xad8] sm:$0xff]
        %v751 = vld [vmem:[%s292 + $0xae0] sm:$0xff]
        %v752 = vld [vmem:[%s292 + $0xae8] sm:$0xff]
        %v753 = vld [vmem:[%s292 + $0xaf0] sm:$0xff]
        %v754 = vld [vmem:[%s292 + $0xaf8] sm:$0xff]
        %v755 = vld [vmem:[%s292 + $0xb00] sm:$0xff]
        %v756 = vld [vmem:[%s292 + $0xb08] sm:$0xff]
        %v757 = vld [vmem:[%s292 + $0xb10] sm:$0xff]
        %v758 = vld [vmem:[%s292 + $0xb18] sm:$0xff]
        %v759 = vld [vmem:[%s292 + $0xb20] sm:$0xff]
        %v760 = vld [vmem:[%s292 + $0xb28] sm:$0xff]
        %v761 = vld [vmem:[%s292 + $0xb30] sm:$0xff]
        %v762 = vld [vmem:[%s292 + $0xb38] sm:$0xff]
        %v763 = vld [vmem:[%s292 + $0xb40] sm:$0xff]
        %v764 = vld [vmem:[%s292 + $0xb48] sm:$0xff]
        %v765 = vld [vmem:[%s292 + $0xb50] sm:$0xff]
        %v766 = vld [vmem:[%s292 + $0xb58] sm:$0xff]
        %v767 = vld [vmem:[%s292 + $0xb60] sm:$0xff]
        %v768 = vld [vmem:[%s292 + $0xb68] sm:$0xff]
        %v769 = vld [vmem:[%s292 + $0xb70] sm:$0xff]
        %v770 = vld [vmem:[%s292 + $0xb78] sm:$0xff]
        %v771 = vld [vmem:[%s292 + $0xb80] sm:$0xff]
        %v772 = vld [vmem:[%s292 + $0xb88] sm:$0xff]
        %v773 = vld [vmem:[%s292 + $0xb90] sm:$0xff]
        %v774 = vld [vmem:[%s292 + $0xb98] sm:$0xff]
        %v775 = vld [vmem:[%s292 + $0xba0] sm:$0xff]
        %v776 = vld [vmem:[%s292 + $0xba8] sm:$0xff]
        %v777 = vld [vmem:[%s292 + $0xbb0] sm:$0xff]
        %v778 = vld [vmem:[%s292 + $0xbb8] sm:$0xff]
        %v779 = vld [vmem:[%s292 + $0xbc0] sm:$0xff]
        %v780 = vld [vmem:[%s292 + $0xbc8] sm:$0xff]
        %v781 = vld [vmem:[%s292 + $0xbd0] sm:$0xff]
        %v782 = vld [vmem:[%s292 + $0xbd8] sm:$0xff]
        %v783 = vld [vmem:[%s292 + $0xbe0] sm:$0xff]
        %v784 = vld [vmem:[%s292 + $0xbe8] sm:$0xff]
        %v785 = vld [vmem:[%s292 + $0xbf0] sm:$0xff]
        %v786 = vld [vmem:[%s292 + $0xbf8] sm:$0xff]
        %v787 = vld [vmem:[%s292 + $0xc00] sm:$0xff]
        %v788 = vld [vmem:[%s292 + $0xc08] sm:$0xff]
        %v789 = vld [vmem:[%s292 + $0xc10] sm:$0xff]
        %v790 = vld [vmem:[%s292 + $0xc18] sm:$0xff]
        %v791 = vld [vmem:[%s292 + $0xc20] sm:$0xff]
        %v792 = vld [vmem:[%s292 + $0xc28] sm:$0xff]
        %v793 = vld [vmem:[%s292 + $0xc30] sm:$0xff]
        %v794 = vld [vmem:[%s292 + $0xc38] sm:$0xff]
        %v795 = vld [vmem:[%s292 + $0xc40] sm:$0xff]
        %v796 = vld [vmem:[%s292 + $0xc48] sm:$0xff]
        %v797 = vld [vmem:[%s292 + $0xc50] sm:$0xff]
        %v798 = vld [vmem:[%s292 + $0xc58] sm:$0xff]
        %v799 = vld [vmem:[%s292 + $0xc60] sm:$0xff]
        %v800 = vld [vmem:[%s292 + $0xc68] sm:$0xff]
        %v801 = vld [vmem:[%s292 + $0xc70] sm:$0xff]
        %v802 = vld [vmem:[%s292 + $0xc78] sm:$0xff]
        %v803 = vld [vmem:[%s292 + $0xc80] sm:$0xff]
        %v804 = vld [vmem:[%s292 + $0xc88] sm:$0xff]
        %v805 = vld [vmem:[%s292 + $0xc90] sm:$0xff]
        %v806 = vld [vmem:[%s292 + $0xc98] sm:$0xff]
        %v807 = vld [vmem:[%s292 + $0xca0] sm:$0xff]
        %v808 = vld [vmem:[%s292 + $0xca8] sm:$0xff]
        %v809 = vld [vmem:[%s292 + $0xcb0] sm:$0xff]
        %v810 = vld [vmem:[%s292 + $0xcb8] sm:$0xff]
        %v811 = vld [vmem:[%s292 + $0xcc0] sm:$0xff]
        %v812 = vld [vmem:[%s292 + $0xcc8] sm:$0xff]
        %v813 = vld [vmem:[%s292 + $0xcd0] sm:$0xff]
        %v814 = vld [vmem:[%s292 + $0xcd8] sm:$0xff]
        %v815 = vld [vmem:[%s292 + $0xce0] sm:$0xff]
        %v816 = vld [vmem:[%s292 + $0xce8] sm:$0xff]
        %v817 = vld [vmem:[%s292 + $0xcf0] sm:$0xff]
        %v818 = vld [vmem:[%s292 + $0xcf8] sm:$0xff]
        %v819 = vld [vmem:[%s292 + $0xd00] sm:$0xff]
        %v820 = vld [vmem:[%s292 + $0xd08] sm:$0xff]
        %v821 = vld [vmem:[%s292 + $0xd10] sm:$0xff]
        %v822 = vld [vmem:[%s292 + $0xd18] sm:$0xff]
        %v823 = vld [vmem:[%s292 + $0xd20] sm:$0xff]
        %v824 = vld [vmem:[%s292 + $0xd28] sm:$0xff]
        %v825 = vld [vmem:[%s292 + $0xd30] sm:$0xff]
        %v826 = vld [vmem:[%s292 + $0xd38] sm:$0xff]
        %v827 = vld [vmem:[%s292 + $0xd40] sm:$0xff]
        %v828 = vld [vmem:[%s292 + $0xd48] sm:$0xff]
        %v829 = vld [vmem:[%s292 + $0xd50] sm:$0xff]
        %v830 = vld [vmem:[%s292 + $0xd58] sm:$0xff]
        %v831 = vld [vmem:[%s292 + $0xd60] sm:$0xff]
        %v832 = vld [vmem:[%s292 + $0xd68] sm:$0xff]
        %v833 = vld [vmem:[%s292 + $0xd70] sm:$0xff]
        %v834 = vld [vmem:[%s292 + $0xd78] sm:$0xff]
        %v835 = vld [vmem:[%s292 + $0xd80] sm:$0xff]
        %v836 = vld [vmem:[%s292 + $0xd88] sm:$0xff]
        %v837 = vld [vmem:[%s292 + $0xd90] sm:$0xff]
        %v838 = vld [vmem:[%s292 + $0xd98] sm:$0xff]
        %v839 = vld [vmem:[%s292 + $0xda0] sm:$0xff]
        %v840 = vld [vmem:[%s292 + $0xda8] sm:$0xff]
        %v841 = vld [vmem:[%s292 + $0xdb0] sm:$0xff]
        %v842 = vld [vmem:[%s292 + $0xdb8] sm:$0xff]
        %v843 = vld [vmem:[%s292 + $0xdc0] sm:$0xff]
        %v844 = vld [vmem:[%s292 + $0xdc8] sm:$0xff]
        %v845 = vld [vmem:[%s292 + $0xdd0] sm:$0xff]
        %v846 = vld [vmem:[%s292 + $0xdd8] sm:$0xff]
        %v847 = vld [vmem:[%s292 + $0xde0] sm:$0xff]
        %v848 = vld [vmem:[%s292 + $0xde8] sm:$0xff]
        %v849 = vld [vmem:[%s292 + $0xdf0] sm:$0xff]
        %v850 = vld [vmem:[%s292 + $0xdf8] sm:$0xff]
        %v851 = vld [vmem:[%s292 + $0xe00] sm:$0xff]
        %v852 = vld [vmem:[%s292 + $0xe08] sm:$0xff]
        %v853 = vld [vmem:[%s292 + $0xe10] sm:$0xff]
        %v854 = vld [vmem:[%s292 + $0xe18] sm:$0xff]
        %v855 = vld [vmem:[%s292 + $0xe20] sm:$0xff]
        %v856 = vld [vmem:[%s292 + $0xe28] sm:$0xff]
        %v857 = vld [vmem:[%s292 + $0xe30] sm:$0xff]
        %v858 = vld [vmem:[%s292 + $0xe38] sm:$0xff]
        %v859 = vld [vmem:[%s292 + $0xe40] sm:$0xff]
        %v860 = vld [vmem:[%s292 + $0xe48] sm:$0xff]
        %v861 = vld [vmem:[%s292 + $0xe50] sm:$0xff]
        %v862 = vld [vmem:[%s292 + $0xe58] sm:$0xff]
        %v863 = vld [vmem:[%s292 + $0xe60] sm:$0xff]
        %v864 = vld [vmem:[%s292 + $0xe68] sm:$0xff]
        %v865 = vld [vmem:[%s292 + $0xe70] sm:$0xff]
        %v866 = vld [vmem:[%s292 + $0xe78] sm:$0xff]
        %v867 = vld [vmem:[%s292 + $0xe80] sm:$0xff]
        %v868 = vld [vmem:[%s292 + $0xe88] sm:$0xff]
        %v869 = vld [vmem:[%s292 + $0xe90] sm:$0xff]
        %v870 = vld [vmem:[%s292 + $0xe98] sm:$0xff]
        %v871 = vld [vmem:[%s292 + $0xea0] sm:$0xff]
        %v872 = vld [vmem:[%s292 + $0xea8] sm:$0xff]
        %v873 = vld [vmem:[%s292 + $0xeb0] sm:$0xff]
        %v874 = vld [vmem:[%s292 + $0xeb8] sm:$0xff]
        %v875 = vld [vmem:[%s292 + $0xec0] sm:$0xff]
        %v876 = vld [vmem:[%s292 + $0xec8] sm:$0xff]
        %v877 = vld [vmem:[%s292 + $0xed0] sm:$0xff]
        %v878 = vld [vmem:[%s292 + $0xed8] sm:$0xff]
        %v879 = vld [vmem:[%s292 + $0xee0] sm:$0xff]
        %v880 = vld [vmem:[%s292 + $0xee8] sm:$0xff]
        %v881 = vld [vmem:[%s292 + $0xef0] sm:$0xff]
        %v882 = vld [vmem:[%s292 + $0xef8] sm:$0xff]
        %v883 = vld [vmem:[%s292 + $0xf00] sm:$0xff]
        %v884 = vld [vmem:[%s292 + $0xf08] sm:$0xff]
        %v885 = vld [vmem:[%s292 + $0xf10] sm:$0xff]
        %v886 = vld [vmem:[%s292 + $0xf18] sm:$0xff]
        %v887 = vld [vmem:[%s292 + $0xf20] sm:$0xff]
        %v888 = vld [vmem:[%s292 + $0xf28] sm:$0xff]
        %v889 = vld [vmem:[%s292 + $0xf30] sm:$0xff]
        %v890 = vld [vmem:[%s292 + $0xf38] sm:$0xff]
        %v891 = vld [vmem:[%s292 + $0xf40] sm:$0xff]
        %v892 = vld [vmem:[%s292 + $0xf48] sm:$0xff]
        %v893 = vld [vmem:[%s292 + $0xf50] sm:$0xff]
        %v894 = vld [vmem:[%s292 + $0xf58] sm:$0xff]
        %v895 = vld [vmem:[%s292 + $0xf60] sm:$0xff]
        %v896 = vld [vmem:[%s292 + $0xf68] sm:$0xff]
        %v897 = vld [vmem:[%s292 + $0xf70] sm:$0xff]
        %v898 = vld [vmem:[%s292 + $0xf78] sm:$0xff]
        %v899 = vld [vmem:[%s292 + $0xf80] sm:$0xff]
        %v900 = vld [vmem:[%s292 + $0xf88] sm:$0xff]
        %v901 = vld [vmem:[%s292 + $0xf90] sm:$0xff]
        %v902 = vld [vmem:[%s292 + $0xf98] sm:$0xff]
        %v903 = vld [vmem:[%s292 + $0xfa0] sm:$0xff]
        %v904 = vld [vmem:[%s292 + $0xfa8] sm:$0xff]
        %v905 = vld [vmem:[%s292 + $0xfb0] sm:$0xff]
        %v906 = vld [vmem:[%s292 + $0xfb8] sm:$0xff]
        %v907 = vld [vmem:[%s292 + $0xfc0] sm:$0xff]
        %v908 = vld [vmem:[%s292 + $0xfc8] sm:$0xff]
        %v909 = vld [vmem:[%s292 + $0xfd0] sm:$0xff]
        %v910 = vld [vmem:[%s292 + $0xfd8] sm:$0xff]
        %v911 = vld [vmem:[%s292 + $0xfe0] sm:$0xff]
        %v912 = vld [vmem:[%s292 + $0xfe8] sm:$0xff]
        %v913 = vld [vmem:[%s292 + $0xff0] sm:$0xff]
        %v914 = vld [vmem:[%s292 + $0xff8] sm:$0xff]
        %v915 = vld [vmem:[%s297] sm:$0xff]
        %v916 = vld [vmem:[%s297 + $0x8] sm:$0xff]
        %v919 = vlaneseq
        %v920 = vshrl.u32 %v919, 7
        %v921 = vsub.s32 0, %v920
        %v922 = vrot.slane %v915, %v921
        %v923 = vlaneseq
        %v924 = vshrl.u32 %v923, 7
        %v925 = vsub.s32 1, %v924
        %v926 = vrot.slane %v915, %v925
        %v927 = vlaneseq
        %v928 = vshrl.u32 %v927, 7
        %v929 = vsub.s32 2, %v928
        %v930 = vrot.slane %v915, %v929
        %v931 = vlaneseq
        %v932 = vshrl.u32 %v931, 7
        %v933 = vsub.s32 3, %v932
        %v934 = vrot.slane %v915, %v933
        %v935 = vlaneseq
        %v936 = vshrl.u32 %v935, 7
        %v937 = vsub.s32 4, %v936
        %v938 = vrot.slane %v915, %v937
        %v939 = vlaneseq
        %v940 = vshrl.u32 %v939, 7
        %v941 = vsub.s32 5, %v940
        %v942 = vrot.slane %v915, %v941
        %v943 = vlaneseq
        %v944 = vshrl.u32 %v943, 7
        %v945 = vsub.s32 6, %v944
        %v946 = vrot.slane %v915, %v945
        %v947 = vlaneseq
        %v948 = vshrl.u32 %v947, 7
        %v949 = vsub.s32 7, %v948
        %v950 = vrot.slane %v915, %v949
        %v951 = vlaneseq
        %v952 = vshrl.u32 %v951, 7
        %v953 = vsub.s32 0, %v952
        %v954 = vrot.slane %v916, %v953
        %v955 = vlaneseq
        %v956 = vshrl.u32 %v955, 7
        %v957 = vsub.s32 1, %v956
        %v958 = vrot.slane %v916, %v957
        %v959 = vlaneseq
        %v960 = vshrl.u32 %v959, 7
        %v961 = vsub.s32 2, %v960
        %v962 = vrot.slane %v916, %v961
        %v963 = vlaneseq
        %v964 = vshrl.u32 %v963, 7
        %v965 = vsub.s32 3, %v964
        %v966 = vrot.slane %v916, %v965
        %v967 = vlaneseq
        %v968 = vshrl.u32 %v967, 7
        %v969 = vsub.s32 4, %v968
        %v970 = vrot.slane %v916, %v969
        %v971 = vlaneseq
        %v972 = vshrl.u32 %v971, 7
        %v973 = vsub.s32 5, %v972
        %v974 = vrot.slane %v916, %v973
        %v975 = vlaneseq
        %v976 = vshrl.u32 %v975, 7
        %v977 = vsub.s32 6, %v976
        %v978 = vrot.slane %v916, %v977
        %v979 = vlaneseq
        %v980 = vshrl.u32 %v979, 7
        %v981 = vsub.s32 7, %v980
        %v982 = vrot.slane %v916, %v981
        %v1511 = vunpack.c.l.b16 %v403
        %v1512 = vunpack.c.h.b16 %v403
        %v1513 = vunpack.c.l.b16 %v404
        %v1514 = vunpack.c.h.b16 %v404
        %v1515 = vunpack.c.l.b16 %v405
        %v1516 = vunpack.c.h.b16 %v405
        %v1517 = vunpack.c.l.b16 %v406
        %v1518 = vunpack.c.h.b16 %v406
        %v1519 = vunpack.c.l.b16 %v407
        %v1520 = vunpack.c.h.b16 %v407
        %v1521 = vunpack.c.l.b16 %v408
        %v1522 = vunpack.c.h.b16 %v408
        %v1523 = vunpack.c.l.b16 %v409
        %v1524 = vunpack.c.h.b16 %v409
        %v1525 = vunpack.c.l.b16 %v410
        %v1526 = vunpack.c.h.b16 %v410
        %v1527 = vunpack.c.l.b16 %v411
        %v1528 = vunpack.c.h.b16 %v411
        %v1529 = vunpack.c.l.b16 %v412
        %v1530 = vunpack.c.h.b16 %v412
        %v1531 = vunpack.c.l.b16 %v413
        %v1532 = vunpack.c.h.b16 %v413
        %v1533 = vunpack.c.l.b16 %v414
        %v1534 = vunpack.c.h.b16 %v414
        %v1535 = vunpack.c.l.b16 %v415
        %v1536 = vunpack.c.h.b16 %v415
        %v1537 = vunpack.c.l.b16 %v416
        %v1538 = vunpack.c.h.b16 %v416
        %v1539 = vunpack.c.l.b16 %v417
        %v1540 = vunpack.c.h.b16 %v417
        %v1541 = vunpack.c.l.b16 %v418
        %v1542 = vunpack.c.h.b16 %v418
        %v1543 = vunpack.c.l.b16 %v419
        %v1544 = vunpack.c.h.b16 %v419
        %v1545 = vunpack.c.l.b16 %v420
        %v1546 = vunpack.c.h.b16 %v420
        %v1547 = vunpack.c.l.b16 %v421
        %v1548 = vunpack.c.h.b16 %v421
        %v1549 = vunpack.c.l.b16 %v422
        %v1550 = vunpack.c.h.b16 %v422
        %v1551 = vunpack.c.l.b16 %v423
        %v1552 = vunpack.c.h.b16 %v423
        %v1553 = vunpack.c.l.b16 %v424
        %v1554 = vunpack.c.h.b16 %v424
        %v1555 = vunpack.c.l.b16 %v425
        %v1556 = vunpack.c.h.b16 %v425
        %v1557 = vunpack.c.l.b16 %v426
        %v1558 = vunpack.c.h.b16 %v426
        %v1559 = vunpack.c.l.b16 %v427
        %v1560 = vunpack.c.h.b16 %v427
        %v1561 = vunpack.c.l.b16 %v428
        %v1562 = vunpack.c.h.b16 %v428
        %v1563 = vunpack.c.l.b16 %v429
        %v1564 = vunpack.c.h.b16 %v429
        %v1565 = vunpack.c.l.b16 %v430
        %v1566 = vunpack.c.h.b16 %v430
        %v1567 = vunpack.c.l.b16 %v431
        %v1568 = vunpack.c.h.b16 %v431
        %v1569 = vunpack.c.l.b16 %v432
        %v1570 = vunpack.c.h.b16 %v432
        %v1571 = vunpack.c.l.b16 %v433
        %v1572 = vunpack.c.h.b16 %v433
        %v1573 = vunpack.c.l.b16 %v434
        %v1574 = vunpack.c.h.b16 %v434
        %v1575 = vunpack.c.l.b16 %v435
        %v1576 = vunpack.c.h.b16 %v435
        %v1577 = vunpack.c.l.b16 %v436
        %v1578 = vunpack.c.h.b16 %v436
        %v1579 = vunpack.c.l.b16 %v437
        %v1580 = vunpack.c.h.b16 %v437
        %v1581 = vunpack.c.l.b16 %v438
        %v1582 = vunpack.c.h.b16 %v438
        %v1583 = vunpack.c.l.b16 %v439
        %v1584 = vunpack.c.h.b16 %v439
        %v1585 = vunpack.c.l.b16 %v440
        %v1586 = vunpack.c.h.b16 %v440
        %v1587 = vunpack.c.l.b16 %v441
        %v1588 = vunpack.c.h.b16 %v441
        %v1589 = vunpack.c.l.b16 %v442
        %v1590 = vunpack.c.h.b16 %v442
        %v1591 = vunpack.c.l.b16 %v443
        %v1592 = vunpack.c.h.b16 %v443
        %v1593 = vunpack.c.l.b16 %v444
        %v1594 = vunpack.c.h.b16 %v444
        %v1595 = vunpack.c.l.b16 %v445
        %v1596 = vunpack.c.h.b16 %v445
        %v1597 = vunpack.c.l.b16 %v446
        %v1598 = vunpack.c.h.b16 %v446
        %v1599 = vunpack.c.l.b16 %v447
        %v1600 = vunpack.c.h.b16 %v447
        %v1601 = vunpack.c.l.b16 %v448
        %v1602 = vunpack.c.h.b16 %v448
        %v1603 = vunpack.c.l.b16 %v449
        %v1604 = vunpack.c.h.b16 %v449
        %v1605 = vunpack.c.l.b16 %v450
        %v1606 = vunpack.c.h.b16 %v450
        %v1607 = vunpack.c.l.b16 %v451
        %v1608 = vunpack.c.h.b16 %v451
        %v1609 = vunpack.c.l.b16 %v452
        %v1610 = vunpack.c.h.b16 %v452
        %v1611 = vunpack.c.l.b16 %v453
        %v1612 = vunpack.c.h.b16 %v453
        %v1613 = vunpack.c.l.b16 %v454
        %v1614 = vunpack.c.h.b16 %v454
        %v1615 = vunpack.c.l.b16 %v455
        %v1616 = vunpack.c.h.b16 %v455
        %v1617 = vunpack.c.l.b16 %v456
        %v1618 = vunpack.c.h.b16 %v456
        %v1619 = vunpack.c.l.b16 %v457
        %v1620 = vunpack.c.h.b16 %v457
        %v1621 = vunpack.c.l.b16 %v458
        %v1622 = vunpack.c.h.b16 %v458
        %v1623 = vunpack.c.l.b16 %v459
        %v1624 = vunpack.c.h.b16 %v459
        %v1625 = vunpack.c.l.b16 %v460
        %v1626 = vunpack.c.h.b16 %v460
        %v1627 = vunpack.c.l.b16 %v461
        %v1628 = vunpack.c.h.b16 %v461
        %v1629 = vunpack.c.l.b16 %v462
        %v1630 = vunpack.c.h.b16 %v462
        %v1631 = vunpack.c.l.b16 %v463
        %v1632 = vunpack.c.h.b16 %v463
        %v1633 = vunpack.c.l.b16 %v464
        %v1634 = vunpack.c.h.b16 %v464
        %v1635 = vunpack.c.l.b16 %v465
        %v1636 = vunpack.c.h.b16 %v465
        %v1637 = vunpack.c.l.b16 %v466
        %v1638 = vunpack.c.h.b16 %v466
        %v1639 = vunpack.c.l.b16 %v467
        %v1640 = vunpack.c.h.b16 %v467
        %v1641 = vunpack.c.l.b16 %v468
        %v1642 = vunpack.c.h.b16 %v468
        %v1643 = vunpack.c.l.b16 %v469
        %v1644 = vunpack.c.h.b16 %v469
        %v1645 = vunpack.c.l.b16 %v470
        %v1646 = vunpack.c.h.b16 %v470
        %v1647 = vunpack.c.l.b16 %v471
        %v1648 = vunpack.c.h.b16 %v471
        %v1649 = vunpack.c.l.b16 %v472
        %v1650 = vunpack.c.h.b16 %v472
        %v1651 = vunpack.c.l.b16 %v473
        %v1652 = vunpack.c.h.b16 %v473
        %v1653 = vunpack.c.l.b16 %v474
        %v1654 = vunpack.c.h.b16 %v474
        %v1655 = vunpack.c.l.b16 %v475
        %v1656 = vunpack.c.h.b16 %v475
        %v1657 = vunpack.c.l.b16 %v476
        %v1658 = vunpack.c.h.b16 %v476
        %v1659 = vunpack.c.l.b16 %v477
        %v1660 = vunpack.c.h.b16 %v477
        %v1661 = vunpack.c.l.b16 %v478
        %v1662 = vunpack.c.h.b16 %v478
        %v1663 = vunpack.c.l.b16 %v479
        %v1664 = vunpack.c.h.b16 %v479
        %v1665 = vunpack.c.l.b16 %v480
        %v1666 = vunpack.c.h.b16 %v480
        %v1667 = vunpack.c.l.b16 %v481
        %v1668 = vunpack.c.h.b16 %v481
        %v1669 = vunpack.c.l.b16 %v482
        %v1670 = vunpack.c.h.b16 %v482
        %v1671 = vunpack.c.l.b16 %v483
        %v1672 = vunpack.c.h.b16 %v483
        %v1673 = vunpack.c.l.b16 %v484
        %v1674 = vunpack.c.h.b16 %v484
        %v1675 = vunpack.c.l.b16 %v485
        %v1676 = vunpack.c.h.b16 %v485
        %v1677 = vunpack.c.l.b16 %v486
        %v1678 = vunpack.c.h.b16 %v486
        %v1679 = vunpack.c.l.b16 %v487
        %v1680 = vunpack.c.h.b16 %v487
        %v1681 = vunpack.c.l.b16 %v488
        %v1682 = vunpack.c.h.b16 %v488
        %v1683 = vunpack.c.l.b16 %v489
        %v1684 = vunpack.c.h.b16 %v489
        %v1685 = vunpack.c.l.b16 %v490
        %v1686 = vunpack.c.h.b16 %v490
        %v1687 = vunpack.c.l.b16 %v491
        %v1688 = vunpack.c.h.b16 %v491
        %v1689 = vunpack.c.l.b16 %v492
        %v1690 = vunpack.c.h.b16 %v492
        %v1691 = vunpack.c.l.b16 %v493
        %v1692 = vunpack.c.h.b16 %v493
        %v1693 = vunpack.c.l.b16 %v494
        %v1694 = vunpack.c.h.b16 %v494
        %v1695 = vunpack.c.l.b16 %v495
        %v1696 = vunpack.c.h.b16 %v495
        %v1697 = vunpack.c.l.b16 %v496
        %v1698 = vunpack.c.h.b16 %v496
        %v1699 = vunpack.c.l.b16 %v497
        %v1700 = vunpack.c.h.b16 %v497
        %v1701 = vunpack.c.l.b16 %v498
        %v1702 = vunpack.c.h.b16 %v498
        %v1703 = vunpack.c.l.b16 %v499
        %v1704 = vunpack.c.h.b16 %v499
        %v1705 = vunpack.c.l.b16 %v500
        %v1706 = vunpack.c.h.b16 %v500
        %v1707 = vunpack.c.l.b16 %v501
        %v1708 = vunpack.c.h.b16 %v501
        %v1709 = vunpack.c.l.b16 %v502
        %v1710 = vunpack.c.h.b16 %v502
        %v1711 = vunpack.c.l.b16 %v503
        %v1712 = vunpack.c.h.b16 %v503
        %v1713 = vunpack.c.l.b16 %v504
        %v1714 = vunpack.c.h.b16 %v504
        %v1715 = vunpack.c.l.b16 %v505
        %v1716 = vunpack.c.h.b16 %v505
        %v1717 = vunpack.c.l.b16 %v506
        %v1718 = vunpack.c.h.b16 %v506
        %v1719 = vunpack.c.l.b16 %v507
        %v1720 = vunpack.c.h.b16 %v507
        %v1721 = vunpack.c.l.b16 %v508
        %v1722 = vunpack.c.h.b16 %v508
        %v1723 = vunpack.c.l.b16 %v509
        %v1724 = vunpack.c.h.b16 %v509
        %v1725 = vunpack.c.l.b16 %v510
        %v1726 = vunpack.c.h.b16 %v510
        %v1727 = vunpack.c.l.b16 %v511
        %v1728 = vunpack.c.h.b16 %v511
        %v1729 = vunpack.c.l.b16 %v512
        %v1730 = vunpack.c.h.b16 %v512
        %v1731 = vunpack.c.l.b16 %v513
        %v1732 = vunpack.c.h.b16 %v513
        %v1733 = vunpack.c.l.b16 %v514
        %v1734 = vunpack.c.h.b16 %v514
        %v1735 = vunpack.c.l.b16 %v515
        %v1736 = vunpack.c.h.b16 %v515
        %v1737 = vunpack.c.l.b16 %v516
        %v1738 = vunpack.c.h.b16 %v516
        %v1739 = vunpack.c.l.b16 %v517
        %v1740 = vunpack.c.h.b16 %v517
        %v1741 = vunpack.c.l.b16 %v518
        %v1742 = vunpack.c.h.b16 %v518
        %v1743 = vunpack.c.l.b16 %v519
        %v1744 = vunpack.c.h.b16 %v519
        %v1745 = vunpack.c.l.b16 %v520
        %v1746 = vunpack.c.h.b16 %v520
        %v1747 = vunpack.c.l.b16 %v521
        %v1748 = vunpack.c.h.b16 %v521
        %v1749 = vunpack.c.l.b16 %v522
        %v1750 = vunpack.c.h.b16 %v522
        %v1751 = vunpack.c.l.b16 %v523
        %v1752 = vunpack.c.h.b16 %v523
        %v1753 = vunpack.c.l.b16 %v524
        %v1754 = vunpack.c.h.b16 %v524
        %v1755 = vunpack.c.l.b16 %v525
        %v1756 = vunpack.c.h.b16 %v525
        %v1757 = vunpack.c.l.b16 %v526
        %v1758 = vunpack.c.h.b16 %v526
        %v1759 = vunpack.c.l.b16 %v527
        %v1760 = vunpack.c.h.b16 %v527
        %v1761 = vunpack.c.l.b16 %v528
        %v1762 = vunpack.c.h.b16 %v528
        %v1763 = vunpack.c.l.b16 %v529
        %v1764 = vunpack.c.h.b16 %v529
        %v1765 = vunpack.c.l.b16 %v530
        %v1766 = vunpack.c.h.b16 %v530
        %v1767 = vunpack.c.l.b16 %v531
        %v1768 = vunpack.c.h.b16 %v531
        %v1769 = vunpack.c.l.b16 %v532
        %v1770 = vunpack.c.h.b16 %v532
        %v1771 = vunpack.c.l.b16 %v533
        %v1772 = vunpack.c.h.b16 %v533
        %v1773 = vunpack.c.l.b16 %v534
        %v1774 = vunpack.c.h.b16 %v534
        %v1775 = vunpack.c.l.b16 %v535
        %v1776 = vunpack.c.h.b16 %v535
        %v1777 = vunpack.c.l.b16 %v536
        %v1778 = vunpack.c.h.b16 %v536
        %v1779 = vunpack.c.l.b16 %v537
        %v1780 = vunpack.c.h.b16 %v537
        %v1781 = vunpack.c.l.b16 %v538
        %v1782 = vunpack.c.h.b16 %v538
        %v1783 = vunpack.c.l.b16 %v539
        %v1784 = vunpack.c.h.b16 %v539
        %v1785 = vunpack.c.l.b16 %v540
        %v1786 = vunpack.c.h.b16 %v540
        %v1787 = vunpack.c.l.b16 %v541
        %v1788 = vunpack.c.h.b16 %v541
        %v1789 = vunpack.c.l.b16 %v542
        %v1790 = vunpack.c.h.b16 %v542
        %v1791 = vunpack.c.l.b16 %v543
        %v1792 = vunpack.c.h.b16 %v543
        %v1793 = vunpack.c.l.b16 %v544
        %v1794 = vunpack.c.h.b16 %v544
        %v1795 = vunpack.c.l.b16 %v545
        %v1796 = vunpack.c.h.b16 %v545
        %v1797 = vunpack.c.l.b16 %v546
        %v1798 = vunpack.c.h.b16 %v546
        %v1799 = vunpack.c.l.b16 %v547
        %v1800 = vunpack.c.h.b16 %v547
        %v1801 = vunpack.c.l.b16 %v548
        %v1802 = vunpack.c.h.b16 %v548
        %v1803 = vunpack.c.l.b16 %v549
        %v1804 = vunpack.c.h.b16 %v549
        %v1805 = vunpack.c.l.b16 %v550
        %v1806 = vunpack.c.h.b16 %v550
        %v1807 = vunpack.c.l.b16 %v551
        %v1808 = vunpack.c.h.b16 %v551
        %v1809 = vunpack.c.l.b16 %v552
        %v1810 = vunpack.c.h.b16 %v552
        %v1811 = vunpack.c.l.b16 %v553
        %v1812 = vunpack.c.h.b16 %v553
        %v1813 = vunpack.c.l.b16 %v554
        %v1814 = vunpack.c.h.b16 %v554
        %v1815 = vunpack.c.l.b16 %v555
        %v1816 = vunpack.c.h.b16 %v555
        %v1817 = vunpack.c.l.b16 %v556
        %v1818 = vunpack.c.h.b16 %v556
        %v1819 = vunpack.c.l.b16 %v557
        %v1820 = vunpack.c.h.b16 %v557
        %v1821 = vunpack.c.l.b16 %v558
        %v1822 = vunpack.c.h.b16 %v558
        %v1823 = vunpack.c.l.b16 %v559
        %v1824 = vunpack.c.h.b16 %v559
        %v1825 = vunpack.c.l.b16 %v560
        %v1826 = vunpack.c.h.b16 %v560
        %v1827 = vunpack.c.l.b16 %v561
        %v1828 = vunpack.c.h.b16 %v561
        %v1829 = vunpack.c.l.b16 %v562
        %v1830 = vunpack.c.h.b16 %v562
        %v1831 = vunpack.c.l.b16 %v563
        %v1832 = vunpack.c.h.b16 %v563
        %v1833 = vunpack.c.l.b16 %v564
        %v1834 = vunpack.c.h.b16 %v564
        %v1835 = vunpack.c.l.b16 %v565
        %v1836 = vunpack.c.h.b16 %v565
        %v1837 = vunpack.c.l.b16 %v566
        %v1838 = vunpack.c.h.b16 %v566
        %v1839 = vunpack.c.l.b16 %v567
        %v1840 = vunpack.c.h.b16 %v567
        %v1841 = vunpack.c.l.b16 %v568
        %v1842 = vunpack.c.h.b16 %v568
        %v1843 = vunpack.c.l.b16 %v569
        %v1844 = vunpack.c.h.b16 %v569
        %v1845 = vunpack.c.l.b16 %v570
        %v1846 = vunpack.c.h.b16 %v570
        %v1847 = vunpack.c.l.b16 %v571
        %v1848 = vunpack.c.h.b16 %v571
        %v1849 = vunpack.c.l.b16 %v572
        %v1850 = vunpack.c.h.b16 %v572
        %v1851 = vunpack.c.l.b16 %v573
        %v1852 = vunpack.c.h.b16 %v573
        %v1853 = vunpack.c.l.b16 %v574
        %v1854 = vunpack.c.h.b16 %v574
        %v1855 = vunpack.c.l.b16 %v575
        %v1856 = vunpack.c.h.b16 %v575
        %v1857 = vunpack.c.l.b16 %v576
        %v1858 = vunpack.c.h.b16 %v576
        %v1859 = vunpack.c.l.b16 %v577
        %v1860 = vunpack.c.h.b16 %v577
        %v1861 = vunpack.c.l.b16 %v578
        %v1862 = vunpack.c.h.b16 %v578
        %v1863 = vunpack.c.l.b16 %v579
        %v1864 = vunpack.c.h.b16 %v579
        %v1865 = vunpack.c.l.b16 %v580
        %v1866 = vunpack.c.h.b16 %v580
        %v1867 = vunpack.c.l.b16 %v581
        %v1868 = vunpack.c.h.b16 %v581
        %v1869 = vunpack.c.l.b16 %v582
        %v1870 = vunpack.c.h.b16 %v582
        %v1871 = vunpack.c.l.b16 %v583
        %v1872 = vunpack.c.h.b16 %v583
        %v1873 = vunpack.c.l.b16 %v584
        %v1874 = vunpack.c.h.b16 %v584
        %v1875 = vunpack.c.l.b16 %v585
        %v1876 = vunpack.c.h.b16 %v585
        %v1877 = vunpack.c.l.b16 %v586
        %v1878 = vunpack.c.h.b16 %v586
        %v1879 = vunpack.c.l.b16 %v587
        %v1880 = vunpack.c.h.b16 %v587
        %v1881 = vunpack.c.l.b16 %v588
        %v1882 = vunpack.c.h.b16 %v588
        %v1883 = vunpack.c.l.b16 %v589
        %v1884 = vunpack.c.h.b16 %v589
        %v1885 = vunpack.c.l.b16 %v590
        %v1886 = vunpack.c.h.b16 %v590
        %v1887 = vunpack.c.l.b16 %v591
        %v1888 = vunpack.c.h.b16 %v591
        %v1889 = vunpack.c.l.b16 %v592
        %v1890 = vunpack.c.h.b16 %v592
        %v1891 = vunpack.c.l.b16 %v593
        %v1892 = vunpack.c.h.b16 %v593
        %v1893 = vunpack.c.l.b16 %v594
        %v1894 = vunpack.c.h.b16 %v594
        %v1895 = vunpack.c.l.b16 %v595
        %v1896 = vunpack.c.h.b16 %v595
        %v1897 = vunpack.c.l.b16 %v596
        %v1898 = vunpack.c.h.b16 %v596
        %v1899 = vunpack.c.l.b16 %v597
        %v1900 = vunpack.c.h.b16 %v597
        %v1901 = vunpack.c.l.b16 %v598
        %v1902 = vunpack.c.h.b16 %v598
        %v1903 = vunpack.c.l.b16 %v599
        %v1904 = vunpack.c.h.b16 %v599
        %v1905 = vunpack.c.l.b16 %v600
        %v1906 = vunpack.c.h.b16 %v600
        %v1907 = vunpack.c.l.b16 %v601
        %v1908 = vunpack.c.h.b16 %v601
        %v1909 = vunpack.c.l.b16 %v602
        %v1910 = vunpack.c.h.b16 %v602
        %v1911 = vunpack.c.l.b16 %v603
        %v1912 = vunpack.c.h.b16 %v603
        %v1913 = vunpack.c.l.b16 %v604
        %v1914 = vunpack.c.h.b16 %v604
        %v1915 = vunpack.c.l.b16 %v605
        %v1916 = vunpack.c.h.b16 %v605
        %v1917 = vunpack.c.l.b16 %v606
        %v1918 = vunpack.c.h.b16 %v606
        %v1919 = vunpack.c.l.b16 %v607
        %v1920 = vunpack.c.h.b16 %v607
        %v1921 = vunpack.c.l.b16 %v608
        %v1922 = vunpack.c.h.b16 %v608
        %v1923 = vunpack.c.l.b16 %v609
        %v1924 = vunpack.c.h.b16 %v609
        %v1925 = vunpack.c.l.b16 %v610
        %v1926 = vunpack.c.h.b16 %v610
        %v1927 = vunpack.c.l.b16 %v611
        %v1928 = vunpack.c.h.b16 %v611
        %v1929 = vunpack.c.l.b16 %v612
        %v1930 = vunpack.c.h.b16 %v612
        %v1931 = vunpack.c.l.b16 %v613
        %v1932 = vunpack.c.h.b16 %v613
        %v1933 = vunpack.c.l.b16 %v614
        %v1934 = vunpack.c.h.b16 %v614
        %v1935 = vunpack.c.l.b16 %v615
        %v1936 = vunpack.c.h.b16 %v615
        %v1937 = vunpack.c.l.b16 %v616
        %v1938 = vunpack.c.h.b16 %v616
        %v1939 = vunpack.c.l.b16 %v617
        %v1940 = vunpack.c.h.b16 %v617
        %v1941 = vunpack.c.l.b16 %v618
        %v1942 = vunpack.c.h.b16 %v618
        %v1943 = vunpack.c.l.b16 %v619
        %v1944 = vunpack.c.h.b16 %v619
        %v1945 = vunpack.c.l.b16 %v620
        %v1946 = vunpack.c.h.b16 %v620
        %v1947 = vunpack.c.l.b16 %v621
        %v1948 = vunpack.c.h.b16 %v621
        %v1949 = vunpack.c.l.b16 %v622
        %v1950 = vunpack.c.h.b16 %v622
        %v1951 = vunpack.c.l.b16 %v623
        %v1952 = vunpack.c.h.b16 %v623
        %v1953 = vunpack.c.l.b16 %v624
        %v1954 = vunpack.c.h.b16 %v624
        %v1955 = vunpack.c.l.b16 %v625
        %v1956 = vunpack.c.h.b16 %v625
        %v1957 = vunpack.c.l.b16 %v626
        %v1958 = vunpack.c.h.b16 %v626
        %v1959 = vunpack.c.l.b16 %v627
        %v1960 = vunpack.c.h.b16 %v627
        %v1961 = vunpack.c.l.b16 %v628
        %v1962 = vunpack.c.h.b16 %v628
        %v1963 = vunpack.c.l.b16 %v629
        %v1964 = vunpack.c.h.b16 %v629
        %v1965 = vunpack.c.l.b16 %v630
        %v1966 = vunpack.c.h.b16 %v630
        %v1967 = vunpack.c.l.b16 %v631
        %v1968 = vunpack.c.h.b16 %v631
        %v1969 = vunpack.c.l.b16 %v632
        %v1970 = vunpack.c.h.b16 %v632
        %v1971 = vunpack.c.l.b16 %v633
        %v1972 = vunpack.c.h.b16 %v633
        %v1973 = vunpack.c.l.b16 %v634
        %v1974 = vunpack.c.h.b16 %v634
        %v1975 = vunpack.c.l.b16 %v635
        %v1976 = vunpack.c.h.b16 %v635
        %v1977 = vunpack.c.l.b16 %v636
        %v1978 = vunpack.c.h.b16 %v636
        %v1979 = vunpack.c.l.b16 %v637
        %v1980 = vunpack.c.h.b16 %v637
        %v1981 = vunpack.c.l.b16 %v638
        %v1982 = vunpack.c.h.b16 %v638
        %v1983 = vunpack.c.l.b16 %v639
        %v1984 = vunpack.c.h.b16 %v639
        %v1985 = vunpack.c.l.b16 %v640
        %v1986 = vunpack.c.h.b16 %v640
        %v1987 = vunpack.c.l.b16 %v641
        %v1988 = vunpack.c.h.b16 %v641
        %v1989 = vunpack.c.l.b16 %v642
        %v1990 = vunpack.c.h.b16 %v642
        %v1991 = vunpack.c.l.b16 %v643
        %v1992 = vunpack.c.h.b16 %v643
        %v1993 = vunpack.c.l.b16 %v644
        %v1994 = vunpack.c.h.b16 %v644
        %v1995 = vunpack.c.l.b16 %v645
        %v1996 = vunpack.c.h.b16 %v645
        %v1997 = vunpack.c.l.b16 %v646
        %v1998 = vunpack.c.h.b16 %v646
        %v1999 = vunpack.c.l.b16 %v647
        %v2000 = vunpack.c.h.b16 %v647
        %v2001 = vunpack.c.l.b16 %v648
        %v2002 = vunpack.c.h.b16 %v648
        %v2003 = vunpack.c.l.b16 %v649
        %v2004 = vunpack.c.h.b16 %v649
        %v2005 = vunpack.c.l.b16 %v650
        %v2006 = vunpack.c.h.b16 %v650
        %v2007 = vunpack.c.l.b16 %v651
        %v2008 = vunpack.c.h.b16 %v651
        %v2009 = vunpack.c.l.b16 %v652
        %v2010 = vunpack.c.h.b16 %v652
        %v2011 = vunpack.c.l.b16 %v653
        %v2012 = vunpack.c.h.b16 %v653
        %v2013 = vunpack.c.l.b16 %v654
        %v2014 = vunpack.c.h.b16 %v654
        %v2015 = vunpack.c.l.b16 %v655
        %v2016 = vunpack.c.h.b16 %v655
        %v2017 = vunpack.c.l.b16 %v656
        %v2018 = vunpack.c.h.b16 %v656
        %v2019 = vunpack.c.l.b16 %v657
        %v2020 = vunpack.c.h.b16 %v657
        %v2021 = vunpack.c.l.b16 %v658
        %v2022 = vunpack.c.h.b16 %v658
        %v2023 = vunpack.c.l.b16 %v659
        %v2024 = vunpack.c.h.b16 %v659
        %v2025 = vunpack.c.l.b16 %v660
        %v2026 = vunpack.c.h.b16 %v660
        %v2027 = vunpack.c.l.b16 %v661
        %v2028 = vunpack.c.h.b16 %v661
        %v2029 = vunpack.c.l.b16 %v662
        %v2030 = vunpack.c.h.b16 %v662
        %v2031 = vunpack.c.l.b16 %v663
        %v2032 = vunpack.c.h.b16 %v663
        %v2033 = vunpack.c.l.b16 %v664
        %v2034 = vunpack.c.h.b16 %v664
        %v2035 = vunpack.c.l.b16 %v665
        %v2036 = vunpack.c.h.b16 %v665
        %v2037 = vunpack.c.l.b16 %v666
        %v2038 = vunpack.c.h.b16 %v666
        %v2039 = vunpack.c.l.b16 %v667
        %v2040 = vunpack.c.h.b16 %v667
        %v2041 = vunpack.c.l.b16 %v668
        %v2042 = vunpack.c.h.b16 %v668
        %v2043 = vunpack.c.l.b16 %v669
        %v2044 = vunpack.c.h.b16 %v669
        %v2045 = vunpack.c.l.b16 %v670
        %v2046 = vunpack.c.h.b16 %v670
        %v2047 = vunpack.c.l.b16 %v671
        %v2048 = vunpack.c.h.b16 %v671
        %v2049 = vunpack.c.l.b16 %v672
        %v2050 = vunpack.c.h.b16 %v672
        %v2051 = vunpack.c.l.b16 %v673
        %v2052 = vunpack.c.h.b16 %v673
        %v2053 = vunpack.c.l.b16 %v674
        %v2054 = vunpack.c.h.b16 %v674
        %v2055 = vunpack.c.l.b16 %v675
        %v2056 = vunpack.c.h.b16 %v675
        %v2057 = vunpack.c.l.b16 %v676
        %v2058 = vunpack.c.h.b16 %v676
        %v2059 = vunpack.c.l.b16 %v677
        %v2060 = vunpack.c.h.b16 %v677
        %v2061 = vunpack.c.l.b16 %v678
        %v2062 = vunpack.c.h.b16 %v678
        %v2063 = vunpack.c.l.b16 %v679
        %v2064 = vunpack.c.h.b16 %v679
        %v2065 = vunpack.c.l.b16 %v680
        %v2066 = vunpack.c.h.b16 %v680
        %v2067 = vunpack.c.l.b16 %v681
        %v2068 = vunpack.c.h.b16 %v681
        %v2069 = vunpack.c.l.b16 %v682
        %v2070 = vunpack.c.h.b16 %v682
        %v2071 = vunpack.c.l.b16 %v683
        %v2072 = vunpack.c.h.b16 %v683
        %v2073 = vunpack.c.l.b16 %v684
        %v2074 = vunpack.c.h.b16 %v684
        %v2075 = vunpack.c.l.b16 %v685
        %v2076 = vunpack.c.h.b16 %v685
        %v2077 = vunpack.c.l.b16 %v686
        %v2078 = vunpack.c.h.b16 %v686
        %v2079 = vunpack.c.l.b16 %v687
        %v2080 = vunpack.c.h.b16 %v687
        %v2081 = vunpack.c.l.b16 %v688
        %v2082 = vunpack.c.h.b16 %v688
        %v2083 = vunpack.c.l.b16 %v689
        %v2084 = vunpack.c.h.b16 %v689
        %v2085 = vunpack.c.l.b16 %v690
        %v2086 = vunpack.c.h.b16 %v690
        %v2087 = vunpack.c.l.b16 %v691
        %v2088 = vunpack.c.h.b16 %v691
        %v2089 = vunpack.c.l.b16 %v692
        %v2090 = vunpack.c.h.b16 %v692
        %v2091 = vunpack.c.l.b16 %v693
        %v2092 = vunpack.c.h.b16 %v693
        %v2093 = vunpack.c.l.b16 %v694
        %v2094 = vunpack.c.h.b16 %v694
        %v2095 = vunpack.c.l.b16 %v695
        %v2096 = vunpack.c.h.b16 %v695
        %v2097 = vunpack.c.l.b16 %v696
        %v2098 = vunpack.c.h.b16 %v696
        %v2099 = vunpack.c.l.b16 %v697
        %v2100 = vunpack.c.h.b16 %v697
        %v2101 = vunpack.c.l.b16 %v698
        %v2102 = vunpack.c.h.b16 %v698
        %v2103 = vunpack.c.l.b16 %v699
        %v2104 = vunpack.c.h.b16 %v699
        %v2105 = vunpack.c.l.b16 %v700
        %v2106 = vunpack.c.h.b16 %v700
        %v2107 = vunpack.c.l.b16 %v701
        %v2108 = vunpack.c.h.b16 %v701
        %v2109 = vunpack.c.l.b16 %v702
        %v2110 = vunpack.c.h.b16 %v702
        %v2111 = vunpack.c.l.b16 %v703
        %v2112 = vunpack.c.h.b16 %v703
        %v2113 = vunpack.c.l.b16 %v704
        %v2114 = vunpack.c.h.b16 %v704
        %v2115 = vunpack.c.l.b16 %v705
        %v2116 = vunpack.c.h.b16 %v705
        %v2117 = vunpack.c.l.b16 %v706
        %v2118 = vunpack.c.h.b16 %v706
        %v2119 = vunpack.c.l.b16 %v707
        %v2120 = vunpack.c.h.b16 %v707
        %v2121 = vunpack.c.l.b16 %v708
        %v2122 = vunpack.c.h.b16 %v708
        %v2123 = vunpack.c.l.b16 %v709
        %v2124 = vunpack.c.h.b16 %v709
        %v2125 = vunpack.c.l.b16 %v710
        %v2126 = vunpack.c.h.b16 %v710
        %v2127 = vunpack.c.l.b16 %v711
        %v2128 = vunpack.c.h.b16 %v711
        %v2129 = vunpack.c.l.b16 %v712
        %v2130 = vunpack.c.h.b16 %v712
        %v2131 = vunpack.c.l.b16 %v713
        %v2132 = vunpack.c.h.b16 %v713
        %v2133 = vunpack.c.l.b16 %v714
        %v2134 = vunpack.c.h.b16 %v714
        %v2135 = vunpack.c.l.b16 %v715
        %v2136 = vunpack.c.h.b16 %v715
        %v2137 = vunpack.c.l.b16 %v716
        %v2138 = vunpack.c.h.b16 %v716
        %v2139 = vunpack.c.l.b16 %v717
        %v2140 = vunpack.c.h.b16 %v717
        %v2141 = vunpack.c.l.b16 %v718
        %v2142 = vunpack.c.h.b16 %v718
        %v2143 = vunpack.c.l.b16 %v719
        %v2144 = vunpack.c.h.b16 %v719
        %v2145 = vunpack.c.l.b16 %v720
        %v2146 = vunpack.c.h.b16 %v720
        %v2147 = vunpack.c.l.b16 %v721
        %v2148 = vunpack.c.h.b16 %v721
        %v2149 = vunpack.c.l.b16 %v722
        %v2150 = vunpack.c.h.b16 %v722
        %v2151 = vunpack.c.l.b16 %v723
        %v2152 = vunpack.c.h.b16 %v723
        %v2153 = vunpack.c.l.b16 %v724
        %v2154 = vunpack.c.h.b16 %v724
        %v2155 = vunpack.c.l.b16 %v725
        %v2156 = vunpack.c.h.b16 %v725
        %v2157 = vunpack.c.l.b16 %v726
        %v2158 = vunpack.c.h.b16 %v726
        %v2159 = vunpack.c.l.b16 %v727
        %v2160 = vunpack.c.h.b16 %v727
        %v2161 = vunpack.c.l.b16 %v728
        %v2162 = vunpack.c.h.b16 %v728
        %v2163 = vunpack.c.l.b16 %v729
        %v2164 = vunpack.c.h.b16 %v729
        %v2165 = vunpack.c.l.b16 %v730
        %v2166 = vunpack.c.h.b16 %v730
        %v2167 = vunpack.c.l.b16 %v731
        %v2168 = vunpack.c.h.b16 %v731
        %v2169 = vunpack.c.l.b16 %v732
        %v2170 = vunpack.c.h.b16 %v732
        %v2171 = vunpack.c.l.b16 %v733
        %v2172 = vunpack.c.h.b16 %v733
        %v2173 = vunpack.c.l.b16 %v734
        %v2174 = vunpack.c.h.b16 %v734
        %v2175 = vunpack.c.l.b16 %v735
        %v2176 = vunpack.c.h.b16 %v735
        %v2177 = vunpack.c.l.b16 %v736
        %v2178 = vunpack.c.h.b16 %v736
        %v2179 = vunpack.c.l.b16 %v737
        %v2180 = vunpack.c.h.b16 %v737
        %v2181 = vunpack.c.l.b16 %v738
        %v2182 = vunpack.c.h.b16 %v738
        %v2183 = vunpack.c.l.b16 %v739
        %v2184 = vunpack.c.h.b16 %v739
        %v2185 = vunpack.c.l.b16 %v740
        %v2186 = vunpack.c.h.b16 %v740
        %v2187 = vunpack.c.l.b16 %v741
        %v2188 = vunpack.c.h.b16 %v741
        %v2189 = vunpack.c.l.b16 %v742
        %v2190 = vunpack.c.h.b16 %v742
        %v2191 = vunpack.c.l.b16 %v743
        %v2192 = vunpack.c.h.b16 %v743
        %v2193 = vunpack.c.l.b16 %v744
        %v2194 = vunpack.c.h.b16 %v744
        %v2195 = vunpack.c.l.b16 %v745
        %v2196 = vunpack.c.h.b16 %v745
        %v2197 = vunpack.c.l.b16 %v746
        %v2198 = vunpack.c.h.b16 %v746
        %v2199 = vunpack.c.l.b16 %v747
        %v2200 = vunpack.c.h.b16 %v747
        %v2201 = vunpack.c.l.b16 %v748
        %v2202 = vunpack.c.h.b16 %v748
        %v2203 = vunpack.c.l.b16 %v749
        %v2204 = vunpack.c.h.b16 %v749
        %v2205 = vunpack.c.l.b16 %v750
        %v2206 = vunpack.c.h.b16 %v750
        %v2207 = vunpack.c.l.b16 %v751
        %v2208 = vunpack.c.h.b16 %v751
        %v2209 = vunpack.c.l.b16 %v752
        %v2210 = vunpack.c.h.b16 %v752
        %v2211 = vunpack.c.l.b16 %v753
        %v2212 = vunpack.c.h.b16 %v753
        %v2213 = vunpack.c.l.b16 %v754
        %v2214 = vunpack.c.h.b16 %v754
        %v2215 = vunpack.c.l.b16 %v755
        %v2216 = vunpack.c.h.b16 %v755
        %v2217 = vunpack.c.l.b16 %v756
        %v2218 = vunpack.c.h.b16 %v756
        %v2219 = vunpack.c.l.b16 %v757
        %v2220 = vunpack.c.h.b16 %v757
        %v2221 = vunpack.c.l.b16 %v758
        %v2222 = vunpack.c.h.b16 %v758
        %v2223 = vunpack.c.l.b16 %v759
        %v2224 = vunpack.c.h.b16 %v759
        %v2225 = vunpack.c.l.b16 %v760
        %v2226 = vunpack.c.h.b16 %v760
        %v2227 = vunpack.c.l.b16 %v761
        %v2228 = vunpack.c.h.b16 %v761
        %v2229 = vunpack.c.l.b16 %v762
        %v2230 = vunpack.c.h.b16 %v762
        %v2231 = vunpack.c.l.b16 %v763
        %v2232 = vunpack.c.h.b16 %v763
        %v2233 = vunpack.c.l.b16 %v764
        %v2234 = vunpack.c.h.b16 %v764
        %v2235 = vunpack.c.l.b16 %v765
        %v2236 = vunpack.c.h.b16 %v765
        %v2237 = vunpack.c.l.b16 %v766
        %v2238 = vunpack.c.h.b16 %v766
        %v2239 = vunpack.c.l.b16 %v767
        %v2240 = vunpack.c.h.b16 %v767
        %v2241 = vunpack.c.l.b16 %v768
        %v2242 = vunpack.c.h.b16 %v768
        %v2243 = vunpack.c.l.b16 %v769
        %v2244 = vunpack.c.h.b16 %v769
        %v2245 = vunpack.c.l.b16 %v770
        %v2246 = vunpack.c.h.b16 %v770
        %v2247 = vunpack.c.l.b16 %v771
        %v2248 = vunpack.c.h.b16 %v771
        %v2249 = vunpack.c.l.b16 %v772
        %v2250 = vunpack.c.h.b16 %v772
        %v2251 = vunpack.c.l.b16 %v773
        %v2252 = vunpack.c.h.b16 %v773
        %v2253 = vunpack.c.l.b16 %v774
        %v2254 = vunpack.c.h.b16 %v774
        %v2255 = vunpack.c.l.b16 %v775
        %v2256 = vunpack.c.h.b16 %v775
        %v2257 = vunpack.c.l.b16 %v776
        %v2258 = vunpack.c.h.b16 %v776
        %v2259 = vunpack.c.l.b16 %v777
        %v2260 = vunpack.c.h.b16 %v777
        %v2261 = vunpack.c.l.b16 %v778
        %v2262 = vunpack.c.h.b16 %v778
        %v2263 = vunpack.c.l.b16 %v779
        %v2264 = vunpack.c.h.b16 %v779
        %v2265 = vunpack.c.l.b16 %v780
        %v2266 = vunpack.c.h.b16 %v780
        %v2267 = vunpack.c.l.b16 %v781
        %v2268 = vunpack.c.h.b16 %v781
        %v2269 = vunpack.c.l.b16 %v782
        %v2270 = vunpack.c.h.b16 %v782
        %v2271 = vunpack.c.l.b16 %v783
        %v2272 = vunpack.c.h.b16 %v783
        %v2273 = vunpack.c.l.b16 %v784
        %v2274 = vunpack.c.h.b16 %v784
        %v2275 = vunpack.c.l.b16 %v785
        %v2276 = vunpack.c.h.b16 %v785
        %v2277 = vunpack.c.l.b16 %v786
        %v2278 = vunpack.c.h.b16 %v786
        %v2279 = vunpack.c.l.b16 %v787
        %v2280 = vunpack.c.h.b16 %v787
        %v2281 = vunpack.c.l.b16 %v788
        %v2282 = vunpack.c.h.b16 %v788
        %v2283 = vunpack.c.l.b16 %v789
        %v2284 = vunpack.c.h.b16 %v789
        %v2285 = vunpack.c.l.b16 %v790
        %v2286 = vunpack.c.h.b16 %v790
        %v2287 = vunpack.c.l.b16 %v791
        %v2288 = vunpack.c.h.b16 %v791
        %v2289 = vunpack.c.l.b16 %v792
        %v2290 = vunpack.c.h.b16 %v792
        %v2291 = vunpack.c.l.b16 %v793
        %v2292 = vunpack.c.h.b16 %v793
        %v2293 = vunpack.c.l.b16 %v794
        %v2294 = vunpack.c.h.b16 %v794
        %v2295 = vunpack.c.l.b16 %v795
        %v2296 = vunpack.c.h.b16 %v795
        %v2297 = vunpack.c.l.b16 %v796
        %v2298 = vunpack.c.h.b16 %v796
        %v2299 = vunpack.c.l.b16 %v797
        %v2300 = vunpack.c.h.b16 %v797
        %v2301 = vunpack.c.l.b16 %v798
        %v2302 = vunpack.c.h.b16 %v798
        %v2303 = vunpack.c.l.b16 %v799
        %v2304 = vunpack.c.h.b16 %v799
        %v2305 = vunpack.c.l.b16 %v800
        %v2306 = vunpack.c.h.b16 %v800
        %v2307 = vunpack.c.l.b16 %v801
        %v2308 = vunpack.c.h.b16 %v801
        %v2309 = vunpack.c.l.b16 %v802
        %v2310 = vunpack.c.h.b16 %v802
        %v2311 = vunpack.c.l.b16 %v803
        %v2312 = vunpack.c.h.b16 %v803
        %v2313 = vunpack.c.l.b16 %v804
        %v2314 = vunpack.c.h.b16 %v804
        %v2315 = vunpack.c.l.b16 %v805
        %v2316 = vunpack.c.h.b16 %v805
        %v2317 = vunpack.c.l.b16 %v806
        %v2318 = vunpack.c.h.b16 %v806
        %v2319 = vunpack.c.l.b16 %v807
        %v2320 = vunpack.c.h.b16 %v807
        %v2321 = vunpack.c.l.b16 %v808
        %v2322 = vunpack.c.h.b16 %v808
        %v2323 = vunpack.c.l.b16 %v809
        %v2324 = vunpack.c.h.b16 %v809
        %v2325 = vunpack.c.l.b16 %v810
        %v2326 = vunpack.c.h.b16 %v810
        %v2327 = vunpack.c.l.b16 %v811
        %v2328 = vunpack.c.h.b16 %v811
        %v2329 = vunpack.c.l.b16 %v812
        %v2330 = vunpack.c.h.b16 %v812
        %v2331 = vunpack.c.l.b16 %v813
        %v2332 = vunpack.c.h.b16 %v813
        %v2333 = vunpack.c.l.b16 %v814
        %v2334 = vunpack.c.h.b16 %v814
        %v2335 = vunpack.c.l.b16 %v815
        %v2336 = vunpack.c.h.b16 %v815
        %v2337 = vunpack.c.l.b16 %v816
        %v2338 = vunpack.c.h.b16 %v816
        %v2339 = vunpack.c.l.b16 %v817
        %v2340 = vunpack.c.h.b16 %v817
        %v2341 = vunpack.c.l.b16 %v818
        %v2342 = vunpack.c.h.b16 %v818
        %v2343 = vunpack.c.l.b16 %v819
        %v2344 = vunpack.c.h.b16 %v819
        %v2345 = vunpack.c.l.b16 %v820
        %v2346 = vunpack.c.h.b16 %v820
        %v2347 = vunpack.c.l.b16 %v821
        %v2348 = vunpack.c.h.b16 %v821
        %v2349 = vunpack.c.l.b16 %v822
        %v2350 = vunpack.c.h.b16 %v822
        %v2351 = vunpack.c.l.b16 %v823
        %v2352 = vunpack.c.h.b16 %v823
        %v2353 = vunpack.c.l.b16 %v824
        %v2354 = vunpack.c.h.b16 %v824
        %v2355 = vunpack.c.l.b16 %v825
        %v2356 = vunpack.c.h.b16 %v825
        %v2357 = vunpack.c.l.b16 %v826
        %v2358 = vunpack.c.h.b16 %v826
        %v2359 = vunpack.c.l.b16 %v827
        %v2360 = vunpack.c.h.b16 %v827
        %v2361 = vunpack.c.l.b16 %v828
        %v2362 = vunpack.c.h.b16 %v828
        %v2363 = vunpack.c.l.b16 %v829
        %v2364 = vunpack.c.h.b16 %v829
        %v2365 = vunpack.c.l.b16 %v830
        %v2366 = vunpack.c.h.b16 %v830
        %v2367 = vunpack.c.l.b16 %v831
        %v2368 = vunpack.c.h.b16 %v831
        %v2369 = vunpack.c.l.b16 %v832
        %v2370 = vunpack.c.h.b16 %v832
        %v2371 = vunpack.c.l.b16 %v833
        %v2372 = vunpack.c.h.b16 %v833
        %v2373 = vunpack.c.l.b16 %v834
        %v2374 = vunpack.c.h.b16 %v834
        %v2375 = vunpack.c.l.b16 %v835
        %v2376 = vunpack.c.h.b16 %v835
        %v2377 = vunpack.c.l.b16 %v836
        %v2378 = vunpack.c.h.b16 %v836
        %v2379 = vunpack.c.l.b16 %v837
        %v2380 = vunpack.c.h.b16 %v837
        %v2381 = vunpack.c.l.b16 %v838
        %v2382 = vunpack.c.h.b16 %v838
        %v2383 = vunpack.c.l.b16 %v839
        %v2384 = vunpack.c.h.b16 %v839
        %v2385 = vunpack.c.l.b16 %v840
        %v2386 = vunpack.c.h.b16 %v840
        %v2387 = vunpack.c.l.b16 %v841
        %v2388 = vunpack.c.h.b16 %v841
        %v2389 = vunpack.c.l.b16 %v842
        %v2390 = vunpack.c.h.b16 %v842
        %v2391 = vunpack.c.l.b16 %v843
        %v2392 = vunpack.c.h.b16 %v843
        %v2393 = vunpack.c.l.b16 %v844
        %v2394 = vunpack.c.h.b16 %v844
        %v2395 = vunpack.c.l.b16 %v845
        %v2396 = vunpack.c.h.b16 %v845
        %v2397 = vunpack.c.l.b16 %v846
        %v2398 = vunpack.c.h.b16 %v846
        %v2399 = vunpack.c.l.b16 %v847
        %v2400 = vunpack.c.h.b16 %v847
        %v2401 = vunpack.c.l.b16 %v848
        %v2402 = vunpack.c.h.b16 %v848
        %v2403 = vunpack.c.l.b16 %v849
        %v2404 = vunpack.c.h.b16 %v849
        %v2405 = vunpack.c.l.b16 %v850
        %v2406 = vunpack.c.h.b16 %v850
        %v2407 = vunpack.c.l.b16 %v851
        %v2408 = vunpack.c.h.b16 %v851
        %v2409 = vunpack.c.l.b16 %v852
        %v2410 = vunpack.c.h.b16 %v852
        %v2411 = vunpack.c.l.b16 %v853
        %v2412 = vunpack.c.h.b16 %v853
        %v2413 = vunpack.c.l.b16 %v854
        %v2414 = vunpack.c.h.b16 %v854
        %v2415 = vunpack.c.l.b16 %v855
        %v2416 = vunpack.c.h.b16 %v855
        %v2417 = vunpack.c.l.b16 %v856
        %v2418 = vunpack.c.h.b16 %v856
        %v2419 = vunpack.c.l.b16 %v857
        %v2420 = vunpack.c.h.b16 %v857
        %v2421 = vunpack.c.l.b16 %v858
        %v2422 = vunpack.c.h.b16 %v858
        %v2423 = vunpack.c.l.b16 %v859
        %v2424 = vunpack.c.h.b16 %v859
        %v2425 = vunpack.c.l.b16 %v860
        %v2426 = vunpack.c.h.b16 %v860
        %v2427 = vunpack.c.l.b16 %v861
        %v2428 = vunpack.c.h.b16 %v861
        %v2429 = vunpack.c.l.b16 %v862
        %v2430 = vunpack.c.h.b16 %v862
        %v2431 = vunpack.c.l.b16 %v863
        %v2432 = vunpack.c.h.b16 %v863
        %v2433 = vunpack.c.l.b16 %v864
        %v2434 = vunpack.c.h.b16 %v864
        %v2435 = vunpack.c.l.b16 %v865
        %v2436 = vunpack.c.h.b16 %v865
        %v2437 = vunpack.c.l.b16 %v866
        %v2438 = vunpack.c.h.b16 %v866
        %v2439 = vunpack.c.l.b16 %v867
        %v2440 = vunpack.c.h.b16 %v867
        %v2441 = vunpack.c.l.b16 %v868
        %v2442 = vunpack.c.h.b16 %v868
        %v2443 = vunpack.c.l.b16 %v869
        %v2444 = vunpack.c.h.b16 %v869
        %v2445 = vunpack.c.l.b16 %v870
        %v2446 = vunpack.c.h.b16 %v870
        %v2447 = vunpack.c.l.b16 %v871
        %v2448 = vunpack.c.h.b16 %v871
        %v2449 = vunpack.c.l.b16 %v872
        %v2450 = vunpack.c.h.b16 %v872
        %v2451 = vunpack.c.l.b16 %v873
        %v2452 = vunpack.c.h.b16 %v873
        %v2453 = vunpack.c.l.b16 %v874
        %v2454 = vunpack.c.h.b16 %v874
        %v2455 = vunpack.c.l.b16 %v875
        %v2456 = vunpack.c.h.b16 %v875
        %v2457 = vunpack.c.l.b16 %v876
        %v2458 = vunpack.c.h.b16 %v876
        %v2459 = vunpack.c.l.b16 %v877
        %v2460 = vunpack.c.h.b16 %v877
        %v2461 = vunpack.c.l.b16 %v878
        %v2462 = vunpack.c.h.b16 %v878
        %v2463 = vunpack.c.l.b16 %v879
        %v2464 = vunpack.c.h.b16 %v879
        %v2465 = vunpack.c.l.b16 %v880
        %v2466 = vunpack.c.h.b16 %v880
        %v2467 = vunpack.c.l.b16 %v881
        %v2468 = vunpack.c.h.b16 %v881
        %v2469 = vunpack.c.l.b16 %v882
        %v2470 = vunpack.c.h.b16 %v882
        %v2471 = vunpack.c.l.b16 %v883
        %v2472 = vunpack.c.h.b16 %v883
        %v2473 = vunpack.c.l.b16 %v884
        %v2474 = vunpack.c.h.b16 %v884
        %v2475 = vunpack.c.l.b16 %v885
        %v2476 = vunpack.c.h.b16 %v885
        %v2477 = vunpack.c.l.b16 %v886
        %v2478 = vunpack.c.h.b16 %v886
        %v2479 = vunpack.c.l.b16 %v887
        %v2480 = vunpack.c.h.b16 %v887
        %v2481 = vunpack.c.l.b16 %v888
        %v2482 = vunpack.c.h.b16 %v888
        %v2483 = vunpack.c.l.b16 %v889
        %v2484 = vunpack.c.h.b16 %v889
        %v2485 = vunpack.c.l.b16 %v890
        %v2486 = vunpack.c.h.b16 %v890
        %v2487 = vunpack.c.l.b16 %v891
        %v2488 = vunpack.c.h.b16 %v891
        %v2489 = vunpack.c.l.b16 %v892
        %v2490 = vunpack.c.h.b16 %v892
        %v2491 = vunpack.c.l.b16 %v893
        %v2492 = vunpack.c.h.b16 %v893
        %v2493 = vunpack.c.l.b16 %v894
        %v2494 = vunpack.c.h.b16 %v894
        %v2495 = vunpack.c.l.b16 %v895
        %v2496 = vunpack.c.h.b16 %v895
        %v2497 = vunpack.c.l.b16 %v896
        %v2498 = vunpack.c.h.b16 %v896
        %v2499 = vunpack.c.l.b16 %v897
        %v2500 = vunpack.c.h.b16 %v897
        %v2501 = vunpack.c.l.b16 %v898
        %v2502 = vunpack.c.h.b16 %v898
        %v2503 = vunpack.c.l.b16 %v899
        %v2504 = vunpack.c.h.b16 %v899
        %v2505 = vunpack.c.l.b16 %v900
        %v2506 = vunpack.c.h.b16 %v900
        %v2507 = vunpack.c.l.b16 %v901
        %v2508 = vunpack.c.h.b16 %v901
        %v2509 = vunpack.c.l.b16 %v902
        %v2510 = vunpack.c.h.b16 %v902
        %v2511 = vunpack.c.l.b16 %v903
        %v2512 = vunpack.c.h.b16 %v903
        %v2513 = vunpack.c.l.b16 %v904
        %v2514 = vunpack.c.h.b16 %v904
        %v2515 = vunpack.c.l.b16 %v905
        %v2516 = vunpack.c.h.b16 %v905
        %v2517 = vunpack.c.l.b16 %v906
        %v2518 = vunpack.c.h.b16 %v906
        %v2519 = vunpack.c.l.b16 %v907
        %v2520 = vunpack.c.h.b16 %v907
        %v2521 = vunpack.c.l.b16 %v908
        %v2522 = vunpack.c.h.b16 %v908
        %v2523 = vunpack.c.l.b16 %v909
        %v2524 = vunpack.c.h.b16 %v909
        %v2525 = vunpack.c.l.b16 %v910
        %v2526 = vunpack.c.h.b16 %v910
        %v2527 = vunpack.c.l.b16 %v911
        %v2528 = vunpack.c.h.b16 %v911
        %v2529 = vunpack.c.l.b16 %v912
        %v2530 = vunpack.c.h.b16 %v912
        %v2531 = vunpack.c.l.b16 %v913
        %v2532 = vunpack.c.h.b16 %v913
        %v2533 = vunpack.c.l.b16 %v914
        %v2534 = vunpack.c.h.b16 %v914
        %v2535 = vpack.c.b16 %v1527, %v1511
        %v2536 = vpack.c.b16 %v1528, %v1512
        %v2537 = vpack.c.b16 %v1529, %v1513
        %v2538 = vpack.c.b16 %v1530, %v1514
        %v2539 = vpack.c.b16 %v1531, %v1515
        %v2540 = vpack.c.b16 %v1532, %v1516
        %v2541 = vpack.c.b16 %v1533, %v1517
        %v2542 = vpack.c.b16 %v1534, %v1518
        %v2543 = vpack.c.b16 %v1535, %v1519
        %v2544 = vpack.c.b16 %v1536, %v1520
        %v2545 = vpack.c.b16 %v1537, %v1521
        %v2546 = vpack.c.b16 %v1538, %v1522
        %v2547 = vpack.c.b16 %v1539, %v1523
        %v2548 = vpack.c.b16 %v1540, %v1524
        %v2549 = vpack.c.b16 %v1541, %v1525
        %v2550 = vpack.c.b16 %v1542, %v1526
        %v2551 = vpack.c.b16 %v1559, %v1543
        %v2552 = vpack.c.b16 %v1560, %v1544
        %v2553 = vpack.c.b16 %v1561, %v1545
        %v2554 = vpack.c.b16 %v1562, %v1546
        %v2555 = vpack.c.b16 %v1563, %v1547
        %v2556 = vpack.c.b16 %v1564, %v1548
        %v2557 = vpack.c.b16 %v1565, %v1549
        %v2558 = vpack.c.b16 %v1566, %v1550
        %v2559 = vpack.c.b16 %v1567, %v1551
        %v2560 = vpack.c.b16 %v1568, %v1552
        %v2561 = vpack.c.b16 %v1569, %v1553
        %v2562 = vpack.c.b16 %v1570, %v1554
        %v2563 = vpack.c.b16 %v1571, %v1555
        %v2564 = vpack.c.b16 %v1572, %v1556
        %v2565 = vpack.c.b16 %v1573, %v1557
        %v2566 = vpack.c.b16 %v1574, %v1558
        %v2567 = vpack.c.b16 %v1591, %v1575
        %v2568 = vpack.c.b16 %v1592, %v1576
        %v2569 = vpack.c.b16 %v1593, %v1577
        %v2570 = vpack.c.b16 %v1594, %v1578
        %v2571 = vpack.c.b16 %v1595, %v1579
        %v2572 = vpack.c.b16 %v1596, %v1580
        %v2573 = vpack.c.b16 %v1597, %v1581
        %v2574 = vpack.c.b16 %v1598, %v1582
        %v2575 = vpack.c.b16 %v1599, %v1583
        %v2576 = vpack.c.b16 %v1600, %v1584
        %v2577 = vpack.c.b16 %v1601, %v1585
        %v2578 = vpack.c.b16 %v1602, %v1586
        %v2579 = vpack.c.b16 %v1603, %v1587
        %v2580 = vpack.c.b16 %v1604, %v1588
        %v2581 = vpack.c.b16 %v1605, %v1589
        %v2582 = vpack.c.b16 %v1606, %v1590
        %v2583 = vpack.c.b16 %v1623, %v1607
        %v2584 = vpack.c.b16 %v1624, %v1608
        %v2585 = vpack.c.b16 %v1625, %v1609
        %v2586 = vpack.c.b16 %v1626, %v1610
        %v2587 = vpack.c.b16 %v1627, %v1611
        %v2588 = vpack.c.b16 %v1628, %v1612
        %v2589 = vpack.c.b16 %v1629, %v1613
        %v2590 = vpack.c.b16 %v1630, %v1614
        %v2591 = vpack.c.b16 %v1631, %v1615
        %v2592 = vpack.c.b16 %v1632, %v1616
        %v2593 = vpack.c.b16 %v1633, %v1617
        %v2594 = vpack.c.b16 %v1634, %v1618
        %v2595 = vpack.c.b16 %v1635, %v1619
        %v2596 = vpack.c.b16 %v1636, %v1620
        %v2597 = vpack.c.b16 %v1637, %v1621
        %v2598 = vpack.c.b16 %v1638, %v1622
        %v2599 = vpack.c.b16 %v1655, %v1639
        %v2600 = vpack.c.b16 %v1656, %v1640
        %v2601 = vpack.c.b16 %v1657, %v1641
        %v2602 = vpack.c.b16 %v1658, %v1642
        %v2603 = vpack.c.b16 %v1659, %v1643
        %v2604 = vpack.c.b16 %v1660, %v1644
        %v2605 = vpack.c.b16 %v1661, %v1645
        %v2606 = vpack.c.b16 %v1662, %v1646
        %v2607 = vpack.c.b16 %v1663, %v1647
        %v2608 = vpack.c.b16 %v1664, %v1648
        %v2609 = vpack.c.b16 %v1665, %v1649
        %v2610 = vpack.c.b16 %v1666, %v1650
        %v2611 = vpack.c.b16 %v1667, %v1651
        %v2612 = vpack.c.b16 %v1668, %v1652
        %v2613 = vpack.c.b16 %v1669, %v1653
        %v2614 = vpack.c.b16 %v1670, %v1654
        %v2615 = vpack.c.b16 %v1687, %v1671
        %v2616 = vpack.c.b16 %v1688, %v1672
        %v2617 = vpack.c.b16 %v1689, %v1673
        %v2618 = vpack.c.b16 %v1690, %v1674
        %v2619 = vpack.c.b16 %v1691, %v1675
        %v2620 = vpack.c.b16 %v1692, %v1676
        %v2621 = vpack.c.b16 %v1693, %v1677
        %v2622 = vpack.c.b16 %v1694, %v1678
        %v2623 = vpack.c.b16 %v1695, %v1679
        %v2624 = vpack.c.b16 %v1696, %v1680
        %v2625 = vpack.c.b16 %v1697, %v1681
        %v2626 = vpack.c.b16 %v1698, %v1682
        %v2627 = vpack.c.b16 %v1699, %v1683
        %v2628 = vpack.c.b16 %v1700, %v1684
        %v2629 = vpack.c.b16 %v1701, %v1685
        %v2630 = vpack.c.b16 %v1702, %v1686
        %v2631 = vpack.c.b16 %v1719, %v1703
        %v2632 = vpack.c.b16 %v1720, %v1704
        %v2633 = vpack.c.b16 %v1721, %v1705
        %v2634 = vpack.c.b16 %v1722, %v1706
        %v2635 = vpack.c.b16 %v1723, %v1707
        %v2636 = vpack.c.b16 %v1724, %v1708
        %v2637 = vpack.c.b16 %v1725, %v1709
        %v2638 = vpack.c.b16 %v1726, %v1710
        %v2639 = vpack.c.b16 %v1727, %v1711
        %v2640 = vpack.c.b16 %v1728, %v1712
        %v2641 = vpack.c.b16 %v1729, %v1713
        %v2642 = vpack.c.b16 %v1730, %v1714
        %v2643 = vpack.c.b16 %v1731, %v1715
        %v2644 = vpack.c.b16 %v1732, %v1716
        %v2645 = vpack.c.b16 %v1733, %v1717
        %v2646 = vpack.c.b16 %v1734, %v1718
        %v2647 = vpack.c.b16 %v1751, %v1735
        %v2648 = vpack.c.b16 %v1752, %v1736
        %v2649 = vpack.c.b16 %v1753, %v1737
        %v2650 = vpack.c.b16 %v1754, %v1738
        %v2651 = vpack.c.b16 %v1755, %v1739
        %v2652 = vpack.c.b16 %v1756, %v1740
        %v2653 = vpack.c.b16 %v1757, %v1741
        %v2654 = vpack.c.b16 %v1758, %v1742
        %v2655 = vpack.c.b16 %v1759, %v1743
        %v2656 = vpack.c.b16 %v1760, %v1744
        %v2657 = vpack.c.b16 %v1761, %v1745
        %v2658 = vpack.c.b16 %v1762, %v1746
        %v2659 = vpack.c.b16 %v1763, %v1747
        %v2660 = vpack.c.b16 %v1764, %v1748
        %v2661 = vpack.c.b16 %v1765, %v1749
        %v2662 = vpack.c.b16 %v1766, %v1750
        %v2663 = vpack.c.b16 %v1783, %v1767
        %v2664 = vpack.c.b16 %v1784, %v1768
        %v2665 = vpack.c.b16 %v1785, %v1769
        %v2666 = vpack.c.b16 %v1786, %v1770
        %v2667 = vpack.c.b16 %v1787, %v1771
        %v2668 = vpack.c.b16 %v1788, %v1772
        %v2669 = vpack.c.b16 %v1789, %v1773
        %v2670 = vpack.c.b16 %v1790, %v1774
        %v2671 = vpack.c.b16 %v1791, %v1775
        %v2672 = vpack.c.b16 %v1792, %v1776
        %v2673 = vpack.c.b16 %v1793, %v1777
        %v2674 = vpack.c.b16 %v1794, %v1778
        %v2675 = vpack.c.b16 %v1795, %v1779
        %v2676 = vpack.c.b16 %v1796, %v1780
        %v2677 = vpack.c.b16 %v1797, %v1781
        %v2678 = vpack.c.b16 %v1798, %v1782
        %v2679 = vpack.c.b16 %v1815, %v1799
        %v2680 = vpack.c.b16 %v1816, %v1800
        %v2681 = vpack.c.b16 %v1817, %v1801
        %v2682 = vpack.c.b16 %v1818, %v1802
        %v2683 = vpack.c.b16 %v1819, %v1803
        %v2684 = vpack.c.b16 %v1820, %v1804
        %v2685 = vpack.c.b16 %v1821, %v1805
        %v2686 = vpack.c.b16 %v1822, %v1806
        %v2687 = vpack.c.b16 %v1823, %v1807
        %v2688 = vpack.c.b16 %v1824, %v1808
        %v2689 = vpack.c.b16 %v1825, %v1809
        %v2690 = vpack.c.b16 %v1826, %v1810
        %v2691 = vpack.c.b16 %v1827, %v1811
        %v2692 = vpack.c.b16 %v1828, %v1812
        %v2693 = vpack.c.b16 %v1829, %v1813
        %v2694 = vpack.c.b16 %v1830, %v1814
        %v2695 = vpack.c.b16 %v1847, %v1831
        %v2696 = vpack.c.b16 %v1848, %v1832
        %v2697 = vpack.c.b16 %v1849, %v1833
        %v2698 = vpack.c.b16 %v1850, %v1834
        %v2699 = vpack.c.b16 %v1851, %v1835
        %v2700 = vpack.c.b16 %v1852, %v1836
        %v2701 = vpack.c.b16 %v1853, %v1837
        %v2702 = vpack.c.b16 %v1854, %v1838
        %v2703 = vpack.c.b16 %v1855, %v1839
        %v2704 = vpack.c.b16 %v1856, %v1840
        %v2705 = vpack.c.b16 %v1857, %v1841
        %v2706 = vpack.c.b16 %v1858, %v1842
        %v2707 = vpack.c.b16 %v1859, %v1843
        %v2708 = vpack.c.b16 %v1860, %v1844
        %v2709 = vpack.c.b16 %v1861, %v1845
        %v2710 = vpack.c.b16 %v1862, %v1846
        %v2711 = vpack.c.b16 %v1879, %v1863
        %v2712 = vpack.c.b16 %v1880, %v1864
        %v2713 = vpack.c.b16 %v1881, %v1865
        %v2714 = vpack.c.b16 %v1882, %v1866
        %v2715 = vpack.c.b16 %v1883, %v1867
        %v2716 = vpack.c.b16 %v1884, %v1868
        %v2717 = vpack.c.b16 %v1885, %v1869
        %v2718 = vpack.c.b16 %v1886, %v1870
        %v2719 = vpack.c.b16 %v1887, %v1871
        %v2720 = vpack.c.b16 %v1888, %v1872
        %v2721 = vpack.c.b16 %v1889, %v1873
        %v2722 = vpack.c.b16 %v1890, %v1874
        %v2723 = vpack.c.b16 %v1891, %v1875
        %v2724 = vpack.c.b16 %v1892, %v1876
        %v2725 = vpack.c.b16 %v1893, %v1877
        %v2726 = vpack.c.b16 %v1894, %v1878
        %v2727 = vpack.c.b16 %v1911, %v1895
        %v2728 = vpack.c.b16 %v1912, %v1896
        %v2729 = vpack.c.b16 %v1913, %v1897
        %v2730 = vpack.c.b16 %v1914, %v1898
        %v2731 = vpack.c.b16 %v1915, %v1899
        %v2732 = vpack.c.b16 %v1916, %v1900
        %v2733 = vpack.c.b16 %v1917, %v1901
        %v2734 = vpack.c.b16 %v1918, %v1902
        %v2735 = vpack.c.b16 %v1919, %v1903
        %v2736 = vpack.c.b16 %v1920, %v1904
        %v2737 = vpack.c.b16 %v1921, %v1905
        %v2738 = vpack.c.b16 %v1922, %v1906
        %v2739 = vpack.c.b16 %v1923, %v1907
        %v2740 = vpack.c.b16 %v1924, %v1908
        %v2741 = vpack.c.b16 %v1925, %v1909
        %v2742 = vpack.c.b16 %v1926, %v1910
        %v2743 = vpack.c.b16 %v1943, %v1927
        %v2744 = vpack.c.b16 %v1944, %v1928
        %v2745 = vpack.c.b16 %v1945, %v1929
        %v2746 = vpack.c.b16 %v1946, %v1930
        %v2747 = vpack.c.b16 %v1947, %v1931
        %v2748 = vpack.c.b16 %v1948, %v1932
        %v2749 = vpack.c.b16 %v1949, %v1933
        %v2750 = vpack.c.b16 %v1950, %v1934
        %v2751 = vpack.c.b16 %v1951, %v1935
        %v2752 = vpack.c.b16 %v1952, %v1936
        %v2753 = vpack.c.b16 %v1953, %v1937
        %v2754 = vpack.c.b16 %v1954, %v1938
        %v2755 = vpack.c.b16 %v1955, %v1939
        %v2756 = vpack.c.b16 %v1956, %v1940
        %v2757 = vpack.c.b16 %v1957, %v1941
        %v2758 = vpack.c.b16 %v1958, %v1942
        %v2759 = vpack.c.b16 %v1975, %v1959
        %v2760 = vpack.c.b16 %v1976, %v1960
        %v2761 = vpack.c.b16 %v1977, %v1961
        %v2762 = vpack.c.b16 %v1978, %v1962
        %v2763 = vpack.c.b16 %v1979, %v1963
        %v2764 = vpack.c.b16 %v1980, %v1964
        %v2765 = vpack.c.b16 %v1981, %v1965
        %v2766 = vpack.c.b16 %v1982, %v1966
        %v2767 = vpack.c.b16 %v1983, %v1967
        %v2768 = vpack.c.b16 %v1984, %v1968
        %v2769 = vpack.c.b16 %v1985, %v1969
        %v2770 = vpack.c.b16 %v1986, %v1970
        %v2771 = vpack.c.b16 %v1987, %v1971
        %v2772 = vpack.c.b16 %v1988, %v1972
        %v2773 = vpack.c.b16 %v1989, %v1973
        %v2774 = vpack.c.b16 %v1990, %v1974
        %v2775 = vpack.c.b16 %v2007, %v1991
        %v2776 = vpack.c.b16 %v2008, %v1992
        %v2777 = vpack.c.b16 %v2009, %v1993
        %v2778 = vpack.c.b16 %v2010, %v1994
        %v2779 = vpack.c.b16 %v2011, %v1995
        %v2780 = vpack.c.b16 %v2012, %v1996
        %v2781 = vpack.c.b16 %v2013, %v1997
        %v2782 = vpack.c.b16 %v2014, %v1998
        %v2783 = vpack.c.b16 %v2015, %v1999
        %v2784 = vpack.c.b16 %v2016, %v2000
        %v2785 = vpack.c.b16 %v2017, %v2001
        %v2786 = vpack.c.b16 %v2018, %v2002
        %v2787 = vpack.c.b16 %v2019, %v2003
        %v2788 = vpack.c.b16 %v2020, %v2004
        %v2789 = vpack.c.b16 %v2021, %v2005
        %v2790 = vpack.c.b16 %v2022, %v2006
        %v2791 = vpack.c.b16 %v2039, %v2023
        %v2792 = vpack.c.b16 %v2040, %v2024
        %v2793 = vpack.c.b16 %v2041, %v2025
        %v2794 = vpack.c.b16 %v2042, %v2026
        %v2795 = vpack.c.b16 %v2043, %v2027
        %v2796 = vpack.c.b16 %v2044, %v2028
        %v2797 = vpack.c.b16 %v2045, %v2029
        %v2798 = vpack.c.b16 %v2046, %v2030
        %v2799 = vpack.c.b16 %v2047, %v2031
        %v2800 = vpack.c.b16 %v2048, %v2032
        %v2801 = vpack.c.b16 %v2049, %v2033
        %v2802 = vpack.c.b16 %v2050, %v2034
        %v2803 = vpack.c.b16 %v2051, %v2035
        %v2804 = vpack.c.b16 %v2052, %v2036
        %v2805 = vpack.c.b16 %v2053, %v2037
        %v2806 = vpack.c.b16 %v2054, %v2038
        %v2807 = vpack.c.b16 %v2071, %v2055
        %v2808 = vpack.c.b16 %v2072, %v2056
        %v2809 = vpack.c.b16 %v2073, %v2057
        %v2810 = vpack.c.b16 %v2074, %v2058
        %v2811 = vpack.c.b16 %v2075, %v2059
        %v2812 = vpack.c.b16 %v2076, %v2060
        %v2813 = vpack.c.b16 %v2077, %v2061
        %v2814 = vpack.c.b16 %v2078, %v2062
        %v2815 = vpack.c.b16 %v2079, %v2063
        %v2816 = vpack.c.b16 %v2080, %v2064
        %v2817 = vpack.c.b16 %v2081, %v2065
        %v2818 = vpack.c.b16 %v2082, %v2066
        %v2819 = vpack.c.b16 %v2083, %v2067
        %v2820 = vpack.c.b16 %v2084, %v2068
        %v2821 = vpack.c.b16 %v2085, %v2069
        %v2822 = vpack.c.b16 %v2086, %v2070
        %v2823 = vpack.c.b16 %v2103, %v2087
        %v2824 = vpack.c.b16 %v2104, %v2088
        %v2825 = vpack.c.b16 %v2105, %v2089
        %v2826 = vpack.c.b16 %v2106, %v2090
        %v2827 = vpack.c.b16 %v2107, %v2091
        %v2828 = vpack.c.b16 %v2108, %v2092
        %v2829 = vpack.c.b16 %v2109, %v2093
        %v2830 = vpack.c.b16 %v2110, %v2094
        %v2831 = vpack.c.b16 %v2111, %v2095
        %v2832 = vpack.c.b16 %v2112, %v2096
        %v2833 = vpack.c.b16 %v2113, %v2097
        %v2834 = vpack.c.b16 %v2114, %v2098
        %v2835 = vpack.c.b16 %v2115, %v2099
        %v2836 = vpack.c.b16 %v2116, %v2100
        %v2837 = vpack.c.b16 %v2117, %v2101
        %v2838 = vpack.c.b16 %v2118, %v2102
        %v2839 = vpack.c.b16 %v2135, %v2119
        %v2840 = vpack.c.b16 %v2136, %v2120
        %v2841 = vpack.c.b16 %v2137, %v2121
        %v2842 = vpack.c.b16 %v2138, %v2122
        %v2843 = vpack.c.b16 %v2139, %v2123
        %v2844 = vpack.c.b16 %v2140, %v2124
        %v2845 = vpack.c.b16 %v2141, %v2125
        %v2846 = vpack.c.b16 %v2142, %v2126
        %v2847 = vpack.c.b16 %v2143, %v2127
        %v2848 = vpack.c.b16 %v2144, %v2128
        %v2849 = vpack.c.b16 %v2145, %v2129
        %v2850 = vpack.c.b16 %v2146, %v2130
        %v2851 = vpack.c.b16 %v2147, %v2131
        %v2852 = vpack.c.b16 %v2148, %v2132
        %v2853 = vpack.c.b16 %v2149, %v2133
        %v2854 = vpack.c.b16 %v2150, %v2134
        %v2855 = vpack.c.b16 %v2167, %v2151
        %v2856 = vpack.c.b16 %v2168, %v2152
        %v2857 = vpack.c.b16 %v2169, %v2153
        %v2858 = vpack.c.b16 %v2170, %v2154
        %v2859 = vpack.c.b16 %v2171, %v2155
        %v2860 = vpack.c.b16 %v2172, %v2156
        %v2861 = vpack.c.b16 %v2173, %v2157
        %v2862 = vpack.c.b16 %v2174, %v2158
        %v2863 = vpack.c.b16 %v2175, %v2159
        %v2864 = vpack.c.b16 %v2176, %v2160
        %v2865 = vpack.c.b16 %v2177, %v2161
        %v2866 = vpack.c.b16 %v2178, %v2162
        %v2867 = vpack.c.b16 %v2179, %v2163
        %v2868 = vpack.c.b16 %v2180, %v2164
        %v2869 = vpack.c.b16 %v2181, %v2165
        %v2870 = vpack.c.b16 %v2182, %v2166
        %v2871 = vpack.c.b16 %v2199, %v2183
        %v2872 = vpack.c.b16 %v2200, %v2184
        %v2873 = vpack.c.b16 %v2201, %v2185
        %v2874 = vpack.c.b16 %v2202, %v2186
        %v2875 = vpack.c.b16 %v2203, %v2187
        %v2876 = vpack.c.b16 %v2204, %v2188
        %v2877 = vpack.c.b16 %v2205, %v2189
        %v2878 = vpack.c.b16 %v2206, %v2190
        %v2879 = vpack.c.b16 %v2207, %v2191
        %v2880 = vpack.c.b16 %v2208, %v2192
        %v2881 = vpack.c.b16 %v2209, %v2193
        %v2882 = vpack.c.b16 %v2210, %v2194
        %v2883 = vpack.c.b16 %v2211, %v2195
        %v2884 = vpack.c.b16 %v2212, %v2196
        %v2885 = vpack.c.b16 %v2213, %v2197
        %v2886 = vpack.c.b16 %v2214, %v2198
        %v2887 = vpack.c.b16 %v2231, %v2215
        %v2888 = vpack.c.b16 %v2232, %v2216
        %v2889 = vpack.c.b16 %v2233, %v2217
        %v2890 = vpack.c.b16 %v2234, %v2218
        %v2891 = vpack.c.b16 %v2235, %v2219
        %v2892 = vpack.c.b16 %v2236, %v2220
        %v2893 = vpack.c.b16 %v2237, %v2221
        %v2894 = vpack.c.b16 %v2238, %v2222
        %v2895 = vpack.c.b16 %v2239, %v2223
        %v2896 = vpack.c.b16 %v2240, %v2224
        %v2897 = vpack.c.b16 %v2241, %v2225
        %v2898 = vpack.c.b16 %v2242, %v2226
        %v2899 = vpack.c.b16 %v2243, %v2227
        %v2900 = vpack.c.b16 %v2244, %v2228
        %v2901 = vpack.c.b16 %v2245, %v2229
        %v2902 = vpack.c.b16 %v2246, %v2230
        %v2903 = vpack.c.b16 %v2263, %v2247
        %v2904 = vpack.c.b16 %v2264, %v2248
        %v2905 = vpack.c.b16 %v2265, %v2249
        %v2906 = vpack.c.b16 %v2266, %v2250
        %v2907 = vpack.c.b16 %v2267, %v2251
        %v2908 = vpack.c.b16 %v2268, %v2252
        %v2909 = vpack.c.b16 %v2269, %v2253
        %v2910 = vpack.c.b16 %v2270, %v2254
        %v2911 = vpack.c.b16 %v2271, %v2255
        %v2912 = vpack.c.b16 %v2272, %v2256
        %v2913 = vpack.c.b16 %v2273, %v2257
        %v2914 = vpack.c.b16 %v2274, %v2258
        %v2915 = vpack.c.b16 %v2275, %v2259
        %v2916 = vpack.c.b16 %v2276, %v2260
        %v2917 = vpack.c.b16 %v2277, %v2261
        %v2918 = vpack.c.b16 %v2278, %v2262
        %v2919 = vpack.c.b16 %v2295, %v2279
        %v2920 = vpack.c.b16 %v2296, %v2280
        %v2921 = vpack.c.b16 %v2297, %v2281
        %v2922 = vpack.c.b16 %v2298, %v2282
        %v2923 = vpack.c.b16 %v2299, %v2283
        %v2924 = vpack.c.b16 %v2300, %v2284
        %v2925 = vpack.c.b16 %v2301, %v2285
        %v2926 = vpack.c.b16 %v2302, %v2286
        %v2927 = vpack.c.b16 %v2303, %v2287
        %v2928 = vpack.c.b16 %v2304, %v2288
        %v2929 = vpack.c.b16 %v2305, %v2289
        %v2930 = vpack.c.b16 %v2306, %v2290
        %v2931 = vpack.c.b16 %v2307, %v2291
        %v2932 = vpack.c.b16 %v2308, %v2292
        %v2933 = vpack.c.b16 %v2309, %v2293
        %v2934 = vpack.c.b16 %v2310, %v2294
        %v2935 = vpack.c.b16 %v2327, %v2311
        %v2936 = vpack.c.b16 %v2328, %v2312
        %v2937 = vpack.c.b16 %v2329, %v2313
        %v2938 = vpack.c.b16 %v2330, %v2314
        %v2939 = vpack.c.b16 %v2331, %v2315
        %v2940 = vpack.c.b16 %v2332, %v2316
        %v2941 = vpack.c.b16 %v2333, %v2317
        %v2942 = vpack.c.b16 %v2334, %v2318
        %v2943 = vpack.c.b16 %v2335, %v2319
        %v2944 = vpack.c.b16 %v2336, %v2320
        %v2945 = vpack.c.b16 %v2337, %v2321
        %v2946 = vpack.c.b16 %v2338, %v2322
        %v2947 = vpack.c.b16 %v2339, %v2323
        %v2948 = vpack.c.b16 %v2340, %v2324
        %v2949 = vpack.c.b16 %v2341, %v2325
        %v2950 = vpack.c.b16 %v2342, %v2326
        %v2951 = vpack.c.b16 %v2359, %v2343
        %v2952 = vpack.c.b16 %v2360, %v2344
        %v2953 = vpack.c.b16 %v2361, %v2345
        %v2954 = vpack.c.b16 %v2362, %v2346
        %v2955 = vpack.c.b16 %v2363, %v2347
        %v2956 = vpack.c.b16 %v2364, %v2348
        %v2957 = vpack.c.b16 %v2365, %v2349
        %v2958 = vpack.c.b16 %v2366, %v2350
        %v2959 = vpack.c.b16 %v2367, %v2351
        %v2960 = vpack.c.b16 %v2368, %v2352
        %v2961 = vpack.c.b16 %v2369, %v2353
        %v2962 = vpack.c.b16 %v2370, %v2354
        %v2963 = vpack.c.b16 %v2371, %v2355
        %v2964 = vpack.c.b16 %v2372, %v2356
        %v2965 = vpack.c.b16 %v2373, %v2357
        %v2966 = vpack.c.b16 %v2374, %v2358
        %v2967 = vpack.c.b16 %v2391, %v2375
        %v2968 = vpack.c.b16 %v2392, %v2376
        %v2969 = vpack.c.b16 %v2393, %v2377
        %v2970 = vpack.c.b16 %v2394, %v2378
        %v2971 = vpack.c.b16 %v2395, %v2379
        %v2972 = vpack.c.b16 %v2396, %v2380
        %v2973 = vpack.c.b16 %v2397, %v2381
        %v2974 = vpack.c.b16 %v2398, %v2382
        %v2975 = vpack.c.b16 %v2399, %v2383
        %v2976 = vpack.c.b16 %v2400, %v2384
        %v2977 = vpack.c.b16 %v2401, %v2385
        %v2978 = vpack.c.b16 %v2402, %v2386
        %v2979 = vpack.c.b16 %v2403, %v2387
        %v2980 = vpack.c.b16 %v2404, %v2388
        %v2981 = vpack.c.b16 %v2405, %v2389
        %v2982 = vpack.c.b16 %v2406, %v2390
        %v2983 = vpack.c.b16 %v2423, %v2407
        %v2984 = vpack.c.b16 %v2424, %v2408
        %v2985 = vpack.c.b16 %v2425, %v2409
        %v2986 = vpack.c.b16 %v2426, %v2410
        %v2987 = vpack.c.b16 %v2427, %v2411
        %v2988 = vpack.c.b16 %v2428, %v2412
        %v2989 = vpack.c.b16 %v2429, %v2413
        %v2990 = vpack.c.b16 %v2430, %v2414
        %v2991 = vpack.c.b16 %v2431, %v2415
        %v2992 = vpack.c.b16 %v2432, %v2416
        %v2993 = vpack.c.b16 %v2433, %v2417
        %v2994 = vpack.c.b16 %v2434, %v2418
        %v2995 = vpack.c.b16 %v2435, %v2419
        %v2996 = vpack.c.b16 %v2436, %v2420
        %v2997 = vpack.c.b16 %v2437, %v2421
        %v2998 = vpack.c.b16 %v2438, %v2422
        %v2999 = vpack.c.b16 %v2455, %v2439
        %v3000 = vpack.c.b16 %v2456, %v2440
        %v3001 = vpack.c.b16 %v2457, %v2441
        %v3002 = vpack.c.b16 %v2458, %v2442
        %v3003 = vpack.c.b16 %v2459, %v2443
        %v3004 = vpack.c.b16 %v2460, %v2444
        %v3005 = vpack.c.b16 %v2461, %v2445
        %v3006 = vpack.c.b16 %v2462, %v2446
        %v3007 = vpack.c.b16 %v2463, %v2447
        %v3008 = vpack.c.b16 %v2464, %v2448
        %v3009 = vpack.c.b16 %v2465, %v2449
        %v3010 = vpack.c.b16 %v2466, %v2450
        %v3011 = vpack.c.b16 %v2467, %v2451
        %v3012 = vpack.c.b16 %v2468, %v2452
        %v3013 = vpack.c.b16 %v2469, %v2453
        %v3014 = vpack.c.b16 %v2470, %v2454
        %v3015 = vpack.c.b16 %v2487, %v2471
        %v3016 = vpack.c.b16 %v2488, %v2472
        %v3017 = vpack.c.b16 %v2489, %v2473
        %v3018 = vpack.c.b16 %v2490, %v2474
        %v3019 = vpack.c.b16 %v2491, %v2475
        %v3020 = vpack.c.b16 %v2492, %v2476
        %v3021 = vpack.c.b16 %v2493, %v2477
        %v3022 = vpack.c.b16 %v2494, %v2478
        %v3023 = vpack.c.b16 %v2495, %v2479
        %v3024 = vpack.c.b16 %v2496, %v2480
        %v3025 = vpack.c.b16 %v2497, %v2481
        %v3026 = vpack.c.b16 %v2498, %v2482
        %v3027 = vpack.c.b16 %v2499, %v2483
        %v3028 = vpack.c.b16 %v2500, %v2484
        %v3029 = vpack.c.b16 %v2501, %v2485
        %v3030 = vpack.c.b16 %v2502, %v2486
        %v3031 = vpack.c.b16 %v2519, %v2503
        %v3032 = vpack.c.b16 %v2520, %v2504
        %v3033 = vpack.c.b16 %v2521, %v2505
        %v3034 = vpack.c.b16 %v2522, %v2506
        %v3035 = vpack.c.b16 %v2523, %v2507
        %v3036 = vpack.c.b16 %v2524, %v2508
        %v3037 = vpack.c.b16 %v2525, %v2509
        %v3038 = vpack.c.b16 %v2526, %v2510
        %v3039 = vpack.c.b16 %v2527, %v2511
        %v3040 = vpack.c.b16 %v2528, %v2512
        %v3041 = vpack.c.b16 %v2529, %v2513
        %v3042 = vpack.c.b16 %v2530, %v2514
        %v3043 = vpack.c.b16 %v2531, %v2515
        %v3044 = vpack.c.b16 %v2532, %v2516
        %v3045 = vpack.c.b16 %v2533, %v2517
        %v3046 = vpack.c.b16 %v2534, %v2518
        %3559 = vmatprep.subr.bf16.mxu0 %v2648
        %3560 = vmatpush1.bf16.msra.mxu0 %v2647
        %3561 = vmatprep.subr.bf16.mxu0 %v2632
        %3562 = vmatpush1.bf16.msra.mxu0 %v2631
        %3563 = vmatprep.subr.bf16.mxu0 %v2616
        %3564 = vmatpush1.bf16.msra.mxu0 %v2615
        %3565 = vmatprep.subr.bf16.mxu0 %v2600
        %3566 = vmatpush1.bf16.msra.mxu0 %v2599
        %3567 = vmatprep.subr.bf16.mxu0 %v2584
        %3568 = vmatpush1.bf16.msra.mxu0 %v2583
        %3569 = vmatprep.subr.bf16.mxu0 %v2568
        %3570 = vmatpush1.bf16.msra.mxu0 %v2567
        %3571 = vmatprep.subr.bf16.mxu0 %v2552
        %3572 = vmatpush1.bf16.msra.mxu0 %v2551
        %3573 = vmatprep.subr.bf16.mxu0 %v2536
        %3574 = vmatpush1.bf16.msra.mxu0 %v2535
        %3575 = vmatprep.subr.bf16.mxu0 %v2776
        %3576 = vmatpush2.bf16.msra.mxu0 %v2775
        %3577 = vmatprep.subr.bf16.mxu0 %v2760
        %3578 = vmatpush2.bf16.msra.mxu0 %v2759
        %3579 = vmatprep.subr.bf16.mxu0 %v2744
        %3580 = vmatpush2.bf16.msra.mxu0 %v2743
        %3581 = vmatprep.subr.bf16.mxu0 %v2728
        %3582 = vmatpush2.bf16.msra.mxu0 %v2727
        %3583 = vmatprep.subr.bf16.mxu0 %v2712
        %3584 = vmatpush2.bf16.msra.mxu0 %v2711
        %3585 = vmatprep.subr.bf16.mxu0 %v2696
        %3586 = vmatpush2.bf16.msra.mxu0 %v2695
        %3587 = vmatprep.subr.bf16.mxu0 %v2680
        %3588 = vmatpush2.bf16.msra.mxu0 %v2679
        %3589 = vmatprep.subr.bf16.mxu0 %v2664
        %3590 = vmatpush2.bf16.msra.mxu0 %v2663
        %3591 = vmatprep.mubr.bf16.mxu0 %v372
        %3592 = vmatmul.mubr.bf16.gmra.mxu0 %v371
        %v3593 = vpop.f32.mrf.mxu0
        %v3594 = vadd.f32 %v922, %v3593
        %v3595 = vpop.f32.mrf.mxu0
        %v3596 = vadd.f32 %v926, %v3595
        %v3597 = vpop.f32.mrf.mxu0
        %v3598 = vadd.f32 %v922, %v3597
        %v3599 = vpop.f32.mrf.mxu0
        %v3600 = vadd.f32 %v926, %v3599
        %3601 = vmatprep.mubr.bf16.mxu0 %v376
        %3602 = vmatmul.mubr.bf16.gmra.mxu0 %v375
        %v3603 = vpop.f32.mrf.mxu0
        %v3604 = vadd.f32 %v922, %v3603
        %v3605 = vpop.f32.mrf.mxu0
        %v3606 = vadd.f32 %v926, %v3605
        %v3607 = vpop.f32.mrf.mxu0
        %v3608 = vadd.f32 %v922, %v3607
        %v3609 = vpop.f32.mrf.mxu0
        %v3610 = vadd.f32 %v926, %v3609
        %3611 = vmatprep.mubr.bf16.mxu0 %v380
        %3612 = vmatmul.mubr.bf16.gmra.mxu0 %v379
        %v3613 = vpop.f32.mrf.mxu0
        %v3614 = vadd.f32 %v922, %v3613
        %v3615 = vpop.f32.mrf.mxu0
        %v3616 = vadd.f32 %v926, %v3615
        %v3617 = vpop.f32.mrf.mxu0
        %v3618 = vadd.f32 %v922, %v3617
        %v3619 = vpop.f32.mrf.mxu0
        %v3620 = vadd.f32 %v926, %v3619
        %3621 = vmatprep.mubr.bf16.mxu0 %v384
        %3622 = vmatmul.mubr.bf16.gmra.mxu0 %v383
        %v3623 = vpop.f32.mrf.mxu0
        %v3624 = vadd.f32 %v922, %v3623
        %v3625 = vpop.f32.mrf.mxu0
        %v3626 = vadd.f32 %v926, %v3625
        %v3627 = vpop.f32.mrf.mxu0
        %v3628 = vadd.f32 %v922, %v3627
        %v3629 = vpop.f32.mrf.mxu0
        %v3630 = vadd.f32 %v926, %v3629
        %3631 = vmatprep.mubr.bf16.mxu0 %v388
        %3632 = vmatmul.mubr.bf16.gmra.mxu0 %v387
        %v3633 = vpop.f32.mrf.mxu0
        %v3634 = vadd.f32 %v922, %v3633
        %v3635 = vpop.f32.mrf.mxu0
        %v3636 = vadd.f32 %v926, %v3635
        %v3637 = vpop.f32.mrf.mxu0
        %v3638 = vadd.f32 %v922, %v3637
        %v3639 = vpop.f32.mrf.mxu0
        %v3640 = vadd.f32 %v926, %v3639
        %3641 = vmatprep.mubr.bf16.mxu0 %v392
        %3642 = vmatmul.mubr.bf16.gmra.mxu0 %v391
        %v3643 = vpop.f32.mrf.mxu0
        %v3644 = vadd.f32 %v922, %v3643
        %v3645 = vpop.f32.mrf.mxu0
        %v3646 = vadd.f32 %v926, %v3645
        %v3647 = vpop.f32.mrf.mxu0
        %v3648 = vadd.f32 %v922, %v3647
        %v3649 = vpop.f32.mrf.mxu0
        %v3650 = vadd.f32 %v926, %v3649
        %3651 = vmatprep.mubr.bf16.mxu0 %v396
        %3652 = vmatmul.mubr.bf16.gmra.mxu0 %v395
        %v3653 = vpop.f32.mrf.mxu0
        %v3654 = vadd.f32 %v922, %v3653
        %v3655 = vpop.f32.mrf.mxu0
        %v3656 = vadd.f32 %v926, %v3655
        %v3657 = vpop.f32.mrf.mxu0
        %v3658 = vadd.f32 %v922, %v3657
        %v3659 = vpop.f32.mrf.mxu0
        %v3660 = vadd.f32 %v926, %v3659
        %3661 = vmatprep.mubr.bf16.mxu0 %v400
        %3662 = vmatmul.mubr.bf16.gmra.mxu0 %v399
        %v3663 = vpop.f32.mrf.mxu0
        %v3664 = vadd.f32 %v922, %v3663
        %v3665 = vpop.f32.mrf.mxu0
        %v3666 = vadd.f32 %v926, %v3665
        %v3667 = vpop.f32.mrf.mxu0
        %v3668 = vadd.f32 %v922, %v3667
        %v3669 = vpop.f32.mrf.mxu0
        %v3670 = vadd.f32 %v926, %v3669
        %3671 = vdwg.mxu0
        %3672 = vmatprep.subr.bf16.mxu0 %v2904
        %3673 = vmatpush1.bf16.msra.mxu0 %v2903
        %3674 = vmatprep.subr.bf16.mxu0 %v2888
        %3675 = vmatpush1.bf16.msra.mxu0 %v2887
        %3676 = vmatprep.subr.bf16.mxu0 %v2872
        %3677 = vmatpush1.bf16.msra.mxu0 %v2871
        %3678 = vmatprep.subr.bf16.mxu0 %v2856
        %3679 = vmatpush1.bf16.msra.mxu0 %v2855
        %3680 = vmatprep.subr.bf16.mxu0 %v2840
        %3681 = vmatpush1.bf16.msra.mxu0 %v2839
        %3682 = vmatprep.subr.bf16.mxu0 %v2824
        %3683 = vmatpush1.bf16.msra.mxu0 %v2823
        %3684 = vmatprep.subr.bf16.mxu0 %v2808
        %3685 = vmatpush1.bf16.msra.mxu0 %v2807
        %3686 = vmatprep.subr.bf16.mxu0 %v2792
        %3687 = vmatpush1.bf16.msra.mxu0 %v2791
        %3688 = vmatprep.subr.bf16.mxu0 %v3032
        %3689 = vmatpush2.bf16.msra.mxu0 %v3031
        %3690 = vmatprep.subr.bf16.mxu0 %v3016
        %3691 = vmatpush2.bf16.msra.mxu0 %v3015
        %3692 = vmatprep.subr.bf16.mxu0 %v3000
        %3693 = vmatpush2.bf16.msra.mxu0 %v2999
        %3694 = vmatprep.subr.bf16.mxu0 %v2984
        %3695 = vmatpush2.bf16.msra.mxu0 %v2983
        %3696 = vmatprep.subr.bf16.mxu0 %v2968
        %3697 = vmatpush2.bf16.msra.mxu0 %v2967
        %3698 = vmatprep.subr.bf16.mxu0 %v2952
        %3699 = vmatpush2.bf16.msra.mxu0 %v2951
        %3700 = vmatprep.subr.bf16.mxu0 %v2936
        %3701 = vmatpush2.bf16.msra.mxu0 %v2935
        %3702 = vmatprep.subr.bf16.mxu0 %v2920
        %3703 = vmatpush2.bf16.msra.mxu0 %v2919
        %3704 = vmatprep.mubr.bf16.mxu0 %v374
        %3705 = vmatmul.mubr.bf16.gmra.mxu0 %v373
        %v3706 = vpop.f32.mrf.mxu0
        %v3707 = vadd.f32 %v3594, %v3706
        %v3708 = vpop.f32.mrf.mxu0
        %v3709 = vadd.f32 %v3596, %v3708
        %v3710 = vpop.f32.mrf.mxu0
        %v3711 = vadd.f32 %v3598, %v3710
        %v3712 = vpop.f32.mrf.mxu0
        %v3713 = vadd.f32 %v3600, %v3712
        %3714 = vmatprep.mubr.bf16.mxu0 %v378
        %3715 = vmatmul.mubr.bf16.gmra.mxu0 %v377
        %v3716 = vpop.f32.mrf.mxu0
        %v3717 = vadd.f32 %v3604, %v3716
        %v3718 = vpop.f32.mrf.mxu0
        %v3719 = vadd.f32 %v3606, %v3718
        %v3720 = vpop.f32.mrf.mxu0
        %v3721 = vadd.f32 %v3608, %v3720
        %v3722 = vpop.f32.mrf.mxu0
        %v3723 = vadd.f32 %v3610, %v3722
        %3724 = vmatprep.mubr.bf16.mxu0 %v382
        %3725 = vmatmul.mubr.bf16.gmra.mxu0 %v381
        %v3726 = vpop.f32.mrf.mxu0
        %v3727 = vadd.f32 %v3614, %v3726
        %v3728 = vpop.f32.mrf.mxu0
        %v3729 = vadd.f32 %v3616, %v3728
        %v3730 = vpop.f32.mrf.mxu0
        %v3731 = vadd.f32 %v3618, %v3730
        %v3732 = vpop.f32.mrf.mxu0
        %v3733 = vadd.f32 %v3620, %v3732
        %3734 = vmatprep.mubr.bf16.mxu0 %v386
        %3735 = vmatmul.mubr.bf16.gmra.mxu0 %v385
        %v3736 = vpop.f32.mrf.mxu0
        %v3737 = vadd.f32 %v3624, %v3736
        %v3738 = vpop.f32.mrf.mxu0
        %v3739 = vadd.f32 %v3626, %v3738
        %v3740 = vpop.f32.mrf.mxu0
        %v3741 = vadd.f32 %v3628, %v3740
        %v3742 = vpop.f32.mrf.mxu0
        %v3743 = vadd.f32 %v3630, %v3742
        %3744 = vmatprep.mubr.bf16.mxu0 %v390
        %3745 = vmatmul.mubr.bf16.gmra.mxu0 %v389
        %v3746 = vpop.f32.mrf.mxu0
        %v3747 = vadd.f32 %v3634, %v3746
        %v3748 = vpop.f32.mrf.mxu0
        %v3749 = vadd.f32 %v3636, %v3748
        %v3750 = vpop.f32.mrf.mxu0
        %v3751 = vadd.f32 %v3638, %v3750
        %v3752 = vpop.f32.mrf.mxu0
        %v3753 = vadd.f32 %v3640, %v3752
        %3754 = vmatprep.mubr.bf16.mxu0 %v394
        %3755 = vmatmul.mubr.bf16.gmra.mxu0 %v393
        %v3756 = vpop.f32.mrf.mxu0
        %v3757 = vadd.f32 %v3644, %v3756
        %v3758 = vpop.f32.mrf.mxu0
        %v3759 = vadd.f32 %v3646, %v3758
        %v3760 = vpop.f32.mrf.mxu0
        %v3761 = vadd.f32 %v3648, %v3760
        %v3762 = vpop.f32.mrf.mxu0
        %v3763 = vadd.f32 %v3650, %v3762
        %3764 = vmatprep.mubr.bf16.mxu0 %v398
        %3765 = vmatmul.mubr.bf16.gmra.mxu0 %v397
        %v3766 = vpop.f32.mrf.mxu0
        %v3767 = vadd.f32 %v3654, %v3766
        %v3768 = vpop.f32.mrf.mxu0
        %v3769 = vadd.f32 %v3656, %v3768
        %v3770 = vpop.f32.mrf.mxu0
        %v3771 = vadd.f32 %v3658, %v3770
        %v3772 = vpop.f32.mrf.mxu0
        %v3773 = vadd.f32 %v3660, %v3772
        %3774 = vmatprep.mubr.bf16.mxu0 %v402
        %3775 = vmatmul.mubr.bf16.gmra.mxu0 %v401
        %v3776 = vpop.f32.mrf.mxu0
        %v3777 = vadd.f32 %v3664, %v3776
        %v3778 = vpop.f32.mrf.mxu0
        %v3779 = vadd.f32 %v3666, %v3778
        %v3780 = vpop.f32.mrf.mxu0
        %v3781 = vadd.f32 %v3668, %v3780
        %v3782 = vpop.f32.mrf.mxu0
        %v3783 = vadd.f32 %v3670, %v3782
        %3784 = vdwg.mxu0
        %3785 = vmatprep.subr.bf16.mxu0 %v2650
        %3786 = vmatpush1.bf16.msra.mxu0 %v2649
        %3787 = vmatprep.subr.bf16.mxu0 %v2634
        %3788 = vmatpush1.bf16.msra.mxu0 %v2633
        %3789 = vmatprep.subr.bf16.mxu0 %v2618
        %3790 = vmatpush1.bf16.msra.mxu0 %v2617
        %3791 = vmatprep.subr.bf16.mxu0 %v2602
        %3792 = vmatpush1.bf16.msra.mxu0 %v2601
        %3793 = vmatprep.subr.bf16.mxu0 %v2586
        %3794 = vmatpush1.bf16.msra.mxu0 %v2585
        %3795 = vmatprep.subr.bf16.mxu0 %v2570
        %3796 = vmatpush1.bf16.msra.mxu0 %v2569
        %3797 = vmatprep.subr.bf16.mxu0 %v2554
        %3798 = vmatpush1.bf16.msra.mxu0 %v2553
        %3799 = vmatprep.subr.bf16.mxu0 %v2538
        %3800 = vmatpush1.bf16.msra.mxu0 %v2537
        %3801 = vmatprep.subr.bf16.mxu0 %v2778
        %3802 = vmatpush2.bf16.msra.mxu0 %v2777
        %3803 = vmatprep.subr.bf16.mxu0 %v2762
        %3804 = vmatpush2.bf16.msra.mxu0 %v2761
        %3805 = vmatprep.subr.bf16.mxu0 %v2746
        %3806 = vmatpush2.bf16.msra.mxu0 %v2745
        %3807 = vmatprep.subr.bf16.mxu0 %v2730
        %3808 = vmatpush2.bf16.msra.mxu0 %v2729
        %3809 = vmatprep.subr.bf16.mxu0 %v2714
        %3810 = vmatpush2.bf16.msra.mxu0 %v2713
        %3811 = vmatprep.subr.bf16.mxu0 %v2698
        %3812 = vmatpush2.bf16.msra.mxu0 %v2697
        %3813 = vmatprep.subr.bf16.mxu0 %v2682
        %3814 = vmatpush2.bf16.msra.mxu0 %v2681
        %3815 = vmatprep.subr.bf16.mxu0 %v2666
        %3816 = vmatpush2.bf16.msra.mxu0 %v2665
        %3817 = vmatprep.mubr.bf16.mxu0 %v372
        %3818 = vmatmul.mubr.bf16.gmra.mxu0 %v371
        %v3819 = vpop.f32.mrf.mxu0
        %v3820 = vadd.f32 %v930, %v3819
        %v3821 = vpop.f32.mrf.mxu0
        %v3822 = vadd.f32 %v934, %v3821
        %v3823 = vpop.f32.mrf.mxu0
        %v3824 = vadd.f32 %v930, %v3823
        %v3825 = vpop.f32.mrf.mxu0
        %v3826 = vadd.f32 %v934, %v3825
        %3827 = vmatprep.mubr.bf16.mxu0 %v376
        %3828 = vmatmul.mubr.bf16.gmra.mxu0 %v375
        %v3829 = vpop.f32.mrf.mxu0
        %v3830 = vadd.f32 %v930, %v3829
        %v3831 = vpop.f32.mrf.mxu0
        %v3832 = vadd.f32 %v934, %v3831
        %v3833 = vpop.f32.mrf.mxu0
        %v3834 = vadd.f32 %v930, %v3833
        %v3835 = vpop.f32.mrf.mxu0
        %v3836 = vadd.f32 %v934, %v3835
        %3837 = vmatprep.mubr.bf16.mxu0 %v380
        %3838 = vmatmul.mubr.bf16.gmra.mxu0 %v379
        %v3839 = vpop.f32.mrf.mxu0
        %v3840 = vadd.f32 %v930, %v3839
        %v3841 = vpop.f32.mrf.mxu0
        %v3842 = vadd.f32 %v934, %v3841
        %v3843 = vpop.f32.mrf.mxu0
        %v3844 = vadd.f32 %v930, %v3843
        %v3845 = vpop.f32.mrf.mxu0
        %v3846 = vadd.f32 %v934, %v3845
        %3847 = vmatprep.mubr.bf16.mxu0 %v384
        %3848 = vmatmul.mubr.bf16.gmra.mxu0 %v383
        %v3849 = vpop.f32.mrf.mxu0
        %v3850 = vadd.f32 %v930, %v3849
        %v3851 = vpop.f32.mrf.mxu0
        %v3852 = vadd.f32 %v934, %v3851
        %v3853 = vpop.f32.mrf.mxu0
        %v3854 = vadd.f32 %v930, %v3853
        %v3855 = vpop.f32.mrf.mxu0
        %v3856 = vadd.f32 %v934, %v3855
        %3857 = vmatprep.mubr.bf16.mxu0 %v388
        %3858 = vmatmul.mubr.bf16.gmra.mxu0 %v387
        %v3859 = vpop.f32.mrf.mxu0
        %v3860 = vadd.f32 %v930, %v3859
        %v3861 = vpop.f32.mrf.mxu0
        %v3862 = vadd.f32 %v934, %v3861
        %v3863 = vpop.f32.mrf.mxu0
        %v3864 = vadd.f32 %v930, %v3863
        %v3865 = vpop.f32.mrf.mxu0
        %v3866 = vadd.f32 %v934, %v3865
        %3867 = vmatprep.mubr.bf16.mxu0 %v392
        %3868 = vmatmul.mubr.bf16.gmra.mxu0 %v391
        %v3869 = vpop.f32.mrf.mxu0
        %v3870 = vadd.f32 %v930, %v3869
        %v3871 = vpop.f32.mrf.mxu0
        %v3872 = vadd.f32 %v934, %v3871
        %v3873 = vpop.f32.mrf.mxu0
        %v3874 = vadd.f32 %v930, %v3873
        %v3875 = vpop.f32.mrf.mxu0
        %v3876 = vadd.f32 %v934, %v3875
        %3877 = vmatprep.mubr.bf16.mxu0 %v396
        %3878 = vmatmul.mubr.bf16.gmra.mxu0 %v395
        %v3879 = vpop.f32.mrf.mxu0
        %v3880 = vadd.f32 %v930, %v3879
        %v3881 = vpop.f32.mrf.mxu0
        %v3882 = vadd.f32 %v934, %v3881
        %v3883 = vpop.f32.mrf.mxu0
        %v3884 = vadd.f32 %v930, %v3883
        %v3885 = vpop.f32.mrf.mxu0
        %v3886 = vadd.f32 %v934, %v3885
        %3887 = vmatprep.mubr.bf16.mxu0 %v400
        %3888 = vmatmul.mubr.bf16.gmra.mxu0 %v399
        %v3889 = vpop.f32.mrf.mxu0
        %v3890 = vadd.f32 %v930, %v3889
        %v3891 = vpop.f32.mrf.mxu0
        %v3892 = vadd.f32 %v934, %v3891
        %v3893 = vpop.f32.mrf.mxu0
        %v3894 = vadd.f32 %v930, %v3893
        %v3895 = vpop.f32.mrf.mxu0
        %v3896 = vadd.f32 %v934, %v3895
        %3897 = vdwg.mxu0
        %3898 = vmatprep.subr.bf16.mxu0 %v2906
        %3899 = vmatpush1.bf16.msra.mxu0 %v2905
        %3900 = vmatprep.subr.bf16.mxu0 %v2890
        %3901 = vmatpush1.bf16.msra.mxu0 %v2889
        %3902 = vmatprep.subr.bf16.mxu0 %v2874
        %3903 = vmatpush1.bf16.msra.mxu0 %v2873
        %3904 = vmatprep.subr.bf16.mxu0 %v2858
        %3905 = vmatpush1.bf16.msra.mxu0 %v2857
        %3906 = vmatprep.subr.bf16.mxu0 %v2842
        %3907 = vmatpush1.bf16.msra.mxu0 %v2841
        %3908 = vmatprep.subr.bf16.mxu0 %v2826
        %3909 = vmatpush1.bf16.msra.mxu0 %v2825
        %3910 = vmatprep.subr.bf16.mxu0 %v2810
        %3911 = vmatpush1.bf16.msra.mxu0 %v2809
        %3912 = vmatprep.subr.bf16.mxu0 %v2794
        %3913 = vmatpush1.bf16.msra.mxu0 %v2793
        %3914 = vmatprep.subr.bf16.mxu0 %v3034
        %3915 = vmatpush2.bf16.msra.mxu0 %v3033
        %3916 = vmatprep.subr.bf16.mxu0 %v3018
        %3917 = vmatpush2.bf16.msra.mxu0 %v3017
        %3918 = vmatprep.subr.bf16.mxu0 %v3002
        %3919 = vmatpush2.bf16.msra.mxu0 %v3001
        %3920 = vmatprep.subr.bf16.mxu0 %v2986
        %3921 = vmatpush2.bf16.msra.mxu0 %v2985
        %3922 = vmatprep.subr.bf16.mxu0 %v2970
        %3923 = vmatpush2.bf16.msra.mxu0 %v2969
        %3924 = vmatprep.subr.bf16.mxu0 %v2954
        %3925 = vmatpush2.bf16.msra.mxu0 %v2953
        %3926 = vmatprep.subr.bf16.mxu0 %v2938
        %3927 = vmatpush2.bf16.msra.mxu0 %v2937
        %3928 = vmatprep.subr.bf16.mxu0 %v2922
        %3929 = vmatpush2.bf16.msra.mxu0 %v2921
        %3930 = vmatprep.mubr.bf16.mxu0 %v374
        %3931 = vmatmul.mubr.bf16.gmra.mxu0 %v373
        %v3932 = vpop.f32.mrf.mxu0
        %v3933 = vadd.f32 %v3820, %v3932
        %v3934 = vpop.f32.mrf.mxu0
        %v3935 = vadd.f32 %v3822, %v3934
        %v3936 = vpop.f32.mrf.mxu0
        %v3937 = vadd.f32 %v3824, %v3936
        %v3938 = vpop.f32.mrf.mxu0
        %v3939 = vadd.f32 %v3826, %v3938
        %3940 = vmatprep.mubr.bf16.mxu0 %v378
        %3941 = vmatmul.mubr.bf16.gmra.mxu0 %v377
        %v3942 = vpop.f32.mrf.mxu0
        %v3943 = vadd.f32 %v3830, %v3942
        %v3944 = vpop.f32.mrf.mxu0
        %v3945 = vadd.f32 %v3832, %v3944
        %v3946 = vpop.f32.mrf.mxu0
        %v3947 = vadd.f32 %v3834, %v3946
        %v3948 = vpop.f32.mrf.mxu0
        %v3949 = vadd.f32 %v3836, %v3948
        %3950 = vmatprep.mubr.bf16.mxu0 %v382
        %3951 = vmatmul.mubr.bf16.gmra.mxu0 %v381
        %v3952 = vpop.f32.mrf.mxu0
        %v3953 = vadd.f32 %v3840, %v3952
        %v3954 = vpop.f32.mrf.mxu0
        %v3955 = vadd.f32 %v3842, %v3954
        %v3956 = vpop.f32.mrf.mxu0
        %v3957 = vadd.f32 %v3844, %v3956
        %v3958 = vpop.f32.mrf.mxu0
        %v3959 = vadd.f32 %v3846, %v3958
        %3960 = vmatprep.mubr.bf16.mxu0 %v386
        %3961 = vmatmul.mubr.bf16.gmra.mxu0 %v385
        %v3962 = vpop.f32.mrf.mxu0
        %v3963 = vadd.f32 %v3850, %v3962
        %v3964 = vpop.f32.mrf.mxu0
        %v3965 = vadd.f32 %v3852, %v3964
        %v3966 = vpop.f32.mrf.mxu0
        %v3967 = vadd.f32 %v3854, %v3966
        %v3968 = vpop.f32.mrf.mxu0
        %v3969 = vadd.f32 %v3856, %v3968
        %3970 = vmatprep.mubr.bf16.mxu0 %v390
        %3971 = vmatmul.mubr.bf16.gmra.mxu0 %v389
        %v3972 = vpop.f32.mrf.mxu0
        %v3973 = vadd.f32 %v3860, %v3972
        %v3974 = vpop.f32.mrf.mxu0
        %v3975 = vadd.f32 %v3862, %v3974
        %v3976 = vpop.f32.mrf.mxu0
        %v3977 = vadd.f32 %v3864, %v3976
        %v3978 = vpop.f32.mrf.mxu0
        %v3979 = vadd.f32 %v3866, %v3978
        %3980 = vmatprep.mubr.bf16.mxu0 %v394
        %3981 = vmatmul.mubr.bf16.gmra.mxu0 %v393
        %v3982 = vpop.f32.mrf.mxu0
        %v3983 = vadd.f32 %v3870, %v3982
        %v3984 = vpop.f32.mrf.mxu0
        %v3985 = vadd.f32 %v3872, %v3984
        %v3986 = vpop.f32.mrf.mxu0
        %v3987 = vadd.f32 %v3874, %v3986
        %v3988 = vpop.f32.mrf.mxu0
        %v3989 = vadd.f32 %v3876, %v3988
        %3990 = vmatprep.mubr.bf16.mxu0 %v398
        %3991 = vmatmul.mubr.bf16.gmra.mxu0 %v397
        %v3992 = vpop.f32.mrf.mxu0
        %v3993 = vadd.f32 %v3880, %v3992
        %v3994 = vpop.f32.mrf.mxu0
        %v3995 = vadd.f32 %v3882, %v3994
        %v3996 = vpop.f32.mrf.mxu0
        %v3997 = vadd.f32 %v3884, %v3996
        %v3998 = vpop.f32.mrf.mxu0
        %v3999 = vadd.f32 %v3886, %v3998
        %4000 = vmatprep.mubr.bf16.mxu0 %v402
        %4001 = vmatmul.mubr.bf16.gmra.mxu0 %v401
        %v4002 = vpop.f32.mrf.mxu0
        %v4003 = vadd.f32 %v3890, %v4002
        %v4004 = vpop.f32.mrf.mxu0
        %v4005 = vadd.f32 %v3892, %v4004
        %v4006 = vpop.f32.mrf.mxu0
        %v4007 = vadd.f32 %v3894, %v4006
        %v4008 = vpop.f32.mrf.mxu0
        %v4009 = vadd.f32 %v3896, %v4008
        %4010 = vdwg.mxu0
        %4011 = vmatprep.subr.bf16.mxu0 %v2652
        %4012 = vmatpush1.bf16.msra.mxu0 %v2651
        %4013 = vmatprep.subr.bf16.mxu0 %v2636
        %4014 = vmatpush1.bf16.msra.mxu0 %v2635
        %4015 = vmatprep.subr.bf16.mxu0 %v2620
        %4016 = vmatpush1.bf16.msra.mxu0 %v2619
        %4017 = vmatprep.subr.bf16.mxu0 %v2604
        %4018 = vmatpush1.bf16.msra.mxu0 %v2603
        %4019 = vmatprep.subr.bf16.mxu0 %v2588
        %4020 = vmatpush1.bf16.msra.mxu0 %v2587
        %4021 = vmatprep.subr.bf16.mxu0 %v2572
        %4022 = vmatpush1.bf16.msra.mxu0 %v2571
        %4023 = vmatprep.subr.bf16.mxu0 %v2556
        %4024 = vmatpush1.bf16.msra.mxu0 %v2555
        %4025 = vmatprep.subr.bf16.mxu0 %v2540
        %4026 = vmatpush1.bf16.msra.mxu0 %v2539
        %4027 = vmatprep.subr.bf16.mxu0 %v2780
        %4028 = vmatpush2.bf16.msra.mxu0 %v2779
        %4029 = vmatprep.subr.bf16.mxu0 %v2764
        %4030 = vmatpush2.bf16.msra.mxu0 %v2763
        %4031 = vmatprep.subr.bf16.mxu0 %v2748
        %4032 = vmatpush2.bf16.msra.mxu0 %v2747
        %4033 = vmatprep.subr.bf16.mxu0 %v2732
        %4034 = vmatpush2.bf16.msra.mxu0 %v2731
        %4035 = vmatprep.subr.bf16.mxu0 %v2716
        %4036 = vmatpush2.bf16.msra.mxu0 %v2715
        %4037 = vmatprep.subr.bf16.mxu0 %v2700
        %4038 = vmatpush2.bf16.msra.mxu0 %v2699
        %4039 = vmatprep.subr.bf16.mxu0 %v2684
        %4040 = vmatpush2.bf16.msra.mxu0 %v2683
        %4041 = vmatprep.subr.bf16.mxu0 %v2668
        %4042 = vmatpush2.bf16.msra.mxu0 %v2667
        %4043 = vmatprep.mubr.bf16.mxu0 %v372
        %4044 = vmatmul.mubr.bf16.gmra.mxu0 %v371
        %v4045 = vpop.f32.mrf.mxu0
        %v4046 = vadd.f32 %v938, %v4045
        %v4047 = vpop.f32.mrf.mxu0
        %v4048 = vadd.f32 %v942, %v4047
        %v4049 = vpop.f32.mrf.mxu0
        %v4050 = vadd.f32 %v938, %v4049
        %v4051 = vpop.f32.mrf.mxu0
        %v4052 = vadd.f32 %v942, %v4051
        %4053 = vmatprep.mubr.bf16.mxu0 %v376
        %4054 = vmatmul.mubr.bf16.gmra.mxu0 %v375
        %v4055 = vpop.f32.mrf.mxu0
        %v4056 = vadd.f32 %v938, %v4055
        %v4057 = vpop.f32.mrf.mxu0
        %v4058 = vadd.f32 %v942, %v4057
        %v4059 = vpop.f32.mrf.mxu0
        %v4060 = vadd.f32 %v938, %v4059
        %v4061 = vpop.f32.mrf.mxu0
        %v4062 = vadd.f32 %v942, %v4061
        %4063 = vmatprep.mubr.bf16.mxu0 %v380
        %4064 = vmatmul.mubr.bf16.gmra.mxu0 %v379
        %v4065 = vpop.f32.mrf.mxu0
        %v4066 = vadd.f32 %v938, %v4065
        %v4067 = vpop.f32.mrf.mxu0
        %v4068 = vadd.f32 %v942, %v4067
        %v4069 = vpop.f32.mrf.mxu0
        %v4070 = vadd.f32 %v938, %v4069
        %v4071 = vpop.f32.mrf.mxu0
        %v4072 = vadd.f32 %v942, %v4071
        %4073 = vmatprep.mubr.bf16.mxu0 %v384
        %4074 = vmatmul.mubr.bf16.gmra.mxu0 %v383
        %v4075 = vpop.f32.mrf.mxu0
        %v4076 = vadd.f32 %v938, %v4075
        %v4077 = vpop.f32.mrf.mxu0
        %v4078 = vadd.f32 %v942, %v4077
        %v4079 = vpop.f32.mrf.mxu0
        %v4080 = vadd.f32 %v938, %v4079
        %v4081 = vpop.f32.mrf.mxu0
        %v4082 = vadd.f32 %v942, %v4081
        %4083 = vmatprep.mubr.bf16.mxu0 %v388
        %4084 = vmatmul.mubr.bf16.gmra.mxu0 %v387
        %v4085 = vpop.f32.mrf.mxu0
        %v4086 = vadd.f32 %v938, %v4085
        %v4087 = vpop.f32.mrf.mxu0
        %v4088 = vadd.f32 %v942, %v4087
        %v4089 = vpop.f32.mrf.mxu0
        %v4090 = vadd.f32 %v938, %v4089
        %v4091 = vpop.f32.mrf.mxu0
        %v4092 = vadd.f32 %v942, %v4091
        %4093 = vmatprep.mubr.bf16.mxu0 %v392
        %4094 = vmatmul.mubr.bf16.gmra.mxu0 %v391
        %v4095 = vpop.f32.mrf.mxu0
        %v4096 = vadd.f32 %v938, %v4095
        %v4097 = vpop.f32.mrf.mxu0
        %v4098 = vadd.f32 %v942, %v4097
        %v4099 = vpop.f32.mrf.mxu0
        %v4100 = vadd.f32 %v938, %v4099
        %v4101 = vpop.f32.mrf.mxu0
        %v4102 = vadd.f32 %v942, %v4101
        %4103 = vmatprep.mubr.bf16.mxu0 %v396
        %4104 = vmatmul.mubr.bf16.gmra.mxu0 %v395
        %v4105 = vpop.f32.mrf.mxu0
        %v4106 = vadd.f32 %v938, %v4105
        %v4107 = vpop.f32.mrf.mxu0
        %v4108 = vadd.f32 %v942, %v4107
        %v4109 = vpop.f32.mrf.mxu0
        %v4110 = vadd.f32 %v938, %v4109
        %v4111 = vpop.f32.mrf.mxu0
        %v4112 = vadd.f32 %v942, %v4111
        %4113 = vmatprep.mubr.bf16.mxu0 %v400
        %4114 = vmatmul.mubr.bf16.gmra.mxu0 %v399
        %v4115 = vpop.f32.mrf.mxu0
        %v4116 = vadd.f32 %v938, %v4115
        %v4117 = vpop.f32.mrf.mxu0
        %v4118 = vadd.f32 %v942, %v4117
        %v4119 = vpop.f32.mrf.mxu0
        %v4120 = vadd.f32 %v938, %v4119
        %v4121 = vpop.f32.mrf.mxu0
        %v4122 = vadd.f32 %v942, %v4121
        %4123 = vdwg.mxu0
        %4124 = vmatprep.subr.bf16.mxu0 %v2908
        %4125 = vmatpush1.bf16.msra.mxu0 %v2907
        %4126 = vmatprep.subr.bf16.mxu0 %v2892
        %4127 = vmatpush1.bf16.msra.mxu0 %v2891
        %4128 = vmatprep.subr.bf16.mxu0 %v2876
        %4129 = vmatpush1.bf16.msra.mxu0 %v2875
        %4130 = vmatprep.subr.bf16.mxu0 %v2860
        %4131 = vmatpush1.bf16.msra.mxu0 %v2859
        %4132 = vmatprep.subr.bf16.mxu0 %v2844
        %4133 = vmatpush1.bf16.msra.mxu0 %v2843
        %4134 = vmatprep.subr.bf16.mxu0 %v2828
        %4135 = vmatpush1.bf16.msra.mxu0 %v2827
        %4136 = vmatprep.subr.bf16.mxu0 %v2812
        %4137 = vmatpush1.bf16.msra.mxu0 %v2811
        %4138 = vmatprep.subr.bf16.mxu0 %v2796
        %4139 = vmatpush1.bf16.msra.mxu0 %v2795
        %4140 = vmatprep.subr.bf16.mxu0 %v3036
        %4141 = vmatpush2.bf16.msra.mxu0 %v3035
        %4142 = vmatprep.subr.bf16.mxu0 %v3020
        %4143 = vmatpush2.bf16.msra.mxu0 %v3019
        %4144 = vmatprep.subr.bf16.mxu0 %v3004
        %4145 = vmatpush2.bf16.msra.mxu0 %v3003
        %4146 = vmatprep.subr.bf16.mxu0 %v2988
        %4147 = vmatpush2.bf16.msra.mxu0 %v2987
        %4148 = vmatprep.subr.bf16.mxu0 %v2972
        %4149 = vmatpush2.bf16.msra.mxu0 %v2971
        %4150 = vmatprep.subr.bf16.mxu0 %v2956
        %4151 = vmatpush2.bf16.msra.mxu0 %v2955
        %4152 = vmatprep.subr.bf16.mxu0 %v2940
        %4153 = vmatpush2.bf16.msra.mxu0 %v2939
        %4154 = vmatprep.subr.bf16.mxu0 %v2924
        %4155 = vmatpush2.bf16.msra.mxu0 %v2923
        %4156 = vmatprep.mubr.bf16.mxu0 %v374
        %4157 = vmatmul.mubr.bf16.gmra.mxu0 %v373
        %v4158 = vpop.f32.mrf.mxu0
        %v4159 = vadd.f32 %v4046, %v4158
        %v4160 = vpop.f32.mrf.mxu0
        %v4161 = vadd.f32 %v4048, %v4160
        %v4162 = vpop.f32.mrf.mxu0
        %v4163 = vadd.f32 %v4050, %v4162
        %v4164 = vpop.f32.mrf.mxu0
        %v4165 = vadd.f32 %v4052, %v4164
        %4166 = vmatprep.mubr.bf16.mxu0 %v378
        %4167 = vmatmul.mubr.bf16.gmra.mxu0 %v377
        %v4168 = vpop.f32.mrf.mxu0
        %v4169 = vadd.f32 %v4056, %v4168
        %v4170 = vpop.f32.mrf.mxu0
        %v4171 = vadd.f32 %v4058, %v4170
        %v4172 = vpop.f32.mrf.mxu0
        %v4173 = vadd.f32 %v4060, %v4172
        %v4174 = vpop.f32.mrf.mxu0
        %v4175 = vadd.f32 %v4062, %v4174
        %4176 = vmatprep.mubr.bf16.mxu0 %v382
        %4177 = vmatmul.mubr.bf16.gmra.mxu0 %v381
        %v4178 = vpop.f32.mrf.mxu0
        %v4179 = vadd.f32 %v4066, %v4178
        %v4180 = vpop.f32.mrf.mxu0
        %v4181 = vadd.f32 %v4068, %v4180
        %v4182 = vpop.f32.mrf.mxu0
        %v4183 = vadd.f32 %v4070, %v4182
        %v4184 = vpop.f32.mrf.mxu0
        %v4185 = vadd.f32 %v4072, %v4184
        %4186 = vmatprep.mubr.bf16.mxu0 %v386
        %4187 = vmatmul.mubr.bf16.gmra.mxu0 %v385
        %v4188 = vpop.f32.mrf.mxu0
        %v4189 = vadd.f32 %v4076, %v4188
        %v4190 = vpop.f32.mrf.mxu0
        %v4191 = vadd.f32 %v4078, %v4190
        %v4192 = vpop.f32.mrf.mxu0
        %v4193 = vadd.f32 %v4080, %v4192
        %v4194 = vpop.f32.mrf.mxu0
        %v4195 = vadd.f32 %v4082, %v4194
        %4196 = vmatprep.mubr.bf16.mxu0 %v390
        %4197 = vmatmul.mubr.bf16.gmra.mxu0 %v389
        %v4198 = vpop.f32.mrf.mxu0
        %v4199 = vadd.f32 %v4086, %v4198
        %v4200 = vpop.f32.mrf.mxu0
        %v4201 = vadd.f32 %v4088, %v4200
        %v4202 = vpop.f32.mrf.mxu0
        %v4203 = vadd.f32 %v4090, %v4202
        %v4204 = vpop.f32.mrf.mxu0
        %v4205 = vadd.f32 %v4092, %v4204
        %4206 = vmatprep.mubr.bf16.mxu0 %v394
        %4207 = vmatmul.mubr.bf16.gmra.mxu0 %v393
        %v4208 = vpop.f32.mrf.mxu0
        %v4209 = vadd.f32 %v4096, %v4208
        %v4210 = vpop.f32.mrf.mxu0
        %v4211 = vadd.f32 %v4098, %v4210
        %v4212 = vpop.f32.mrf.mxu0
        %v4213 = vadd.f32 %v4100, %v4212
        %v4214 = vpop.f32.mrf.mxu0
        %v4215 = vadd.f32 %v4102, %v4214
        %4216 = vmatprep.mubr.bf16.mxu0 %v398
        %4217 = vmatmul.mubr.bf16.gmra.mxu0 %v397
        %v4218 = vpop.f32.mrf.mxu0
        %v4219 = vadd.f32 %v4106, %v4218
        %v4220 = vpop.f32.mrf.mxu0
        %v4221 = vadd.f32 %v4108, %v4220
        %v4222 = vpop.f32.mrf.mxu0
        %v4223 = vadd.f32 %v4110, %v4222
        %v4224 = vpop.f32.mrf.mxu0
        %v4225 = vadd.f32 %v4112, %v4224
        %4226 = vmatprep.mubr.bf16.mxu0 %v402
        %4227 = vmatmul.mubr.bf16.gmra.mxu0 %v401
        %v4228 = vpop.f32.mrf.mxu0
        %v4229 = vadd.f32 %v4116, %v4228
        %v4230 = vpop.f32.mrf.mxu0
        %v4231 = vadd.f32 %v4118, %v4230
        %v4232 = vpop.f32.mrf.mxu0
        %v4233 = vadd.f32 %v4120, %v4232
        %v4234 = vpop.f32.mrf.mxu0
        %v4235 = vadd.f32 %v4122, %v4234
        %4236 = vdwg.mxu0
        %4237 = vmatprep.subr.bf16.mxu0 %v2654
        %4238 = vmatpush1.bf16.msra.mxu0 %v2653
        %4239 = vmatprep.subr.bf16.mxu0 %v2638
        %4240 = vmatpush1.bf16.msra.mxu0 %v2637
        %4241 = vmatprep.subr.bf16.mxu0 %v2622
        %4242 = vmatpush1.bf16.msra.mxu0 %v2621
        %4243 = vmatprep.subr.bf16.mxu0 %v2606
        %4244 = vmatpush1.bf16.msra.mxu0 %v2605
        %4245 = vmatprep.subr.bf16.mxu0 %v2590
        %4246 = vmatpush1.bf16.msra.mxu0 %v2589
        %4247 = vmatprep.subr.bf16.mxu0 %v2574
        %4248 = vmatpush1.bf16.msra.mxu0 %v2573
        %4249 = vmatprep.subr.bf16.mxu0 %v2558
        %4250 = vmatpush1.bf16.msra.mxu0 %v2557
        %4251 = vmatprep.subr.bf16.mxu0 %v2542
        %4252 = vmatpush1.bf16.msra.mxu0 %v2541
        %4253 = vmatprep.subr.bf16.mxu0 %v2782
        %4254 = vmatpush2.bf16.msra.mxu0 %v2781
        %4255 = vmatprep.subr.bf16.mxu0 %v2766
        %4256 = vmatpush2.bf16.msra.mxu0 %v2765
        %4257 = vmatprep.subr.bf16.mxu0 %v2750
        %4258 = vmatpush2.bf16.msra.mxu0 %v2749
        %4259 = vmatprep.subr.bf16.mxu0 %v2734
        %4260 = vmatpush2.bf16.msra.mxu0 %v2733
        %4261 = vmatprep.subr.bf16.mxu0 %v2718
        %4262 = vmatpush2.bf16.msra.mxu0 %v2717
        %4263 = vmatprep.subr.bf16.mxu0 %v2702
        %4264 = vmatpush2.bf16.msra.mxu0 %v2701
        %4265 = vmatprep.subr.bf16.mxu0 %v2686
        %4266 = vmatpush2.bf16.msra.mxu0 %v2685
        %4267 = vmatprep.subr.bf16.mxu0 %v2670
        %4268 = vmatpush2.bf16.msra.mxu0 %v2669
        %4269 = vmatprep.mubr.bf16.mxu0 %v372
        %4270 = vmatmul.mubr.bf16.gmra.mxu0 %v371
        %v4271 = vpop.f32.mrf.mxu0
        %v4272 = vadd.f32 %v946, %v4271
        %v4273 = vpop.f32.mrf.mxu0
        %v4274 = vadd.f32 %v950, %v4273
        %v4275 = vpop.f32.mrf.mxu0
        %v4276 = vadd.f32 %v946, %v4275
        %v4277 = vpop.f32.mrf.mxu0
        %v4278 = vadd.f32 %v950, %v4277
        %4279 = vmatprep.mubr.bf16.mxu0 %v376
        %4280 = vmatmul.mubr.bf16.gmra.mxu0 %v375
        %v4281 = vpop.f32.mrf.mxu0
        %v4282 = vadd.f32 %v946, %v4281
        %v4283 = vpop.f32.mrf.mxu0
        %v4284 = vadd.f32 %v950, %v4283
        %v4285 = vpop.f32.mrf.mxu0
        %v4286 = vadd.f32 %v946, %v4285
        %v4287 = vpop.f32.mrf.mxu0
        %v4288 = vadd.f32 %v950, %v4287
        %4289 = vmatprep.mubr.bf16.mxu0 %v380
        %4290 = vmatmul.mubr.bf16.gmra.mxu0 %v379
        %v4291 = vpop.f32.mrf.mxu0
        %v4292 = vadd.f32 %v946, %v4291
        %v4293 = vpop.f32.mrf.mxu0
        %v4294 = vadd.f32 %v950, %v4293
        %v4295 = vpop.f32.mrf.mxu0
        %v4296 = vadd.f32 %v946, %v4295
        %v4297 = vpop.f32.mrf.mxu0
        %v4298 = vadd.f32 %v950, %v4297
        %4299 = vmatprep.mubr.bf16.mxu0 %v384
        %4300 = vmatmul.mubr.bf16.gmra.mxu0 %v383
        %v4301 = vpop.f32.mrf.mxu0
        %v4302 = vadd.f32 %v946, %v4301
        %v4303 = vpop.f32.mrf.mxu0
        %v4304 = vadd.f32 %v950, %v4303
        %v4305 = vpop.f32.mrf.mxu0
        %v4306 = vadd.f32 %v946, %v4305
        %v4307 = vpop.f32.mrf.mxu0
        %v4308 = vadd.f32 %v950, %v4307
        %4309 = vmatprep.mubr.bf16.mxu0 %v388
        %4310 = vmatmul.mubr.bf16.gmra.mxu0 %v387
        %v4311 = vpop.f32.mrf.mxu0
        %v4312 = vadd.f32 %v946, %v4311
        %v4313 = vpop.f32.mrf.mxu0
        %v4314 = vadd.f32 %v950, %v4313
        %v4315 = vpop.f32.mrf.mxu0
        %v4316 = vadd.f32 %v946, %v4315
        %v4317 = vpop.f32.mrf.mxu0
        %v4318 = vadd.f32 %v950, %v4317
        %4319 = vmatprep.mubr.bf16.mxu0 %v392
        %4320 = vmatmul.mubr.bf16.gmra.mxu0 %v391
        %v4321 = vpop.f32.mrf.mxu0
        %v4322 = vadd.f32 %v946, %v4321
        %v4323 = vpop.f32.mrf.mxu0
        %v4324 = vadd.f32 %v950, %v4323
        %v4325 = vpop.f32.mrf.mxu0
        %v4326 = vadd.f32 %v946, %v4325
        %v4327 = vpop.f32.mrf.mxu0
        %v4328 = vadd.f32 %v950, %v4327
        %4329 = vmatprep.mubr.bf16.mxu0 %v396
        %4330 = vmatmul.mubr.bf16.gmra.mxu0 %v395
        %v4331 = vpop.f32.mrf.mxu0
        %v4332 = vadd.f32 %v946, %v4331
        %v4333 = vpop.f32.mrf.mxu0
        %v4334 = vadd.f32 %v950, %v4333
        %v4335 = vpop.f32.mrf.mxu0
        %v4336 = vadd.f32 %v946, %v4335
        %v4337 = vpop.f32.mrf.mxu0
        %v4338 = vadd.f32 %v950, %v4337
        %4339 = vmatprep.mubr.bf16.mxu0 %v400
        %4340 = vmatmul.mubr.bf16.gmra.mxu0 %v399
        %v4341 = vpop.f32.mrf.mxu0
        %v4342 = vadd.f32 %v946, %v4341
        %v4343 = vpop.f32.mrf.mxu0
        %v4344 = vadd.f32 %v950, %v4343
        %v4345 = vpop.f32.mrf.mxu0
        %v4346 = vadd.f32 %v946, %v4345
        %v4347 = vpop.f32.mrf.mxu0
        %v4348 = vadd.f32 %v950, %v4347
        %4349 = vdwg.mxu0
        %4350 = vmatprep.subr.bf16.mxu0 %v2910
        %4351 = vmatpush1.bf16.msra.mxu0 %v2909
        %4352 = vmatprep.subr.bf16.mxu0 %v2894
        %4353 = vmatpush1.bf16.msra.mxu0 %v2893
        %4354 = vmatprep.subr.bf16.mxu0 %v2878
        %4355 = vmatpush1.bf16.msra.mxu0 %v2877
        %4356 = vmatprep.subr.bf16.mxu0 %v2862
        %4357 = vmatpush1.bf16.msra.mxu0 %v2861
        %4358 = vmatprep.subr.bf16.mxu0 %v2846
        %4359 = vmatpush1.bf16.msra.mxu0 %v2845
        %4360 = vmatprep.subr.bf16.mxu0 %v2830
        %4361 = vmatpush1.bf16.msra.mxu0 %v2829
        %4362 = vmatprep.subr.bf16.mxu0 %v2814
        %4363 = vmatpush1.bf16.msra.mxu0 %v2813
        %4364 = vmatprep.subr.bf16.mxu0 %v2798
        %4365 = vmatpush1.bf16.msra.mxu0 %v2797
        %4366 = vmatprep.subr.bf16.mxu0 %v3038
        %4367 = vmatpush2.bf16.msra.mxu0 %v3037
        %4368 = vmatprep.subr.bf16.mxu0 %v3022
        %4369 = vmatpush2.bf16.msra.mxu0 %v3021
        %4370 = vmatprep.subr.bf16.mxu0 %v3006
        %4371 = vmatpush2.bf16.msra.mxu0 %v3005
        %4372 = vmatprep.subr.bf16.mxu0 %v2990
        %4373 = vmatpush2.bf16.msra.mxu0 %v2989
        %4374 = vmatprep.subr.bf16.mxu0 %v2974
        %4375 = vmatpush2.bf16.msra.mxu0 %v2973
        %4376 = vmatprep.subr.bf16.mxu0 %v2958
        %4377 = vmatpush2.bf16.msra.mxu0 %v2957
        %4378 = vmatprep.subr.bf16.mxu0 %v2942
        %4379 = vmatpush2.bf16.msra.mxu0 %v2941
        %4380 = vmatprep.subr.bf16.mxu0 %v2926
        %4381 = vmatpush2.bf16.msra.mxu0 %v2925
        %4382 = vmatprep.mubr.bf16.mxu0 %v374
        %4383 = vmatmul.mubr.bf16.gmra.mxu0 %v373
        %v4384 = vpop.f32.mrf.mxu0
        %v4385 = vadd.f32 %v4272, %v4384
        %v4386 = vpop.f32.mrf.mxu0
        %v4387 = vadd.f32 %v4274, %v4386
        %v4388 = vpop.f32.mrf.mxu0
        %v4389 = vadd.f32 %v4276, %v4388
        %v4390 = vpop.f32.mrf.mxu0
        %v4391 = vadd.f32 %v4278, %v4390
        %4392 = vmatprep.mubr.bf16.mxu0 %v378
        %4393 = vmatmul.mubr.bf16.gmra.mxu0 %v377
        %v4394 = vpop.f32.mrf.mxu0
        %v4395 = vadd.f32 %v4282, %v4394
        %v4396 = vpop.f32.mrf.mxu0
        %v4397 = vadd.f32 %v4284, %v4396
        %v4398 = vpop.f32.mrf.mxu0
        %v4399 = vadd.f32 %v4286, %v4398
        %v4400 = vpop.f32.mrf.mxu0
        %v4401 = vadd.f32 %v4288, %v4400
        %4402 = vmatprep.mubr.bf16.mxu0 %v382
        %4403 = vmatmul.mubr.bf16.gmra.mxu0 %v381
        %v4404 = vpop.f32.mrf.mxu0
        %v4405 = vadd.f32 %v4292, %v4404
        %v4406 = vpop.f32.mrf.mxu0
        %v4407 = vadd.f32 %v4294, %v4406
        %v4408 = vpop.f32.mrf.mxu0
        %v4409 = vadd.f32 %v4296, %v4408
        %v4410 = vpop.f32.mrf.mxu0
        %v4411 = vadd.f32 %v4298, %v4410
        %4412 = vmatprep.mubr.bf16.mxu0 %v386
        %4413 = vmatmul.mubr.bf16.gmra.mxu0 %v385
        %v4414 = vpop.f32.mrf.mxu0
        %v4415 = vadd.f32 %v4302, %v4414
        %v4416 = vpop.f32.mrf.mxu0
        %v4417 = vadd.f32 %v4304, %v4416
        %v4418 = vpop.f32.mrf.mxu0
        %v4419 = vadd.f32 %v4306, %v4418
        %v4420 = vpop.f32.mrf.mxu0
        %v4421 = vadd.f32 %v4308, %v4420
        %4422 = vmatprep.mubr.bf16.mxu0 %v390
        %4423 = vmatmul.mubr.bf16.gmra.mxu0 %v389
        %v4424 = vpop.f32.mrf.mxu0
        %v4425 = vadd.f32 %v4312, %v4424
        %v4426 = vpop.f32.mrf.mxu0
        %v4427 = vadd.f32 %v4314, %v4426
        %v4428 = vpop.f32.mrf.mxu0
        %v4429 = vadd.f32 %v4316, %v4428
        %v4430 = vpop.f32.mrf.mxu0
        %v4431 = vadd.f32 %v4318, %v4430
        %4432 = vmatprep.mubr.bf16.mxu0 %v394
        %4433 = vmatmul.mubr.bf16.gmra.mxu0 %v393
        %v4434 = vpop.f32.mrf.mxu0
        %v4435 = vadd.f32 %v4322, %v4434
        %v4436 = vpop.f32.mrf.mxu0
        %v4437 = vadd.f32 %v4324, %v4436
        %v4438 = vpop.f32.mrf.mxu0
        %v4439 = vadd.f32 %v4326, %v4438
        %v4440 = vpop.f32.mrf.mxu0
        %v4441 = vadd.f32 %v4328, %v4440
        %4442 = vmatprep.mubr.bf16.mxu0 %v398
        %4443 = vmatmul.mubr.bf16.gmra.mxu0 %v397
        %v4444 = vpop.f32.mrf.mxu0
        %v4445 = vadd.f32 %v4332, %v4444
        %v4446 = vpop.f32.mrf.mxu0
        %v4447 = vadd.f32 %v4334, %v4446
        %v4448 = vpop.f32.mrf.mxu0
        %v4449 = vadd.f32 %v4336, %v4448
        %v4450 = vpop.f32.mrf.mxu0
        %v4451 = vadd.f32 %v4338, %v4450
        %4452 = vmatprep.mubr.bf16.mxu0 %v402
        %4453 = vmatmul.mubr.bf16.gmra.mxu0 %v401
        %v4454 = vpop.f32.mrf.mxu0
        %v4455 = vadd.f32 %v4342, %v4454
        %v4456 = vpop.f32.mrf.mxu0
        %v4457 = vadd.f32 %v4344, %v4456
        %v4458 = vpop.f32.mrf.mxu0
        %v4459 = vadd.f32 %v4346, %v4458
        %v4460 = vpop.f32.mrf.mxu0
        %v4461 = vadd.f32 %v4348, %v4460
        %4462 = vdwg.mxu0
        %4463 = vmatprep.subr.bf16.mxu0 %v2656
        %4464 = vmatpush1.bf16.msra.mxu0 %v2655
        %4465 = vmatprep.subr.bf16.mxu0 %v2640
        %4466 = vmatpush1.bf16.msra.mxu0 %v2639
        %4467 = vmatprep.subr.bf16.mxu0 %v2624
        %4468 = vmatpush1.bf16.msra.mxu0 %v2623
        %4469 = vmatprep.subr.bf16.mxu0 %v2608
        %4470 = vmatpush1.bf16.msra.mxu0 %v2607
        %4471 = vmatprep.subr.bf16.mxu0 %v2592
        %4472 = vmatpush1.bf16.msra.mxu0 %v2591
        %4473 = vmatprep.subr.bf16.mxu0 %v2576
        %4474 = vmatpush1.bf16.msra.mxu0 %v2575
        %4475 = vmatprep.subr.bf16.mxu0 %v2560
        %4476 = vmatpush1.bf16.msra.mxu0 %v2559
        %4477 = vmatprep.subr.bf16.mxu0 %v2544
        %4478 = vmatpush1.bf16.msra.mxu0 %v2543
        %4479 = vmatprep.subr.bf16.mxu0 %v2784
        %4480 = vmatpush2.bf16.msra.mxu0 %v2783
        %4481 = vmatprep.subr.bf16.mxu0 %v2768
        %4482 = vmatpush2.bf16.msra.mxu0 %v2767
        %4483 = vmatprep.subr.bf16.mxu0 %v2752
        %4484 = vmatpush2.bf16.msra.mxu0 %v2751
        %4485 = vmatprep.subr.bf16.mxu0 %v2736
        %4486 = vmatpush2.bf16.msra.mxu0 %v2735
        %4487 = vmatprep.subr.bf16.mxu0 %v2720
        %4488 = vmatpush2.bf16.msra.mxu0 %v2719
        %4489 = vmatprep.subr.bf16.mxu0 %v2704
        %4490 = vmatpush2.bf16.msra.mxu0 %v2703
        %4491 = vmatprep.subr.bf16.mxu0 %v2688
        %4492 = vmatpush2.bf16.msra.mxu0 %v2687
        %4493 = vmatprep.subr.bf16.mxu0 %v2672
        %4494 = vmatpush2.bf16.msra.mxu0 %v2671
        %4495 = vmatprep.mubr.bf16.mxu0 %v372
        %4496 = vmatmul.mubr.bf16.gmra.mxu0 %v371
        %v4497 = vpop.f32.mrf.mxu0
        %v4498 = vadd.f32 %v954, %v4497
        %v4499 = vpop.f32.mrf.mxu0
        %v4500 = vadd.f32 %v958, %v4499
        %v4501 = vpop.f32.mrf.mxu0
        %v4502 = vadd.f32 %v954, %v4501
        %v4503 = vpop.f32.mrf.mxu0
        %v4504 = vadd.f32 %v958, %v4503
        %4505 = vmatprep.mubr.bf16.mxu0 %v376
        %4506 = vmatmul.mubr.bf16.gmra.mxu0 %v375
        %v4507 = vpop.f32.mrf.mxu0
        %v4508 = vadd.f32 %v954, %v4507
        %v4509 = vpop.f32.mrf.mxu0
        %v4510 = vadd.f32 %v958, %v4509
        %v4511 = vpop.f32.mrf.mxu0
        %v4512 = vadd.f32 %v954, %v4511
        %v4513 = vpop.f32.mrf.mxu0
        %v4514 = vadd.f32 %v958, %v4513
        %4515 = vmatprep.mubr.bf16.mxu0 %v380
        %4516 = vmatmul.mubr.bf16.gmra.mxu0 %v379
        %v4517 = vpop.f32.mrf.mxu0
        %v4518 = vadd.f32 %v954, %v4517
        %v4519 = vpop.f32.mrf.mxu0
        %v4520 = vadd.f32 %v958, %v4519
        %v4521 = vpop.f32.mrf.mxu0
        %v4522 = vadd.f32 %v954, %v4521
        %v4523 = vpop.f32.mrf.mxu0
        %v4524 = vadd.f32 %v958, %v4523
        %4525 = vmatprep.mubr.bf16.mxu0 %v384
        %4526 = vmatmul.mubr.bf16.gmra.mxu0 %v383
        %v4527 = vpop.f32.mrf.mxu0
        %v4528 = vadd.f32 %v954, %v4527
        %v4529 = vpop.f32.mrf.mxu0
        %v4530 = vadd.f32 %v958, %v4529
        %v4531 = vpop.f32.mrf.mxu0
        %v4532 = vadd.f32 %v954, %v4531
        %v4533 = vpop.f32.mrf.mxu0
        %v4534 = vadd.f32 %v958, %v4533
        %4535 = vmatprep.mubr.bf16.mxu0 %v388
        %4536 = vmatmul.mubr.bf16.gmra.mxu0 %v387
        %v4537 = vpop.f32.mrf.mxu0
        %v4538 = vadd.f32 %v954, %v4537
        %v4539 = vpop.f32.mrf.mxu0
        %v4540 = vadd.f32 %v958, %v4539
        %v4541 = vpop.f32.mrf.mxu0
        %v4542 = vadd.f32 %v954, %v4541
        %v4543 = vpop.f32.mrf.mxu0
        %v4544 = vadd.f32 %v958, %v4543
        %4545 = vmatprep.mubr.bf16.mxu0 %v392
        %4546 = vmatmul.mubr.bf16.gmra.mxu0 %v391
        %v4547 = vpop.f32.mrf.mxu0
        %v4548 = vadd.f32 %v954, %v4547
        %v4549 = vpop.f32.mrf.mxu0
        %v4550 = vadd.f32 %v958, %v4549
        %v4551 = vpop.f32.mrf.mxu0
        %v4552 = vadd.f32 %v954, %v4551
        %v4553 = vpop.f32.mrf.mxu0
        %v4554 = vadd.f32 %v958, %v4553
        %4555 = vmatprep.mubr.bf16.mxu0 %v396
        %4556 = vmatmul.mubr.bf16.gmra.mxu0 %v395
        %v4557 = vpop.f32.mrf.mxu0
        %v4558 = vadd.f32 %v954, %v4557
        %v4559 = vpop.f32.mrf.mxu0
        %v4560 = vadd.f32 %v958, %v4559
        %v4561 = vpop.f32.mrf.mxu0
        %v4562 = vadd.f32 %v954, %v4561
        %v4563 = vpop.f32.mrf.mxu0
        %v4564 = vadd.f32 %v958, %v4563
        %4565 = vmatprep.mubr.bf16.mxu0 %v400
        %4566 = vmatmul.mubr.bf16.gmra.mxu0 %v399
        %v4567 = vpop.f32.mrf.mxu0
        %v4568 = vadd.f32 %v954, %v4567
        %v4569 = vpop.f32.mrf.mxu0
        %v4570 = vadd.f32 %v958, %v4569
        %v4571 = vpop.f32.mrf.mxu0
        %v4572 = vadd.f32 %v954, %v4571
        %v4573 = vpop.f32.mrf.mxu0
        %v4574 = vadd.f32 %v958, %v4573
        %4575 = vdwg.mxu0
        %4576 = vmatprep.subr.bf16.mxu0 %v2912
        %4577 = vmatpush1.bf16.msra.mxu0 %v2911
        %4578 = vmatprep.subr.bf16.mxu0 %v2896
        %4579 = vmatpush1.bf16.msra.mxu0 %v2895
        %4580 = vmatprep.subr.bf16.mxu0 %v2880
        %4581 = vmatpush1.bf16.msra.mxu0 %v2879
        %4582 = vmatprep.subr.bf16.mxu0 %v2864
        %4583 = vmatpush1.bf16.msra.mxu0 %v2863
        %4584 = vmatprep.subr.bf16.mxu0 %v2848
        %4585 = vmatpush1.bf16.msra.mxu0 %v2847
        %4586 = vmatprep.subr.bf16.mxu0 %v2832
        %4587 = vmatpush1.bf16.msra.mxu0 %v2831
        %4588 = vmatprep.subr.bf16.mxu0 %v2816
        %4589 = vmatpush1.bf16.msra.mxu0 %v2815
        %4590 = vmatprep.subr.bf16.mxu0 %v2800
        %4591 = vmatpush1.bf16.msra.mxu0 %v2799
        %4592 = vmatprep.subr.bf16.mxu0 %v3040
        %4593 = vmatpush2.bf16.msra.mxu0 %v3039
        %4594 = vmatprep.subr.bf16.mxu0 %v3024
        %4595 = vmatpush2.bf16.msra.mxu0 %v3023
        %4596 = vmatprep.subr.bf16.mxu0 %v3008
        %4597 = vmatpush2.bf16.msra.mxu0 %v3007
        %4598 = vmatprep.subr.bf16.mxu0 %v2992
        %4599 = vmatpush2.bf16.msra.mxu0 %v2991
        %4600 = vmatprep.subr.bf16.mxu0 %v2976
        %4601 = vmatpush2.bf16.msra.mxu0 %v2975
        %4602 = vmatprep.subr.bf16.mxu0 %v2960
        %4603 = vmatpush2.bf16.msra.mxu0 %v2959
        %4604 = vmatprep.subr.bf16.mxu0 %v2944
        %4605 = vmatpush2.bf16.msra.mxu0 %v2943
        %4606 = vmatprep.subr.bf16.mxu0 %v2928
        %4607 = vmatpush2.bf16.msra.mxu0 %v2927
        %4608 = vmatprep.mubr.bf16.mxu0 %v374
        %4609 = vmatmul.mubr.bf16.gmra.mxu0 %v373
        %v4610 = vpop.f32.mrf.mxu0
        %v4611 = vadd.f32 %v4498, %v4610
        %v4612 = vpop.f32.mrf.mxu0
        %v4613 = vadd.f32 %v4500, %v4612
        %v4614 = vpop.f32.mrf.mxu0
        %v4615 = vadd.f32 %v4502, %v4614
        %v4616 = vpop.f32.mrf.mxu0
        %v4617 = vadd.f32 %v4504, %v4616
        %4618 = vmatprep.mubr.bf16.mxu0 %v378
        %4619 = vmatmul.mubr.bf16.gmra.mxu0 %v377
        %v4620 = vpop.f32.mrf.mxu0
        %v4621 = vadd.f32 %v4508, %v4620
        %v4622 = vpop.f32.mrf.mxu0
        %v4623 = vadd.f32 %v4510, %v4622
        %v4624 = vpop.f32.mrf.mxu0
        %v4625 = vadd.f32 %v4512, %v4624
        %v4626 = vpop.f32.mrf.mxu0
        %v4627 = vadd.f32 %v4514, %v4626
        %4628 = vmatprep.mubr.bf16.mxu0 %v382
        %4629 = vmatmul.mubr.bf16.gmra.mxu0 %v381
        %v4630 = vpop.f32.mrf.mxu0
        %v4631 = vadd.f32 %v4518, %v4630
        %v4632 = vpop.f32.mrf.mxu0
        %v4633 = vadd.f32 %v4520, %v4632
        %v4634 = vpop.f32.mrf.mxu0
        %v4635 = vadd.f32 %v4522, %v4634
        %v4636 = vpop.f32.mrf.mxu0
        %v4637 = vadd.f32 %v4524, %v4636
        %4638 = vmatprep.mubr.bf16.mxu0 %v386
        %4639 = vmatmul.mubr.bf16.gmra.mxu0 %v385
        %v4640 = vpop.f32.mrf.mxu0
        %v4641 = vadd.f32 %v4528, %v4640
        %v4642 = vpop.f32.mrf.mxu0
        %v4643 = vadd.f32 %v4530, %v4642
        %v4644 = vpop.f32.mrf.mxu0
        %v4645 = vadd.f32 %v4532, %v4644
        %v4646 = vpop.f32.mrf.mxu0
        %v4647 = vadd.f32 %v4534, %v4646
        %4648 = vmatprep.mubr.bf16.mxu0 %v390
        %4649 = vmatmul.mubr.bf16.gmra.mxu0 %v389
        %v4650 = vpop.f32.mrf.mxu0
        %v4651 = vadd.f32 %v4538, %v4650
        %v4652 = vpop.f32.mrf.mxu0
        %v4653 = vadd.f32 %v4540, %v4652
        %v4654 = vpop.f32.mrf.mxu0
        %v4655 = vadd.f32 %v4542, %v4654
        %v4656 = vpop.f32.mrf.mxu0
        %v4657 = vadd.f32 %v4544, %v4656
        %4658 = vmatprep.mubr.bf16.mxu0 %v394
        %4659 = vmatmul.mubr.bf16.gmra.mxu0 %v393
        %v4660 = vpop.f32.mrf.mxu0
        %v4661 = vadd.f32 %v4548, %v4660
        %v4662 = vpop.f32.mrf.mxu0
        %v4663 = vadd.f32 %v4550, %v4662
        %v4664 = vpop.f32.mrf.mxu0
        %v4665 = vadd.f32 %v4552, %v4664
        %v4666 = vpop.f32.mrf.mxu0
        %v4667 = vadd.f32 %v4554, %v4666
        %4668 = vmatprep.mubr.bf16.mxu0 %v398
        %4669 = vmatmul.mubr.bf16.gmra.mxu0 %v397
        %v4670 = vpop.f32.mrf.mxu0
        %v4671 = vadd.f32 %v4558, %v4670
        %v4672 = vpop.f32.mrf.mxu0
        %v4673 = vadd.f32 %v4560, %v4672
        %v4674 = vpop.f32.mrf.mxu0
        %v4675 = vadd.f32 %v4562, %v4674
        %v4676 = vpop.f32.mrf.mxu0
        %v4677 = vadd.f32 %v4564, %v4676
        %4678 = vmatprep.mubr.bf16.mxu0 %v402
        %4679 = vmatmul.mubr.bf16.gmra.mxu0 %v401
        %v4680 = vpop.f32.mrf.mxu0
        %v4681 = vadd.f32 %v4568, %v4680
        %v4682 = vpop.f32.mrf.mxu0
        %v4683 = vadd.f32 %v4570, %v4682
        %v4684 = vpop.f32.mrf.mxu0
        %v4685 = vadd.f32 %v4572, %v4684
        %v4686 = vpop.f32.mrf.mxu0
        %v4687 = vadd.f32 %v4574, %v4686
        %4688 = vdwg.mxu0
        %4689 = vmatprep.subr.bf16.mxu0 %v2658
        %4690 = vmatpush1.bf16.msra.mxu0 %v2657
        %4691 = vmatprep.subr.bf16.mxu0 %v2642
        %4692 = vmatpush1.bf16.msra.mxu0 %v2641
        %4693 = vmatprep.subr.bf16.mxu0 %v2626
        %4694 = vmatpush1.bf16.msra.mxu0 %v2625
        %4695 = vmatprep.subr.bf16.mxu0 %v2610
        %4696 = vmatpush1.bf16.msra.mxu0 %v2609
        %4697 = vmatprep.subr.bf16.mxu0 %v2594
        %4698 = vmatpush1.bf16.msra.mxu0 %v2593
        %4699 = vmatprep.subr.bf16.mxu0 %v2578
        %4700 = vmatpush1.bf16.msra.mxu0 %v2577
        %4701 = vmatprep.subr.bf16.mxu0 %v2562
        %4702 = vmatpush1.bf16.msra.mxu0 %v2561
        %4703 = vmatprep.subr.bf16.mxu0 %v2546
        %4704 = vmatpush1.bf16.msra.mxu0 %v2545
        %4705 = vmatprep.subr.bf16.mxu0 %v2786
        %4706 = vmatpush2.bf16.msra.mxu0 %v2785
        %4707 = vmatprep.subr.bf16.mxu0 %v2770
        %4708 = vmatpush2.bf16.msra.mxu0 %v2769
        %4709 = vmatprep.subr.bf16.mxu0 %v2754
        %4710 = vmatpush2.bf16.msra.mxu0 %v2753
        %4711 = vmatprep.subr.bf16.mxu0 %v2738
        %4712 = vmatpush2.bf16.msra.mxu0 %v2737
        %4713 = vmatprep.subr.bf16.mxu0 %v2722
        %4714 = vmatpush2.bf16.msra.mxu0 %v2721
        %4715 = vmatprep.subr.bf16.mxu0 %v2706
        %4716 = vmatpush2.bf16.msra.mxu0 %v2705
        %4717 = vmatprep.subr.bf16.mxu0 %v2690
        %4718 = vmatpush2.bf16.msra.mxu0 %v2689
        %4719 = vmatprep.subr.bf16.mxu0 %v2674
        %4720 = vmatpush2.bf16.msra.mxu0 %v2673
        %4721 = vmatprep.mubr.bf16.mxu0 %v372
        %4722 = vmatmul.mubr.bf16.gmra.mxu0 %v371
        %v4723 = vpop.f32.mrf.mxu0
        %v4724 = vadd.f32 %v962, %v4723
        %v4725 = vpop.f32.mrf.mxu0
        %v4726 = vadd.f32 %v966, %v4725
        %v4727 = vpop.f32.mrf.mxu0
        %v4728 = vadd.f32 %v962, %v4727
        %v4729 = vpop.f32.mrf.mxu0
        %v4730 = vadd.f32 %v966, %v4729
        %4731 = vmatprep.mubr.bf16.mxu0 %v376
        %4732 = vmatmul.mubr.bf16.gmra.mxu0 %v375
        %v4733 = vpop.f32.mrf.mxu0
        %v4734 = vadd.f32 %v962, %v4733
        %v4735 = vpop.f32.mrf.mxu0
        %v4736 = vadd.f32 %v966, %v4735
        %v4737 = vpop.f32.mrf.mxu0
        %v4738 = vadd.f32 %v962, %v4737
        %v4739 = vpop.f32.mrf.mxu0
        %v4740 = vadd.f32 %v966, %v4739
        %4741 = vmatprep.mubr.bf16.mxu0 %v380
        %4742 = vmatmul.mubr.bf16.gmra.mxu0 %v379
        %v4743 = vpop.f32.mrf.mxu0
        %v4744 = vadd.f32 %v962, %v4743
        %v4745 = vpop.f32.mrf.mxu0
        %v4746 = vadd.f32 %v966, %v4745
        %v4747 = vpop.f32.mrf.mxu0
        %v4748 = vadd.f32 %v962, %v4747
        %v4749 = vpop.f32.mrf.mxu0
        %v4750 = vadd.f32 %v966, %v4749
        %4751 = vmatprep.mubr.bf16.mxu0 %v384
        %4752 = vmatmul.mubr.bf16.gmra.mxu0 %v383
        %v4753 = vpop.f32.mrf.mxu0
        %v4754 = vadd.f32 %v962, %v4753
        %v4755 = vpop.f32.mrf.mxu0
        %v4756 = vadd.f32 %v966, %v4755
        %v4757 = vpop.f32.mrf.mxu0
        %v4758 = vadd.f32 %v962, %v4757
        %v4759 = vpop.f32.mrf.mxu0
        %v4760 = vadd.f32 %v966, %v4759
        %4761 = vmatprep.mubr.bf16.mxu0 %v388
        %4762 = vmatmul.mubr.bf16.gmra.mxu0 %v387
        %v4763 = vpop.f32.mrf.mxu0
        %v4764 = vadd.f32 %v962, %v4763
        %v4765 = vpop.f32.mrf.mxu0
        %v4766 = vadd.f32 %v966, %v4765
        %v4767 = vpop.f32.mrf.mxu0
        %v4768 = vadd.f32 %v962, %v4767
        %v4769 = vpop.f32.mrf.mxu0
        %v4770 = vadd.f32 %v966, %v4769
        %4771 = vmatprep.mubr.bf16.mxu0 %v392
        %4772 = vmatmul.mubr.bf16.gmra.mxu0 %v391
        %v4773 = vpop.f32.mrf.mxu0
        %v4774 = vadd.f32 %v962, %v4773
        %v4775 = vpop.f32.mrf.mxu0
        %v4776 = vadd.f32 %v966, %v4775
        %v4777 = vpop.f32.mrf.mxu0
        %v4778 = vadd.f32 %v962, %v4777
        %v4779 = vpop.f32.mrf.mxu0
        %v4780 = vadd.f32 %v966, %v4779
        %4781 = vmatprep.mubr.bf16.mxu0 %v396
        %4782 = vmatmul.mubr.bf16.gmra.mxu0 %v395
        %v4783 = vpop.f32.mrf.mxu0
        %v4784 = vadd.f32 %v962, %v4783
        %v4785 = vpop.f32.mrf.mxu0
        %v4786 = vadd.f32 %v966, %v4785
        %v4787 = vpop.f32.mrf.mxu0
        %v4788 = vadd.f32 %v962, %v4787
        %v4789 = vpop.f32.mrf.mxu0
        %v4790 = vadd.f32 %v966, %v4789
        %4791 = vmatprep.mubr.bf16.mxu0 %v400
        %4792 = vmatmul.mubr.bf16.gmra.mxu0 %v399
        %v4793 = vpop.f32.mrf.mxu0
        %v4794 = vadd.f32 %v962, %v4793
        %v4795 = vpop.f32.mrf.mxu0
        %v4796 = vadd.f32 %v966, %v4795
        %v4797 = vpop.f32.mrf.mxu0
        %v4798 = vadd.f32 %v962, %v4797
        %v4799 = vpop.f32.mrf.mxu0
        %v4800 = vadd.f32 %v966, %v4799
        %4801 = vdwg.mxu0
        %4802 = vmatprep.subr.bf16.mxu0 %v2914
        %4803 = vmatpush1.bf16.msra.mxu0 %v2913
        %4804 = vmatprep.subr.bf16.mxu0 %v2898
        %4805 = vmatpush1.bf16.msra.mxu0 %v2897
        %4806 = vmatprep.subr.bf16.mxu0 %v2882
        %4807 = vmatpush1.bf16.msra.mxu0 %v2881
        %4808 = vmatprep.subr.bf16.mxu0 %v2866
        %4809 = vmatpush1.bf16.msra.mxu0 %v2865
        %4810 = vmatprep.subr.bf16.mxu0 %v2850
        %4811 = vmatpush1.bf16.msra.mxu0 %v2849
        %4812 = vmatprep.subr.bf16.mxu0 %v2834
        %4813 = vmatpush1.bf16.msra.mxu0 %v2833
        %4814 = vmatprep.subr.bf16.mxu0 %v2818
        %4815 = vmatpush1.bf16.msra.mxu0 %v2817
        %4816 = vmatprep.subr.bf16.mxu0 %v2802
        %4817 = vmatpush1.bf16.msra.mxu0 %v2801
        %4818 = vmatprep.subr.bf16.mxu0 %v3042
        %4819 = vmatpush2.bf16.msra.mxu0 %v3041
        %4820 = vmatprep.subr.bf16.mxu0 %v3026
        %4821 = vmatpush2.bf16.msra.mxu0 %v3025
        %4822 = vmatprep.subr.bf16.mxu0 %v3010
        %4823 = vmatpush2.bf16.msra.mxu0 %v3009
        %4824 = vmatprep.subr.bf16.mxu0 %v2994
        %4825 = vmatpush2.bf16.msra.mxu0 %v2993
        %4826 = vmatprep.subr.bf16.mxu0 %v2978
        %4827 = vmatpush2.bf16.msra.mxu0 %v2977
        %4828 = vmatprep.subr.bf16.mxu0 %v2962
        %4829 = vmatpush2.bf16.msra.mxu0 %v2961
        %4830 = vmatprep.subr.bf16.mxu0 %v2946
        %4831 = vmatpush2.bf16.msra.mxu0 %v2945
        %4832 = vmatprep.subr.bf16.mxu0 %v2930
        %4833 = vmatpush2.bf16.msra.mxu0 %v2929
        %4834 = vmatprep.mubr.bf16.mxu0 %v374
        %4835 = vmatmul.mubr.bf16.gmra.mxu0 %v373
        %v4836 = vpop.f32.mrf.mxu0
        %v4837 = vadd.f32 %v4724, %v4836
        %v4838 = vpop.f32.mrf.mxu0
        %v4839 = vadd.f32 %v4726, %v4838
        %v4840 = vpop.f32.mrf.mxu0
        %v4841 = vadd.f32 %v4728, %v4840
        %v4842 = vpop.f32.mrf.mxu0
        %v4843 = vadd.f32 %v4730, %v4842
        %4844 = vmatprep.mubr.bf16.mxu0 %v378
        %4845 = vmatmul.mubr.bf16.gmra.mxu0 %v377
        %v4846 = vpop.f32.mrf.mxu0
        %v4847 = vadd.f32 %v4734, %v4846
        %v4848 = vpop.f32.mrf.mxu0
        %v4849 = vadd.f32 %v4736, %v4848
        %v4850 = vpop.f32.mrf.mxu0
        %v4851 = vadd.f32 %v4738, %v4850
        %v4852 = vpop.f32.mrf.mxu0
        %v4853 = vadd.f32 %v4740, %v4852
        %4854 = vmatprep.mubr.bf16.mxu0 %v382
        %4855 = vmatmul.mubr.bf16.gmra.mxu0 %v381
        %v4856 = vpop.f32.mrf.mxu0
        %v4857 = vadd.f32 %v4744, %v4856
        %v4858 = vpop.f32.mrf.mxu0
        %v4859 = vadd.f32 %v4746, %v4858
        %v4860 = vpop.f32.mrf.mxu0
        %v4861 = vadd.f32 %v4748, %v4860
        %v4862 = vpop.f32.mrf.mxu0
        %v4863 = vadd.f32 %v4750, %v4862
        %4864 = vmatprep.mubr.bf16.mxu0 %v386
        %4865 = vmatmul.mubr.bf16.gmra.mxu0 %v385
        %v4866 = vpop.f32.mrf.mxu0
        %v4867 = vadd.f32 %v4754, %v4866
        %v4868 = vpop.f32.mrf.mxu0
        %v4869 = vadd.f32 %v4756, %v4868
        %v4870 = vpop.f32.mrf.mxu0
        %v4871 = vadd.f32 %v4758, %v4870
        %v4872 = vpop.f32.mrf.mxu0
        %v4873 = vadd.f32 %v4760, %v4872
        %4874 = vmatprep.mubr.bf16.mxu0 %v390
        %4875 = vmatmul.mubr.bf16.gmra.mxu0 %v389
        %v4876 = vpop.f32.mrf.mxu0
        %v4877 = vadd.f32 %v4764, %v4876
        %v4878 = vpop.f32.mrf.mxu0
        %v4879 = vadd.f32 %v4766, %v4878
        %v4880 = vpop.f32.mrf.mxu0
        %v4881 = vadd.f32 %v4768, %v4880
        %v4882 = vpop.f32.mrf.mxu0
        %v4883 = vadd.f32 %v4770, %v4882
        %4884 = vmatprep.mubr.bf16.mxu0 %v394
        %4885 = vmatmul.mubr.bf16.gmra.mxu0 %v393
        %v4886 = vpop.f32.mrf.mxu0
        %v4887 = vadd.f32 %v4774, %v4886
        %v4888 = vpop.f32.mrf.mxu0
        %v4889 = vadd.f32 %v4776, %v4888
        %v4890 = vpop.f32.mrf.mxu0
        %v4891 = vadd.f32 %v4778, %v4890
        %v4892 = vpop.f32.mrf.mxu0
        %v4893 = vadd.f32 %v4780, %v4892
        %4894 = vmatprep.mubr.bf16.mxu0 %v398
        %4895 = vmatmul.mubr.bf16.gmra.mxu0 %v397
        %v4896 = vpop.f32.mrf.mxu0
        %v4897 = vadd.f32 %v4784, %v4896
        %v4898 = vpop.f32.mrf.mxu0
        %v4899 = vadd.f32 %v4786, %v4898
        %v4900 = vpop.f32.mrf.mxu0
        %v4901 = vadd.f32 %v4788, %v4900
        %v4902 = vpop.f32.mrf.mxu0
        %v4903 = vadd.f32 %v4790, %v4902
        %4904 = vmatprep.mubr.bf16.mxu0 %v402
        %4905 = vmatmul.mubr.bf16.gmra.mxu0 %v401
        %v4906 = vpop.f32.mrf.mxu0
        %v4907 = vadd.f32 %v4794, %v4906
        %v4908 = vpop.f32.mrf.mxu0
        %v4909 = vadd.f32 %v4796, %v4908
        %v4910 = vpop.f32.mrf.mxu0
        %v4911 = vadd.f32 %v4798, %v4910
        %v4912 = vpop.f32.mrf.mxu0
        %v4913 = vadd.f32 %v4800, %v4912
        %4914 = vdwg.mxu0
        %4915 = vmatprep.subr.bf16.mxu0 %v2660
        %4916 = vmatpush1.bf16.msra.mxu0 %v2659
        %4917 = vmatprep.subr.bf16.mxu0 %v2644
        %4918 = vmatpush1.bf16.msra.mxu0 %v2643
        %4919 = vmatprep.subr.bf16.mxu0 %v2628
        %4920 = vmatpush1.bf16.msra.mxu0 %v2627
        %4921 = vmatprep.subr.bf16.mxu0 %v2612
        %4922 = vmatpush1.bf16.msra.mxu0 %v2611
        %4923 = vmatprep.subr.bf16.mxu0 %v2596
        %4924 = vmatpush1.bf16.msra.mxu0 %v2595
        %4925 = vmatprep.subr.bf16.mxu0 %v2580
        %4926 = vmatpush1.bf16.msra.mxu0 %v2579
        %4927 = vmatprep.subr.bf16.mxu0 %v2564
        %4928 = vmatpush1.bf16.msra.mxu0 %v2563
        %4929 = vmatprep.subr.bf16.mxu0 %v2548
        %4930 = vmatpush1.bf16.msra.mxu0 %v2547
        %4931 = vmatprep.subr.bf16.mxu0 %v2788
        %4932 = vmatpush2.bf16.msra.mxu0 %v2787
        %4933 = vmatprep.subr.bf16.mxu0 %v2772
        %4934 = vmatpush2.bf16.msra.mxu0 %v2771
        %4935 = vmatprep.subr.bf16.mxu0 %v2756
        %4936 = vmatpush2.bf16.msra.mxu0 %v2755
        %4937 = vmatprep.subr.bf16.mxu0 %v2740
        %4938 = vmatpush2.bf16.msra.mxu0 %v2739
        %4939 = vmatprep.subr.bf16.mxu0 %v2724
        %4940 = vmatpush2.bf16.msra.mxu0 %v2723
        %4941 = vmatprep.subr.bf16.mxu0 %v2708
        %4942 = vmatpush2.bf16.msra.mxu0 %v2707
        %4943 = vmatprep.subr.bf16.mxu0 %v2692
        %4944 = vmatpush2.bf16.msra.mxu0 %v2691
        %4945 = vmatprep.subr.bf16.mxu0 %v2676
        %4946 = vmatpush2.bf16.msra.mxu0 %v2675
        %4947 = vmatprep.mubr.bf16.mxu0 %v372
        %4948 = vmatmul.mubr.bf16.gmra.mxu0 %v371
        %v4949 = vpop.f32.mrf.mxu0
        %v4950 = vadd.f32 %v970, %v4949
        %v4951 = vpop.f32.mrf.mxu0
        %v4952 = vadd.f32 %v974, %v4951
        %v4953 = vpop.f32.mrf.mxu0
        %v4954 = vadd.f32 %v970, %v4953
        %v4955 = vpop.f32.mrf.mxu0
        %v4956 = vadd.f32 %v974, %v4955
        %4957 = vmatprep.mubr.bf16.mxu0 %v376
        %4958 = vmatmul.mubr.bf16.gmra.mxu0 %v375
        %v4959 = vpop.f32.mrf.mxu0
        %v4960 = vadd.f32 %v970, %v4959
        %v4961 = vpop.f32.mrf.mxu0
        %v4962 = vadd.f32 %v974, %v4961
        %v4963 = vpop.f32.mrf.mxu0
        %v4964 = vadd.f32 %v970, %v4963
        %v4965 = vpop.f32.mrf.mxu0
        %v4966 = vadd.f32 %v974, %v4965
        %4967 = vmatprep.mubr.bf16.mxu0 %v380
        %4968 = vmatmul.mubr.bf16.gmra.mxu0 %v379
        %v4969 = vpop.f32.mrf.mxu0
        %v4970 = vadd.f32 %v970, %v4969
        %v4971 = vpop.f32.mrf.mxu0
        %v4972 = vadd.f32 %v974, %v4971
        %v4973 = vpop.f32.mrf.mxu0
        %v4974 = vadd.f32 %v970, %v4973
        %v4975 = vpop.f32.mrf.mxu0
        %v4976 = vadd.f32 %v974, %v4975
        %4977 = vmatprep.mubr.bf16.mxu0 %v384
        %4978 = vmatmul.mubr.bf16.gmra.mxu0 %v383
        %v4979 = vpop.f32.mrf.mxu0
        %v4980 = vadd.f32 %v970, %v4979
        %v4981 = vpop.f32.mrf.mxu0
        %v4982 = vadd.f32 %v974, %v4981
        %v4983 = vpop.f32.mrf.mxu0
        %v4984 = vadd.f32 %v970, %v4983
        %v4985 = vpop.f32.mrf.mxu0
        %v4986 = vadd.f32 %v974, %v4985
        %4987 = vmatprep.mubr.bf16.mxu0 %v388
        %4988 = vmatmul.mubr.bf16.gmra.mxu0 %v387
        %v4989 = vpop.f32.mrf.mxu0
        %v4990 = vadd.f32 %v970, %v4989
        %v4991 = vpop.f32.mrf.mxu0
        %v4992 = vadd.f32 %v974, %v4991
        %v4993 = vpop.f32.mrf.mxu0
        %v4994 = vadd.f32 %v970, %v4993
        %v4995 = vpop.f32.mrf.mxu0
        %v4996 = vadd.f32 %v974, %v4995
        %4997 = vmatprep.mubr.bf16.mxu0 %v392
        %4998 = vmatmul.mubr.bf16.gmra.mxu0 %v391
        %v4999 = vpop.f32.mrf.mxu0
        %v5000 = vadd.f32 %v970, %v4999
        %v5001 = vpop.f32.mrf.mxu0
        %v5002 = vadd.f32 %v974, %v5001
        %v5003 = vpop.f32.mrf.mxu0
        %v5004 = vadd.f32 %v970, %v5003
        %v5005 = vpop.f32.mrf.mxu0
        %v5006 = vadd.f32 %v974, %v5005
        %5007 = vmatprep.mubr.bf16.mxu0 %v396
        %5008 = vmatmul.mubr.bf16.gmra.mxu0 %v395
        %v5009 = vpop.f32.mrf.mxu0
        %v5010 = vadd.f32 %v970, %v5009
        %v5011 = vpop.f32.mrf.mxu0
        %v5012 = vadd.f32 %v974, %v5011
        %v5013 = vpop.f32.mrf.mxu0
        %v5014 = vadd.f32 %v970, %v5013
        %v5015 = vpop.f32.mrf.mxu0
        %v5016 = vadd.f32 %v974, %v5015
        %5017 = vmatprep.mubr.bf16.mxu0 %v400
        %5018 = vmatmul.mubr.bf16.gmra.mxu0 %v399
        %v5019 = vpop.f32.mrf.mxu0
        %v5020 = vadd.f32 %v970, %v5019
        %v5021 = vpop.f32.mrf.mxu0
        %v5022 = vadd.f32 %v974, %v5021
        %v5023 = vpop.f32.mrf.mxu0
        %v5024 = vadd.f32 %v970, %v5023
        %v5025 = vpop.f32.mrf.mxu0
        %v5026 = vadd.f32 %v974, %v5025
        %5027 = vdwg.mxu0
        %5028 = vmatprep.subr.bf16.mxu0 %v2916
        %5029 = vmatpush1.bf16.msra.mxu0 %v2915
        %5030 = vmatprep.subr.bf16.mxu0 %v2900
        %5031 = vmatpush1.bf16.msra.mxu0 %v2899
        %5032 = vmatprep.subr.bf16.mxu0 %v2884
        %5033 = vmatpush1.bf16.msra.mxu0 %v2883
        %5034 = vmatprep.subr.bf16.mxu0 %v2868
        %5035 = vmatpush1.bf16.msra.mxu0 %v2867
        %5036 = vmatprep.subr.bf16.mxu0 %v2852
        %5037 = vmatpush1.bf16.msra.mxu0 %v2851
        %5038 = vmatprep.subr.bf16.mxu0 %v2836
        %5039 = vmatpush1.bf16.msra.mxu0 %v2835
        %5040 = vmatprep.subr.bf16.mxu0 %v2820
        %5041 = vmatpush1.bf16.msra.mxu0 %v2819
        %5042 = vmatprep.subr.bf16.mxu0 %v2804
        %5043 = vmatpush1.bf16.msra.mxu0 %v2803
        %5044 = vmatprep.subr.bf16.mxu0 %v3044
        %5045 = vmatpush2.bf16.msra.mxu0 %v3043
        %5046 = vmatprep.subr.bf16.mxu0 %v3028
        %5047 = vmatpush2.bf16.msra.mxu0 %v3027
        %5048 = vmatprep.subr.bf16.mxu0 %v3012
        %5049 = vmatpush2.bf16.msra.mxu0 %v3011
        %5050 = vmatprep.subr.bf16.mxu0 %v2996
        %5051 = vmatpush2.bf16.msra.mxu0 %v2995
        %5052 = vmatprep.subr.bf16.mxu0 %v2980
        %5053 = vmatpush2.bf16.msra.mxu0 %v2979
        %5054 = vmatprep.subr.bf16.mxu0 %v2964
        %5055 = vmatpush2.bf16.msra.mxu0 %v2963
        %5056 = vmatprep.subr.bf16.mxu0 %v2948
        %5057 = vmatpush2.bf16.msra.mxu0 %v2947
        %5058 = vmatprep.subr.bf16.mxu0 %v2932
        %5059 = vmatpush2.bf16.msra.mxu0 %v2931
        %5060 = vmatprep.mubr.bf16.mxu0 %v374
        %5061 = vmatmul.mubr.bf16.gmra.mxu0 %v373
        %v5062 = vpop.f32.mrf.mxu0
        %v5063 = vadd.f32 %v4950, %v5062
        %v5064 = vpop.f32.mrf.mxu0
        %v5065 = vadd.f32 %v4952, %v5064
        %v5066 = vpop.f32.mrf.mxu0
        %v5067 = vadd.f32 %v4954, %v5066
        %v5068 = vpop.f32.mrf.mxu0
        %v5069 = vadd.f32 %v4956, %v5068
        %5070 = vmatprep.mubr.bf16.mxu0 %v378
        %5071 = vmatmul.mubr.bf16.gmra.mxu0 %v377
        %v5072 = vpop.f32.mrf.mxu0
        %v5073 = vadd.f32 %v4960, %v5072
        %v5074 = vpop.f32.mrf.mxu0
        %v5075 = vadd.f32 %v4962, %v5074
        %v5076 = vpop.f32.mrf.mxu0
        %v5077 = vadd.f32 %v4964, %v5076
        %v5078 = vpop.f32.mrf.mxu0
        %v5079 = vadd.f32 %v4966, %v5078
        %5080 = vmatprep.mubr.bf16.mxu0 %v382
        %5081 = vmatmul.mubr.bf16.gmra.mxu0 %v381
        %v5082 = vpop.f32.mrf.mxu0
        %v5083 = vadd.f32 %v4970, %v5082
        %v5084 = vpop.f32.mrf.mxu0
        %v5085 = vadd.f32 %v4972, %v5084
        %v5086 = vpop.f32.mrf.mxu0
        %v5087 = vadd.f32 %v4974, %v5086
        %v5088 = vpop.f32.mrf.mxu0
        %v5089 = vadd.f32 %v4976, %v5088
        %5090 = vmatprep.mubr.bf16.mxu0 %v386
        %5091 = vmatmul.mubr.bf16.gmra.mxu0 %v385
        %v5092 = vpop.f32.mrf.mxu0
        %v5093 = vadd.f32 %v4980, %v5092
        %v5094 = vpop.f32.mrf.mxu0
        %v5095 = vadd.f32 %v4982, %v5094
        %v5096 = vpop.f32.mrf.mxu0
        %v5097 = vadd.f32 %v4984, %v5096
        %v5098 = vpop.f32.mrf.mxu0
        %v5099 = vadd.f32 %v4986, %v5098
        %5100 = vmatprep.mubr.bf16.mxu0 %v390
        %5101 = vmatmul.mubr.bf16.gmra.mxu0 %v389
        %v5102 = vpop.f32.mrf.mxu0
        %v5103 = vadd.f32 %v4990, %v5102
        %v5104 = vpop.f32.mrf.mxu0
        %v5105 = vadd.f32 %v4992, %v5104
        %v5106 = vpop.f32.mrf.mxu0
        %v5107 = vadd.f32 %v4994, %v5106
        %v5108 = vpop.f32.mrf.mxu0
        %v5109 = vadd.f32 %v4996, %v5108
        %5110 = vmatprep.mubr.bf16.mxu0 %v394
        %5111 = vmatmul.mubr.bf16.gmra.mxu0 %v393
        %v5112 = vpop.f32.mrf.mxu0
        %v5113 = vadd.f32 %v5000, %v5112
        %v5114 = vpop.f32.mrf.mxu0
        %v5115 = vadd.f32 %v5002, %v5114
        %v5116 = vpop.f32.mrf.mxu0
        %v5117 = vadd.f32 %v5004, %v5116
        %v5118 = vpop.f32.mrf.mxu0
        %v5119 = vadd.f32 %v5006, %v5118
        %5120 = vmatprep.mubr.bf16.mxu0 %v398
        %5121 = vmatmul.mubr.bf16.gmra.mxu0 %v397
        %v5122 = vpop.f32.mrf.mxu0
        %v5123 = vadd.f32 %v5010, %v5122
        %v5124 = vpop.f32.mrf.mxu0
        %v5125 = vadd.f32 %v5012, %v5124
        %v5126 = vpop.f32.mrf.mxu0
        %v5127 = vadd.f32 %v5014, %v5126
        %v5128 = vpop.f32.mrf.mxu0
        %v5129 = vadd.f32 %v5016, %v5128
        %5130 = vmatprep.mubr.bf16.mxu0 %v402
        %5131 = vmatmul.mubr.bf16.gmra.mxu0 %v401
        %v5132 = vpop.f32.mrf.mxu0
        %v5133 = vadd.f32 %v5020, %v5132
        %v5134 = vpop.f32.mrf.mxu0
        %v5135 = vadd.f32 %v5022, %v5134
        %v5136 = vpop.f32.mrf.mxu0
        %v5137 = vadd.f32 %v5024, %v5136
        %v5138 = vpop.f32.mrf.mxu0
        %v5139 = vadd.f32 %v5026, %v5138
        %5140 = vdwg.mxu0
        %5141 = vmatprep.subr.bf16.mxu0 %v2662
        %5142 = vmatpush1.bf16.msra.mxu0 %v2661
        %5143 = vmatprep.subr.bf16.mxu0 %v2646
        %5144 = vmatpush1.bf16.msra.mxu0 %v2645
        %5145 = vmatprep.subr.bf16.mxu0 %v2630
        %5146 = vmatpush1.bf16.msra.mxu0 %v2629
        %5147 = vmatprep.subr.bf16.mxu0 %v2614
        %5148 = vmatpush1.bf16.msra.mxu0 %v2613
        %5149 = vmatprep.subr.bf16.mxu0 %v2598
        %5150 = vmatpush1.bf16.msra.mxu0 %v2597
        %5151 = vmatprep.subr.bf16.mxu0 %v2582
        %5152 = vmatpush1.bf16.msra.mxu0 %v2581
        %5153 = vmatprep.subr.bf16.mxu0 %v2566
        %5154 = vmatpush1.bf16.msra.mxu0 %v2565
        %5155 = vmatprep.subr.bf16.mxu0 %v2550
        %5156 = vmatpush1.bf16.msra.mxu0 %v2549
        %5157 = vmatprep.subr.bf16.mxu0 %v2790
        %5158 = vmatpush2.bf16.msra.mxu0 %v2789
        %5159 = vmatprep.subr.bf16.mxu0 %v2774
        %5160 = vmatpush2.bf16.msra.mxu0 %v2773
        %5161 = vmatprep.subr.bf16.mxu0 %v2758
        %5162 = vmatpush2.bf16.msra.mxu0 %v2757
        %5163 = vmatprep.subr.bf16.mxu0 %v2742
        %5164 = vmatpush2.bf16.msra.mxu0 %v2741
        %5165 = vmatprep.subr.bf16.mxu0 %v2726
        %5166 = vmatpush2.bf16.msra.mxu0 %v2725
        %5167 = vmatprep.subr.bf16.mxu0 %v2710
        %5168 = vmatpush2.bf16.msra.mxu0 %v2709
        %5169 = vmatprep.subr.bf16.mxu0 %v2694
        %5170 = vmatpush2.bf16.msra.mxu0 %v2693
        %5171 = vmatprep.subr.bf16.mxu0 %v2678
        %5172 = vmatpush2.bf16.msra.mxu0 %v2677
        %5173 = vmatprep.mubr.bf16.mxu0 %v372
        %5174 = vmatmul.mubr.bf16.gmra.mxu0 %v371
        %v5175 = vpop.f32.mrf.mxu0
        %v5176 = vadd.f32 %v978, %v5175
        %v5177 = vpop.f32.mrf.mxu0
        %v5178 = vadd.f32 %v982, %v5177
        %v5179 = vpop.f32.mrf.mxu0
        %v5180 = vadd.f32 %v978, %v5179
        %v5181 = vpop.f32.mrf.mxu0
        %v5182 = vadd.f32 %v982, %v5181
        %5183 = vmatprep.mubr.bf16.mxu0 %v376
        %5184 = vmatmul.mubr.bf16.gmra.mxu0 %v375
        %v5185 = vpop.f32.mrf.mxu0
        %v5186 = vadd.f32 %v978, %v5185
        %v5187 = vpop.f32.mrf.mxu0
        %v5188 = vadd.f32 %v982, %v5187
        %v5189 = vpop.f32.mrf.mxu0
        %v5190 = vadd.f32 %v978, %v5189
        %v5191 = vpop.f32.mrf.mxu0
        %v5192 = vadd.f32 %v982, %v5191
        %5193 = vmatprep.mubr.bf16.mxu0 %v380
        %5194 = vmatmul.mubr.bf16.gmra.mxu0 %v379
        %v5195 = vpop.f32.mrf.mxu0
        %v5196 = vadd.f32 %v978, %v5195
        %v5197 = vpop.f32.mrf.mxu0
        %v5198 = vadd.f32 %v982, %v5197
        %v5199 = vpop.f32.mrf.mxu0
        %v5200 = vadd.f32 %v978, %v5199
        %v5201 = vpop.f32.mrf.mxu0
        %v5202 = vadd.f32 %v982, %v5201
        %5203 = vmatprep.mubr.bf16.mxu0 %v384
        %5204 = vmatmul.mubr.bf16.gmra.mxu0 %v383
        %v5205 = vpop.f32.mrf.mxu0
        %v5206 = vadd.f32 %v978, %v5205
        %v5207 = vpop.f32.mrf.mxu0
        %v5208 = vadd.f32 %v982, %v5207
        %v5209 = vpop.f32.mrf.mxu0
        %v5210 = vadd.f32 %v978, %v5209
        %v5211 = vpop.f32.mrf.mxu0
        %v5212 = vadd.f32 %v982, %v5211
        %5213 = vmatprep.mubr.bf16.mxu0 %v388
        %5214 = vmatmul.mubr.bf16.gmra.mxu0 %v387
        %v5215 = vpop.f32.mrf.mxu0
        %v5216 = vadd.f32 %v978, %v5215
        %v5217 = vpop.f32.mrf.mxu0
        %v5218 = vadd.f32 %v982, %v5217
        %v5219 = vpop.f32.mrf.mxu0
        %v5220 = vadd.f32 %v978, %v5219
        %v5221 = vpop.f32.mrf.mxu0
        %v5222 = vadd.f32 %v982, %v5221
        %5223 = vmatprep.mubr.bf16.mxu0 %v392
        %5224 = vmatmul.mubr.bf16.gmra.mxu0 %v391
        %v5225 = vpop.f32.mrf.mxu0
        %v5226 = vadd.f32 %v978, %v5225
        %v5227 = vpop.f32.mrf.mxu0
        %v5228 = vadd.f32 %v982, %v5227
        %v5229 = vpop.f32.mrf.mxu0
        %v5230 = vadd.f32 %v978, %v5229
        %v5231 = vpop.f32.mrf.mxu0
        %v5232 = vadd.f32 %v982, %v5231
        %5233 = vmatprep.mubr.bf16.mxu0 %v396
        %5234 = vmatmul.mubr.bf16.gmra.mxu0 %v395
        %v5235 = vpop.f32.mrf.mxu0
        %v5236 = vadd.f32 %v978, %v5235
        %v5237 = vpop.f32.mrf.mxu0
        %v5238 = vadd.f32 %v982, %v5237
        %v5239 = vpop.f32.mrf.mxu0
        %v5240 = vadd.f32 %v978, %v5239
        %v5241 = vpop.f32.mrf.mxu0
        %v5242 = vadd.f32 %v982, %v5241
        %5243 = vmatprep.mubr.bf16.mxu0 %v400
        %5244 = vmatmul.mubr.bf16.gmra.mxu0 %v399
        %v5245 = vpop.f32.mrf.mxu0
        %v5246 = vadd.f32 %v978, %v5245
        %v5247 = vpop.f32.mrf.mxu0
        %v5248 = vadd.f32 %v982, %v5247
        %v5249 = vpop.f32.mrf.mxu0
        %v5250 = vadd.f32 %v978, %v5249
        %v5251 = vpop.f32.mrf.mxu0
        %v5252 = vadd.f32 %v982, %v5251
        %5253 = vdwg.mxu0
        %5254 = vmatprep.subr.bf16.mxu0 %v2918
        %5255 = vmatpush1.bf16.msra.mxu0 %v2917
        %5256 = vmatprep.subr.bf16.mxu0 %v2902
        %5257 = vmatpush1.bf16.msra.mxu0 %v2901
        %5258 = vmatprep.subr.bf16.mxu0 %v2886
        %5259 = vmatpush1.bf16.msra.mxu0 %v2885
        %5260 = vmatprep.subr.bf16.mxu0 %v2870
        %5261 = vmatpush1.bf16.msra.mxu0 %v2869
        %5262 = vmatprep.subr.bf16.mxu0 %v2854
        %5263 = vmatpush1.bf16.msra.mxu0 %v2853
        %5264 = vmatprep.subr.bf16.mxu0 %v2838
        %5265 = vmatpush1.bf16.msra.mxu0 %v2837
        %5266 = vmatprep.subr.bf16.mxu0 %v2822
        %5267 = vmatpush1.bf16.msra.mxu0 %v2821
        %5268 = vmatprep.subr.bf16.mxu0 %v2806
        %5269 = vmatpush1.bf16.msra.mxu0 %v2805
        %5270 = vmatprep.subr.bf16.mxu0 %v3046
        %5271 = vmatpush2.bf16.msra.mxu0 %v3045
        %5272 = vmatprep.subr.bf16.mxu0 %v3030
        %5273 = vmatpush2.bf16.msra.mxu0 %v3029
        %5274 = vmatprep.subr.bf16.mxu0 %v3014
        %5275 = vmatpush2.bf16.msra.mxu0 %v3013
        %5276 = vmatprep.subr.bf16.mxu0 %v2998
        %5277 = vmatpush2.bf16.msra.mxu0 %v2997
        %5278 = vmatprep.subr.bf16.mxu0 %v2982
        %5279 = vmatpush2.bf16.msra.mxu0 %v2981
        %5280 = vmatprep.subr.bf16.mxu0 %v2966
        %5281 = vmatpush2.bf16.msra.mxu0 %v2965
        %5282 = vmatprep.subr.bf16.mxu0 %v2950
        %5283 = vmatpush2.bf16.msra.mxu0 %v2949
        %5284 = vmatprep.subr.bf16.mxu0 %v2934
        %5285 = vmatpush2.bf16.msra.mxu0 %v2933
        %5286 = vmatprep.mubr.bf16.mxu0 %v374
        %5287 = vmatmul.mubr.bf16.gmra.mxu0 %v373
        %v5288 = vpop.f32.mrf.mxu0
        %v5289 = vadd.f32 %v5176, %v5288
        %v5290 = vpop.f32.mrf.mxu0
        %v5291 = vadd.f32 %v5178, %v5290
        %v5292 = vpop.f32.mrf.mxu0
        %v5293 = vadd.f32 %v5180, %v5292
        %v5294 = vpop.f32.mrf.mxu0
        %v5295 = vadd.f32 %v5182, %v5294
        %5296 = vmatprep.mubr.bf16.mxu0 %v378
        %5297 = vmatmul.mubr.bf16.gmra.mxu0 %v377
        %v5298 = vpop.f32.mrf.mxu0
        %v5299 = vadd.f32 %v5186, %v5298
        %v5300 = vpop.f32.mrf.mxu0
        %v5301 = vadd.f32 %v5188, %v5300
        %v5302 = vpop.f32.mrf.mxu0
        %v5303 = vadd.f32 %v5190, %v5302
        %v5304 = vpop.f32.mrf.mxu0
        %v5305 = vadd.f32 %v5192, %v5304
        %5306 = vmatprep.mubr.bf16.mxu0 %v382
        %5307 = vmatmul.mubr.bf16.gmra.mxu0 %v381
        %v5308 = vpop.f32.mrf.mxu0
        %v5309 = vadd.f32 %v5196, %v5308
        %v5310 = vpop.f32.mrf.mxu0
        %v5311 = vadd.f32 %v5198, %v5310
        %v5312 = vpop.f32.mrf.mxu0
        %v5313 = vadd.f32 %v5200, %v5312
        %v5314 = vpop.f32.mrf.mxu0
        %v5315 = vadd.f32 %v5202, %v5314
        %5316 = vmatprep.mubr.bf16.mxu0 %v386
        %5317 = vmatmul.mubr.bf16.gmra.mxu0 %v385
        %v5318 = vpop.f32.mrf.mxu0
        %v5319 = vadd.f32 %v5206, %v5318
        %v5320 = vpop.f32.mrf.mxu0
        %v5321 = vadd.f32 %v5208, %v5320
        %v5322 = vpop.f32.mrf.mxu0
        %v5323 = vadd.f32 %v5210, %v5322
        %v5324 = vpop.f32.mrf.mxu0
        %v5325 = vadd.f32 %v5212, %v5324
        %5326 = vmatprep.mubr.bf16.mxu0 %v390
        %5327 = vmatmul.mubr.bf16.gmra.mxu0 %v389
        %v5328 = vpop.f32.mrf.mxu0
        %v5329 = vadd.f32 %v5216, %v5328
        %v5330 = vpop.f32.mrf.mxu0
        %v5331 = vadd.f32 %v5218, %v5330
        %v5332 = vpop.f32.mrf.mxu0
        %v5333 = vadd.f32 %v5220, %v5332
        %v5334 = vpop.f32.mrf.mxu0
        %v5335 = vadd.f32 %v5222, %v5334
        %5336 = vmatprep.mubr.bf16.mxu0 %v394
        %5337 = vmatmul.mubr.bf16.gmra.mxu0 %v393
        %v5338 = vpop.f32.mrf.mxu0
        %v5339 = vadd.f32 %v5226, %v5338
        %v5340 = vpop.f32.mrf.mxu0
        %v5341 = vadd.f32 %v5228, %v5340
        %v5342 = vpop.f32.mrf.mxu0
        %v5343 = vadd.f32 %v5230, %v5342
        %v5344 = vpop.f32.mrf.mxu0
        %v5345 = vadd.f32 %v5232, %v5344
        %5346 = vmatprep.mubr.bf16.mxu0 %v398
        %5347 = vmatmul.mubr.bf16.gmra.mxu0 %v397
        %v5348 = vpop.f32.mrf.mxu0
        %v5349 = vadd.f32 %v5236, %v5348
        %v5350 = vpop.f32.mrf.mxu0
        %v5351 = vadd.f32 %v5238, %v5350
        %v5352 = vpop.f32.mrf.mxu0
        %v5353 = vadd.f32 %v5240, %v5352
        %v5354 = vpop.f32.mrf.mxu0
        %v5355 = vadd.f32 %v5242, %v5354
        %5356 = vmatprep.mubr.bf16.mxu0 %v402
        %5357 = vmatmul.mubr.bf16.gmra.mxu0 %v401
        %v5358 = vpop.f32.mrf.mxu0
        %v5359 = vadd.f32 %v5246, %v5358
        %v5360 = vpop.f32.mrf.mxu0
        %v5361 = vadd.f32 %v5248, %v5360
        %v5362 = vpop.f32.mrf.mxu0
        %v5363 = vadd.f32 %v5250, %v5362
        %v5364 = vpop.f32.mrf.mxu0
        %v5365 = vadd.f32 %v5252, %v5364
        %5366 = vdwg.mxu0
        %v5367 = vmax.f32 %v3707, 0.0
        %v5368 = vmax.f32 %v3709, 0.0
        %v5369 = vmax.f32 %v3933, 0.0
        %v5370 = vmax.f32 %v3935, 0.0
        %v5371 = vmax.f32 %v4159, 0.0
        %v5372 = vmax.f32 %v4161, 0.0
        %v5373 = vmax.f32 %v4385, 0.0
        %v5374 = vmax.f32 %v4387, 0.0
        %v5375 = vmax.f32 %v4611, 0.0
        %v5376 = vmax.f32 %v4613, 0.0
        %v5377 = vmax.f32 %v4837, 0.0
        %v5378 = vmax.f32 %v4839, 0.0
        %v5379 = vmax.f32 %v5063, 0.0
        %v5380 = vmax.f32 %v5065, 0.0
        %v5381 = vmax.f32 %v5289, 0.0
        %v5382 = vmax.f32 %v5291, 0.0
        %v5383 = vmax.f32 %v3711, 0.0
        %v5384 = vmax.f32 %v3713, 0.0
        %v5385 = vmax.f32 %v3937, 0.0
        %v5386 = vmax.f32 %v3939, 0.0
        %v5387 = vmax.f32 %v4163, 0.0
        %v5388 = vmax.f32 %v4165, 0.0
        %v5389 = vmax.f32 %v4389, 0.0
        %v5390 = vmax.f32 %v4391, 0.0
        %v5391 = vmax.f32 %v4615, 0.0
        %v5392 = vmax.f32 %v4617, 0.0
        %v5393 = vmax.f32 %v4841, 0.0
        %v5394 = vmax.f32 %v4843, 0.0
        %v5395 = vmax.f32 %v5067, 0.0
        %v5396 = vmax.f32 %v5069, 0.0
        %v5397 = vmax.f32 %v5293, 0.0
        %v5398 = vmax.f32 %v5295, 0.0
        %v5399 = vmax.f32 %v3717, 0.0
        %v5400 = vmax.f32 %v3719, 0.0
        %v5401 = vmax.f32 %v3943, 0.0
        %v5402 = vmax.f32 %v3945, 0.0
        %v5403 = vmax.f32 %v4169, 0.0
        %v5404 = vmax.f32 %v4171, 0.0
        %v5405 = vmax.f32 %v4395, 0.0
        %v5406 = vmax.f32 %v4397, 0.0
        %v5407 = vmax.f32 %v4621, 0.0
        %v5408 = vmax.f32 %v4623, 0.0
        %v5409 = vmax.f32 %v4847, 0.0
        %v5410 = vmax.f32 %v4849, 0.0
        %v5411 = vmax.f32 %v5073, 0.0
        %v5412 = vmax.f32 %v5075, 0.0
        %v5413 = vmax.f32 %v5299, 0.0
        %v5414 = vmax.f32 %v5301, 0.0
        %v5415 = vmax.f32 %v3721, 0.0
        %v5416 = vmax.f32 %v3723, 0.0
        %v5417 = vmax.f32 %v3947, 0.0
        %v5418 = vmax.f32 %v3949, 0.0
        %v5419 = vmax.f32 %v4173, 0.0
        %v5420 = vmax.f32 %v4175, 0.0
        %v5421 = vmax.f32 %v4399, 0.0
        %v5422 = vmax.f32 %v4401, 0.0
        %v5423 = vmax.f32 %v4625, 0.0
        %v5424 = vmax.f32 %v4627, 0.0
        %v5425 = vmax.f32 %v4851, 0.0
        %v5426 = vmax.f32 %v4853, 0.0
        %v5427 = vmax.f32 %v5077, 0.0
        %v5428 = vmax.f32 %v5079, 0.0
        %v5429 = vmax.f32 %v5303, 0.0
        %v5430 = vmax.f32 %v5305, 0.0
        %v5431 = vmax.f32 %v3727, 0.0
        %v5432 = vmax.f32 %v3729, 0.0
        %v5433 = vmax.f32 %v3953, 0.0
        %v5434 = vmax.f32 %v3955, 0.0
        %v5435 = vmax.f32 %v4179, 0.0
        %v5436 = vmax.f32 %v4181, 0.0
        %v5437 = vmax.f32 %v4405, 0.0
        %v5438 = vmax.f32 %v4407, 0.0
        %v5439 = vmax.f32 %v4631, 0.0
        %v5440 = vmax.f32 %v4633, 0.0
        %v5441 = vmax.f32 %v4857, 0.0
        %v5442 = vmax.f32 %v4859, 0.0
        %v5443 = vmax.f32 %v5083, 0.0
        %v5444 = vmax.f32 %v5085, 0.0
        %v5445 = vmax.f32 %v5309, 0.0
        %v5446 = vmax.f32 %v5311, 0.0
        %v5447 = vmax.f32 %v3731, 0.0
        %v5448 = vmax.f32 %v3733, 0.0
        %v5449 = vmax.f32 %v3957, 0.0
        %v5450 = vmax.f32 %v3959, 0.0
        %v5451 = vmax.f32 %v4183, 0.0
        %v5452 = vmax.f32 %v4185, 0.0
        %v5453 = vmax.f32 %v4409, 0.0
        %v5454 = vmax.f32 %v4411, 0.0
        %v5455 = vmax.f32 %v4635, 0.0
        %v5456 = vmax.f32 %v4637, 0.0
        %v5457 = vmax.f32 %v4861, 0.0
        %v5458 = vmax.f32 %v4863, 0.0
        %v5459 = vmax.f32 %v5087, 0.0
        %v5460 = vmax.f32 %v5089, 0.0
        %v5461 = vmax.f32 %v5313, 0.0
        %v5462 = vmax.f32 %v5315, 0.0
        %v5463 = vmax.f32 %v3737, 0.0
        %v5464 = vmax.f32 %v3739, 0.0
        %v5465 = vmax.f32 %v3963, 0.0
        %v5466 = vmax.f32 %v3965, 0.0
        %v5467 = vmax.f32 %v4189, 0.0
        %v5468 = vmax.f32 %v4191, 0.0
        %v5469 = vmax.f32 %v4415, 0.0
        %v5470 = vmax.f32 %v4417, 0.0
        %v5471 = vmax.f32 %v4641, 0.0
        %v5472 = vmax.f32 %v4643, 0.0
        %v5473 = vmax.f32 %v4867, 0.0
        %v5474 = vmax.f32 %v4869, 0.0
        %v5475 = vmax.f32 %v5093, 0.0
        %v5476 = vmax.f32 %v5095, 0.0
        %v5477 = vmax.f32 %v5319, 0.0
        %v5478 = vmax.f32 %v5321, 0.0
        %v5479 = vmax.f32 %v3741, 0.0
        %v5480 = vmax.f32 %v3743, 0.0
        %v5481 = vmax.f32 %v3967, 0.0
        %v5482 = vmax.f32 %v3969, 0.0
        %v5483 = vmax.f32 %v4193, 0.0
        %v5484 = vmax.f32 %v4195, 0.0
        %v5485 = vmax.f32 %v4419, 0.0
        %v5486 = vmax.f32 %v4421, 0.0
        %v5487 = vmax.f32 %v4645, 0.0
        %v5488 = vmax.f32 %v4647, 0.0
        %v5489 = vmax.f32 %v4871, 0.0
        %v5490 = vmax.f32 %v4873, 0.0
        %v5491 = vmax.f32 %v5097, 0.0
        %v5492 = vmax.f32 %v5099, 0.0
        %v5493 = vmax.f32 %v5323, 0.0
        %v5494 = vmax.f32 %v5325, 0.0
        %v5495 = vmax.f32 %v3747, 0.0
        %v5496 = vmax.f32 %v3749, 0.0
        %v5497 = vmax.f32 %v3973, 0.0
        %v5498 = vmax.f32 %v3975, 0.0
        %v5499 = vmax.f32 %v4199, 0.0
        %v5500 = vmax.f32 %v4201, 0.0
        %v5501 = vmax.f32 %v4425, 0.0
        %v5502 = vmax.f32 %v4427, 0.0
        %v5503 = vmax.f32 %v4651, 0.0
        %v5504 = vmax.f32 %v4653, 0.0
        %v5505 = vmax.f32 %v4877, 0.0
        %v5506 = vmax.f32 %v4879, 0.0
        %v5507 = vmax.f32 %v5103, 0.0
        %v5508 = vmax.f32 %v5105, 0.0
        %v5509 = vmax.f32 %v5329, 0.0
        %v5510 = vmax.f32 %v5331, 0.0
        %v5511 = vmax.f32 %v3751, 0.0
        %v5512 = vmax.f32 %v3753, 0.0
        %v5513 = vmax.f32 %v3977, 0.0
        %v5514 = vmax.f32 %v3979, 0.0
        %v5515 = vmax.f32 %v4203, 0.0
        %v5516 = vmax.f32 %v4205, 0.0
        %v5517 = vmax.f32 %v4429, 0.0
        %v5518 = vmax.f32 %v4431, 0.0
        %v5519 = vmax.f32 %v4655, 0.0
        %v5520 = vmax.f32 %v4657, 0.0
        %v5521 = vmax.f32 %v4881, 0.0
        %v5522 = vmax.f32 %v4883, 0.0
        %v5523 = vmax.f32 %v5107, 0.0
        %v5524 = vmax.f32 %v5109, 0.0
        %v5525 = vmax.f32 %v5333, 0.0
        %v5526 = vmax.f32 %v5335, 0.0
        %v5527 = vmax.f32 %v3757, 0.0
        %v5528 = vmax.f32 %v3759, 0.0
        %v5529 = vmax.f32 %v3983, 0.0
        %v5530 = vmax.f32 %v3985, 0.0
        %v5531 = vmax.f32 %v4209, 0.0
        %v5532 = vmax.f32 %v4211, 0.0
        %v5533 = vmax.f32 %v4435, 0.0
        %v5534 = vmax.f32 %v4437, 0.0
        %v5535 = vmax.f32 %v4661, 0.0
        %v5536 = vmax.f32 %v4663, 0.0
        %v5537 = vmax.f32 %v4887, 0.0
        %v5538 = vmax.f32 %v4889, 0.0
        %v5539 = vmax.f32 %v5113, 0.0
        %v5540 = vmax.f32 %v5115, 0.0
        %v5541 = vmax.f32 %v5339, 0.0
        %v5542 = vmax.f32 %v5341, 0.0
        %v5543 = vmax.f32 %v3761, 0.0
        %v5544 = vmax.f32 %v3763, 0.0
        %v5545 = vmax.f32 %v3987, 0.0
        %v5546 = vmax.f32 %v3989, 0.0
        %v5547 = vmax.f32 %v4213, 0.0
        %v5548 = vmax.f32 %v4215, 0.0
        %v5549 = vmax.f32 %v4439, 0.0
        %v5550 = vmax.f32 %v4441, 0.0
        %v5551 = vmax.f32 %v4665, 0.0
        %v5552 = vmax.f32 %v4667, 0.0
        %v5553 = vmax.f32 %v4891, 0.0
        %v5554 = vmax.f32 %v4893, 0.0
        %v5555 = vmax.f32 %v5117, 0.0
        %v5556 = vmax.f32 %v5119, 0.0
        %v5557 = vmax.f32 %v5343, 0.0
        %v5558 = vmax.f32 %v5345, 0.0
        %v5559 = vmax.f32 %v3767, 0.0
        %v5560 = vmax.f32 %v3769, 0.0
        %v5561 = vmax.f32 %v3993, 0.0
        %v5562 = vmax.f32 %v3995, 0.0
        %v5563 = vmax.f32 %v4219, 0.0
        %v5564 = vmax.f32 %v4221, 0.0
        %v5565 = vmax.f32 %v4445, 0.0
        %v5566 = vmax.f32 %v4447, 0.0
        %v5567 = vmax.f32 %v4671, 0.0
        %v5568 = vmax.f32 %v4673, 0.0
        %v5569 = vmax.f32 %v4897, 0.0
        %v5570 = vmax.f32 %v4899, 0.0
        %v5571 = vmax.f32 %v5123, 0.0
        %v5572 = vmax.f32 %v5125, 0.0
        %v5573 = vmax.f32 %v5349, 0.0
        %v5574 = vmax.f32 %v5351, 0.0
        %v5575 = vmax.f32 %v3771, 0.0
        %v5576 = vmax.f32 %v3773, 0.0
        %v5577 = vmax.f32 %v3997, 0.0
        %v5578 = vmax.f32 %v3999, 0.0
        %v5579 = vmax.f32 %v4223, 0.0
        %v5580 = vmax.f32 %v4225, 0.0
        %v5581 = vmax.f32 %v4449, 0.0
        %v5582 = vmax.f32 %v4451, 0.0
        %v5583 = vmax.f32 %v4675, 0.0
        %v5584 = vmax.f32 %v4677, 0.0
        %v5585 = vmax.f32 %v4901, 0.0
        %v5586 = vmax.f32 %v4903, 0.0
        %v5587 = vmax.f32 %v5127, 0.0
        %v5588 = vmax.f32 %v5129, 0.0
        %v5589 = vmax.f32 %v5353, 0.0
        %v5590 = vmax.f32 %v5355, 0.0
        %v5591 = vmax.f32 %v3777, 0.0
        %v5592 = vmax.f32 %v3779, 0.0
        %v5593 = vmax.f32 %v4003, 0.0
        %v5594 = vmax.f32 %v4005, 0.0
        %v5595 = vmax.f32 %v4229, 0.0
        %v5596 = vmax.f32 %v4231, 0.0
        %v5597 = vmax.f32 %v4455, 0.0
        %v5598 = vmax.f32 %v4457, 0.0
        %v5599 = vmax.f32 %v4681, 0.0
        %v5600 = vmax.f32 %v4683, 0.0
        %v5601 = vmax.f32 %v4907, 0.0
        %v5602 = vmax.f32 %v4909, 0.0
        %v5603 = vmax.f32 %v5133, 0.0
        %v5604 = vmax.f32 %v5135, 0.0
        %v5605 = vmax.f32 %v5359, 0.0
        %v5606 = vmax.f32 %v5361, 0.0
        %v5607 = vmax.f32 %v3781, 0.0
        %v5608 = vmax.f32 %v3783, 0.0
        %v5609 = vmax.f32 %v4007, 0.0
        %v5610 = vmax.f32 %v4009, 0.0
        %v5611 = vmax.f32 %v4233, 0.0
        %v5612 = vmax.f32 %v4235, 0.0
        %v5613 = vmax.f32 %v4459, 0.0
        %v5614 = vmax.f32 %v4461, 0.0
        %v5615 = vmax.f32 %v4685, 0.0
        %v5616 = vmax.f32 %v4687, 0.0
        %v5617 = vmax.f32 %v4911, 0.0
        %v5618 = vmax.f32 %v4913, 0.0
        %v5619 = vmax.f32 %v5137, 0.0
        %v5620 = vmax.f32 %v5139, 0.0
        %v5621 = vmax.f32 %v5363, 0.0
        %v5622 = vmax.f32 %v5365, 0.0
        %v5623 = vpack.c.bf16 %v5383, %v5367
        %v5624 = vpack.c.bf16 %v5384, %v5368
        %v5625 = vpack.c.bf16 %v5385, %v5369
        %v5626 = vpack.c.bf16 %v5386, %v5370
        %v5627 = vpack.c.bf16 %v5387, %v5371
        %v5628 = vpack.c.bf16 %v5388, %v5372
        %v5629 = vpack.c.bf16 %v5389, %v5373
        %v5630 = vpack.c.bf16 %v5390, %v5374
        %v5631 = vpack.c.bf16 %v5391, %v5375
        %v5632 = vpack.c.bf16 %v5392, %v5376
        %v5633 = vpack.c.bf16 %v5393, %v5377
        %v5634 = vpack.c.bf16 %v5394, %v5378
        %v5635 = vpack.c.bf16 %v5395, %v5379
        %v5636 = vpack.c.bf16 %v5396, %v5380
        %v5637 = vpack.c.bf16 %v5397, %v5381
        %v5638 = vpack.c.bf16 %v5398, %v5382
        %v5639 = vpack.c.bf16 %v5415, %v5399
        %v5640 = vpack.c.bf16 %v5416, %v5400
        %v5641 = vpack.c.bf16 %v5417, %v5401
        %v5642 = vpack.c.bf16 %v5418, %v5402
        %v5643 = vpack.c.bf16 %v5419, %v5403
        %v5644 = vpack.c.bf16 %v5420, %v5404
        %v5645 = vpack.c.bf16 %v5421, %v5405
        %v5646 = vpack.c.bf16 %v5422, %v5406
        %v5647 = vpack.c.bf16 %v5423, %v5407
        %v5648 = vpack.c.bf16 %v5424, %v5408
        %v5649 = vpack.c.bf16 %v5425, %v5409
        %v5650 = vpack.c.bf16 %v5426, %v5410
        %v5651 = vpack.c.bf16 %v5427, %v5411
        %v5652 = vpack.c.bf16 %v5428, %v5412
        %v5653 = vpack.c.bf16 %v5429, %v5413
        %v5654 = vpack.c.bf16 %v5430, %v5414
        %v5655 = vpack.c.bf16 %v5447, %v5431
        %v5656 = vpack.c.bf16 %v5448, %v5432
        %v5657 = vpack.c.bf16 %v5449, %v5433
        %v5658 = vpack.c.bf16 %v5450, %v5434
        %v5659 = vpack.c.bf16 %v5451, %v5435
        %v5660 = vpack.c.bf16 %v5452, %v5436
        %v5661 = vpack.c.bf16 %v5453, %v5437
        %v5662 = vpack.c.bf16 %v5454, %v5438
        %v5663 = vpack.c.bf16 %v5455, %v5439
        %v5664 = vpack.c.bf16 %v5456, %v5440
        %v5665 = vpack.c.bf16 %v5457, %v5441
        %v5666 = vpack.c.bf16 %v5458, %v5442
        %v5667 = vpack.c.bf16 %v5459, %v5443
        %v5668 = vpack.c.bf16 %v5460, %v5444
        %v5669 = vpack.c.bf16 %v5461, %v5445
        %v5670 = vpack.c.bf16 %v5462, %v5446
        %v5671 = vpack.c.bf16 %v5479, %v5463
        %v5672 = vpack.c.bf16 %v5480, %v5464
        %v5673 = vpack.c.bf16 %v5481, %v5465
        %v5674 = vpack.c.bf16 %v5482, %v5466
        %v5675 = vpack.c.bf16 %v5483, %v5467
        %v5676 = vpack.c.bf16 %v5484, %v5468
        %v5677 = vpack.c.bf16 %v5485, %v5469
        %v5678 = vpack.c.bf16 %v5486, %v5470
        %v5679 = vpack.c.bf16 %v5487, %v5471
        %v5680 = vpack.c.bf16 %v5488, %v5472
        %v5681 = vpack.c.bf16 %v5489, %v5473
        %v5682 = vpack.c.bf16 %v5490, %v5474
        %v5683 = vpack.c.bf16 %v5491, %v5475
        %v5684 = vpack.c.bf16 %v5492, %v5476
        %v5685 = vpack.c.bf16 %v5493, %v5477
        %v5686 = vpack.c.bf16 %v5494, %v5478
        %v5687 = vpack.c.bf16 %v5511, %v5495
        %v5688 = vpack.c.bf16 %v5512, %v5496
        %v5689 = vpack.c.bf16 %v5513, %v5497
        %v5690 = vpack.c.bf16 %v5514, %v5498
        %v5691 = vpack.c.bf16 %v5515, %v5499
        %v5692 = vpack.c.bf16 %v5516, %v5500
        %v5693 = vpack.c.bf16 %v5517, %v5501
        %v5694 = vpack.c.bf16 %v5518, %v5502
        %v5695 = vpack.c.bf16 %v5519, %v5503
        %v5696 = vpack.c.bf16 %v5520, %v5504
        %v5697 = vpack.c.bf16 %v5521, %v5505
        %v5698 = vpack.c.bf16 %v5522, %v5506
        %v5699 = vpack.c.bf16 %v5523, %v5507
        %v5700 = vpack.c.bf16 %v5524, %v5508
        %v5701 = vpack.c.bf16 %v5525, %v5509
        %v5702 = vpack.c.bf16 %v5526, %v5510
        %v5703 = vpack.c.bf16 %v5543, %v5527
        %v5704 = vpack.c.bf16 %v5544, %v5528
        %v5705 = vpack.c.bf16 %v5545, %v5529
        %v5706 = vpack.c.bf16 %v5546, %v5530
        %v5707 = vpack.c.bf16 %v5547, %v5531
        %v5708 = vpack.c.bf16 %v5548, %v5532
        %v5709 = vpack.c.bf16 %v5549, %v5533
        %v5710 = vpack.c.bf16 %v5550, %v5534
        %v5711 = vpack.c.bf16 %v5551, %v5535
        %v5712 = vpack.c.bf16 %v5552, %v5536
        %v5713 = vpack.c.bf16 %v5553, %v5537
        %v5714 = vpack.c.bf16 %v5554, %v5538
        %v5715 = vpack.c.bf16 %v5555, %v5539
        %v5716 = vpack.c.bf16 %v5556, %v5540
        %v5717 = vpack.c.bf16 %v5557, %v5541
        %v5718 = vpack.c.bf16 %v5558, %v5542
        %v5719 = vpack.c.bf16 %v5575, %v5559
        %v5720 = vpack.c.bf16 %v5576, %v5560
        %v5721 = vpack.c.bf16 %v5577, %v5561
        %v5722 = vpack.c.bf16 %v5578, %v5562
        %v5723 = vpack.c.bf16 %v5579, %v5563
        %v5724 = vpack.c.bf16 %v5580, %v5564
        %v5725 = vpack.c.bf16 %v5581, %v5565
        %v5726 = vpack.c.bf16 %v5582, %v5566
        %v5727 = vpack.c.bf16 %v5583, %v5567
        %v5728 = vpack.c.bf16 %v5584, %v5568
        %v5729 = vpack.c.bf16 %v5585, %v5569
        %v5730 = vpack.c.bf16 %v5586, %v5570
        %v5731 = vpack.c.bf16 %v5587, %v5571
        %v5732 = vpack.c.bf16 %v5588, %v5572
        %v5733 = vpack.c.bf16 %v5589, %v5573
        %v5734 = vpack.c.bf16 %v5590, %v5574
        %v5735 = vpack.c.bf16 %v5607, %v5591
        %v5736 = vpack.c.bf16 %v5608, %v5592
        %v5737 = vpack.c.bf16 %v5609, %v5593
        %v5738 = vpack.c.bf16 %v5610, %v5594
        %v5739 = vpack.c.bf16 %v5611, %v5595
        %v5740 = vpack.c.bf16 %v5612, %v5596
        %v5741 = vpack.c.bf16 %v5613, %v5597
        %v5742 = vpack.c.bf16 %v5614, %v5598
        %v5743 = vpack.c.bf16 %v5615, %v5599
        %v5744 = vpack.c.bf16 %v5616, %v5600
        %v5745 = vpack.c.bf16 %v5617, %v5601
        %v5746 = vpack.c.bf16 %v5618, %v5602
        %v5747 = vpack.c.bf16 %v5619, %v5603
        %v5748 = vpack.c.bf16 %v5620, %v5604
        %v5749 = vpack.c.bf16 %v5621, %v5605
        %v5750 = vpack.c.bf16 %v5622, %v5606
        %v5751 = vld [vmem:[%s304] sm:$0xff]
        %v5752 = vld [vmem:[%s304 + $0x8] sm:$0xff]
        %v5753 = vld [vmem:[%s304 + $0x10] sm:$0xff]
        %v5754 = vld [vmem:[%s304 + $0x18] sm:$0xff]
        %v5755 = vld [vmem:[%s304 + $0x20] sm:$0xff]
        %v5756 = vld [vmem:[%s304 + $0x28] sm:$0xff]
        %v5757 = vld [vmem:[%s304 + $0x30] sm:$0xff]
        %v5758 = vld [vmem:[%s304 + $0x38] sm:$0xff]
        %v5759 = vld [vmem:[%s304 + $0x40] sm:$0xff]
        %v5760 = vld [vmem:[%s304 + $0x48] sm:$0xff]
        %v5761 = vld [vmem:[%s304 + $0x50] sm:$0xff]
        %v5762 = vld [vmem:[%s304 + $0x58] sm:$0xff]
        %v5763 = vld [vmem:[%s304 + $0x60] sm:$0xff]
        %v5764 = vld [vmem:[%s304 + $0x68] sm:$0xff]
        %v5765 = vld [vmem:[%s304 + $0x70] sm:$0xff]
        %v5766 = vld [vmem:[%s304 + $0x78] sm:$0xff]
        %v5767 = vld [vmem:[%s304 + $0x80] sm:$0xff]
        %v5768 = vld [vmem:[%s304 + $0x88] sm:$0xff]
        %v5769 = vld [vmem:[%s304 + $0x90] sm:$0xff]
        %v5770 = vld [vmem:[%s304 + $0x98] sm:$0xff]
        %v5771 = vld [vmem:[%s304 + $0xa0] sm:$0xff]
        %v5772 = vld [vmem:[%s304 + $0xa8] sm:$0xff]
        %v5773 = vld [vmem:[%s304 + $0xb0] sm:$0xff]
        %v5774 = vld [vmem:[%s304 + $0xb8] sm:$0xff]
        %v5775 = vld [vmem:[%s304 + $0xc0] sm:$0xff]
        %v5776 = vld [vmem:[%s304 + $0xc8] sm:$0xff]
        %v5777 = vld [vmem:[%s304 + $0xd0] sm:$0xff]
        %v5778 = vld [vmem:[%s304 + $0xd8] sm:$0xff]
        %v5779 = vld [vmem:[%s304 + $0xe0] sm:$0xff]
        %v5780 = vld [vmem:[%s304 + $0xe8] sm:$0xff]
        %v5781 = vld [vmem:[%s304 + $0xf0] sm:$0xff]
        %v5782 = vld [vmem:[%s304 + $0xf8] sm:$0xff]
        %v5783 = vld [vmem:[%s304 + $0x100] sm:$0xff]
        %v5784 = vld [vmem:[%s304 + $0x108] sm:$0xff]
        %v5785 = vld [vmem:[%s304 + $0x110] sm:$0xff]
        %v5786 = vld [vmem:[%s304 + $0x118] sm:$0xff]
        %v5787 = vld [vmem:[%s304 + $0x120] sm:$0xff]
        %v5788 = vld [vmem:[%s304 + $0x128] sm:$0xff]
        %v5789 = vld [vmem:[%s304 + $0x130] sm:$0xff]
        %v5790 = vld [vmem:[%s304 + $0x138] sm:$0xff]
        %v5791 = vld [vmem:[%s304 + $0x140] sm:$0xff]
        %v5792 = vld [vmem:[%s304 + $0x148] sm:$0xff]
        %v5793 = vld [vmem:[%s304 + $0x150] sm:$0xff]
        %v5794 = vld [vmem:[%s304 + $0x158] sm:$0xff]
        %v5795 = vld [vmem:[%s304 + $0x160] sm:$0xff]
        %v5796 = vld [vmem:[%s304 + $0x168] sm:$0xff]
        %v5797 = vld [vmem:[%s304 + $0x170] sm:$0xff]
        %v5798 = vld [vmem:[%s304 + $0x178] sm:$0xff]
        %v5799 = vld [vmem:[%s304 + $0x180] sm:$0xff]
        %v5800 = vld [vmem:[%s304 + $0x188] sm:$0xff]
        %v5801 = vld [vmem:[%s304 + $0x190] sm:$0xff]
        %v5802 = vld [vmem:[%s304 + $0x198] sm:$0xff]
        %v5803 = vld [vmem:[%s304 + $0x1a0] sm:$0xff]
        %v5804 = vld [vmem:[%s304 + $0x1a8] sm:$0xff]
        %v5805 = vld [vmem:[%s304 + $0x1b0] sm:$0xff]
        %v5806 = vld [vmem:[%s304 + $0x1b8] sm:$0xff]
        %v5807 = vld [vmem:[%s304 + $0x1c0] sm:$0xff]
        %v5808 = vld [vmem:[%s304 + $0x1c8] sm:$0xff]
        %v5809 = vld [vmem:[%s304 + $0x1d0] sm:$0xff]
        %v5810 = vld [vmem:[%s304 + $0x1d8] sm:$0xff]
        %v5811 = vld [vmem:[%s304 + $0x1e0] sm:$0xff]
        %v5812 = vld [vmem:[%s304 + $0x1e8] sm:$0xff]
        %v5813 = vld [vmem:[%s304 + $0x1f0] sm:$0xff]
        %v5814 = vld [vmem:[%s304 + $0x1f8] sm:$0xff]
        %v5815 = vld [vmem:[%s304 + $0x200] sm:$0xff]
        %v5816 = vld [vmem:[%s304 + $0x208] sm:$0xff]
        %v5817 = vld [vmem:[%s304 + $0x210] sm:$0xff]
        %v5818 = vld [vmem:[%s304 + $0x218] sm:$0xff]
        %v5819 = vld [vmem:[%s304 + $0x220] sm:$0xff]
        %v5820 = vld [vmem:[%s304 + $0x228] sm:$0xff]
        %v5821 = vld [vmem:[%s304 + $0x230] sm:$0xff]
        %v5822 = vld [vmem:[%s304 + $0x238] sm:$0xff]
        %v5823 = vld [vmem:[%s304 + $0x240] sm:$0xff]
        %v5824 = vld [vmem:[%s304 + $0x248] sm:$0xff]
        %v5825 = vld [vmem:[%s304 + $0x250] sm:$0xff]
        %v5826 = vld [vmem:[%s304 + $0x258] sm:$0xff]
        %v5827 = vld [vmem:[%s304 + $0x260] sm:$0xff]
        %v5828 = vld [vmem:[%s304 + $0x268] sm:$0xff]
        %v5829 = vld [vmem:[%s304 + $0x270] sm:$0xff]
        %v5830 = vld [vmem:[%s304 + $0x278] sm:$0xff]
        %v5831 = vld [vmem:[%s304 + $0x280] sm:$0xff]
        %v5832 = vld [vmem:[%s304 + $0x288] sm:$0xff]
        %v5833 = vld [vmem:[%s304 + $0x290] sm:$0xff]
        %v5834 = vld [vmem:[%s304 + $0x298] sm:$0xff]
        %v5835 = vld [vmem:[%s304 + $0x2a0] sm:$0xff]
        %v5836 = vld [vmem:[%s304 + $0x2a8] sm:$0xff]
        %v5837 = vld [vmem:[%s304 + $0x2b0] sm:$0xff]
        %v5838 = vld [vmem:[%s304 + $0x2b8] sm:$0xff]
        %v5839 = vld [vmem:[%s304 + $0x2c0] sm:$0xff]
        %v5840 = vld [vmem:[%s304 + $0x2c8] sm:$0xff]
        %v5841 = vld [vmem:[%s304 + $0x2d0] sm:$0xff]
        %v5842 = vld [vmem:[%s304 + $0x2d8] sm:$0xff]
        %v5843 = vld [vmem:[%s304 + $0x2e0] sm:$0xff]
        %v5844 = vld [vmem:[%s304 + $0x2e8] sm:$0xff]
        %v5845 = vld [vmem:[%s304 + $0x2f0] sm:$0xff]
        %v5846 = vld [vmem:[%s304 + $0x2f8] sm:$0xff]
        %v5847 = vld [vmem:[%s304 + $0x300] sm:$0xff]
        %v5848 = vld [vmem:[%s304 + $0x308] sm:$0xff]
        %v5849 = vld [vmem:[%s304 + $0x310] sm:$0xff]
        %v5850 = vld [vmem:[%s304 + $0x318] sm:$0xff]
        %v5851 = vld [vmem:[%s304 + $0x320] sm:$0xff]
        %v5852 = vld [vmem:[%s304 + $0x328] sm:$0xff]
        %v5853 = vld [vmem:[%s304 + $0x330] sm:$0xff]
        %v5854 = vld [vmem:[%s304 + $0x338] sm:$0xff]
        %v5855 = vld [vmem:[%s304 + $0x340] sm:$0xff]
        %v5856 = vld [vmem:[%s304 + $0x348] sm:$0xff]
        %v5857 = vld [vmem:[%s304 + $0x350] sm:$0xff]
        %v5858 = vld [vmem:[%s304 + $0x358] sm:$0xff]
        %v5859 = vld [vmem:[%s304 + $0x360] sm:$0xff]
        %v5860 = vld [vmem:[%s304 + $0x368] sm:$0xff]
        %v5861 = vld [vmem:[%s304 + $0x370] sm:$0xff]
        %v5862 = vld [vmem:[%s304 + $0x378] sm:$0xff]
        %v5863 = vld [vmem:[%s304 + $0x380] sm:$0xff]
        %v5864 = vld [vmem:[%s304 + $0x388] sm:$0xff]
        %v5865 = vld [vmem:[%s304 + $0x390] sm:$0xff]
        %v5866 = vld [vmem:[%s304 + $0x398] sm:$0xff]
        %v5867 = vld [vmem:[%s304 + $0x3a0] sm:$0xff]
        %v5868 = vld [vmem:[%s304 + $0x3a8] sm:$0xff]
        %v5869 = vld [vmem:[%s304 + $0x3b0] sm:$0xff]
        %v5870 = vld [vmem:[%s304 + $0x3b8] sm:$0xff]
        %v5871 = vld [vmem:[%s304 + $0x3c0] sm:$0xff]
        %v5872 = vld [vmem:[%s304 + $0x3c8] sm:$0xff]
        %v5873 = vld [vmem:[%s304 + $0x3d0] sm:$0xff]
        %v5874 = vld [vmem:[%s304 + $0x3d8] sm:$0xff]
        %v5875 = vld [vmem:[%s304 + $0x3e0] sm:$0xff]
        %v5876 = vld [vmem:[%s304 + $0x3e8] sm:$0xff]
        %v5877 = vld [vmem:[%s304 + $0x3f0] sm:$0xff]
        %v5878 = vld [vmem:[%s304 + $0x3f8] sm:$0xff]
        %v5879 = vld [vmem:[%s304 + $0x400] sm:$0xff]
        %v5880 = vld [vmem:[%s304 + $0x408] sm:$0xff]
        %v5881 = vld [vmem:[%s304 + $0x410] sm:$0xff]
        %v5882 = vld [vmem:[%s304 + $0x418] sm:$0xff]
        %v5883 = vld [vmem:[%s304 + $0x420] sm:$0xff]
        %v5884 = vld [vmem:[%s304 + $0x428] sm:$0xff]
        %v5885 = vld [vmem:[%s304 + $0x430] sm:$0xff]
        %v5886 = vld [vmem:[%s304 + $0x438] sm:$0xff]
        %v5887 = vld [vmem:[%s304 + $0x440] sm:$0xff]
        %v5888 = vld [vmem:[%s304 + $0x448] sm:$0xff]
        %v5889 = vld [vmem:[%s304 + $0x450] sm:$0xff]
        %v5890 = vld [vmem:[%s304 + $0x458] sm:$0xff]
        %v5891 = vld [vmem:[%s304 + $0x460] sm:$0xff]
        %v5892 = vld [vmem:[%s304 + $0x468] sm:$0xff]
        %v5893 = vld [vmem:[%s304 + $0x470] sm:$0xff]
        %v5894 = vld [vmem:[%s304 + $0x478] sm:$0xff]
        %v5895 = vld [vmem:[%s304 + $0x480] sm:$0xff]
        %v5896 = vld [vmem:[%s304 + $0x488] sm:$0xff]
        %v5897 = vld [vmem:[%s304 + $0x490] sm:$0xff]
        %v5898 = vld [vmem:[%s304 + $0x498] sm:$0xff]
        %v5899 = vld [vmem:[%s304 + $0x4a0] sm:$0xff]
        %v5900 = vld [vmem:[%s304 + $0x4a8] sm:$0xff]
        %v5901 = vld [vmem:[%s304 + $0x4b0] sm:$0xff]
        %v5902 = vld [vmem:[%s304 + $0x4b8] sm:$0xff]
        %v5903 = vld [vmem:[%s304 + $0x4c0] sm:$0xff]
        %v5904 = vld [vmem:[%s304 + $0x4c8] sm:$0xff]
        %v5905 = vld [vmem:[%s304 + $0x4d0] sm:$0xff]
        %v5906 = vld [vmem:[%s304 + $0x4d8] sm:$0xff]
        %v5907 = vld [vmem:[%s304 + $0x4e0] sm:$0xff]
        %v5908 = vld [vmem:[%s304 + $0x4e8] sm:$0xff]
        %v5909 = vld [vmem:[%s304 + $0x4f0] sm:$0xff]
        %v5910 = vld [vmem:[%s304 + $0x4f8] sm:$0xff]
        %v5911 = vld [vmem:[%s304 + $0x500] sm:$0xff]
        %v5912 = vld [vmem:[%s304 + $0x508] sm:$0xff]
        %v5913 = vld [vmem:[%s304 + $0x510] sm:$0xff]
        %v5914 = vld [vmem:[%s304 + $0x518] sm:$0xff]
        %v5915 = vld [vmem:[%s304 + $0x520] sm:$0xff]
        %v5916 = vld [vmem:[%s304 + $0x528] sm:$0xff]
        %v5917 = vld [vmem:[%s304 + $0x530] sm:$0xff]
        %v5918 = vld [vmem:[%s304 + $0x538] sm:$0xff]
        %v5919 = vld [vmem:[%s304 + $0x540] sm:$0xff]
        %v5920 = vld [vmem:[%s304 + $0x548] sm:$0xff]
        %v5921 = vld [vmem:[%s304 + $0x550] sm:$0xff]
        %v5922 = vld [vmem:[%s304 + $0x558] sm:$0xff]
        %v5923 = vld [vmem:[%s304 + $0x560] sm:$0xff]
        %v5924 = vld [vmem:[%s304 + $0x568] sm:$0xff]
        %v5925 = vld [vmem:[%s304 + $0x570] sm:$0xff]
        %v5926 = vld [vmem:[%s304 + $0x578] sm:$0xff]
        %v5927 = vld [vmem:[%s304 + $0x580] sm:$0xff]
        %v5928 = vld [vmem:[%s304 + $0x588] sm:$0xff]
        %v5929 = vld [vmem:[%s304 + $0x590] sm:$0xff]
        %v5930 = vld [vmem:[%s304 + $0x598] sm:$0xff]
        %v5931 = vld [vmem:[%s304 + $0x5a0] sm:$0xff]
        %v5932 = vld [vmem:[%s304 + $0x5a8] sm:$0xff]
        %v5933 = vld [vmem:[%s304 + $0x5b0] sm:$0xff]
        %v5934 = vld [vmem:[%s304 + $0x5b8] sm:$0xff]
        %v5935 = vld [vmem:[%s304 + $0x5c0] sm:$0xff]
        %v5936 = vld [vmem:[%s304 + $0x5c8] sm:$0xff]
        %v5937 = vld [vmem:[%s304 + $0x5d0] sm:$0xff]
        %v5938 = vld [vmem:[%s304 + $0x5d8] sm:$0xff]
        %v5939 = vld [vmem:[%s304 + $0x5e0] sm:$0xff]
        %v5940 = vld [vmem:[%s304 + $0x5e8] sm:$0xff]
        %v5941 = vld [vmem:[%s304 + $0x5f0] sm:$0xff]
        %v5942 = vld [vmem:[%s304 + $0x5f8] sm:$0xff]
        %v5943 = vld [vmem:[%s304 + $0x600] sm:$0xff]
        %v5944 = vld [vmem:[%s304 + $0x608] sm:$0xff]
        %v5945 = vld [vmem:[%s304 + $0x610] sm:$0xff]
        %v5946 = vld [vmem:[%s304 + $0x618] sm:$0xff]
        %v5947 = vld [vmem:[%s304 + $0x620] sm:$0xff]
        %v5948 = vld [vmem:[%s304 + $0x628] sm:$0xff]
        %v5949 = vld [vmem:[%s304 + $0x630] sm:$0xff]
        %v5950 = vld [vmem:[%s304 + $0x638] sm:$0xff]
        %v5951 = vld [vmem:[%s304 + $0x640] sm:$0xff]
        %v5952 = vld [vmem:[%s304 + $0x648] sm:$0xff]
        %v5953 = vld [vmem:[%s304 + $0x650] sm:$0xff]
        %v5954 = vld [vmem:[%s304 + $0x658] sm:$0xff]
        %v5955 = vld [vmem:[%s304 + $0x660] sm:$0xff]
        %v5956 = vld [vmem:[%s304 + $0x668] sm:$0xff]
        %v5957 = vld [vmem:[%s304 + $0x670] sm:$0xff]
        %v5958 = vld [vmem:[%s304 + $0x678] sm:$0xff]
        %v5959 = vld [vmem:[%s304 + $0x680] sm:$0xff]
        %v5960 = vld [vmem:[%s304 + $0x688] sm:$0xff]
        %v5961 = vld [vmem:[%s304 + $0x690] sm:$0xff]
        %v5962 = vld [vmem:[%s304 + $0x698] sm:$0xff]
        %v5963 = vld [vmem:[%s304 + $0x6a0] sm:$0xff]
        %v5964 = vld [vmem:[%s304 + $0x6a8] sm:$0xff]
        %v5965 = vld [vmem:[%s304 + $0x6b0] sm:$0xff]
        %v5966 = vld [vmem:[%s304 + $0x6b8] sm:$0xff]
        %v5967 = vld [vmem:[%s304 + $0x6c0] sm:$0xff]
        %v5968 = vld [vmem:[%s304 + $0x6c8] sm:$0xff]
        %v5969 = vld [vmem:[%s304 + $0x6d0] sm:$0xff]
        %v5970 = vld [vmem:[%s304 + $0x6d8] sm:$0xff]
        %v5971 = vld [vmem:[%s304 + $0x6e0] sm:$0xff]
        %v5972 = vld [vmem:[%s304 + $0x6e8] sm:$0xff]
        %v5973 = vld [vmem:[%s304 + $0x6f0] sm:$0xff]
        %v5974 = vld [vmem:[%s304 + $0x6f8] sm:$0xff]
        %v5975 = vld [vmem:[%s304 + $0x700] sm:$0xff]
        %v5976 = vld [vmem:[%s304 + $0x708] sm:$0xff]
        %v5977 = vld [vmem:[%s304 + $0x710] sm:$0xff]
        %v5978 = vld [vmem:[%s304 + $0x718] sm:$0xff]
        %v5979 = vld [vmem:[%s304 + $0x720] sm:$0xff]
        %v5980 = vld [vmem:[%s304 + $0x728] sm:$0xff]
        %v5981 = vld [vmem:[%s304 + $0x730] sm:$0xff]
        %v5982 = vld [vmem:[%s304 + $0x738] sm:$0xff]
        %v5983 = vld [vmem:[%s304 + $0x740] sm:$0xff]
        %v5984 = vld [vmem:[%s304 + $0x748] sm:$0xff]
        %v5985 = vld [vmem:[%s304 + $0x750] sm:$0xff]
        %v5986 = vld [vmem:[%s304 + $0x758] sm:$0xff]
        %v5987 = vld [vmem:[%s304 + $0x760] sm:$0xff]
        %v5988 = vld [vmem:[%s304 + $0x768] sm:$0xff]
        %v5989 = vld [vmem:[%s304 + $0x770] sm:$0xff]
        %v5990 = vld [vmem:[%s304 + $0x778] sm:$0xff]
        %v5991 = vld [vmem:[%s304 + $0x780] sm:$0xff]
        %v5992 = vld [vmem:[%s304 + $0x788] sm:$0xff]
        %v5993 = vld [vmem:[%s304 + $0x790] sm:$0xff]
        %v5994 = vld [vmem:[%s304 + $0x798] sm:$0xff]
        %v5995 = vld [vmem:[%s304 + $0x7a0] sm:$0xff]
        %v5996 = vld [vmem:[%s304 + $0x7a8] sm:$0xff]
        %v5997 = vld [vmem:[%s304 + $0x7b0] sm:$0xff]
        %v5998 = vld [vmem:[%s304 + $0x7b8] sm:$0xff]
        %v5999 = vld [vmem:[%s304 + $0x7c0] sm:$0xff]
        %v6000 = vld [vmem:[%s304 + $0x7c8] sm:$0xff]
        %v6001 = vld [vmem:[%s304 + $0x7d0] sm:$0xff]
        %v6002 = vld [vmem:[%s304 + $0x7d8] sm:$0xff]
        %v6003 = vld [vmem:[%s304 + $0x7e0] sm:$0xff]
        %v6004 = vld [vmem:[%s304 + $0x7e8] sm:$0xff]
        %v6005 = vld [vmem:[%s304 + $0x7f0] sm:$0xff]
        %v6006 = vld [vmem:[%s304 + $0x7f8] sm:$0xff]
        %v6007 = vld [vmem:[%s304 + $0x800] sm:$0xff]
        %v6008 = vld [vmem:[%s304 + $0x808] sm:$0xff]
        %v6009 = vld [vmem:[%s304 + $0x810] sm:$0xff]
        %v6010 = vld [vmem:[%s304 + $0x818] sm:$0xff]
        %v6011 = vld [vmem:[%s304 + $0x820] sm:$0xff]
        %v6012 = vld [vmem:[%s304 + $0x828] sm:$0xff]
        %v6013 = vld [vmem:[%s304 + $0x830] sm:$0xff]
        %v6014 = vld [vmem:[%s304 + $0x838] sm:$0xff]
        %v6015 = vld [vmem:[%s304 + $0x840] sm:$0xff]
        %v6016 = vld [vmem:[%s304 + $0x848] sm:$0xff]
        %v6017 = vld [vmem:[%s304 + $0x850] sm:$0xff]
        %v6018 = vld [vmem:[%s304 + $0x858] sm:$0xff]
        %v6019 = vld [vmem:[%s304 + $0x860] sm:$0xff]
        %v6020 = vld [vmem:[%s304 + $0x868] sm:$0xff]
        %v6021 = vld [vmem:[%s304 + $0x870] sm:$0xff]
        %v6022 = vld [vmem:[%s304 + $0x878] sm:$0xff]
        %v6023 = vld [vmem:[%s304 + $0x880] sm:$0xff]
        %v6024 = vld [vmem:[%s304 + $0x888] sm:$0xff]
        %v6025 = vld [vmem:[%s304 + $0x890] sm:$0xff]
        %v6026 = vld [vmem:[%s304 + $0x898] sm:$0xff]
        %v6027 = vld [vmem:[%s304 + $0x8a0] sm:$0xff]
        %v6028 = vld [vmem:[%s304 + $0x8a8] sm:$0xff]
        %v6029 = vld [vmem:[%s304 + $0x8b0] sm:$0xff]
        %v6030 = vld [vmem:[%s304 + $0x8b8] sm:$0xff]
        %v6031 = vld [vmem:[%s304 + $0x8c0] sm:$0xff]
        %v6032 = vld [vmem:[%s304 + $0x8c8] sm:$0xff]
        %v6033 = vld [vmem:[%s304 + $0x8d0] sm:$0xff]
        %v6034 = vld [vmem:[%s304 + $0x8d8] sm:$0xff]
        %v6035 = vld [vmem:[%s304 + $0x8e0] sm:$0xff]
        %v6036 = vld [vmem:[%s304 + $0x8e8] sm:$0xff]
        %v6037 = vld [vmem:[%s304 + $0x8f0] sm:$0xff]
        %v6038 = vld [vmem:[%s304 + $0x8f8] sm:$0xff]
        %v6039 = vld [vmem:[%s304 + $0x900] sm:$0xff]
        %v6040 = vld [vmem:[%s304 + $0x908] sm:$0xff]
        %v6041 = vld [vmem:[%s304 + $0x910] sm:$0xff]
        %v6042 = vld [vmem:[%s304 + $0x918] sm:$0xff]
        %v6043 = vld [vmem:[%s304 + $0x920] sm:$0xff]
        %v6044 = vld [vmem:[%s304 + $0x928] sm:$0xff]
        %v6045 = vld [vmem:[%s304 + $0x930] sm:$0xff]
        %v6046 = vld [vmem:[%s304 + $0x938] sm:$0xff]
        %v6047 = vld [vmem:[%s304 + $0x940] sm:$0xff]
        %v6048 = vld [vmem:[%s304 + $0x948] sm:$0xff]
        %v6049 = vld [vmem:[%s304 + $0x950] sm:$0xff]
        %v6050 = vld [vmem:[%s304 + $0x958] sm:$0xff]
        %v6051 = vld [vmem:[%s304 + $0x960] sm:$0xff]
        %v6052 = vld [vmem:[%s304 + $0x968] sm:$0xff]
        %v6053 = vld [vmem:[%s304 + $0x970] sm:$0xff]
        %v6054 = vld [vmem:[%s304 + $0x978] sm:$0xff]
        %v6055 = vld [vmem:[%s304 + $0x980] sm:$0xff]
        %v6056 = vld [vmem:[%s304 + $0x988] sm:$0xff]
        %v6057 = vld [vmem:[%s304 + $0x990] sm:$0xff]
        %v6058 = vld [vmem:[%s304 + $0x998] sm:$0xff]
        %v6059 = vld [vmem:[%s304 + $0x9a0] sm:$0xff]
        %v6060 = vld [vmem:[%s304 + $0x9a8] sm:$0xff]
        %v6061 = vld [vmem:[%s304 + $0x9b0] sm:$0xff]
        %v6062 = vld [vmem:[%s304 + $0x9b8] sm:$0xff]
        %v6063 = vld [vmem:[%s304 + $0x9c0] sm:$0xff]
        %v6064 = vld [vmem:[%s304 + $0x9c8] sm:$0xff]
        %v6065 = vld [vmem:[%s304 + $0x9d0] sm:$0xff]
        %v6066 = vld [vmem:[%s304 + $0x9d8] sm:$0xff]
        %v6067 = vld [vmem:[%s304 + $0x9e0] sm:$0xff]
        %v6068 = vld [vmem:[%s304 + $0x9e8] sm:$0xff]
        %v6069 = vld [vmem:[%s304 + $0x9f0] sm:$0xff]
        %v6070 = vld [vmem:[%s304 + $0x9f8] sm:$0xff]
        %v6071 = vld [vmem:[%s304 + $0xa00] sm:$0xff]
        %v6072 = vld [vmem:[%s304 + $0xa08] sm:$0xff]
        %v6073 = vld [vmem:[%s304 + $0xa10] sm:$0xff]
        %v6074 = vld [vmem:[%s304 + $0xa18] sm:$0xff]
        %v6075 = vld [vmem:[%s304 + $0xa20] sm:$0xff]
        %v6076 = vld [vmem:[%s304 + $0xa28] sm:$0xff]
        %v6077 = vld [vmem:[%s304 + $0xa30] sm:$0xff]
        %v6078 = vld [vmem:[%s304 + $0xa38] sm:$0xff]
        %v6079 = vld [vmem:[%s304 + $0xa40] sm:$0xff]
        %v6080 = vld [vmem:[%s304 + $0xa48] sm:$0xff]
        %v6081 = vld [vmem:[%s304 + $0xa50] sm:$0xff]
        %v6082 = vld [vmem:[%s304 + $0xa58] sm:$0xff]
        %v6083 = vld [vmem:[%s304 + $0xa60] sm:$0xff]
        %v6084 = vld [vmem:[%s304 + $0xa68] sm:$0xff]
        %v6085 = vld [vmem:[%s304 + $0xa70] sm:$0xff]
        %v6086 = vld [vmem:[%s304 + $0xa78] sm:$0xff]
        %v6087 = vld [vmem:[%s304 + $0xa80] sm:$0xff]
        %v6088 = vld [vmem:[%s304 + $0xa88] sm:$0xff]
        %v6089 = vld [vmem:[%s304 + $0xa90] sm:$0xff]
        %v6090 = vld [vmem:[%s304 + $0xa98] sm:$0xff]
        %v6091 = vld [vmem:[%s304 + $0xaa0] sm:$0xff]
        %v6092 = vld [vmem:[%s304 + $0xaa8] sm:$0xff]
        %v6093 = vld [vmem:[%s304 + $0xab0] sm:$0xff]
        %v6094 = vld [vmem:[%s304 + $0xab8] sm:$0xff]
        %v6095 = vld [vmem:[%s304 + $0xac0] sm:$0xff]
        %v6096 = vld [vmem:[%s304 + $0xac8] sm:$0xff]
        %v6097 = vld [vmem:[%s304 + $0xad0] sm:$0xff]
        %v6098 = vld [vmem:[%s304 + $0xad8] sm:$0xff]
        %v6099 = vld [vmem:[%s304 + $0xae0] sm:$0xff]
        %v6100 = vld [vmem:[%s304 + $0xae8] sm:$0xff]
        %v6101 = vld [vmem:[%s304 + $0xaf0] sm:$0xff]
        %v6102 = vld [vmem:[%s304 + $0xaf8] sm:$0xff]
        %v6103 = vld [vmem:[%s304 + $0xb00] sm:$0xff]
        %v6104 = vld [vmem:[%s304 + $0xb08] sm:$0xff]
        %v6105 = vld [vmem:[%s304 + $0xb10] sm:$0xff]
        %v6106 = vld [vmem:[%s304 + $0xb18] sm:$0xff]
        %v6107 = vld [vmem:[%s304 + $0xb20] sm:$0xff]
        %v6108 = vld [vmem:[%s304 + $0xb28] sm:$0xff]
        %v6109 = vld [vmem:[%s304 + $0xb30] sm:$0xff]
        %v6110 = vld [vmem:[%s304 + $0xb38] sm:$0xff]
        %v6111 = vld [vmem:[%s304 + $0xb40] sm:$0xff]
        %v6112 = vld [vmem:[%s304 + $0xb48] sm:$0xff]
        %v6113 = vld [vmem:[%s304 + $0xb50] sm:$0xff]
        %v6114 = vld [vmem:[%s304 + $0xb58] sm:$0xff]
        %v6115 = vld [vmem:[%s304 + $0xb60] sm:$0xff]
        %v6116 = vld [vmem:[%s304 + $0xb68] sm:$0xff]
        %v6117 = vld [vmem:[%s304 + $0xb70] sm:$0xff]
        %v6118 = vld [vmem:[%s304 + $0xb78] sm:$0xff]
        %v6119 = vld [vmem:[%s304 + $0xb80] sm:$0xff]
        %v6120 = vld [vmem:[%s304 + $0xb88] sm:$0xff]
        %v6121 = vld [vmem:[%s304 + $0xb90] sm:$0xff]
        %v6122 = vld [vmem:[%s304 + $0xb98] sm:$0xff]
        %v6123 = vld [vmem:[%s304 + $0xba0] sm:$0xff]
        %v6124 = vld [vmem:[%s304 + $0xba8] sm:$0xff]
        %v6125 = vld [vmem:[%s304 + $0xbb0] sm:$0xff]
        %v6126 = vld [vmem:[%s304 + $0xbb8] sm:$0xff]
        %v6127 = vld [vmem:[%s304 + $0xbc0] sm:$0xff]
        %v6128 = vld [vmem:[%s304 + $0xbc8] sm:$0xff]
        %v6129 = vld [vmem:[%s304 + $0xbd0] sm:$0xff]
        %v6130 = vld [vmem:[%s304 + $0xbd8] sm:$0xff]
        %v6131 = vld [vmem:[%s304 + $0xbe0] sm:$0xff]
        %v6132 = vld [vmem:[%s304 + $0xbe8] sm:$0xff]
        %v6133 = vld [vmem:[%s304 + $0xbf0] sm:$0xff]
        %v6134 = vld [vmem:[%s304 + $0xbf8] sm:$0xff]
        %v6135 = vld [vmem:[%s304 + $0xc00] sm:$0xff]
        %v6136 = vld [vmem:[%s304 + $0xc08] sm:$0xff]
        %v6137 = vld [vmem:[%s304 + $0xc10] sm:$0xff]
        %v6138 = vld [vmem:[%s304 + $0xc18] sm:$0xff]
        %v6139 = vld [vmem:[%s304 + $0xc20] sm:$0xff]
        %v6140 = vld [vmem:[%s304 + $0xc28] sm:$0xff]
        %v6141 = vld [vmem:[%s304 + $0xc30] sm:$0xff]
        %v6142 = vld [vmem:[%s304 + $0xc38] sm:$0xff]
        %v6143 = vld [vmem:[%s304 + $0xc40] sm:$0xff]
        %v6144 = vld [vmem:[%s304 + $0xc48] sm:$0xff]
        %v6145 = vld [vmem:[%s304 + $0xc50] sm:$0xff]
        %v6146 = vld [vmem:[%s304 + $0xc58] sm:$0xff]
        %v6147 = vld [vmem:[%s304 + $0xc60] sm:$0xff]
        %v6148 = vld [vmem:[%s304 + $0xc68] sm:$0xff]
        %v6149 = vld [vmem:[%s304 + $0xc70] sm:$0xff]
        %v6150 = vld [vmem:[%s304 + $0xc78] sm:$0xff]
        %v6151 = vld [vmem:[%s304 + $0xc80] sm:$0xff]
        %v6152 = vld [vmem:[%s304 + $0xc88] sm:$0xff]
        %v6153 = vld [vmem:[%s304 + $0xc90] sm:$0xff]
        %v6154 = vld [vmem:[%s304 + $0xc98] sm:$0xff]
        %v6155 = vld [vmem:[%s304 + $0xca0] sm:$0xff]
        %v6156 = vld [vmem:[%s304 + $0xca8] sm:$0xff]
        %v6157 = vld [vmem:[%s304 + $0xcb0] sm:$0xff]
        %v6158 = vld [vmem:[%s304 + $0xcb8] sm:$0xff]
        %v6159 = vld [vmem:[%s304 + $0xcc0] sm:$0xff]
        %v6160 = vld [vmem:[%s304 + $0xcc8] sm:$0xff]
        %v6161 = vld [vmem:[%s304 + $0xcd0] sm:$0xff]
        %v6162 = vld [vmem:[%s304 + $0xcd8] sm:$0xff]
        %v6163 = vld [vmem:[%s304 + $0xce0] sm:$0xff]
        %v6164 = vld [vmem:[%s304 + $0xce8] sm:$0xff]
        %v6165 = vld [vmem:[%s304 + $0xcf0] sm:$0xff]
        %v6166 = vld [vmem:[%s304 + $0xcf8] sm:$0xff]
        %v6167 = vld [vmem:[%s304 + $0xd00] sm:$0xff]
        %v6168 = vld [vmem:[%s304 + $0xd08] sm:$0xff]
        %v6169 = vld [vmem:[%s304 + $0xd10] sm:$0xff]
        %v6170 = vld [vmem:[%s304 + $0xd18] sm:$0xff]
        %v6171 = vld [vmem:[%s304 + $0xd20] sm:$0xff]
        %v6172 = vld [vmem:[%s304 + $0xd28] sm:$0xff]
        %v6173 = vld [vmem:[%s304 + $0xd30] sm:$0xff]
        %v6174 = vld [vmem:[%s304 + $0xd38] sm:$0xff]
        %v6175 = vld [vmem:[%s304 + $0xd40] sm:$0xff]
        %v6176 = vld [vmem:[%s304 + $0xd48] sm:$0xff]
        %v6177 = vld [vmem:[%s304 + $0xd50] sm:$0xff]
        %v6178 = vld [vmem:[%s304 + $0xd58] sm:$0xff]
        %v6179 = vld [vmem:[%s304 + $0xd60] sm:$0xff]
        %v6180 = vld [vmem:[%s304 + $0xd68] sm:$0xff]
        %v6181 = vld [vmem:[%s304 + $0xd70] sm:$0xff]
        %v6182 = vld [vmem:[%s304 + $0xd78] sm:$0xff]
        %v6183 = vld [vmem:[%s304 + $0xd80] sm:$0xff]
        %v6184 = vld [vmem:[%s304 + $0xd88] sm:$0xff]
        %v6185 = vld [vmem:[%s304 + $0xd90] sm:$0xff]
        %v6186 = vld [vmem:[%s304 + $0xd98] sm:$0xff]
        %v6187 = vld [vmem:[%s304 + $0xda0] sm:$0xff]
        %v6188 = vld [vmem:[%s304 + $0xda8] sm:$0xff]
        %v6189 = vld [vmem:[%s304 + $0xdb0] sm:$0xff]
        %v6190 = vld [vmem:[%s304 + $0xdb8] sm:$0xff]
        %v6191 = vld [vmem:[%s304 + $0xdc0] sm:$0xff]
        %v6192 = vld [vmem:[%s304 + $0xdc8] sm:$0xff]
        %v6193 = vld [vmem:[%s304 + $0xdd0] sm:$0xff]
        %v6194 = vld [vmem:[%s304 + $0xdd8] sm:$0xff]
        %v6195 = vld [vmem:[%s304 + $0xde0] sm:$0xff]
        %v6196 = vld [vmem:[%s304 + $0xde8] sm:$0xff]
        %v6197 = vld [vmem:[%s304 + $0xdf0] sm:$0xff]
        %v6198 = vld [vmem:[%s304 + $0xdf8] sm:$0xff]
        %v6199 = vld [vmem:[%s304 + $0xe00] sm:$0xff]
        %v6200 = vld [vmem:[%s304 + $0xe08] sm:$0xff]
        %v6201 = vld [vmem:[%s304 + $0xe10] sm:$0xff]
        %v6202 = vld [vmem:[%s304 + $0xe18] sm:$0xff]
        %v6203 = vld [vmem:[%s304 + $0xe20] sm:$0xff]
        %v6204 = vld [vmem:[%s304 + $0xe28] sm:$0xff]
        %v6205 = vld [vmem:[%s304 + $0xe30] sm:$0xff]
        %v6206 = vld [vmem:[%s304 + $0xe38] sm:$0xff]
        %v6207 = vld [vmem:[%s304 + $0xe40] sm:$0xff]
        %v6208 = vld [vmem:[%s304 + $0xe48] sm:$0xff]
        %v6209 = vld [vmem:[%s304 + $0xe50] sm:$0xff]
        %v6210 = vld [vmem:[%s304 + $0xe58] sm:$0xff]
        %v6211 = vld [vmem:[%s304 + $0xe60] sm:$0xff]
        %v6212 = vld [vmem:[%s304 + $0xe68] sm:$0xff]
        %v6213 = vld [vmem:[%s304 + $0xe70] sm:$0xff]
        %v6214 = vld [vmem:[%s304 + $0xe78] sm:$0xff]
        %v6215 = vld [vmem:[%s304 + $0xe80] sm:$0xff]
        %v6216 = vld [vmem:[%s304 + $0xe88] sm:$0xff]
        %v6217 = vld [vmem:[%s304 + $0xe90] sm:$0xff]
        %v6218 = vld [vmem:[%s304 + $0xe98] sm:$0xff]
        %v6219 = vld [vmem:[%s304 + $0xea0] sm:$0xff]
        %v6220 = vld [vmem:[%s304 + $0xea8] sm:$0xff]
        %v6221 = vld [vmem:[%s304 + $0xeb0] sm:$0xff]
        %v6222 = vld [vmem:[%s304 + $0xeb8] sm:$0xff]
        %v6223 = vld [vmem:[%s304 + $0xec0] sm:$0xff]
        %v6224 = vld [vmem:[%s304 + $0xec8] sm:$0xff]
        %v6225 = vld [vmem:[%s304 + $0xed0] sm:$0xff]
        %v6226 = vld [vmem:[%s304 + $0xed8] sm:$0xff]
        %v6227 = vld [vmem:[%s304 + $0xee0] sm:$0xff]
        %v6228 = vld [vmem:[%s304 + $0xee8] sm:$0xff]
        %v6229 = vld [vmem:[%s304 + $0xef0] sm:$0xff]
        %v6230 = vld [vmem:[%s304 + $0xef8] sm:$0xff]
        %v6231 = vld [vmem:[%s304 + $0xf00] sm:$0xff]
        %v6232 = vld [vmem:[%s304 + $0xf08] sm:$0xff]
        %v6233 = vld [vmem:[%s304 + $0xf10] sm:$0xff]
        %v6234 = vld [vmem:[%s304 + $0xf18] sm:$0xff]
        %v6235 = vld [vmem:[%s304 + $0xf20] sm:$0xff]
        %v6236 = vld [vmem:[%s304 + $0xf28] sm:$0xff]
        %v6237 = vld [vmem:[%s304 + $0xf30] sm:$0xff]
        %v6238 = vld [vmem:[%s304 + $0xf38] sm:$0xff]
        %v6239 = vld [vmem:[%s304 + $0xf40] sm:$0xff]
        %v6240 = vld [vmem:[%s304 + $0xf48] sm:$0xff]
        %v6241 = vld [vmem:[%s304 + $0xf50] sm:$0xff]
        %v6242 = vld [vmem:[%s304 + $0xf58] sm:$0xff]
        %v6243 = vld [vmem:[%s304 + $0xf60] sm:$0xff]
        %v6244 = vld [vmem:[%s304 + $0xf68] sm:$0xff]
        %v6245 = vld [vmem:[%s304 + $0xf70] sm:$0xff]
        %v6246 = vld [vmem:[%s304 + $0xf78] sm:$0xff]
        %v6247 = vld [vmem:[%s304 + $0xf80] sm:$0xff]
        %v6248 = vld [vmem:[%s304 + $0xf88] sm:$0xff]
        %v6249 = vld [vmem:[%s304 + $0xf90] sm:$0xff]
        %v6250 = vld [vmem:[%s304 + $0xf98] sm:$0xff]
        %v6251 = vld [vmem:[%s304 + $0xfa0] sm:$0xff]
        %v6252 = vld [vmem:[%s304 + $0xfa8] sm:$0xff]
        %v6253 = vld [vmem:[%s304 + $0xfb0] sm:$0xff]
        %v6254 = vld [vmem:[%s304 + $0xfb8] sm:$0xff]
        %v6255 = vld [vmem:[%s304 + $0xfc0] sm:$0xff]
        %v6256 = vld [vmem:[%s304 + $0xfc8] sm:$0xff]
        %v6257 = vld [vmem:[%s304 + $0xfd0] sm:$0xff]
        %v6258 = vld [vmem:[%s304 + $0xfd8] sm:$0xff]
        %v6259 = vld [vmem:[%s304 + $0xfe0] sm:$0xff]
        %v6260 = vld [vmem:[%s304 + $0xfe8] sm:$0xff]
        %v6261 = vld [vmem:[%s304 + $0xff0] sm:$0xff]
        %v6262 = vld [vmem:[%s304 + $0xff8] sm:$0xff]
        %v6775 = vunpack.c.l.b16 %v5751
        %v6776 = vunpack.c.h.b16 %v5751
        %v6777 = vunpack.c.l.b16 %v5752
        %v6778 = vunpack.c.h.b16 %v5752
        %v6779 = vunpack.c.l.b16 %v5753
        %v6780 = vunpack.c.h.b16 %v5753
        %v6781 = vunpack.c.l.b16 %v5754
        %v6782 = vunpack.c.h.b16 %v5754
        %v6783 = vunpack.c.l.b16 %v5755
        %v6784 = vunpack.c.h.b16 %v5755
        %v6785 = vunpack.c.l.b16 %v5756
        %v6786 = vunpack.c.h.b16 %v5756
        %v6787 = vunpack.c.l.b16 %v5757
        %v6788 = vunpack.c.h.b16 %v5757
        %v6789 = vunpack.c.l.b16 %v5758
        %v6790 = vunpack.c.h.b16 %v5758
        %v6791 = vunpack.c.l.b16 %v5759
        %v6792 = vunpack.c.h.b16 %v5759
        %v6793 = vunpack.c.l.b16 %v5760
        %v6794 = vunpack.c.h.b16 %v5760
        %v6795 = vunpack.c.l.b16 %v5761
        %v6796 = vunpack.c.h.b16 %v5761
        %v6797 = vunpack.c.l.b16 %v5762
        %v6798 = vunpack.c.h.b16 %v5762
        %v6799 = vunpack.c.l.b16 %v5763
        %v6800 = vunpack.c.h.b16 %v5763
        %v6801 = vunpack.c.l.b16 %v5764
        %v6802 = vunpack.c.h.b16 %v5764
        %v6803 = vunpack.c.l.b16 %v5765
        %v6804 = vunpack.c.h.b16 %v5765
        %v6805 = vunpack.c.l.b16 %v5766
        %v6806 = vunpack.c.h.b16 %v5766
        %v6807 = vunpack.c.l.b16 %v5767
        %v6808 = vunpack.c.h.b16 %v5767
        %v6809 = vunpack.c.l.b16 %v5768
        %v6810 = vunpack.c.h.b16 %v5768
        %v6811 = vunpack.c.l.b16 %v5769
        %v6812 = vunpack.c.h.b16 %v5769
        %v6813 = vunpack.c.l.b16 %v5770
        %v6814 = vunpack.c.h.b16 %v5770
        %v6815 = vunpack.c.l.b16 %v5771
        %v6816 = vunpack.c.h.b16 %v5771
        %v6817 = vunpack.c.l.b16 %v5772
        %v6818 = vunpack.c.h.b16 %v5772
        %v6819 = vunpack.c.l.b16 %v5773
        %v6820 = vunpack.c.h.b16 %v5773
        %v6821 = vunpack.c.l.b16 %v5774
        %v6822 = vunpack.c.h.b16 %v5774
        %v6823 = vunpack.c.l.b16 %v5775
        %v6824 = vunpack.c.h.b16 %v5775
        %v6825 = vunpack.c.l.b16 %v5776
        %v6826 = vunpack.c.h.b16 %v5776
        %v6827 = vunpack.c.l.b16 %v5777
        %v6828 = vunpack.c.h.b16 %v5777
        %v6829 = vunpack.c.l.b16 %v5778
        %v6830 = vunpack.c.h.b16 %v5778
        %v6831 = vunpack.c.l.b16 %v5779
        %v6832 = vunpack.c.h.b16 %v5779
        %v6833 = vunpack.c.l.b16 %v5780
        %v6834 = vunpack.c.h.b16 %v5780
        %v6835 = vunpack.c.l.b16 %v5781
        %v6836 = vunpack.c.h.b16 %v5781
        %v6837 = vunpack.c.l.b16 %v5782
        %v6838 = vunpack.c.h.b16 %v5782
        %v6839 = vunpack.c.l.b16 %v5783
        %v6840 = vunpack.c.h.b16 %v5783
        %v6841 = vunpack.c.l.b16 %v5784
        %v6842 = vunpack.c.h.b16 %v5784
        %v6843 = vunpack.c.l.b16 %v5785
        %v6844 = vunpack.c.h.b16 %v5785
        %v6845 = vunpack.c.l.b16 %v5786
        %v6846 = vunpack.c.h.b16 %v5786
        %v6847 = vunpack.c.l.b16 %v5787
        %v6848 = vunpack.c.h.b16 %v5787
        %v6849 = vunpack.c.l.b16 %v5788
        %v6850 = vunpack.c.h.b16 %v5788
        %v6851 = vunpack.c.l.b16 %v5789
        %v6852 = vunpack.c.h.b16 %v5789
        %v6853 = vunpack.c.l.b16 %v5790
        %v6854 = vunpack.c.h.b16 %v5790
        %v6855 = vunpack.c.l.b16 %v5791
        %v6856 = vunpack.c.h.b16 %v5791
        %v6857 = vunpack.c.l.b16 %v5792
        %v6858 = vunpack.c.h.b16 %v5792
        %v6859 = vunpack.c.l.b16 %v5793
        %v6860 = vunpack.c.h.b16 %v5793
        %v6861 = vunpack.c.l.b16 %v5794
        %v6862 = vunpack.c.h.b16 %v5794
        %v6863 = vunpack.c.l.b16 %v5795
        %v6864 = vunpack.c.h.b16 %v5795
        %v6865 = vunpack.c.l.b16 %v5796
        %v6866 = vunpack.c.h.b16 %v5796
        %v6867 = vunpack.c.l.b16 %v5797
        %v6868 = vunpack.c.h.b16 %v5797
        %v6869 = vunpack.c.l.b16 %v5798
        %v6870 = vunpack.c.h.b16 %v5798
        %v6871 = vunpack.c.l.b16 %v5799
        %v6872 = vunpack.c.h.b16 %v5799
        %v6873 = vunpack.c.l.b16 %v5800
        %v6874 = vunpack.c.h.b16 %v5800
        %v6875 = vunpack.c.l.b16 %v5801
        %v6876 = vunpack.c.h.b16 %v5801
        %v6877 = vunpack.c.l.b16 %v5802
        %v6878 = vunpack.c.h.b16 %v5802
        %v6879 = vunpack.c.l.b16 %v5803
        %v6880 = vunpack.c.h.b16 %v5803
        %v6881 = vunpack.c.l.b16 %v5804
        %v6882 = vunpack.c.h.b16 %v5804
        %v6883 = vunpack.c.l.b16 %v5805
        %v6884 = vunpack.c.h.b16 %v5805
        %v6885 = vunpack.c.l.b16 %v5806
        %v6886 = vunpack.c.h.b16 %v5806
        %v6887 = vunpack.c.l.b16 %v5807
        %v6888 = vunpack.c.h.b16 %v5807
        %v6889 = vunpack.c.l.b16 %v5808
        %v6890 = vunpack.c.h.b16 %v5808
        %v6891 = vunpack.c.l.b16 %v5809
        %v6892 = vunpack.c.h.b16 %v5809
        %v6893 = vunpack.c.l.b16 %v5810
        %v6894 = vunpack.c.h.b16 %v5810
        %v6895 = vunpack.c.l.b16 %v5811
        %v6896 = vunpack.c.h.b16 %v5811
        %v6897 = vunpack.c.l.b16 %v5812
        %v6898 = vunpack.c.h.b16 %v5812
        %v6899 = vunpack.c.l.b16 %v5813
        %v6900 = vunpack.c.h.b16 %v5813
        %v6901 = vunpack.c.l.b16 %v5814
        %v6902 = vunpack.c.h.b16 %v5814
        %v6903 = vunpack.c.l.b16 %v5815
        %v6904 = vunpack.c.h.b16 %v5815
        %v6905 = vunpack.c.l.b16 %v5816
        %v6906 = vunpack.c.h.b16 %v5816
        %v6907 = vunpack.c.l.b16 %v5817
        %v6908 = vunpack.c.h.b16 %v5817
        %v6909 = vunpack.c.l.b16 %v5818
        %v6910 = vunpack.c.h.b16 %v5818
        %v6911 = vunpack.c.l.b16 %v5819
        %v6912 = vunpack.c.h.b16 %v5819
        %v6913 = vunpack.c.l.b16 %v5820
        %v6914 = vunpack.c.h.b16 %v5820
        %v6915 = vunpack.c.l.b16 %v5821
        %v6916 = vunpack.c.h.b16 %v5821
        %v6917 = vunpack.c.l.b16 %v5822
        %v6918 = vunpack.c.h.b16 %v5822
        %v6919 = vunpack.c.l.b16 %v5823
        %v6920 = vunpack.c.h.b16 %v5823
        %v6921 = vunpack.c.l.b16 %v5824
        %v6922 = vunpack.c.h.b16 %v5824
        %v6923 = vunpack.c.l.b16 %v5825
        %v6924 = vunpack.c.h.b16 %v5825
        %v6925 = vunpack.c.l.b16 %v5826
        %v6926 = vunpack.c.h.b16 %v5826
        %v6927 = vunpack.c.l.b16 %v5827
        %v6928 = vunpack.c.h.b16 %v5827
        %v6929 = vunpack.c.l.b16 %v5828
        %v6930 = vunpack.c.h.b16 %v5828
        %v6931 = vunpack.c.l.b16 %v5829
        %v6932 = vunpack.c.h.b16 %v5829
        %v6933 = vunpack.c.l.b16 %v5830
        %v6934 = vunpack.c.h.b16 %v5830
        %v6935 = vunpack.c.l.b16 %v5831
        %v6936 = vunpack.c.h.b16 %v5831
        %v6937 = vunpack.c.l.b16 %v5832
        %v6938 = vunpack.c.h.b16 %v5832
        %v6939 = vunpack.c.l.b16 %v5833
        %v6940 = vunpack.c.h.b16 %v5833
        %v6941 = vunpack.c.l.b16 %v5834
        %v6942 = vunpack.c.h.b16 %v5834
        %v6943 = vunpack.c.l.b16 %v5835
        %v6944 = vunpack.c.h.b16 %v5835
        %v6945 = vunpack.c.l.b16 %v5836
        %v6946 = vunpack.c.h.b16 %v5836
        %v6947 = vunpack.c.l.b16 %v5837
        %v6948 = vunpack.c.h.b16 %v5837
        %v6949 = vunpack.c.l.b16 %v5838
        %v6950 = vunpack.c.h.b16 %v5838
        %v6951 = vunpack.c.l.b16 %v5839
        %v6952 = vunpack.c.h.b16 %v5839
        %v6953 = vunpack.c.l.b16 %v5840
        %v6954 = vunpack.c.h.b16 %v5840
        %v6955 = vunpack.c.l.b16 %v5841
        %v6956 = vunpack.c.h.b16 %v5841
        %v6957 = vunpack.c.l.b16 %v5842
        %v6958 = vunpack.c.h.b16 %v5842
        %v6959 = vunpack.c.l.b16 %v5843
        %v6960 = vunpack.c.h.b16 %v5843
        %v6961 = vunpack.c.l.b16 %v5844
        %v6962 = vunpack.c.h.b16 %v5844
        %v6963 = vunpack.c.l.b16 %v5845
        %v6964 = vunpack.c.h.b16 %v5845
        %v6965 = vunpack.c.l.b16 %v5846
        %v6966 = vunpack.c.h.b16 %v5846
        %v6967 = vunpack.c.l.b16 %v5847
        %v6968 = vunpack.c.h.b16 %v5847
        %v6969 = vunpack.c.l.b16 %v5848
        %v6970 = vunpack.c.h.b16 %v5848
        %v6971 = vunpack.c.l.b16 %v5849
        %v6972 = vunpack.c.h.b16 %v5849
        %v6973 = vunpack.c.l.b16 %v5850
        %v6974 = vunpack.c.h.b16 %v5850
        %v6975 = vunpack.c.l.b16 %v5851
        %v6976 = vunpack.c.h.b16 %v5851
        %v6977 = vunpack.c.l.b16 %v5852
        %v6978 = vunpack.c.h.b16 %v5852
        %v6979 = vunpack.c.l.b16 %v5853
        %v6980 = vunpack.c.h.b16 %v5853
        %v6981 = vunpack.c.l.b16 %v5854
        %v6982 = vunpack.c.h.b16 %v5854
        %v6983 = vunpack.c.l.b16 %v5855
        %v6984 = vunpack.c.h.b16 %v5855
        %v6985 = vunpack.c.l.b16 %v5856
        %v6986 = vunpack.c.h.b16 %v5856
        %v6987 = vunpack.c.l.b16 %v5857
        %v6988 = vunpack.c.h.b16 %v5857
        %v6989 = vunpack.c.l.b16 %v5858
        %v6990 = vunpack.c.h.b16 %v5858
        %v6991 = vunpack.c.l.b16 %v5859
        %v6992 = vunpack.c.h.b16 %v5859
        %v6993 = vunpack.c.l.b16 %v5860
        %v6994 = vunpack.c.h.b16 %v5860
        %v6995 = vunpack.c.l.b16 %v5861
        %v6996 = vunpack.c.h.b16 %v5861
        %v6997 = vunpack.c.l.b16 %v5862
        %v6998 = vunpack.c.h.b16 %v5862
        %v6999 = vunpack.c.l.b16 %v5863
        %v7000 = vunpack.c.h.b16 %v5863
        %v7001 = vunpack.c.l.b16 %v5864
        %v7002 = vunpack.c.h.b16 %v5864
        %v7003 = vunpack.c.l.b16 %v5865
        %v7004 = vunpack.c.h.b16 %v5865
        %v7005 = vunpack.c.l.b16 %v5866
        %v7006 = vunpack.c.h.b16 %v5866
        %v7007 = vunpack.c.l.b16 %v5867
        %v7008 = vunpack.c.h.b16 %v5867
        %v7009 = vunpack.c.l.b16 %v5868
        %v7010 = vunpack.c.h.b16 %v5868
        %v7011 = vunpack.c.l.b16 %v5869
        %v7012 = vunpack.c.h.b16 %v5869
        %v7013 = vunpack.c.l.b16 %v5870
        %v7014 = vunpack.c.h.b16 %v5870
        %v7015 = vunpack.c.l.b16 %v5871
        %v7016 = vunpack.c.h.b16 %v5871
        %v7017 = vunpack.c.l.b16 %v5872
        %v7018 = vunpack.c.h.b16 %v5872
        %v7019 = vunpack.c.l.b16 %v5873
        %v7020 = vunpack.c.h.b16 %v5873
        %v7021 = vunpack.c.l.b16 %v5874
        %v7022 = vunpack.c.h.b16 %v5874
        %v7023 = vunpack.c.l.b16 %v5875
        %v7024 = vunpack.c.h.b16 %v5875
        %v7025 = vunpack.c.l.b16 %v5876
        %v7026 = vunpack.c.h.b16 %v5876
        %v7027 = vunpack.c.l.b16 %v5877
        %v7028 = vunpack.c.h.b16 %v5877
        %v7029 = vunpack.c.l.b16 %v5878
        %v7030 = vunpack.c.h.b16 %v5878
        %v7031 = vunpack.c.l.b16 %v5879
        %v7032 = vunpack.c.h.b16 %v5879
        %v7033 = vunpack.c.l.b16 %v5880
        %v7034 = vunpack.c.h.b16 %v5880
        %v7035 = vunpack.c.l.b16 %v5881
        %v7036 = vunpack.c.h.b16 %v5881
        %v7037 = vunpack.c.l.b16 %v5882
        %v7038 = vunpack.c.h.b16 %v5882
        %v7039 = vunpack.c.l.b16 %v5883
        %v7040 = vunpack.c.h.b16 %v5883
        %v7041 = vunpack.c.l.b16 %v5884
        %v7042 = vunpack.c.h.b16 %v5884
        %v7043 = vunpack.c.l.b16 %v5885
        %v7044 = vunpack.c.h.b16 %v5885
        %v7045 = vunpack.c.l.b16 %v5886
        %v7046 = vunpack.c.h.b16 %v5886
        %v7047 = vunpack.c.l.b16 %v5887
        %v7048 = vunpack.c.h.b16 %v5887
        %v7049 = vunpack.c.l.b16 %v5888
        %v7050 = vunpack.c.h.b16 %v5888
        %v7051 = vunpack.c.l.b16 %v5889
        %v7052 = vunpack.c.h.b16 %v5889
        %v7053 = vunpack.c.l.b16 %v5890
        %v7054 = vunpack.c.h.b16 %v5890
        %v7055 = vunpack.c.l.b16 %v5891
        %v7056 = vunpack.c.h.b16 %v5891
        %v7057 = vunpack.c.l.b16 %v5892
        %v7058 = vunpack.c.h.b16 %v5892
        %v7059 = vunpack.c.l.b16 %v5893
        %v7060 = vunpack.c.h.b16 %v5893
        %v7061 = vunpack.c.l.b16 %v5894
        %v7062 = vunpack.c.h.b16 %v5894
        %v7063 = vunpack.c.l.b16 %v5895
        %v7064 = vunpack.c.h.b16 %v5895
        %v7065 = vunpack.c.l.b16 %v5896
        %v7066 = vunpack.c.h.b16 %v5896
        %v7067 = vunpack.c.l.b16 %v5897
        %v7068 = vunpack.c.h.b16 %v5897
        %v7069 = vunpack.c.l.b16 %v5898
        %v7070 = vunpack.c.h.b16 %v5898
        %v7071 = vunpack.c.l.b16 %v5899
        %v7072 = vunpack.c.h.b16 %v5899
        %v7073 = vunpack.c.l.b16 %v5900
        %v7074 = vunpack.c.h.b16 %v5900
        %v7075 = vunpack.c.l.b16 %v5901
        %v7076 = vunpack.c.h.b16 %v5901
        %v7077 = vunpack.c.l.b16 %v5902
        %v7078 = vunpack.c.h.b16 %v5902
        %v7079 = vunpack.c.l.b16 %v5903
        %v7080 = vunpack.c.h.b16 %v5903
        %v7081 = vunpack.c.l.b16 %v5904
        %v7082 = vunpack.c.h.b16 %v5904
        %v7083 = vunpack.c.l.b16 %v5905
        %v7084 = vunpack.c.h.b16 %v5905
        %v7085 = vunpack.c.l.b16 %v5906
        %v7086 = vunpack.c.h.b16 %v5906
        %v7087 = vunpack.c.l.b16 %v5907
        %v7088 = vunpack.c.h.b16 %v5907
        %v7089 = vunpack.c.l.b16 %v5908
        %v7090 = vunpack.c.h.b16 %v5908
        %v7091 = vunpack.c.l.b16 %v5909
        %v7092 = vunpack.c.h.b16 %v5909
        %v7093 = vunpack.c.l.b16 %v5910
        %v7094 = vunpack.c.h.b16 %v5910
        %v7095 = vunpack.c.l.b16 %v5911
        %v7096 = vunpack.c.h.b16 %v5911
        %v7097 = vunpack.c.l.b16 %v5912
        %v7098 = vunpack.c.h.b16 %v5912
        %v7099 = vunpack.c.l.b16 %v5913
        %v7100 = vunpack.c.h.b16 %v5913
        %v7101 = vunpack.c.l.b16 %v5914
        %v7102 = vunpack.c.h.b16 %v5914
        %v7103 = vunpack.c.l.b16 %v5915
        %v7104 = vunpack.c.h.b16 %v5915
        %v7105 = vunpack.c.l.b16 %v5916
        %v7106 = vunpack.c.h.b16 %v5916
        %v7107 = vunpack.c.l.b16 %v5917
        %v7108 = vunpack.c.h.b16 %v5917
        %v7109 = vunpack.c.l.b16 %v5918
        %v7110 = vunpack.c.h.b16 %v5918
        %v7111 = vunpack.c.l.b16 %v5919
        %v7112 = vunpack.c.h.b16 %v5919
        %v7113 = vunpack.c.l.b16 %v5920
        %v7114 = vunpack.c.h.b16 %v5920
        %v7115 = vunpack.c.l.b16 %v5921
        %v7116 = vunpack.c.h.b16 %v5921
        %v7117 = vunpack.c.l.b16 %v5922
        %v7118 = vunpack.c.h.b16 %v5922
        %v7119 = vunpack.c.l.b16 %v5923
        %v7120 = vunpack.c.h.b16 %v5923
        %v7121 = vunpack.c.l.b16 %v5924
        %v7122 = vunpack.c.h.b16 %v5924
        %v7123 = vunpack.c.l.b16 %v5925
        %v7124 = vunpack.c.h.b16 %v5925
        %v7125 = vunpack.c.l.b16 %v5926
        %v7126 = vunpack.c.h.b16 %v5926
        %v7127 = vunpack.c.l.b16 %v5927
        %v7128 = vunpack.c.h.b16 %v5927
        %v7129 = vunpack.c.l.b16 %v5928
        %v7130 = vunpack.c.h.b16 %v5928
        %v7131 = vunpack.c.l.b16 %v5929
        %v7132 = vunpack.c.h.b16 %v5929
        %v7133 = vunpack.c.l.b16 %v5930
        %v7134 = vunpack.c.h.b16 %v5930
        %v7135 = vunpack.c.l.b16 %v5931
        %v7136 = vunpack.c.h.b16 %v5931
        %v7137 = vunpack.c.l.b16 %v5932
        %v7138 = vunpack.c.h.b16 %v5932
        %v7139 = vunpack.c.l.b16 %v5933
        %v7140 = vunpack.c.h.b16 %v5933
        %v7141 = vunpack.c.l.b16 %v5934
        %v7142 = vunpack.c.h.b16 %v5934
        %v7143 = vunpack.c.l.b16 %v5935
        %v7144 = vunpack.c.h.b16 %v5935
        %v7145 = vunpack.c.l.b16 %v5936
        %v7146 = vunpack.c.h.b16 %v5936
        %v7147 = vunpack.c.l.b16 %v5937
        %v7148 = vunpack.c.h.b16 %v5937
        %v7149 = vunpack.c.l.b16 %v5938
        %v7150 = vunpack.c.h.b16 %v5938
        %v7151 = vunpack.c.l.b16 %v5939
        %v7152 = vunpack.c.h.b16 %v5939
        %v7153 = vunpack.c.l.b16 %v5940
        %v7154 = vunpack.c.h.b16 %v5940
        %v7155 = vunpack.c.l.b16 %v5941
        %v7156 = vunpack.c.h.b16 %v5941
        %v7157 = vunpack.c.l.b16 %v5942
        %v7158 = vunpack.c.h.b16 %v5942
        %v7159 = vunpack.c.l.b16 %v5943
        %v7160 = vunpack.c.h.b16 %v5943
        %v7161 = vunpack.c.l.b16 %v5944
        %v7162 = vunpack.c.h.b16 %v5944
        %v7163 = vunpack.c.l.b16 %v5945
        %v7164 = vunpack.c.h.b16 %v5945
        %v7165 = vunpack.c.l.b16 %v5946
        %v7166 = vunpack.c.h.b16 %v5946
        %v7167 = vunpack.c.l.b16 %v5947
        %v7168 = vunpack.c.h.b16 %v5947
        %v7169 = vunpack.c.l.b16 %v5948
        %v7170 = vunpack.c.h.b16 %v5948
        %v7171 = vunpack.c.l.b16 %v5949
        %v7172 = vunpack.c.h.b16 %v5949
        %v7173 = vunpack.c.l.b16 %v5950
        %v7174 = vunpack.c.h.b16 %v5950
        %v7175 = vunpack.c.l.b16 %v5951
        %v7176 = vunpack.c.h.b16 %v5951
        %v7177 = vunpack.c.l.b16 %v5952
        %v7178 = vunpack.c.h.b16 %v5952
        %v7179 = vunpack.c.l.b16 %v5953
        %v7180 = vunpack.c.h.b16 %v5953
        %v7181 = vunpack.c.l.b16 %v5954
        %v7182 = vunpack.c.h.b16 %v5954
        %v7183 = vunpack.c.l.b16 %v5955
        %v7184 = vunpack.c.h.b16 %v5955
        %v7185 = vunpack.c.l.b16 %v5956
        %v7186 = vunpack.c.h.b16 %v5956
        %v7187 = vunpack.c.l.b16 %v5957
        %v7188 = vunpack.c.h.b16 %v5957
        %v7189 = vunpack.c.l.b16 %v5958
        %v7190 = vunpack.c.h.b16 %v5958
        %v7191 = vunpack.c.l.b16 %v5959
        %v7192 = vunpack.c.h.b16 %v5959
        %v7193 = vunpack.c.l.b16 %v5960
        %v7194 = vunpack.c.h.b16 %v5960
        %v7195 = vunpack.c.l.b16 %v5961
        %v7196 = vunpack.c.h.b16 %v5961
        %v7197 = vunpack.c.l.b16 %v5962
        %v7198 = vunpack.c.h.b16 %v5962
        %v7199 = vunpack.c.l.b16 %v5963
        %v7200 = vunpack.c.h.b16 %v5963
        %v7201 = vunpack.c.l.b16 %v5964
        %v7202 = vunpack.c.h.b16 %v5964
        %v7203 = vunpack.c.l.b16 %v5965
        %v7204 = vunpack.c.h.b16 %v5965
        %v7205 = vunpack.c.l.b16 %v5966
        %v7206 = vunpack.c.h.b16 %v5966
        %v7207 = vunpack.c.l.b16 %v5967
        %v7208 = vunpack.c.h.b16 %v5967
        %v7209 = vunpack.c.l.b16 %v5968
        %v7210 = vunpack.c.h.b16 %v5968
        %v7211 = vunpack.c.l.b16 %v5969
        %v7212 = vunpack.c.h.b16 %v5969
        %v7213 = vunpack.c.l.b16 %v5970
        %v7214 = vunpack.c.h.b16 %v5970
        %v7215 = vunpack.c.l.b16 %v5971
        %v7216 = vunpack.c.h.b16 %v5971
        %v7217 = vunpack.c.l.b16 %v5972
        %v7218 = vunpack.c.h.b16 %v5972
        %v7219 = vunpack.c.l.b16 %v5973
        %v7220 = vunpack.c.h.b16 %v5973
        %v7221 = vunpack.c.l.b16 %v5974
        %v7222 = vunpack.c.h.b16 %v5974
        %v7223 = vunpack.c.l.b16 %v5975
        %v7224 = vunpack.c.h.b16 %v5975
        %v7225 = vunpack.c.l.b16 %v5976
        %v7226 = vunpack.c.h.b16 %v5976
        %v7227 = vunpack.c.l.b16 %v5977
        %v7228 = vunpack.c.h.b16 %v5977
        %v7229 = vunpack.c.l.b16 %v5978
        %v7230 = vunpack.c.h.b16 %v5978
        %v7231 = vunpack.c.l.b16 %v5979
        %v7232 = vunpack.c.h.b16 %v5979
        %v7233 = vunpack.c.l.b16 %v5980
        %v7234 = vunpack.c.h.b16 %v5980
        %v7235 = vunpack.c.l.b16 %v5981
        %v7236 = vunpack.c.h.b16 %v5981
        %v7237 = vunpack.c.l.b16 %v5982
        %v7238 = vunpack.c.h.b16 %v5982
        %v7239 = vunpack.c.l.b16 %v5983
        %v7240 = vunpack.c.h.b16 %v5983
        %v7241 = vunpack.c.l.b16 %v5984
        %v7242 = vunpack.c.h.b16 %v5984
        %v7243 = vunpack.c.l.b16 %v5985
        %v7244 = vunpack.c.h.b16 %v5985
        %v7245 = vunpack.c.l.b16 %v5986
        %v7246 = vunpack.c.h.b16 %v5986
        %v7247 = vunpack.c.l.b16 %v5987
        %v7248 = vunpack.c.h.b16 %v5987
        %v7249 = vunpack.c.l.b16 %v5988
        %v7250 = vunpack.c.h.b16 %v5988
        %v7251 = vunpack.c.l.b16 %v5989
        %v7252 = vunpack.c.h.b16 %v5989
        %v7253 = vunpack.c.l.b16 %v5990
        %v7254 = vunpack.c.h.b16 %v5990
        %v7255 = vunpack.c.l.b16 %v5991
        %v7256 = vunpack.c.h.b16 %v5991
        %v7257 = vunpack.c.l.b16 %v5992
        %v7258 = vunpack.c.h.b16 %v5992
        %v7259 = vunpack.c.l.b16 %v5993
        %v7260 = vunpack.c.h.b16 %v5993
        %v7261 = vunpack.c.l.b16 %v5994
        %v7262 = vunpack.c.h.b16 %v5994
        %v7263 = vunpack.c.l.b16 %v5995
        %v7264 = vunpack.c.h.b16 %v5995
        %v7265 = vunpack.c.l.b16 %v5996
        %v7266 = vunpack.c.h.b16 %v5996
        %v7267 = vunpack.c.l.b16 %v5997
        %v7268 = vunpack.c.h.b16 %v5997
        %v7269 = vunpack.c.l.b16 %v5998
        %v7270 = vunpack.c.h.b16 %v5998
        %v7271 = vunpack.c.l.b16 %v5999
        %v7272 = vunpack.c.h.b16 %v5999
        %v7273 = vunpack.c.l.b16 %v6000
        %v7274 = vunpack.c.h.b16 %v6000
        %v7275 = vunpack.c.l.b16 %v6001
        %v7276 = vunpack.c.h.b16 %v6001
        %v7277 = vunpack.c.l.b16 %v6002
        %v7278 = vunpack.c.h.b16 %v6002
        %v7279 = vunpack.c.l.b16 %v6003
        %v7280 = vunpack.c.h.b16 %v6003
        %v7281 = vunpack.c.l.b16 %v6004
        %v7282 = vunpack.c.h.b16 %v6004
        %v7283 = vunpack.c.l.b16 %v6005
        %v7284 = vunpack.c.h.b16 %v6005
        %v7285 = vunpack.c.l.b16 %v6006
        %v7286 = vunpack.c.h.b16 %v6006
        %v7287 = vunpack.c.l.b16 %v6007
        %v7288 = vunpack.c.h.b16 %v6007
        %v7289 = vunpack.c.l.b16 %v6008
        %v7290 = vunpack.c.h.b16 %v6008
        %v7291 = vunpack.c.l.b16 %v6009
        %v7292 = vunpack.c.h.b16 %v6009
        %v7293 = vunpack.c.l.b16 %v6010
        %v7294 = vunpack.c.h.b16 %v6010
        %v7295 = vunpack.c.l.b16 %v6011
        %v7296 = vunpack.c.h.b16 %v6011
        %v7297 = vunpack.c.l.b16 %v6012
        %v7298 = vunpack.c.h.b16 %v6012
        %v7299 = vunpack.c.l.b16 %v6013
        %v7300 = vunpack.c.h.b16 %v6013
        %v7301 = vunpack.c.l.b16 %v6014
        %v7302 = vunpack.c.h.b16 %v6014
        %v7303 = vunpack.c.l.b16 %v6015
        %v7304 = vunpack.c.h.b16 %v6015
        %v7305 = vunpack.c.l.b16 %v6016
        %v7306 = vunpack.c.h.b16 %v6016
        %v7307 = vunpack.c.l.b16 %v6017
        %v7308 = vunpack.c.h.b16 %v6017
        %v7309 = vunpack.c.l.b16 %v6018
        %v7310 = vunpack.c.h.b16 %v6018
        %v7311 = vunpack.c.l.b16 %v6019
        %v7312 = vunpack.c.h.b16 %v6019
        %v7313 = vunpack.c.l.b16 %v6020
        %v7314 = vunpack.c.h.b16 %v6020
        %v7315 = vunpack.c.l.b16 %v6021
        %v7316 = vunpack.c.h.b16 %v6021
        %v7317 = vunpack.c.l.b16 %v6022
        %v7318 = vunpack.c.h.b16 %v6022
        %v7319 = vunpack.c.l.b16 %v6023
        %v7320 = vunpack.c.h.b16 %v6023
        %v7321 = vunpack.c.l.b16 %v6024
        %v7322 = vunpack.c.h.b16 %v6024
        %v7323 = vunpack.c.l.b16 %v6025
        %v7324 = vunpack.c.h.b16 %v6025
        %v7325 = vunpack.c.l.b16 %v6026
        %v7326 = vunpack.c.h.b16 %v6026
        %v7327 = vunpack.c.l.b16 %v6027
        %v7328 = vunpack.c.h.b16 %v6027
        %v7329 = vunpack.c.l.b16 %v6028
        %v7330 = vunpack.c.h.b16 %v6028
        %v7331 = vunpack.c.l.b16 %v6029
        %v7332 = vunpack.c.h.b16 %v6029
        %v7333 = vunpack.c.l.b16 %v6030
        %v7334 = vunpack.c.h.b16 %v6030
        %v7335 = vunpack.c.l.b16 %v6031
        %v7336 = vunpack.c.h.b16 %v6031
        %v7337 = vunpack.c.l.b16 %v6032
        %v7338 = vunpack.c.h.b16 %v6032
        %v7339 = vunpack.c.l.b16 %v6033
        %v7340 = vunpack.c.h.b16 %v6033
        %v7341 = vunpack.c.l.b16 %v6034
        %v7342 = vunpack.c.h.b16 %v6034
        %v7343 = vunpack.c.l.b16 %v6035
        %v7344 = vunpack.c.h.b16 %v6035
        %v7345 = vunpack.c.l.b16 %v6036
        %v7346 = vunpack.c.h.b16 %v6036
        %v7347 = vunpack.c.l.b16 %v6037
        %v7348 = vunpack.c.h.b16 %v6037
        %v7349 = vunpack.c.l.b16 %v6038
        %v7350 = vunpack.c.h.b16 %v6038
        %v7351 = vunpack.c.l.b16 %v6039
        %v7352 = vunpack.c.h.b16 %v6039
        %v7353 = vunpack.c.l.b16 %v6040
        %v7354 = vunpack.c.h.b16 %v6040
        %v7355 = vunpack.c.l.b16 %v6041
        %v7356 = vunpack.c.h.b16 %v6041
        %v7357 = vunpack.c.l.b16 %v6042
        %v7358 = vunpack.c.h.b16 %v6042
        %v7359 = vunpack.c.l.b16 %v6043
        %v7360 = vunpack.c.h.b16 %v6043
        %v7361 = vunpack.c.l.b16 %v6044
        %v7362 = vunpack.c.h.b16 %v6044
        %v7363 = vunpack.c.l.b16 %v6045
        %v7364 = vunpack.c.h.b16 %v6045
        %v7365 = vunpack.c.l.b16 %v6046
        %v7366 = vunpack.c.h.b16 %v6046
        %v7367 = vunpack.c.l.b16 %v6047
        %v7368 = vunpack.c.h.b16 %v6047
        %v7369 = vunpack.c.l.b16 %v6048
        %v7370 = vunpack.c.h.b16 %v6048
        %v7371 = vunpack.c.l.b16 %v6049
        %v7372 = vunpack.c.h.b16 %v6049
        %v7373 = vunpack.c.l.b16 %v6050
        %v7374 = vunpack.c.h.b16 %v6050
        %v7375 = vunpack.c.l.b16 %v6051
        %v7376 = vunpack.c.h.b16 %v6051
        %v7377 = vunpack.c.l.b16 %v6052
        %v7378 = vunpack.c.h.b16 %v6052
        %v7379 = vunpack.c.l.b16 %v6053
        %v7380 = vunpack.c.h.b16 %v6053
        %v7381 = vunpack.c.l.b16 %v6054
        %v7382 = vunpack.c.h.b16 %v6054
        %v7383 = vunpack.c.l.b16 %v6055
        %v7384 = vunpack.c.h.b16 %v6055
        %v7385 = vunpack.c.l.b16 %v6056
        %v7386 = vunpack.c.h.b16 %v6056
        %v7387 = vunpack.c.l.b16 %v6057
        %v7388 = vunpack.c.h.b16 %v6057
        %v7389 = vunpack.c.l.b16 %v6058
        %v7390 = vunpack.c.h.b16 %v6058
        %v7391 = vunpack.c.l.b16 %v6059
        %v7392 = vunpack.c.h.b16 %v6059
        %v7393 = vunpack.c.l.b16 %v6060
        %v7394 = vunpack.c.h.b16 %v6060
        %v7395 = vunpack.c.l.b16 %v6061
        %v7396 = vunpack.c.h.b16 %v6061
        %v7397 = vunpack.c.l.b16 %v6062
        %v7398 = vunpack.c.h.b16 %v6062
        %v7399 = vunpack.c.l.b16 %v6063
        %v7400 = vunpack.c.h.b16 %v6063
        %v7401 = vunpack.c.l.b16 %v6064
        %v7402 = vunpack.c.h.b16 %v6064
        %v7403 = vunpack.c.l.b16 %v6065
        %v7404 = vunpack.c.h.b16 %v6065
        %v7405 = vunpack.c.l.b16 %v6066
        %v7406 = vunpack.c.h.b16 %v6066
        %v7407 = vunpack.c.l.b16 %v6067
        %v7408 = vunpack.c.h.b16 %v6067
        %v7409 = vunpack.c.l.b16 %v6068
        %v7410 = vunpack.c.h.b16 %v6068
        %v7411 = vunpack.c.l.b16 %v6069
        %v7412 = vunpack.c.h.b16 %v6069
        %v7413 = vunpack.c.l.b16 %v6070
        %v7414 = vunpack.c.h.b16 %v6070
        %v7415 = vunpack.c.l.b16 %v6071
        %v7416 = vunpack.c.h.b16 %v6071
        %v7417 = vunpack.c.l.b16 %v6072
        %v7418 = vunpack.c.h.b16 %v6072
        %v7419 = vunpack.c.l.b16 %v6073
        %v7420 = vunpack.c.h.b16 %v6073
        %v7421 = vunpack.c.l.b16 %v6074
        %v7422 = vunpack.c.h.b16 %v6074
        %v7423 = vunpack.c.l.b16 %v6075
        %v7424 = vunpack.c.h.b16 %v6075
        %v7425 = vunpack.c.l.b16 %v6076
        %v7426 = vunpack.c.h.b16 %v6076
        %v7427 = vunpack.c.l.b16 %v6077
        %v7428 = vunpack.c.h.b16 %v6077
        %v7429 = vunpack.c.l.b16 %v6078
        %v7430 = vunpack.c.h.b16 %v6078
        %v7431 = vunpack.c.l.b16 %v6079
        %v7432 = vunpack.c.h.b16 %v6079
        %v7433 = vunpack.c.l.b16 %v6080
        %v7434 = vunpack.c.h.b16 %v6080
        %v7435 = vunpack.c.l.b16 %v6081
        %v7436 = vunpack.c.h.b16 %v6081
        %v7437 = vunpack.c.l.b16 %v6082
        %v7438 = vunpack.c.h.b16 %v6082
        %v7439 = vunpack.c.l.b16 %v6083
        %v7440 = vunpack.c.h.b16 %v6083
        %v7441 = vunpack.c.l.b16 %v6084
        %v7442 = vunpack.c.h.b16 %v6084
        %v7443 = vunpack.c.l.b16 %v6085
        %v7444 = vunpack.c.h.b16 %v6085
        %v7445 = vunpack.c.l.b16 %v6086
        %v7446 = vunpack.c.h.b16 %v6086
        %v7447 = vunpack.c.l.b16 %v6087
        %v7448 = vunpack.c.h.b16 %v6087
        %v7449 = vunpack.c.l.b16 %v6088
        %v7450 = vunpack.c.h.b16 %v6088
        %v7451 = vunpack.c.l.b16 %v6089
        %v7452 = vunpack.c.h.b16 %v6089
        %v7453 = vunpack.c.l.b16 %v6090
        %v7454 = vunpack.c.h.b16 %v6090
        %v7455 = vunpack.c.l.b16 %v6091
        %v7456 = vunpack.c.h.b16 %v6091
        %v7457 = vunpack.c.l.b16 %v6092
        %v7458 = vunpack.c.h.b16 %v6092
        %v7459 = vunpack.c.l.b16 %v6093
        %v7460 = vunpack.c.h.b16 %v6093
        %v7461 = vunpack.c.l.b16 %v6094
        %v7462 = vunpack.c.h.b16 %v6094
        %v7463 = vunpack.c.l.b16 %v6095
        %v7464 = vunpack.c.h.b16 %v6095
        %v7465 = vunpack.c.l.b16 %v6096
        %v7466 = vunpack.c.h.b16 %v6096
        %v7467 = vunpack.c.l.b16 %v6097
        %v7468 = vunpack.c.h.b16 %v6097
        %v7469 = vunpack.c.l.b16 %v6098
        %v7470 = vunpack.c.h.b16 %v6098
        %v7471 = vunpack.c.l.b16 %v6099
        %v7472 = vunpack.c.h.b16 %v6099
        %v7473 = vunpack.c.l.b16 %v6100
        %v7474 = vunpack.c.h.b16 %v6100
        %v7475 = vunpack.c.l.b16 %v6101
        %v7476 = vunpack.c.h.b16 %v6101
        %v7477 = vunpack.c.l.b16 %v6102
        %v7478 = vunpack.c.h.b16 %v6102
        %v7479 = vunpack.c.l.b16 %v6103
        %v7480 = vunpack.c.h.b16 %v6103
        %v7481 = vunpack.c.l.b16 %v6104
        %v7482 = vunpack.c.h.b16 %v6104
        %v7483 = vunpack.c.l.b16 %v6105
        %v7484 = vunpack.c.h.b16 %v6105
        %v7485 = vunpack.c.l.b16 %v6106
        %v7486 = vunpack.c.h.b16 %v6106
        %v7487 = vunpack.c.l.b16 %v6107
        %v7488 = vunpack.c.h.b16 %v6107
        %v7489 = vunpack.c.l.b16 %v6108
        %v7490 = vunpack.c.h.b16 %v6108
        %v7491 = vunpack.c.l.b16 %v6109
        %v7492 = vunpack.c.h.b16 %v6109
        %v7493 = vunpack.c.l.b16 %v6110
        %v7494 = vunpack.c.h.b16 %v6110
        %v7495 = vunpack.c.l.b16 %v6111
        %v7496 = vunpack.c.h.b16 %v6111
        %v7497 = vunpack.c.l.b16 %v6112
        %v7498 = vunpack.c.h.b16 %v6112
        %v7499 = vunpack.c.l.b16 %v6113
        %v7500 = vunpack.c.h.b16 %v6113
        %v7501 = vunpack.c.l.b16 %v6114
        %v7502 = vunpack.c.h.b16 %v6114
        %v7503 = vunpack.c.l.b16 %v6115
        %v7504 = vunpack.c.h.b16 %v6115
        %v7505 = vunpack.c.l.b16 %v6116
        %v7506 = vunpack.c.h.b16 %v6116
        %v7507 = vunpack.c.l.b16 %v6117
        %v7508 = vunpack.c.h.b16 %v6117
        %v7509 = vunpack.c.l.b16 %v6118
        %v7510 = vunpack.c.h.b16 %v6118
        %v7511 = vunpack.c.l.b16 %v6119
        %v7512 = vunpack.c.h.b16 %v6119
        %v7513 = vunpack.c.l.b16 %v6120
        %v7514 = vunpack.c.h.b16 %v6120
        %v7515 = vunpack.c.l.b16 %v6121
        %v7516 = vunpack.c.h.b16 %v6121
        %v7517 = vunpack.c.l.b16 %v6122
        %v7518 = vunpack.c.h.b16 %v6122
        %v7519 = vunpack.c.l.b16 %v6123
        %v7520 = vunpack.c.h.b16 %v6123
        %v7521 = vunpack.c.l.b16 %v6124
        %v7522 = vunpack.c.h.b16 %v6124
        %v7523 = vunpack.c.l.b16 %v6125
        %v7524 = vunpack.c.h.b16 %v6125
        %v7525 = vunpack.c.l.b16 %v6126
        %v7526 = vunpack.c.h.b16 %v6126
        %v7527 = vunpack.c.l.b16 %v6127
        %v7528 = vunpack.c.h.b16 %v6127
        %v7529 = vunpack.c.l.b16 %v6128
        %v7530 = vunpack.c.h.b16 %v6128
        %v7531 = vunpack.c.l.b16 %v6129
        %v7532 = vunpack.c.h.b16 %v6129
        %v7533 = vunpack.c.l.b16 %v6130
        %v7534 = vunpack.c.h.b16 %v6130
        %v7535 = vunpack.c.l.b16 %v6131
        %v7536 = vunpack.c.h.b16 %v6131
        %v7537 = vunpack.c.l.b16 %v6132
        %v7538 = vunpack.c.h.b16 %v6132
        %v7539 = vunpack.c.l.b16 %v6133
        %v7540 = vunpack.c.h.b16 %v6133
        %v7541 = vunpack.c.l.b16 %v6134
        %v7542 = vunpack.c.h.b16 %v6134
        %v7543 = vunpack.c.l.b16 %v6135
        %v7544 = vunpack.c.h.b16 %v6135
        %v7545 = vunpack.c.l.b16 %v6136
        %v7546 = vunpack.c.h.b16 %v6136
        %v7547 = vunpack.c.l.b16 %v6137
        %v7548 = vunpack.c.h.b16 %v6137
        %v7549 = vunpack.c.l.b16 %v6138
        %v7550 = vunpack.c.h.b16 %v6138
        %v7551 = vunpack.c.l.b16 %v6139
        %v7552 = vunpack.c.h.b16 %v6139
        %v7553 = vunpack.c.l.b16 %v6140
        %v7554 = vunpack.c.h.b16 %v6140
        %v7555 = vunpack.c.l.b16 %v6141
        %v7556 = vunpack.c.h.b16 %v6141
        %v7557 = vunpack.c.l.b16 %v6142
        %v7558 = vunpack.c.h.b16 %v6142
        %v7559 = vunpack.c.l.b16 %v6143
        %v7560 = vunpack.c.h.b16 %v6143
        %v7561 = vunpack.c.l.b16 %v6144
        %v7562 = vunpack.c.h.b16 %v6144
        %v7563 = vunpack.c.l.b16 %v6145
        %v7564 = vunpack.c.h.b16 %v6145
        %v7565 = vunpack.c.l.b16 %v6146
        %v7566 = vunpack.c.h.b16 %v6146
        %v7567 = vunpack.c.l.b16 %v6147
        %v7568 = vunpack.c.h.b16 %v6147
        %v7569 = vunpack.c.l.b16 %v6148
        %v7570 = vunpack.c.h.b16 %v6148
        %v7571 = vunpack.c.l.b16 %v6149
        %v7572 = vunpack.c.h.b16 %v6149
        %v7573 = vunpack.c.l.b16 %v6150
        %v7574 = vunpack.c.h.b16 %v6150
        %v7575 = vunpack.c.l.b16 %v6151
        %v7576 = vunpack.c.h.b16 %v6151
        %v7577 = vunpack.c.l.b16 %v6152
        %v7578 = vunpack.c.h.b16 %v6152
        %v7579 = vunpack.c.l.b16 %v6153
        %v7580 = vunpack.c.h.b16 %v6153
        %v7581 = vunpack.c.l.b16 %v6154
        %v7582 = vunpack.c.h.b16 %v6154
        %v7583 = vunpack.c.l.b16 %v6155
        %v7584 = vunpack.c.h.b16 %v6155
        %v7585 = vunpack.c.l.b16 %v6156
        %v7586 = vunpack.c.h.b16 %v6156
        %v7587 = vunpack.c.l.b16 %v6157
        %v7588 = vunpack.c.h.b16 %v6157
        %v7589 = vunpack.c.l.b16 %v6158
        %v7590 = vunpack.c.h.b16 %v6158
        %v7591 = vunpack.c.l.b16 %v6159
        %v7592 = vunpack.c.h.b16 %v6159
        %v7593 = vunpack.c.l.b16 %v6160
        %v7594 = vunpack.c.h.b16 %v6160
        %v7595 = vunpack.c.l.b16 %v6161
        %v7596 = vunpack.c.h.b16 %v6161
        %v7597 = vunpack.c.l.b16 %v6162
        %v7598 = vunpack.c.h.b16 %v6162
        %v7599 = vunpack.c.l.b16 %v6163
        %v7600 = vunpack.c.h.b16 %v6163
        %v7601 = vunpack.c.l.b16 %v6164
        %v7602 = vunpack.c.h.b16 %v6164
        %v7603 = vunpack.c.l.b16 %v6165
        %v7604 = vunpack.c.h.b16 %v6165
        %v7605 = vunpack.c.l.b16 %v6166
        %v7606 = vunpack.c.h.b16 %v6166
        %v7607 = vunpack.c.l.b16 %v6167
        %v7608 = vunpack.c.h.b16 %v6167
        %v7609 = vunpack.c.l.b16 %v6168
        %v7610 = vunpack.c.h.b16 %v6168
        %v7611 = vunpack.c.l.b16 %v6169
        %v7612 = vunpack.c.h.b16 %v6169
        %v7613 = vunpack.c.l.b16 %v6170
        %v7614 = vunpack.c.h.b16 %v6170
        %v7615 = vunpack.c.l.b16 %v6171
        %v7616 = vunpack.c.h.b16 %v6171
        %v7617 = vunpack.c.l.b16 %v6172
        %v7618 = vunpack.c.h.b16 %v6172
        %v7619 = vunpack.c.l.b16 %v6173
        %v7620 = vunpack.c.h.b16 %v6173
        %v7621 = vunpack.c.l.b16 %v6174
        %v7622 = vunpack.c.h.b16 %v6174
        %v7623 = vunpack.c.l.b16 %v6175
        %v7624 = vunpack.c.h.b16 %v6175
        %v7625 = vunpack.c.l.b16 %v6176
        %v7626 = vunpack.c.h.b16 %v6176
        %v7627 = vunpack.c.l.b16 %v6177
        %v7628 = vunpack.c.h.b16 %v6177
        %v7629 = vunpack.c.l.b16 %v6178
        %v7630 = vunpack.c.h.b16 %v6178
        %v7631 = vunpack.c.l.b16 %v6179
        %v7632 = vunpack.c.h.b16 %v6179
        %v7633 = vunpack.c.l.b16 %v6180
        %v7634 = vunpack.c.h.b16 %v6180
        %v7635 = vunpack.c.l.b16 %v6181
        %v7636 = vunpack.c.h.b16 %v6181
        %v7637 = vunpack.c.l.b16 %v6182
        %v7638 = vunpack.c.h.b16 %v6182
        %v7639 = vunpack.c.l.b16 %v6183
        %v7640 = vunpack.c.h.b16 %v6183
        %v7641 = vunpack.c.l.b16 %v6184
        %v7642 = vunpack.c.h.b16 %v6184
        %v7643 = vunpack.c.l.b16 %v6185
        %v7644 = vunpack.c.h.b16 %v6185
        %v7645 = vunpack.c.l.b16 %v6186
        %v7646 = vunpack.c.h.b16 %v6186
        %v7647 = vunpack.c.l.b16 %v6187
        %v7648 = vunpack.c.h.b16 %v6187
        %v7649 = vunpack.c.l.b16 %v6188
        %v7650 = vunpack.c.h.b16 %v6188
        %v7651 = vunpack.c.l.b16 %v6189
        %v7652 = vunpack.c.h.b16 %v6189
        %v7653 = vunpack.c.l.b16 %v6190
        %v7654 = vunpack.c.h.b16 %v6190
        %v7655 = vunpack.c.l.b16 %v6191
        %v7656 = vunpack.c.h.b16 %v6191
        %v7657 = vunpack.c.l.b16 %v6192
        %v7658 = vunpack.c.h.b16 %v6192
        %v7659 = vunpack.c.l.b16 %v6193
        %v7660 = vunpack.c.h.b16 %v6193
        %v7661 = vunpack.c.l.b16 %v6194
        %v7662 = vunpack.c.h.b16 %v6194
        %v7663 = vunpack.c.l.b16 %v6195
        %v7664 = vunpack.c.h.b16 %v6195
        %v7665 = vunpack.c.l.b16 %v6196
        %v7666 = vunpack.c.h.b16 %v6196
        %v7667 = vunpack.c.l.b16 %v6197
        %v7668 = vunpack.c.h.b16 %v6197
        %v7669 = vunpack.c.l.b16 %v6198
        %v7670 = vunpack.c.h.b16 %v6198
        %v7671 = vunpack.c.l.b16 %v6199
        %v7672 = vunpack.c.h.b16 %v6199
        %v7673 = vunpack.c.l.b16 %v6200
        %v7674 = vunpack.c.h.b16 %v6200
        %v7675 = vunpack.c.l.b16 %v6201
        %v7676 = vunpack.c.h.b16 %v6201
        %v7677 = vunpack.c.l.b16 %v6202
        %v7678 = vunpack.c.h.b16 %v6202
        %v7679 = vunpack.c.l.b16 %v6203
        %v7680 = vunpack.c.h.b16 %v6203
        %v7681 = vunpack.c.l.b16 %v6204
        %v7682 = vunpack.c.h.b16 %v6204
        %v7683 = vunpack.c.l.b16 %v6205
        %v7684 = vunpack.c.h.b16 %v6205
        %v7685 = vunpack.c.l.b16 %v6206
        %v7686 = vunpack.c.h.b16 %v6206
        %v7687 = vunpack.c.l.b16 %v6207
        %v7688 = vunpack.c.h.b16 %v6207
        %v7689 = vunpack.c.l.b16 %v6208
        %v7690 = vunpack.c.h.b16 %v6208
        %v7691 = vunpack.c.l.b16 %v6209
        %v7692 = vunpack.c.h.b16 %v6209
        %v7693 = vunpack.c.l.b16 %v6210
        %v7694 = vunpack.c.h.b16 %v6210
        %v7695 = vunpack.c.l.b16 %v6211
        %v7696 = vunpack.c.h.b16 %v6211
        %v7697 = vunpack.c.l.b16 %v6212
        %v7698 = vunpack.c.h.b16 %v6212
        %v7699 = vunpack.c.l.b16 %v6213
        %v7700 = vunpack.c.h.b16 %v6213
        %v7701 = vunpack.c.l.b16 %v6214
        %v7702 = vunpack.c.h.b16 %v6214
        %v7703 = vunpack.c.l.b16 %v6215
        %v7704 = vunpack.c.h.b16 %v6215
        %v7705 = vunpack.c.l.b16 %v6216
        %v7706 = vunpack.c.h.b16 %v6216
        %v7707 = vunpack.c.l.b16 %v6217
        %v7708 = vunpack.c.h.b16 %v6217
        %v7709 = vunpack.c.l.b16 %v6218
        %v7710 = vunpack.c.h.b16 %v6218
        %v7711 = vunpack.c.l.b16 %v6219
        %v7712 = vunpack.c.h.b16 %v6219
        %v7713 = vunpack.c.l.b16 %v6220
        %v7714 = vunpack.c.h.b16 %v6220
        %v7715 = vunpack.c.l.b16 %v6221
        %v7716 = vunpack.c.h.b16 %v6221
        %v7717 = vunpack.c.l.b16 %v6222
        %v7718 = vunpack.c.h.b16 %v6222
        %v7719 = vunpack.c.l.b16 %v6223
        %v7720 = vunpack.c.h.b16 %v6223
        %v7721 = vunpack.c.l.b16 %v6224
        %v7722 = vunpack.c.h.b16 %v6224
        %v7723 = vunpack.c.l.b16 %v6225
        %v7724 = vunpack.c.h.b16 %v6225
        %v7725 = vunpack.c.l.b16 %v6226
        %v7726 = vunpack.c.h.b16 %v6226
        %v7727 = vunpack.c.l.b16 %v6227
        %v7728 = vunpack.c.h.b16 %v6227
        %v7729 = vunpack.c.l.b16 %v6228
        %v7730 = vunpack.c.h.b16 %v6228
        %v7731 = vunpack.c.l.b16 %v6229
        %v7732 = vunpack.c.h.b16 %v6229
        %v7733 = vunpack.c.l.b16 %v6230
        %v7734 = vunpack.c.h.b16 %v6230
        %v7735 = vunpack.c.l.b16 %v6231
        %v7736 = vunpack.c.h.b16 %v6231
        %v7737 = vunpack.c.l.b16 %v6232
        %v7738 = vunpack.c.h.b16 %v6232
        %v7739 = vunpack.c.l.b16 %v6233
        %v7740 = vunpack.c.h.b16 %v6233
        %v7741 = vunpack.c.l.b16 %v6234
        %v7742 = vunpack.c.h.b16 %v6234
        %v7743 = vunpack.c.l.b16 %v6235
        %v7744 = vunpack.c.h.b16 %v6235
        %v7745 = vunpack.c.l.b16 %v6236
        %v7746 = vunpack.c.h.b16 %v6236
        %v7747 = vunpack.c.l.b16 %v6237
        %v7748 = vunpack.c.h.b16 %v6237
        %v7749 = vunpack.c.l.b16 %v6238
        %v7750 = vunpack.c.h.b16 %v6238
        %v7751 = vunpack.c.l.b16 %v6239
        %v7752 = vunpack.c.h.b16 %v6239
        %v7753 = vunpack.c.l.b16 %v6240
        %v7754 = vunpack.c.h.b16 %v6240
        %v7755 = vunpack.c.l.b16 %v6241
        %v7756 = vunpack.c.h.b16 %v6241
        %v7757 = vunpack.c.l.b16 %v6242
        %v7758 = vunpack.c.h.b16 %v6242
        %v7759 = vunpack.c.l.b16 %v6243
        %v7760 = vunpack.c.h.b16 %v6243
        %v7761 = vunpack.c.l.b16 %v6244
        %v7762 = vunpack.c.h.b16 %v6244
        %v7763 = vunpack.c.l.b16 %v6245
        %v7764 = vunpack.c.h.b16 %v6245
        %v7765 = vunpack.c.l.b16 %v6246
        %v7766 = vunpack.c.h.b16 %v6246
        %v7767 = vunpack.c.l.b16 %v6247
        %v7768 = vunpack.c.h.b16 %v6247
        %v7769 = vunpack.c.l.b16 %v6248
        %v7770 = vunpack.c.h.b16 %v6248
        %v7771 = vunpack.c.l.b16 %v6249
        %v7772 = vunpack.c.h.b16 %v6249
        %v7773 = vunpack.c.l.b16 %v6250
        %v7774 = vunpack.c.h.b16 %v6250
        %v7775 = vunpack.c.l.b16 %v6251
        %v7776 = vunpack.c.h.b16 %v6251
        %v7777 = vunpack.c.l.b16 %v6252
        %v7778 = vunpack.c.h.b16 %v6252
        %v7779 = vunpack.c.l.b16 %v6253
        %v7780 = vunpack.c.h.b16 %v6253
        %v7781 = vunpack.c.l.b16 %v6254
        %v7782 = vunpack.c.h.b16 %v6254
        %v7783 = vunpack.c.l.b16 %v6255
        %v7784 = vunpack.c.h.b16 %v6255
        %v7785 = vunpack.c.l.b16 %v6256
        %v7786 = vunpack.c.h.b16 %v6256
        %v7787 = vunpack.c.l.b16 %v6257
        %v7788 = vunpack.c.h.b16 %v6257
        %v7789 = vunpack.c.l.b16 %v6258
        %v7790 = vunpack.c.h.b16 %v6258
        %v7791 = vunpack.c.l.b16 %v6259
        %v7792 = vunpack.c.h.b16 %v6259
        %v7793 = vunpack.c.l.b16 %v6260
        %v7794 = vunpack.c.h.b16 %v6260
        %v7795 = vunpack.c.l.b16 %v6261
        %v7796 = vunpack.c.h.b16 %v6261
        %v7797 = vunpack.c.l.b16 %v6262
        %v7798 = vunpack.c.h.b16 %v6262
        %v7799 = vpack.c.b16 %v6779, %v6775
        %v7800 = vpack.c.b16 %v6780, %v6776
        %v7801 = vpack.c.b16 %v6781, %v6777
        %v7802 = vpack.c.b16 %v6782, %v6778
        %v7803 = vpack.c.b16 %v6787, %v6783
        %v7804 = vpack.c.b16 %v6788, %v6784
        %v7805 = vpack.c.b16 %v6789, %v6785
        %v7806 = vpack.c.b16 %v6790, %v6786
        %v7807 = vpack.c.b16 %v6795, %v6791
        %v7808 = vpack.c.b16 %v6796, %v6792
        %v7809 = vpack.c.b16 %v6797, %v6793
        %v7810 = vpack.c.b16 %v6798, %v6794
        %v7811 = vpack.c.b16 %v6803, %v6799
        %v7812 = vpack.c.b16 %v6804, %v6800
        %v7813 = vpack.c.b16 %v6805, %v6801
        %v7814 = vpack.c.b16 %v6806, %v6802
        %v7815 = vpack.c.b16 %v6811, %v6807
        %v7816 = vpack.c.b16 %v6812, %v6808
        %v7817 = vpack.c.b16 %v6813, %v6809
        %v7818 = vpack.c.b16 %v6814, %v6810
        %v7819 = vpack.c.b16 %v6819, %v6815
        %v7820 = vpack.c.b16 %v6820, %v6816
        %v7821 = vpack.c.b16 %v6821, %v6817
        %v7822 = vpack.c.b16 %v6822, %v6818
        %v7823 = vpack.c.b16 %v6827, %v6823
        %v7824 = vpack.c.b16 %v6828, %v6824
        %v7825 = vpack.c.b16 %v6829, %v6825
        %v7826 = vpack.c.b16 %v6830, %v6826
        %v7827 = vpack.c.b16 %v6835, %v6831
        %v7828 = vpack.c.b16 %v6836, %v6832
        %v7829 = vpack.c.b16 %v6837, %v6833
        %v7830 = vpack.c.b16 %v6838, %v6834
        %v7831 = vpack.c.b16 %v6843, %v6839
        %v7832 = vpack.c.b16 %v6844, %v6840
        %v7833 = vpack.c.b16 %v6845, %v6841
        %v7834 = vpack.c.b16 %v6846, %v6842
        %v7835 = vpack.c.b16 %v6851, %v6847
        %v7836 = vpack.c.b16 %v6852, %v6848
        %v7837 = vpack.c.b16 %v6853, %v6849
        %v7838 = vpack.c.b16 %v6854, %v6850
        %v7839 = vpack.c.b16 %v6859, %v6855
        %v7840 = vpack.c.b16 %v6860, %v6856
        %v7841 = vpack.c.b16 %v6861, %v6857
        %v7842 = vpack.c.b16 %v6862, %v6858
        %v7843 = vpack.c.b16 %v6867, %v6863
        %v7844 = vpack.c.b16 %v6868, %v6864
        %v7845 = vpack.c.b16 %v6869, %v6865
        %v7846 = vpack.c.b16 %v6870, %v6866
        %v7847 = vpack.c.b16 %v6875, %v6871
        %v7848 = vpack.c.b16 %v6876, %v6872
        %v7849 = vpack.c.b16 %v6877, %v6873
        %v7850 = vpack.c.b16 %v6878, %v6874
        %v7851 = vpack.c.b16 %v6883, %v6879
        %v7852 = vpack.c.b16 %v6884, %v6880
        %v7853 = vpack.c.b16 %v6885, %v6881
        %v7854 = vpack.c.b16 %v6886, %v6882
        %v7855 = vpack.c.b16 %v6891, %v6887
        %v7856 = vpack.c.b16 %v6892, %v6888
        %v7857 = vpack.c.b16 %v6893, %v6889
        %v7858 = vpack.c.b16 %v6894, %v6890
        %v7859 = vpack.c.b16 %v6899, %v6895
        %v7860 = vpack.c.b16 %v6900, %v6896
        %v7861 = vpack.c.b16 %v6901, %v6897
        %v7862 = vpack.c.b16 %v6902, %v6898
        %v7863 = vpack.c.b16 %v6907, %v6903
        %v7864 = vpack.c.b16 %v6908, %v6904
        %v7865 = vpack.c.b16 %v6909, %v6905
        %v7866 = vpack.c.b16 %v6910, %v6906
        %v7867 = vpack.c.b16 %v6915, %v6911
        %v7868 = vpack.c.b16 %v6916, %v6912
        %v7869 = vpack.c.b16 %v6917, %v6913
        %v7870 = vpack.c.b16 %v6918, %v6914
        %v7871 = vpack.c.b16 %v6923, %v6919
        %v7872 = vpack.c.b16 %v6924, %v6920
        %v7873 = vpack.c.b16 %v6925, %v6921
        %v7874 = vpack.c.b16 %v6926, %v6922
        %v7875 = vpack.c.b16 %v6931, %v6927
        %v7876 = vpack.c.b16 %v6932, %v6928
        %v7877 = vpack.c.b16 %v6933, %v6929
        %v7878 = vpack.c.b16 %v6934, %v6930
        %v7879 = vpack.c.b16 %v6939, %v6935
        %v7880 = vpack.c.b16 %v6940, %v6936
        %v7881 = vpack.c.b16 %v6941, %v6937
        %v7882 = vpack.c.b16 %v6942, %v6938
        %v7883 = vpack.c.b16 %v6947, %v6943
        %v7884 = vpack.c.b16 %v6948, %v6944
        %v7885 = vpack.c.b16 %v6949, %v6945
        %v7886 = vpack.c.b16 %v6950, %v6946
        %v7887 = vpack.c.b16 %v6955, %v6951
        %v7888 = vpack.c.b16 %v6956, %v6952
        %v7889 = vpack.c.b16 %v6957, %v6953
        %v7890 = vpack.c.b16 %v6958, %v6954
        %v7891 = vpack.c.b16 %v6963, %v6959
        %v7892 = vpack.c.b16 %v6964, %v6960
        %v7893 = vpack.c.b16 %v6965, %v6961
        %v7894 = vpack.c.b16 %v6966, %v6962
        %v7895 = vpack.c.b16 %v6971, %v6967
        %v7896 = vpack.c.b16 %v6972, %v6968
        %v7897 = vpack.c.b16 %v6973, %v6969
        %v7898 = vpack.c.b16 %v6974, %v6970
        %v7899 = vpack.c.b16 %v6979, %v6975
        %v7900 = vpack.c.b16 %v6980, %v6976
        %v7901 = vpack.c.b16 %v6981, %v6977
        %v7902 = vpack.c.b16 %v6982, %v6978
        %v7903 = vpack.c.b16 %v6987, %v6983
        %v7904 = vpack.c.b16 %v6988, %v6984
        %v7905 = vpack.c.b16 %v6989, %v6985
        %v7906 = vpack.c.b16 %v6990, %v6986
        %v7907 = vpack.c.b16 %v6995, %v6991
        %v7908 = vpack.c.b16 %v6996, %v6992
        %v7909 = vpack.c.b16 %v6997, %v6993
        %v7910 = vpack.c.b16 %v6998, %v6994
        %v7911 = vpack.c.b16 %v7003, %v6999
        %v7912 = vpack.c.b16 %v7004, %v7000
        %v7913 = vpack.c.b16 %v7005, %v7001
        %v7914 = vpack.c.b16 %v7006, %v7002
        %v7915 = vpack.c.b16 %v7011, %v7007
        %v7916 = vpack.c.b16 %v7012, %v7008
        %v7917 = vpack.c.b16 %v7013, %v7009
        %v7918 = vpack.c.b16 %v7014, %v7010
        %v7919 = vpack.c.b16 %v7019, %v7015
        %v7920 = vpack.c.b16 %v7020, %v7016
        %v7921 = vpack.c.b16 %v7021, %v7017
        %v7922 = vpack.c.b16 %v7022, %v7018
        %v7923 = vpack.c.b16 %v7027, %v7023
        %v7924 = vpack.c.b16 %v7028, %v7024
        %v7925 = vpack.c.b16 %v7029, %v7025
        %v7926 = vpack.c.b16 %v7030, %v7026
        %v7927 = vpack.c.b16 %v7035, %v7031
        %v7928 = vpack.c.b16 %v7036, %v7032
        %v7929 = vpack.c.b16 %v7037, %v7033
        %v7930 = vpack.c.b16 %v7038, %v7034
        %v7931 = vpack.c.b16 %v7043, %v7039
        %v7932 = vpack.c.b16 %v7044, %v7040
        %v7933 = vpack.c.b16 %v7045, %v7041
        %v7934 = vpack.c.b16 %v7046, %v7042
        %v7935 = vpack.c.b16 %v7051, %v7047
        %v7936 = vpack.c.b16 %v7052, %v7048
        %v7937 = vpack.c.b16 %v7053, %v7049
        %v7938 = vpack.c.b16 %v7054, %v7050
        %v7939 = vpack.c.b16 %v7059, %v7055
        %v7940 = vpack.c.b16 %v7060, %v7056
        %v7941 = vpack.c.b16 %v7061, %v7057
        %v7942 = vpack.c.b16 %v7062, %v7058
        %v7943 = vpack.c.b16 %v7067, %v7063
        %v7944 = vpack.c.b16 %v7068, %v7064
        %v7945 = vpack.c.b16 %v7069, %v7065
        %v7946 = vpack.c.b16 %v7070, %v7066
        %v7947 = vpack.c.b16 %v7075, %v7071
        %v7948 = vpack.c.b16 %v7076, %v7072
        %v7949 = vpack.c.b16 %v7077, %v7073
        %v7950 = vpack.c.b16 %v7078, %v7074
        %v7951 = vpack.c.b16 %v7083, %v7079
        %v7952 = vpack.c.b16 %v7084, %v7080
        %v7953 = vpack.c.b16 %v7085, %v7081
        %v7954 = vpack.c.b16 %v7086, %v7082
        %v7955 = vpack.c.b16 %v7091, %v7087
        %v7956 = vpack.c.b16 %v7092, %v7088
        %v7957 = vpack.c.b16 %v7093, %v7089
        %v7958 = vpack.c.b16 %v7094, %v7090
        %v7959 = vpack.c.b16 %v7099, %v7095
        %v7960 = vpack.c.b16 %v7100, %v7096
        %v7961 = vpack.c.b16 %v7101, %v7097
        %v7962 = vpack.c.b16 %v7102, %v7098
        %v7963 = vpack.c.b16 %v7107, %v7103
        %v7964 = vpack.c.b16 %v7108, %v7104
        %v7965 = vpack.c.b16 %v7109, %v7105
        %v7966 = vpack.c.b16 %v7110, %v7106
        %v7967 = vpack.c.b16 %v7115, %v7111
        %v7968 = vpack.c.b16 %v7116, %v7112
        %v7969 = vpack.c.b16 %v7117, %v7113
        %v7970 = vpack.c.b16 %v7118, %v7114
        %v7971 = vpack.c.b16 %v7123, %v7119
        %v7972 = vpack.c.b16 %v7124, %v7120
        %v7973 = vpack.c.b16 %v7125, %v7121
        %v7974 = vpack.c.b16 %v7126, %v7122
        %v7975 = vpack.c.b16 %v7131, %v7127
        %v7976 = vpack.c.b16 %v7132, %v7128
        %v7977 = vpack.c.b16 %v7133, %v7129
        %v7978 = vpack.c.b16 %v7134, %v7130
        %v7979 = vpack.c.b16 %v7139, %v7135
        %v7980 = vpack.c.b16 %v7140, %v7136
        %v7981 = vpack.c.b16 %v7141, %v7137
        %v7982 = vpack.c.b16 %v7142, %v7138
        %v7983 = vpack.c.b16 %v7147, %v7143
        %v7984 = vpack.c.b16 %v7148, %v7144
        %v7985 = vpack.c.b16 %v7149, %v7145
        %v7986 = vpack.c.b16 %v7150, %v7146
        %v7987 = vpack.c.b16 %v7155, %v7151
        %v7988 = vpack.c.b16 %v7156, %v7152
        %v7989 = vpack.c.b16 %v7157, %v7153
        %v7990 = vpack.c.b16 %v7158, %v7154
        %v7991 = vpack.c.b16 %v7163, %v7159
        %v7992 = vpack.c.b16 %v7164, %v7160
        %v7993 = vpack.c.b16 %v7165, %v7161
        %v7994 = vpack.c.b16 %v7166, %v7162
        %v7995 = vpack.c.b16 %v7171, %v7167
        %v7996 = vpack.c.b16 %v7172, %v7168
        %v7997 = vpack.c.b16 %v7173, %v7169
        %v7998 = vpack.c.b16 %v7174, %v7170
        %v7999 = vpack.c.b16 %v7179, %v7175
        %v8000 = vpack.c.b16 %v7180, %v7176
        %v8001 = vpack.c.b16 %v7181, %v7177
        %v8002 = vpack.c.b16 %v7182, %v7178
        %v8003 = vpack.c.b16 %v7187, %v7183
        %v8004 = vpack.c.b16 %v7188, %v7184
        %v8005 = vpack.c.b16 %v7189, %v7185
        %v8006 = vpack.c.b16 %v7190, %v7186
        %v8007 = vpack.c.b16 %v7195, %v7191
        %v8008 = vpack.c.b16 %v7196, %v7192
        %v8009 = vpack.c.b16 %v7197, %v7193
        %v8010 = vpack.c.b16 %v7198, %v7194
        %v8011 = vpack.c.b16 %v7203, %v7199
        %v8012 = vpack.c.b16 %v7204, %v7200
        %v8013 = vpack.c.b16 %v7205, %v7201
        %v8014 = vpack.c.b16 %v7206, %v7202
        %v8015 = vpack.c.b16 %v7211, %v7207
        %v8016 = vpack.c.b16 %v7212, %v7208
        %v8017 = vpack.c.b16 %v7213, %v7209
        %v8018 = vpack.c.b16 %v7214, %v7210
        %v8019 = vpack.c.b16 %v7219, %v7215
        %v8020 = vpack.c.b16 %v7220, %v7216
        %v8021 = vpack.c.b16 %v7221, %v7217
        %v8022 = vpack.c.b16 %v7222, %v7218
        %v8023 = vpack.c.b16 %v7227, %v7223
        %v8024 = vpack.c.b16 %v7228, %v7224
        %v8025 = vpack.c.b16 %v7229, %v7225
        %v8026 = vpack.c.b16 %v7230, %v7226
        %v8027 = vpack.c.b16 %v7235, %v7231
        %v8028 = vpack.c.b16 %v7236, %v7232
        %v8029 = vpack.c.b16 %v7237, %v7233
        %v8030 = vpack.c.b16 %v7238, %v7234
        %v8031 = vpack.c.b16 %v7243, %v7239
        %v8032 = vpack.c.b16 %v7244, %v7240
        %v8033 = vpack.c.b16 %v7245, %v7241
        %v8034 = vpack.c.b16 %v7246, %v7242
        %v8035 = vpack.c.b16 %v7251, %v7247
        %v8036 = vpack.c.b16 %v7252, %v7248
        %v8037 = vpack.c.b16 %v7253, %v7249
        %v8038 = vpack.c.b16 %v7254, %v7250
        %v8039 = vpack.c.b16 %v7259, %v7255
        %v8040 = vpack.c.b16 %v7260, %v7256
        %v8041 = vpack.c.b16 %v7261, %v7257
        %v8042 = vpack.c.b16 %v7262, %v7258
        %v8043 = vpack.c.b16 %v7267, %v7263
        %v8044 = vpack.c.b16 %v7268, %v7264
        %v8045 = vpack.c.b16 %v7269, %v7265
        %v8046 = vpack.c.b16 %v7270, %v7266
        %v8047 = vpack.c.b16 %v7275, %v7271
        %v8048 = vpack.c.b16 %v7276, %v7272
        %v8049 = vpack.c.b16 %v7277, %v7273
        %v8050 = vpack.c.b16 %v7278, %v7274
        %v8051 = vpack.c.b16 %v7283, %v7279
        %v8052 = vpack.c.b16 %v7284, %v7280
        %v8053 = vpack.c.b16 %v7285, %v7281
        %v8054 = vpack.c.b16 %v7286, %v7282
        %v8055 = vpack.c.b16 %v7291, %v7287
        %v8056 = vpack.c.b16 %v7292, %v7288
        %v8057 = vpack.c.b16 %v7293, %v7289
        %v8058 = vpack.c.b16 %v7294, %v7290
        %v8059 = vpack.c.b16 %v7299, %v7295
        %v8060 = vpack.c.b16 %v7300, %v7296
        %v8061 = vpack.c.b16 %v7301, %v7297
        %v8062 = vpack.c.b16 %v7302, %v7298
        %v8063 = vpack.c.b16 %v7307, %v7303
        %v8064 = vpack.c.b16 %v7308, %v7304
        %v8065 = vpack.c.b16 %v7309, %v7305
        %v8066 = vpack.c.b16 %v7310, %v7306
        %v8067 = vpack.c.b16 %v7315, %v7311
        %v8068 = vpack.c.b16 %v7316, %v7312
        %v8069 = vpack.c.b16 %v7317, %v7313
        %v8070 = vpack.c.b16 %v7318, %v7314
        %v8071 = vpack.c.b16 %v7323, %v7319
        %v8072 = vpack.c.b16 %v7324, %v7320
        %v8073 = vpack.c.b16 %v7325, %v7321
        %v8074 = vpack.c.b16 %v7326, %v7322
        %v8075 = vpack.c.b16 %v7331, %v7327
        %v8076 = vpack.c.b16 %v7332, %v7328
        %v8077 = vpack.c.b16 %v7333, %v7329
        %v8078 = vpack.c.b16 %v7334, %v7330
        %v8079 = vpack.c.b16 %v7339, %v7335
        %v8080 = vpack.c.b16 %v7340, %v7336
        %v8081 = vpack.c.b16 %v7341, %v7337
        %v8082 = vpack.c.b16 %v7342, %v7338
        %v8083 = vpack.c.b16 %v7347, %v7343
        %v8084 = vpack.c.b16 %v7348, %v7344
        %v8085 = vpack.c.b16 %v7349, %v7345
        %v8086 = vpack.c.b16 %v7350, %v7346
        %v8087 = vpack.c.b16 %v7355, %v7351
        %v8088 = vpack.c.b16 %v7356, %v7352
        %v8089 = vpack.c.b16 %v7357, %v7353
        %v8090 = vpack.c.b16 %v7358, %v7354
        %v8091 = vpack.c.b16 %v7363, %v7359
        %v8092 = vpack.c.b16 %v7364, %v7360
        %v8093 = vpack.c.b16 %v7365, %v7361
        %v8094 = vpack.c.b16 %v7366, %v7362
        %v8095 = vpack.c.b16 %v7371, %v7367
        %v8096 = vpack.c.b16 %v7372, %v7368
        %v8097 = vpack.c.b16 %v7373, %v7369
        %v8098 = vpack.c.b16 %v7374, %v7370
        %v8099 = vpack.c.b16 %v7379, %v7375
        %v8100 = vpack.c.b16 %v7380, %v7376
        %v8101 = vpack.c.b16 %v7381, %v7377
        %v8102 = vpack.c.b16 %v7382, %v7378
        %v8103 = vpack.c.b16 %v7387, %v7383
        %v8104 = vpack.c.b16 %v7388, %v7384
        %v8105 = vpack.c.b16 %v7389, %v7385
        %v8106 = vpack.c.b16 %v7390, %v7386
        %v8107 = vpack.c.b16 %v7395, %v7391
        %v8108 = vpack.c.b16 %v7396, %v7392
        %v8109 = vpack.c.b16 %v7397, %v7393
        %v8110 = vpack.c.b16 %v7398, %v7394
        %v8111 = vpack.c.b16 %v7403, %v7399
        %v8112 = vpack.c.b16 %v7404, %v7400
        %v8113 = vpack.c.b16 %v7405, %v7401
        %v8114 = vpack.c.b16 %v7406, %v7402
        %v8115 = vpack.c.b16 %v7411, %v7407
        %v8116 = vpack.c.b16 %v7412, %v7408
        %v8117 = vpack.c.b16 %v7413, %v7409
        %v8118 = vpack.c.b16 %v7414, %v7410
        %v8119 = vpack.c.b16 %v7419, %v7415
        %v8120 = vpack.c.b16 %v7420, %v7416
        %v8121 = vpack.c.b16 %v7421, %v7417
        %v8122 = vpack.c.b16 %v7422, %v7418
        %v8123 = vpack.c.b16 %v7427, %v7423
        %v8124 = vpack.c.b16 %v7428, %v7424
        %v8125 = vpack.c.b16 %v7429, %v7425
        %v8126 = vpack.c.b16 %v7430, %v7426
        %v8127 = vpack.c.b16 %v7435, %v7431
        %v8128 = vpack.c.b16 %v7436, %v7432
        %v8129 = vpack.c.b16 %v7437, %v7433
        %v8130 = vpack.c.b16 %v7438, %v7434
        %v8131 = vpack.c.b16 %v7443, %v7439
        %v8132 = vpack.c.b16 %v7444, %v7440
        %v8133 = vpack.c.b16 %v7445, %v7441
        %v8134 = vpack.c.b16 %v7446, %v7442
        %v8135 = vpack.c.b16 %v7451, %v7447
        %v8136 = vpack.c.b16 %v7452, %v7448
        %v8137 = vpack.c.b16 %v7453, %v7449
        %v8138 = vpack.c.b16 %v7454, %v7450
        %v8139 = vpack.c.b16 %v7459, %v7455
        %v8140 = vpack.c.b16 %v7460, %v7456
        %v8141 = vpack.c.b16 %v7461, %v7457
        %v8142 = vpack.c.b16 %v7462, %v7458
        %v8143 = vpack.c.b16 %v7467, %v7463
        %v8144 = vpack.c.b16 %v7468, %v7464
        %v8145 = vpack.c.b16 %v7469, %v7465
        %v8146 = vpack.c.b16 %v7470, %v7466
        %v8147 = vpack.c.b16 %v7475, %v7471
        %v8148 = vpack.c.b16 %v7476, %v7472
        %v8149 = vpack.c.b16 %v7477, %v7473
        %v8150 = vpack.c.b16 %v7478, %v7474
        %v8151 = vpack.c.b16 %v7483, %v7479
        %v8152 = vpack.c.b16 %v7484, %v7480
        %v8153 = vpack.c.b16 %v7485, %v7481
        %v8154 = vpack.c.b16 %v7486, %v7482
        %v8155 = vpack.c.b16 %v7491, %v7487
        %v8156 = vpack.c.b16 %v7492, %v7488
        %v8157 = vpack.c.b16 %v7493, %v7489
        %v8158 = vpack.c.b16 %v7494, %v7490
        %v8159 = vpack.c.b16 %v7499, %v7495
        %v8160 = vpack.c.b16 %v7500, %v7496
        %v8161 = vpack.c.b16 %v7501, %v7497
        %v8162 = vpack.c.b16 %v7502, %v7498
        %v8163 = vpack.c.b16 %v7507, %v7503
        %v8164 = vpack.c.b16 %v7508, %v7504
        %v8165 = vpack.c.b16 %v7509, %v7505
        %v8166 = vpack.c.b16 %v7510, %v7506
        %v8167 = vpack.c.b16 %v7515, %v7511
        %v8168 = vpack.c.b16 %v7516, %v7512
        %v8169 = vpack.c.b16 %v7517, %v7513
        %v8170 = vpack.c.b16 %v7518, %v7514
        %v8171 = vpack.c.b16 %v7523, %v7519
        %v8172 = vpack.c.b16 %v7524, %v7520
        %v8173 = vpack.c.b16 %v7525, %v7521
        %v8174 = vpack.c.b16 %v7526, %v7522
        %v8175 = vpack.c.b16 %v7531, %v7527
        %v8176 = vpack.c.b16 %v7532, %v7528
        %v8177 = vpack.c.b16 %v7533, %v7529
        %v8178 = vpack.c.b16 %v7534, %v7530
        %v8179 = vpack.c.b16 %v7539, %v7535
        %v8180 = vpack.c.b16 %v7540, %v7536
        %v8181 = vpack.c.b16 %v7541, %v7537
        %v8182 = vpack.c.b16 %v7542, %v7538
        %v8183 = vpack.c.b16 %v7547, %v7543
        %v8184 = vpack.c.b16 %v7548, %v7544
        %v8185 = vpack.c.b16 %v7549, %v7545
        %v8186 = vpack.c.b16 %v7550, %v7546
        %v8187 = vpack.c.b16 %v7555, %v7551
        %v8188 = vpack.c.b16 %v7556, %v7552
        %v8189 = vpack.c.b16 %v7557, %v7553
        %v8190 = vpack.c.b16 %v7558, %v7554
        %v8191 = vpack.c.b16 %v7563, %v7559
        %v8192 = vpack.c.b16 %v7564, %v7560
        %v8193 = vpack.c.b16 %v7565, %v7561
        %v8194 = vpack.c.b16 %v7566, %v7562
        %v8195 = vpack.c.b16 %v7571, %v7567
        %v8196 = vpack.c.b16 %v7572, %v7568
        %v8197 = vpack.c.b16 %v7573, %v7569
        %v8198 = vpack.c.b16 %v7574, %v7570
        %v8199 = vpack.c.b16 %v7579, %v7575
        %v8200 = vpack.c.b16 %v7580, %v7576
        %v8201 = vpack.c.b16 %v7581, %v7577
        %v8202 = vpack.c.b16 %v7582, %v7578
        %v8203 = vpack.c.b16 %v7587, %v7583
        %v8204 = vpack.c.b16 %v7588, %v7584
        %v8205 = vpack.c.b16 %v7589, %v7585
        %v8206 = vpack.c.b16 %v7590, %v7586
        %v8207 = vpack.c.b16 %v7595, %v7591
        %v8208 = vpack.c.b16 %v7596, %v7592
        %v8209 = vpack.c.b16 %v7597, %v7593
        %v8210 = vpack.c.b16 %v7598, %v7594
        %v8211 = vpack.c.b16 %v7603, %v7599
        %v8212 = vpack.c.b16 %v7604, %v7600
        %v8213 = vpack.c.b16 %v7605, %v7601
        %v8214 = vpack.c.b16 %v7606, %v7602
        %v8215 = vpack.c.b16 %v7611, %v7607
        %v8216 = vpack.c.b16 %v7612, %v7608
        %v8217 = vpack.c.b16 %v7613, %v7609
        %v8218 = vpack.c.b16 %v7614, %v7610
        %v8219 = vpack.c.b16 %v7619, %v7615
        %v8220 = vpack.c.b16 %v7620, %v7616
        %v8221 = vpack.c.b16 %v7621, %v7617
        %v8222 = vpack.c.b16 %v7622, %v7618
        %v8223 = vpack.c.b16 %v7627, %v7623
        %v8224 = vpack.c.b16 %v7628, %v7624
        %v8225 = vpack.c.b16 %v7629, %v7625
        %v8226 = vpack.c.b16 %v7630, %v7626
        %v8227 = vpack.c.b16 %v7635, %v7631
        %v8228 = vpack.c.b16 %v7636, %v7632
        %v8229 = vpack.c.b16 %v7637, %v7633
        %v8230 = vpack.c.b16 %v7638, %v7634
        %v8231 = vpack.c.b16 %v7643, %v7639
        %v8232 = vpack.c.b16 %v7644, %v7640
        %v8233 = vpack.c.b16 %v7645, %v7641
        %v8234 = vpack.c.b16 %v7646, %v7642
        %v8235 = vpack.c.b16 %v7651, %v7647
        %v8236 = vpack.c.b16 %v7652, %v7648
        %v8237 = vpack.c.b16 %v7653, %v7649
        %v8238 = vpack.c.b16 %v7654, %v7650
        %v8239 = vpack.c.b16 %v7659, %v7655
        %v8240 = vpack.c.b16 %v7660, %v7656
        %v8241 = vpack.c.b16 %v7661, %v7657
        %v8242 = vpack.c.b16 %v7662, %v7658
        %v8243 = vpack.c.b16 %v7667, %v7663
        %v8244 = vpack.c.b16 %v7668, %v7664
        %v8245 = vpack.c.b16 %v7669, %v7665
        %v8246 = vpack.c.b16 %v7670, %v7666
        %v8247 = vpack.c.b16 %v7675, %v7671
        %v8248 = vpack.c.b16 %v7676, %v7672
        %v8249 = vpack.c.b16 %v7677, %v7673
        %v8250 = vpack.c.b16 %v7678, %v7674
        %v8251 = vpack.c.b16 %v7683, %v7679
        %v8252 = vpack.c.b16 %v7684, %v7680
        %v8253 = vpack.c.b16 %v7685, %v7681
        %v8254 = vpack.c.b16 %v7686, %v7682
        %v8255 = vpack.c.b16 %v7691, %v7687
        %v8256 = vpack.c.b16 %v7692, %v7688
        %v8257 = vpack.c.b16 %v7693, %v7689
        %v8258 = vpack.c.b16 %v7694, %v7690
        %v8259 = vpack.c.b16 %v7699, %v7695
        %v8260 = vpack.c.b16 %v7700, %v7696
        %v8261 = vpack.c.b16 %v7701, %v7697
        %v8262 = vpack.c.b16 %v7702, %v7698
        %v8263 = vpack.c.b16 %v7707, %v7703
        %v8264 = vpack.c.b16 %v7708, %v7704
        %v8265 = vpack.c.b16 %v7709, %v7705
        %v8266 = vpack.c.b16 %v7710, %v7706
        %v8267 = vpack.c.b16 %v7715, %v7711
        %v8268 = vpack.c.b16 %v7716, %v7712
        %v8269 = vpack.c.b16 %v7717, %v7713
        %v8270 = vpack.c.b16 %v7718, %v7714
        %v8271 = vpack.c.b16 %v7723, %v7719
        %v8272 = vpack.c.b16 %v7724, %v7720
        %v8273 = vpack.c.b16 %v7725, %v7721
        %v8274 = vpack.c.b16 %v7726, %v7722
        %v8275 = vpack.c.b16 %v7731, %v7727
        %v8276 = vpack.c.b16 %v7732, %v7728
        %v8277 = vpack.c.b16 %v7733, %v7729
        %v8278 = vpack.c.b16 %v7734, %v7730
        %v8279 = vpack.c.b16 %v7739, %v7735
        %v8280 = vpack.c.b16 %v7740, %v7736
        %v8281 = vpack.c.b16 %v7741, %v7737
        %v8282 = vpack.c.b16 %v7742, %v7738
        %v8283 = vpack.c.b16 %v7747, %v7743
        %v8284 = vpack.c.b16 %v7748, %v7744
        %v8285 = vpack.c.b16 %v7749, %v7745
        %v8286 = vpack.c.b16 %v7750, %v7746
        %v8287 = vpack.c.b16 %v7755, %v7751
        %v8288 = vpack.c.b16 %v7756, %v7752
        %v8289 = vpack.c.b16 %v7757, %v7753
        %v8290 = vpack.c.b16 %v7758, %v7754
        %v8291 = vpack.c.b16 %v7763, %v7759
        %v8292 = vpack.c.b16 %v7764, %v7760
        %v8293 = vpack.c.b16 %v7765, %v7761
        %v8294 = vpack.c.b16 %v7766, %v7762
        %v8295 = vpack.c.b16 %v7771, %v7767
        %v8296 = vpack.c.b16 %v7772, %v7768
        %v8297 = vpack.c.b16 %v7773, %v7769
        %v8298 = vpack.c.b16 %v7774, %v7770
        %v8299 = vpack.c.b16 %v7779, %v7775
        %v8300 = vpack.c.b16 %v7780, %v7776
        %v8301 = vpack.c.b16 %v7781, %v7777
        %v8302 = vpack.c.b16 %v7782, %v7778
        %v8303 = vpack.c.b16 %v7787, %v7783
        %v8304 = vpack.c.b16 %v7788, %v7784
        %v8305 = vpack.c.b16 %v7789, %v7785
        %v8306 = vpack.c.b16 %v7790, %v7786
        %v8307 = vpack.c.b16 %v7795, %v7791
        %v8308 = vpack.c.b16 %v7796, %v7792
        %v8309 = vpack.c.b16 %v7797, %v7793
        %v8310 = vpack.c.b16 %v7798, %v7794
        %8823 = vmatprep.subr.bf16.mxu0 %v7828
        %8824 = vmatpush1.bf16.msra.mxu0 %v7827
        %8825 = vmatprep.subr.bf16.mxu0 %v7824
        %8826 = vmatpush1.bf16.msra.mxu0 %v7823
        %8827 = vmatprep.subr.bf16.mxu0 %v7820
        %8828 = vmatpush1.bf16.msra.mxu0 %v7819
        %8829 = vmatprep.subr.bf16.mxu0 %v7816
        %8830 = vmatpush1.bf16.msra.mxu0 %v7815
        %8831 = vmatprep.subr.bf16.mxu0 %v7812
        %8832 = vmatpush1.bf16.msra.mxu0 %v7811
        %8833 = vmatprep.subr.bf16.mxu0 %v7808
        %8834 = vmatpush1.bf16.msra.mxu0 %v7807
        %8835 = vmatprep.subr.bf16.mxu0 %v7804
        %8836 = vmatpush1.bf16.msra.mxu0 %v7803
        %8837 = vmatprep.subr.bf16.mxu0 %v7800
        %8838 = vmatpush1.bf16.msra.mxu0 %v7799
        %8839 = vmatprep.subr.bf16.mxu0 %v7860
        %8840 = vmatpush2.bf16.msra.mxu0 %v7859
        %8841 = vmatprep.subr.bf16.mxu0 %v7856
        %8842 = vmatpush2.bf16.msra.mxu0 %v7855
        %8843 = vmatprep.subr.bf16.mxu0 %v7852
        %8844 = vmatpush2.bf16.msra.mxu0 %v7851
        %8845 = vmatprep.subr.bf16.mxu0 %v7848
        %8846 = vmatpush2.bf16.msra.mxu0 %v7847
        %8847 = vmatprep.subr.bf16.mxu0 %v7844
        %8848 = vmatpush2.bf16.msra.mxu0 %v7843
        %8849 = vmatprep.subr.bf16.mxu0 %v7840
        %8850 = vmatpush2.bf16.msra.mxu0 %v7839
        %8851 = vmatprep.subr.bf16.mxu0 %v7836
        %8852 = vmatpush2.bf16.msra.mxu0 %v7835
        %8853 = vmatprep.subr.bf16.mxu0 %v7832
        %8854 = vmatpush2.bf16.msra.mxu0 %v7831
        %8855 = vmatprep.mubr.bf16.mxu0 %v5624
        %8856 = vmatmul.mubr.bf16.gmra.mxu0 %v5623
        %v8857 = vpop.f32.mrf.mxu0
        %v8858 = vadd.f32 0.0, %v8857
        %v8859 = vpop.f32.mrf.mxu0
        %v8860 = vadd.f32 0.0, %v8859
        %v8861 = vpop.f32.mrf.mxu0
        %v8862 = vadd.f32 0.0, %v8861
        %v8863 = vpop.f32.mrf.mxu0
        %v8864 = vadd.f32 0.0, %v8863
        %8865 = vmatprep.mubr.bf16.mxu0 %v5640
        %8866 = vmatmul.mubr.bf16.gmra.mxu0 %v5639
        %v8867 = vpop.f32.mrf.mxu0
        %v8868 = vadd.f32 0.0, %v8867
        %v8869 = vpop.f32.mrf.mxu0
        %v8870 = vadd.f32 0.0, %v8869
        %v8871 = vpop.f32.mrf.mxu0
        %v8872 = vadd.f32 0.0, %v8871
        %v8873 = vpop.f32.mrf.mxu0
        %v8874 = vadd.f32 0.0, %v8873
        %8875 = vmatprep.mubr.bf16.mxu0 %v5656
        %8876 = vmatmul.mubr.bf16.gmra.mxu0 %v5655
        %v8877 = vpop.f32.mrf.mxu0
        %v8878 = vadd.f32 0.0, %v8877
        %v8879 = vpop.f32.mrf.mxu0
        %v8880 = vadd.f32 0.0, %v8879
        %v8881 = vpop.f32.mrf.mxu0
        %v8882 = vadd.f32 0.0, %v8881
        %v8883 = vpop.f32.mrf.mxu0
        %v8884 = vadd.f32 0.0, %v8883
        %8885 = vmatprep.mubr.bf16.mxu0 %v5672
        %8886 = vmatmul.mubr.bf16.gmra.mxu0 %v5671
        %v8887 = vpop.f32.mrf.mxu0
        %v8888 = vadd.f32 0.0, %v8887
        %v8889 = vpop.f32.mrf.mxu0
        %v8890 = vadd.f32 0.0, %v8889
        %v8891 = vpop.f32.mrf.mxu0
        %v8892 = vadd.f32 0.0, %v8891
        %v8893 = vpop.f32.mrf.mxu0
        %v8894 = vadd.f32 0.0, %v8893
        %8895 = vmatprep.mubr.bf16.mxu0 %v5688
        %8896 = vmatmul.mubr.bf16.gmra.mxu0 %v5687
        %v8897 = vpop.f32.mrf.mxu0
        %v8898 = vadd.f32 0.0, %v8897
        %v8899 = vpop.f32.mrf.mxu0
        %v8900 = vadd.f32 0.0, %v8899
        %v8901 = vpop.f32.mrf.mxu0
        %v8902 = vadd.f32 0.0, %v8901
        %v8903 = vpop.f32.mrf.mxu0
        %v8904 = vadd.f32 0.0, %v8903
        %8905 = vmatprep.mubr.bf16.mxu0 %v5704
        %8906 = vmatmul.mubr.bf16.gmra.mxu0 %v5703
        %v8907 = vpop.f32.mrf.mxu0
        %v8908 = vadd.f32 0.0, %v8907
        %v8909 = vpop.f32.mrf.mxu0
        %v8910 = vadd.f32 0.0, %v8909
        %v8911 = vpop.f32.mrf.mxu0
        %v8912 = vadd.f32 0.0, %v8911
        %v8913 = vpop.f32.mrf.mxu0
        %v8914 = vadd.f32 0.0, %v8913
        %8915 = vmatprep.mubr.bf16.mxu0 %v5720
        %8916 = vmatmul.mubr.bf16.gmra.mxu0 %v5719
        %v8917 = vpop.f32.mrf.mxu0
        %v8918 = vadd.f32 0.0, %v8917
        %v8919 = vpop.f32.mrf.mxu0
        %v8920 = vadd.f32 0.0, %v8919
        %v8921 = vpop.f32.mrf.mxu0
        %v8922 = vadd.f32 0.0, %v8921
        %v8923 = vpop.f32.mrf.mxu0
        %v8924 = vadd.f32 0.0, %v8923
        %8925 = vmatprep.mubr.bf16.mxu0 %v5736
        %8926 = vmatmul.mubr.bf16.gmra.mxu0 %v5735
        %v8927 = vpop.f32.mrf.mxu0
        %v8928 = vadd.f32 0.0, %v8927
        %v8929 = vpop.f32.mrf.mxu0
        %v8930 = vadd.f32 0.0, %v8929
        %v8931 = vpop.f32.mrf.mxu0
        %v8932 = vadd.f32 0.0, %v8931
        %v8933 = vpop.f32.mrf.mxu0
        %v8934 = vadd.f32 0.0, %v8933
        %8935 = vdwg.mxu0
        %8936 = vmatprep.subr.bf16.mxu0 %v7892
        %8937 = vmatpush1.bf16.msra.mxu0 %v7891
        %8938 = vmatprep.subr.bf16.mxu0 %v7888
        %8939 = vmatpush1.bf16.msra.mxu0 %v7887
        %8940 = vmatprep.subr.bf16.mxu0 %v7884
        %8941 = vmatpush1.bf16.msra.mxu0 %v7883
        %8942 = vmatprep.subr.bf16.mxu0 %v7880
        %8943 = vmatpush1.bf16.msra.mxu0 %v7879
        %8944 = vmatprep.subr.bf16.mxu0 %v7876
        %8945 = vmatpush1.bf16.msra.mxu0 %v7875
        %8946 = vmatprep.subr.bf16.mxu0 %v7872
        %8947 = vmatpush1.bf16.msra.mxu0 %v7871
        %8948 = vmatprep.subr.bf16.mxu0 %v7868
        %8949 = vmatpush1.bf16.msra.mxu0 %v7867
        %8950 = vmatprep.subr.bf16.mxu0 %v7864
        %8951 = vmatpush1.bf16.msra.mxu0 %v7863
        %8952 = vmatprep.subr.bf16.mxu0 %v7924
        %8953 = vmatpush2.bf16.msra.mxu0 %v7923
        %8954 = vmatprep.subr.bf16.mxu0 %v7920
        %8955 = vmatpush2.bf16.msra.mxu0 %v7919
        %8956 = vmatprep.subr.bf16.mxu0 %v7916
        %8957 = vmatpush2.bf16.msra.mxu0 %v7915
        %8958 = vmatprep.subr.bf16.mxu0 %v7912
        %8959 = vmatpush2.bf16.msra.mxu0 %v7911
        %8960 = vmatprep.subr.bf16.mxu0 %v7908
        %8961 = vmatpush2.bf16.msra.mxu0 %v7907
        %8962 = vmatprep.subr.bf16.mxu0 %v7904
        %8963 = vmatpush2.bf16.msra.mxu0 %v7903
        %8964 = vmatprep.subr.bf16.mxu0 %v7900
        %8965 = vmatpush2.bf16.msra.mxu0 %v7899
        %8966 = vmatprep.subr.bf16.mxu0 %v7896
        %8967 = vmatpush2.bf16.msra.mxu0 %v7895
        %8968 = vmatprep.mubr.bf16.mxu0 %v5626
        %8969 = vmatmul.mubr.bf16.gmra.mxu0 %v5625
        %v8970 = vpop.f32.mrf.mxu0
        %v8971 = vadd.f32 %v8858, %v8970
        %v8972 = vpop.f32.mrf.mxu0
        %v8973 = vadd.f32 %v8860, %v8972
        %v8974 = vpop.f32.mrf.mxu0
        %v8975 = vadd.f32 %v8862, %v8974
        %v8976 = vpop.f32.mrf.mxu0
        %v8977 = vadd.f32 %v8864, %v8976
        %8978 = vmatprep.mubr.bf16.mxu0 %v5642
        %8979 = vmatmul.mubr.bf16.gmra.mxu0 %v5641
        %v8980 = vpop.f32.mrf.mxu0
        %v8981 = vadd.f32 %v8868, %v8980
        %v8982 = vpop.f32.mrf.mxu0
        %v8983 = vadd.f32 %v8870, %v8982
        %v8984 = vpop.f32.mrf.mxu0
        %v8985 = vadd.f32 %v8872, %v8984
        %v8986 = vpop.f32.mrf.mxu0
        %v8987 = vadd.f32 %v8874, %v8986
        %8988 = vmatprep.mubr.bf16.mxu0 %v5658
        %8989 = vmatmul.mubr.bf16.gmra.mxu0 %v5657
        %v8990 = vpop.f32.mrf.mxu0
        %v8991 = vadd.f32 %v8878, %v8990
        %v8992 = vpop.f32.mrf.mxu0
        %v8993 = vadd.f32 %v8880, %v8992
        %v8994 = vpop.f32.mrf.mxu0
        %v8995 = vadd.f32 %v8882, %v8994
        %v8996 = vpop.f32.mrf.mxu0
        %v8997 = vadd.f32 %v8884, %v8996
        %8998 = vmatprep.mubr.bf16.mxu0 %v5674
        %8999 = vmatmul.mubr.bf16.gmra.mxu0 %v5673
        %v9000 = vpop.f32.mrf.mxu0
        %v9001 = vadd.f32 %v8888, %v9000
        %v9002 = vpop.f32.mrf.mxu0
        %v9003 = vadd.f32 %v8890, %v9002
        %v9004 = vpop.f32.mrf.mxu0
        %v9005 = vadd.f32 %v8892, %v9004
        %v9006 = vpop.f32.mrf.mxu0
        %v9007 = vadd.f32 %v8894, %v9006
        %9008 = vmatprep.mubr.bf16.mxu0 %v5690
        %9009 = vmatmul.mubr.bf16.gmra.mxu0 %v5689
        %v9010 = vpop.f32.mrf.mxu0
        %v9011 = vadd.f32 %v8898, %v9010
        %v9012 = vpop.f32.mrf.mxu0
        %v9013 = vadd.f32 %v8900, %v9012
        %v9014 = vpop.f32.mrf.mxu0
        %v9015 = vadd.f32 %v8902, %v9014
        %v9016 = vpop.f32.mrf.mxu0
        %v9017 = vadd.f32 %v8904, %v9016
        %9018 = vmatprep.mubr.bf16.mxu0 %v5706
        %9019 = vmatmul.mubr.bf16.gmra.mxu0 %v5705
        %v9020 = vpop.f32.mrf.mxu0
        %v9021 = vadd.f32 %v8908, %v9020
        %v9022 = vpop.f32.mrf.mxu0
        %v9023 = vadd.f32 %v8910, %v9022
        %v9024 = vpop.f32.mrf.mxu0
        %v9025 = vadd.f32 %v8912, %v9024
        %v9026 = vpop.f32.mrf.mxu0
        %v9027 = vadd.f32 %v8914, %v9026
        %9028 = vmatprep.mubr.bf16.mxu0 %v5722
        %9029 = vmatmul.mubr.bf16.gmra.mxu0 %v5721
        %v9030 = vpop.f32.mrf.mxu0
        %v9031 = vadd.f32 %v8918, %v9030
        %v9032 = vpop.f32.mrf.mxu0
        %v9033 = vadd.f32 %v8920, %v9032
        %v9034 = vpop.f32.mrf.mxu0
        %v9035 = vadd.f32 %v8922, %v9034
        %v9036 = vpop.f32.mrf.mxu0
        %v9037 = vadd.f32 %v8924, %v9036
        %9038 = vmatprep.mubr.bf16.mxu0 %v5738
        %9039 = vmatmul.mubr.bf16.gmra.mxu0 %v5737
        %v9040 = vpop.f32.mrf.mxu0
        %v9041 = vadd.f32 %v8928, %v9040
        %v9042 = vpop.f32.mrf.mxu0
        %v9043 = vadd.f32 %v8930, %v9042
        %v9044 = vpop.f32.mrf.mxu0
        %v9045 = vadd.f32 %v8932, %v9044
        %v9046 = vpop.f32.mrf.mxu0
        %v9047 = vadd.f32 %v8934, %v9046
        %9048 = vdwg.mxu0
        %9049 = vmatprep.subr.bf16.mxu0 %v7956
        %9050 = vmatpush1.bf16.msra.mxu0 %v7955
        %9051 = vmatprep.subr.bf16.mxu0 %v7952
        %9052 = vmatpush1.bf16.msra.mxu0 %v7951
        %9053 = vmatprep.subr.bf16.mxu0 %v7948
        %9054 = vmatpush1.bf16.msra.mxu0 %v7947
        %9055 = vmatprep.subr.bf16.mxu0 %v7944
        %9056 = vmatpush1.bf16.msra.mxu0 %v7943
        %9057 = vmatprep.subr.bf16.mxu0 %v7940
        %9058 = vmatpush1.bf16.msra.mxu0 %v7939
        %9059 = vmatprep.subr.bf16.mxu0 %v7936
        %9060 = vmatpush1.bf16.msra.mxu0 %v7935
        %9061 = vmatprep.subr.bf16.mxu0 %v7932
        %9062 = vmatpush1.bf16.msra.mxu0 %v7931
        %9063 = vmatprep.subr.bf16.mxu0 %v7928
        %9064 = vmatpush1.bf16.msra.mxu0 %v7927
        %9065 = vmatprep.subr.bf16.mxu0 %v7988
        %9066 = vmatpush2.bf16.msra.mxu0 %v7987
        %9067 = vmatprep.subr.bf16.mxu0 %v7984
        %9068 = vmatpush2.bf16.msra.mxu0 %v7983
        %9069 = vmatprep.subr.bf16.mxu0 %v7980
        %9070 = vmatpush2.bf16.msra.mxu0 %v7979
        %9071 = vmatprep.subr.bf16.mxu0 %v7976
        %9072 = vmatpush2.bf16.msra.mxu0 %v7975
        %9073 = vmatprep.subr.bf16.mxu0 %v7972
        %9074 = vmatpush2.bf16.msra.mxu0 %v7971
        %9075 = vmatprep.subr.bf16.mxu0 %v7968
        %9076 = vmatpush2.bf16.msra.mxu0 %v7967
        %9077 = vmatprep.subr.bf16.mxu0 %v7964
        %9078 = vmatpush2.bf16.msra.mxu0 %v7963
        %9079 = vmatprep.subr.bf16.mxu0 %v7960
        %9080 = vmatpush2.bf16.msra.mxu0 %v7959
        %9081 = vmatprep.mubr.bf16.mxu0 %v5628
        %9082 = vmatmul.mubr.bf16.gmra.mxu0 %v5627
        %v9083 = vpop.f32.mrf.mxu0
        %v9084 = vadd.f32 %v8971, %v9083
        %v9085 = vpop.f32.mrf.mxu0
        %v9086 = vadd.f32 %v8973, %v9085
        %v9087 = vpop.f32.mrf.mxu0
        %v9088 = vadd.f32 %v8975, %v9087
        %v9089 = vpop.f32.mrf.mxu0
        %v9090 = vadd.f32 %v8977, %v9089
        %9091 = vmatprep.mubr.bf16.mxu0 %v5644
        %9092 = vmatmul.mubr.bf16.gmra.mxu0 %v5643
        %v9093 = vpop.f32.mrf.mxu0
        %v9094 = vadd.f32 %v8981, %v9093
        %v9095 = vpop.f32.mrf.mxu0
        %v9096 = vadd.f32 %v8983, %v9095
        %v9097 = vpop.f32.mrf.mxu0
        %v9098 = vadd.f32 %v8985, %v9097
        %v9099 = vpop.f32.mrf.mxu0
        %v9100 = vadd.f32 %v8987, %v9099
        %9101 = vmatprep.mubr.bf16.mxu0 %v5660
        %9102 = vmatmul.mubr.bf16.gmra.mxu0 %v5659
        %v9103 = vpop.f32.mrf.mxu0
        %v9104 = vadd.f32 %v8991, %v9103
        %v9105 = vpop.f32.mrf.mxu0
        %v9106 = vadd.f32 %v8993, %v9105
        %v9107 = vpop.f32.mrf.mxu0
        %v9108 = vadd.f32 %v8995, %v9107
        %v9109 = vpop.f32.mrf.mxu0
        %v9110 = vadd.f32 %v8997, %v9109
        %9111 = vmatprep.mubr.bf16.mxu0 %v5676
        %9112 = vmatmul.mubr.bf16.gmra.mxu0 %v5675
        %v9113 = vpop.f32.mrf.mxu0
        %v9114 = vadd.f32 %v9001, %v9113
        %v9115 = vpop.f32.mrf.mxu0
        %v9116 = vadd.f32 %v9003, %v9115
        %v9117 = vpop.f32.mrf.mxu0
        %v9118 = vadd.f32 %v9005, %v9117
        %v9119 = vpop.f32.mrf.mxu0
        %v9120 = vadd.f32 %v9007, %v9119
        %9121 = vmatprep.mubr.bf16.mxu0 %v5692
        %9122 = vmatmul.mubr.bf16.gmra.mxu0 %v5691
        %v9123 = vpop.f32.mrf.mxu0
        %v9124 = vadd.f32 %v9011, %v9123
        %v9125 = vpop.f32.mrf.mxu0
        %v9126 = vadd.f32 %v9013, %v9125
        %v9127 = vpop.f32.mrf.mxu0
        %v9128 = vadd.f32 %v9015, %v9127
        %v9129 = vpop.f32.mrf.mxu0
        %v9130 = vadd.f32 %v9017, %v9129
        %9131 = vmatprep.mubr.bf16.mxu0 %v5708
        %9132 = vmatmul.mubr.bf16.gmra.mxu0 %v5707
        %v9133 = vpop.f32.mrf.mxu0
        %v9134 = vadd.f32 %v9021, %v9133
        %v9135 = vpop.f32.mrf.mxu0
        %v9136 = vadd.f32 %v9023, %v9135
        %v9137 = vpop.f32.mrf.mxu0
        %v9138 = vadd.f32 %v9025, %v9137
        %v9139 = vpop.f32.mrf.mxu0
        %v9140 = vadd.f32 %v9027, %v9139
        %9141 = vmatprep.mubr.bf16.mxu0 %v5724
        %9142 = vmatmul.mubr.bf16.gmra.mxu0 %v5723
        %v9143 = vpop.f32.mrf.mxu0
        %v9144 = vadd.f32 %v9031, %v9143
        %v9145 = vpop.f32.mrf.mxu0
        %v9146 = vadd.f32 %v9033, %v9145
        %v9147 = vpop.f32.mrf.mxu0
        %v9148 = vadd.f32 %v9035, %v9147
        %v9149 = vpop.f32.mrf.mxu0
        %v9150 = vadd.f32 %v9037, %v9149
        %9151 = vmatprep.mubr.bf16.mxu0 %v5740
        %9152 = vmatmul.mubr.bf16.gmra.mxu0 %v5739
        %v9153 = vpop.f32.mrf.mxu0
        %v9154 = vadd.f32 %v9041, %v9153
        %v9155 = vpop.f32.mrf.mxu0
        %v9156 = vadd.f32 %v9043, %v9155
        %v9157 = vpop.f32.mrf.mxu0
        %v9158 = vadd.f32 %v9045, %v9157
        %v9159 = vpop.f32.mrf.mxu0
        %v9160 = vadd.f32 %v9047, %v9159
        %9161 = vdwg.mxu0
        %9162 = vmatprep.subr.bf16.mxu0 %v8020
        %9163 = vmatpush1.bf16.msra.mxu0 %v8019
        %9164 = vmatprep.subr.bf16.mxu0 %v8016
        %9165 = vmatpush1.bf16.msra.mxu0 %v8015
        %9166 = vmatprep.subr.bf16.mxu0 %v8012
        %9167 = vmatpush1.bf16.msra.mxu0 %v8011
        %9168 = vmatprep.subr.bf16.mxu0 %v8008
        %9169 = vmatpush1.bf16.msra.mxu0 %v8007
        %9170 = vmatprep.subr.bf16.mxu0 %v8004
        %9171 = vmatpush1.bf16.msra.mxu0 %v8003
        %9172 = vmatprep.subr.bf16.mxu0 %v8000
        %9173 = vmatpush1.bf16.msra.mxu0 %v7999
        %9174 = vmatprep.subr.bf16.mxu0 %v7996
        %9175 = vmatpush1.bf16.msra.mxu0 %v7995
        %9176 = vmatprep.subr.bf16.mxu0 %v7992
        %9177 = vmatpush1.bf16.msra.mxu0 %v7991
        %9178 = vmatprep.subr.bf16.mxu0 %v8052
        %9179 = vmatpush2.bf16.msra.mxu0 %v8051
        %9180 = vmatprep.subr.bf16.mxu0 %v8048
        %9181 = vmatpush2.bf16.msra.mxu0 %v8047
        %9182 = vmatprep.subr.bf16.mxu0 %v8044
        %9183 = vmatpush2.bf16.msra.mxu0 %v8043
        %9184 = vmatprep.subr.bf16.mxu0 %v8040
        %9185 = vmatpush2.bf16.msra.mxu0 %v8039
        %9186 = vmatprep.subr.bf16.mxu0 %v8036
        %9187 = vmatpush2.bf16.msra.mxu0 %v8035
        %9188 = vmatprep.subr.bf16.mxu0 %v8032
        %9189 = vmatpush2.bf16.msra.mxu0 %v8031
        %9190 = vmatprep.subr.bf16.mxu0 %v8028
        %9191 = vmatpush2.bf16.msra.mxu0 %v8027
        %9192 = vmatprep.subr.bf16.mxu0 %v8024
        %9193 = vmatpush2.bf16.msra.mxu0 %v8023
        %9194 = vmatprep.mubr.bf16.mxu0 %v5630
        %9195 = vmatmul.mubr.bf16.gmra.mxu0 %v5629
        %v9196 = vpop.f32.mrf.mxu0
        %v9197 = vadd.f32 %v9084, %v9196
        %v9198 = vpop.f32.mrf.mxu0
        %v9199 = vadd.f32 %v9086, %v9198
        %v9200 = vpop.f32.mrf.mxu0
        %v9201 = vadd.f32 %v9088, %v9200
        %v9202 = vpop.f32.mrf.mxu0
        %v9203 = vadd.f32 %v9090, %v9202
        %9204 = vmatprep.mubr.bf16.mxu0 %v5646
        %9205 = vmatmul.mubr.bf16.gmra.mxu0 %v5645
        %v9206 = vpop.f32.mrf.mxu0
        %v9207 = vadd.f32 %v9094, %v9206
        %v9208 = vpop.f32.mrf.mxu0
        %v9209 = vadd.f32 %v9096, %v9208
        %v9210 = vpop.f32.mrf.mxu0
        %v9211 = vadd.f32 %v9098, %v9210
        %v9212 = vpop.f32.mrf.mxu0
        %v9213 = vadd.f32 %v9100, %v9212
        %9214 = vmatprep.mubr.bf16.mxu0 %v5662
        %9215 = vmatmul.mubr.bf16.gmra.mxu0 %v5661
        %v9216 = vpop.f32.mrf.mxu0
        %v9217 = vadd.f32 %v9104, %v9216
        %v9218 = vpop.f32.mrf.mxu0
        %v9219 = vadd.f32 %v9106, %v9218
        %v9220 = vpop.f32.mrf.mxu0
        %v9221 = vadd.f32 %v9108, %v9220
        %v9222 = vpop.f32.mrf.mxu0
        %v9223 = vadd.f32 %v9110, %v9222
        %9224 = vmatprep.mubr.bf16.mxu0 %v5678
        %9225 = vmatmul.mubr.bf16.gmra.mxu0 %v5677
        %v9226 = vpop.f32.mrf.mxu0
        %v9227 = vadd.f32 %v9114, %v9226
        %v9228 = vpop.f32.mrf.mxu0
        %v9229 = vadd.f32 %v9116, %v9228
        %v9230 = vpop.f32.mrf.mxu0
        %v9231 = vadd.f32 %v9118, %v9230
        %v9232 = vpop.f32.mrf.mxu0
        %v9233 = vadd.f32 %v9120, %v9232
        %9234 = vmatprep.mubr.bf16.mxu0 %v5694
        %9235 = vmatmul.mubr.bf16.gmra.mxu0 %v5693
        %v9236 = vpop.f32.mrf.mxu0
        %v9237 = vadd.f32 %v9124, %v9236
        %v9238 = vpop.f32.mrf.mxu0
        %v9239 = vadd.f32 %v9126, %v9238
        %v9240 = vpop.f32.mrf.mxu0
        %v9241 = vadd.f32 %v9128, %v9240
        %v9242 = vpop.f32.mrf.mxu0
        %v9243 = vadd.f32 %v9130, %v9242
        %9244 = vmatprep.mubr.bf16.mxu0 %v5710
        %9245 = vmatmul.mubr.bf16.gmra.mxu0 %v5709
        %v9246 = vpop.f32.mrf.mxu0
        %v9247 = vadd.f32 %v9134, %v9246
        %v9248 = vpop.f32.mrf.mxu0
        %v9249 = vadd.f32 %v9136, %v9248
        %v9250 = vpop.f32.mrf.mxu0
        %v9251 = vadd.f32 %v9138, %v9250
        %v9252 = vpop.f32.mrf.mxu0
        %v9253 = vadd.f32 %v9140, %v9252
        %9254 = vmatprep.mubr.bf16.mxu0 %v5726
        %9255 = vmatmul.mubr.bf16.gmra.mxu0 %v5725
        %v9256 = vpop.f32.mrf.mxu0
        %v9257 = vadd.f32 %v9144, %v9256
        %v9258 = vpop.f32.mrf.mxu0
        %v9259 = vadd.f32 %v9146, %v9258
        %v9260 = vpop.f32.mrf.mxu0
        %v9261 = vadd.f32 %v9148, %v9260
        %v9262 = vpop.f32.mrf.mxu0
        %v9263 = vadd.f32 %v9150, %v9262
        %9264 = vmatprep.mubr.bf16.mxu0 %v5742
        %9265 = vmatmul.mubr.bf16.gmra.mxu0 %v5741
        %v9266 = vpop.f32.mrf.mxu0
        %v9267 = vadd.f32 %v9154, %v9266
        %v9268 = vpop.f32.mrf.mxu0
        %v9269 = vadd.f32 %v9156, %v9268
        %v9270 = vpop.f32.mrf.mxu0
        %v9271 = vadd.f32 %v9158, %v9270
        %v9272 = vpop.f32.mrf.mxu0
        %v9273 = vadd.f32 %v9160, %v9272
        %9274 = vdwg.mxu0
        %9275 = vmatprep.subr.bf16.mxu0 %v8084
        %9276 = vmatpush1.bf16.msra.mxu0 %v8083
        %9277 = vmatprep.subr.bf16.mxu0 %v8080
        %9278 = vmatpush1.bf16.msra.mxu0 %v8079
        %9279 = vmatprep.subr.bf16.mxu0 %v8076
        %9280 = vmatpush1.bf16.msra.mxu0 %v8075
        %9281 = vmatprep.subr.bf16.mxu0 %v8072
        %9282 = vmatpush1.bf16.msra.mxu0 %v8071
        %9283 = vmatprep.subr.bf16.mxu0 %v8068
        %9284 = vmatpush1.bf16.msra.mxu0 %v8067
        %9285 = vmatprep.subr.bf16.mxu0 %v8064
        %9286 = vmatpush1.bf16.msra.mxu0 %v8063
        %9287 = vmatprep.subr.bf16.mxu0 %v8060
        %9288 = vmatpush1.bf16.msra.mxu0 %v8059
        %9289 = vmatprep.subr.bf16.mxu0 %v8056
        %9290 = vmatpush1.bf16.msra.mxu0 %v8055
        %9291 = vmatprep.subr.bf16.mxu0 %v8116
        %9292 = vmatpush2.bf16.msra.mxu0 %v8115
        %9293 = vmatprep.subr.bf16.mxu0 %v8112
        %9294 = vmatpush2.bf16.msra.mxu0 %v8111
        %9295 = vmatprep.subr.bf16.mxu0 %v8108
        %9296 = vmatpush2.bf16.msra.mxu0 %v8107
        %9297 = vmatprep.subr.bf16.mxu0 %v8104
        %9298 = vmatpush2.bf16.msra.mxu0 %v8103
        %9299 = vmatprep.subr.bf16.mxu0 %v8100
        %9300 = vmatpush2.bf16.msra.mxu0 %v8099
        %9301 = vmatprep.subr.bf16.mxu0 %v8096
        %9302 = vmatpush2.bf16.msra.mxu0 %v8095
        %9303 = vmatprep.subr.bf16.mxu0 %v8092
        %9304 = vmatpush2.bf16.msra.mxu0 %v8091
        %9305 = vmatprep.subr.bf16.mxu0 %v8088
        %9306 = vmatpush2.bf16.msra.mxu0 %v8087
        %9307 = vmatprep.mubr.bf16.mxu0 %v5632
        %9308 = vmatmul.mubr.bf16.gmra.mxu0 %v5631
        %v9309 = vpop.f32.mrf.mxu0
        %v9310 = vadd.f32 %v9197, %v9309
        %v9311 = vpop.f32.mrf.mxu0
        %v9312 = vadd.f32 %v9199, %v9311
        %v9313 = vpop.f32.mrf.mxu0
        %v9314 = vadd.f32 %v9201, %v9313
        %v9315 = vpop.f32.mrf.mxu0
        %v9316 = vadd.f32 %v9203, %v9315
        %9317 = vmatprep.mubr.bf16.mxu0 %v5648
        %9318 = vmatmul.mubr.bf16.gmra.mxu0 %v5647
        %v9319 = vpop.f32.mrf.mxu0
        %v9320 = vadd.f32 %v9207, %v9319
        %v9321 = vpop.f32.mrf.mxu0
        %v9322 = vadd.f32 %v9209, %v9321
        %v9323 = vpop.f32.mrf.mxu0
        %v9324 = vadd.f32 %v9211, %v9323
        %v9325 = vpop.f32.mrf.mxu0
        %v9326 = vadd.f32 %v9213, %v9325
        %9327 = vmatprep.mubr.bf16.mxu0 %v5664
        %9328 = vmatmul.mubr.bf16.gmra.mxu0 %v5663
        %v9329 = vpop.f32.mrf.mxu0
        %v9330 = vadd.f32 %v9217, %v9329
        %v9331 = vpop.f32.mrf.mxu0
        %v9332 = vadd.f32 %v9219, %v9331
        %v9333 = vpop.f32.mrf.mxu0
        %v9334 = vadd.f32 %v9221, %v9333
        %v9335 = vpop.f32.mrf.mxu0
        %v9336 = vadd.f32 %v9223, %v9335
        %9337 = vmatprep.mubr.bf16.mxu0 %v5680
        %9338 = vmatmul.mubr.bf16.gmra.mxu0 %v5679
        %v9339 = vpop.f32.mrf.mxu0
        %v9340 = vadd.f32 %v9227, %v9339
        %v9341 = vpop.f32.mrf.mxu0
        %v9342 = vadd.f32 %v9229, %v9341
        %v9343 = vpop.f32.mrf.mxu0
        %v9344 = vadd.f32 %v9231, %v9343
        %v9345 = vpop.f32.mrf.mxu0
        %v9346 = vadd.f32 %v9233, %v9345
        %9347 = vmatprep.mubr.bf16.mxu0 %v5696
        %9348 = vmatmul.mubr.bf16.gmra.mxu0 %v5695
        %v9349 = vpop.f32.mrf.mxu0
        %v9350 = vadd.f32 %v9237, %v9349
        %v9351 = vpop.f32.mrf.mxu0
        %v9352 = vadd.f32 %v9239, %v9351
        %v9353 = vpop.f32.mrf.mxu0
        %v9354 = vadd.f32 %v9241, %v9353
        %v9355 = vpop.f32.mrf.mxu0
        %v9356 = vadd.f32 %v9243, %v9355
        %9357 = vmatprep.mubr.bf16.mxu0 %v5712
        %9358 = vmatmul.mubr.bf16.gmra.mxu0 %v5711
        %v9359 = vpop.f32.mrf.mxu0
        %v9360 = vadd.f32 %v9247, %v9359
        %v9361 = vpop.f32.mrf.mxu0
        %v9362 = vadd.f32 %v9249, %v9361
        %v9363 = vpop.f32.mrf.mxu0
        %v9364 = vadd.f32 %v9251, %v9363
        %v9365 = vpop.f32.mrf.mxu0
        %v9366 = vadd.f32 %v9253, %v9365
        %9367 = vmatprep.mubr.bf16.mxu0 %v5728
        %9368 = vmatmul.mubr.bf16.gmra.mxu0 %v5727
        %v9369 = vpop.f32.mrf.mxu0
        %v9370 = vadd.f32 %v9257, %v9369
        %v9371 = vpop.f32.mrf.mxu0
        %v9372 = vadd.f32 %v9259, %v9371
        %v9373 = vpop.f32.mrf.mxu0
        %v9374 = vadd.f32 %v9261, %v9373
        %v9375 = vpop.f32.mrf.mxu0
        %v9376 = vadd.f32 %v9263, %v9375
        %9377 = vmatprep.mubr.bf16.mxu0 %v5744
        %9378 = vmatmul.mubr.bf16.gmra.mxu0 %v5743
        %v9379 = vpop.f32.mrf.mxu0
        %v9380 = vadd.f32 %v9267, %v9379
        %v9381 = vpop.f32.mrf.mxu0
        %v9382 = vadd.f32 %v9269, %v9381
        %v9383 = vpop.f32.mrf.mxu0
        %v9384 = vadd.f32 %v9271, %v9383
        %v9385 = vpop.f32.mrf.mxu0
        %v9386 = vadd.f32 %v9273, %v9385
        %9387 = vdwg.mxu0
        %9388 = vmatprep.subr.bf16.mxu0 %v8148
        %9389 = vmatpush1.bf16.msra.mxu0 %v8147
        %9390 = vmatprep.subr.bf16.mxu0 %v8144
        %9391 = vmatpush1.bf16.msra.mxu0 %v8143
        %9392 = vmatprep.subr.bf16.mxu0 %v8140
        %9393 = vmatpush1.bf16.msra.mxu0 %v8139
        %9394 = vmatprep.subr.bf16.mxu0 %v8136
        %9395 = vmatpush1.bf16.msra.mxu0 %v8135
        %9396 = vmatprep.subr.bf16.mxu0 %v8132
        %9397 = vmatpush1.bf16.msra.mxu0 %v8131
        %9398 = vmatprep.subr.bf16.mxu0 %v8128
        %9399 = vmatpush1.bf16.msra.mxu0 %v8127
        %9400 = vmatprep.subr.bf16.mxu0 %v8124
        %9401 = vmatpush1.bf16.msra.mxu0 %v8123
        %9402 = vmatprep.subr.bf16.mxu0 %v8120
        %9403 = vmatpush1.bf16.msra.mxu0 %v8119
        %9404 = vmatprep.subr.bf16.mxu0 %v8180
        %9405 = vmatpush2.bf16.msra.mxu0 %v8179
        %9406 = vmatprep.subr.bf16.mxu0 %v8176
        %9407 = vmatpush2.bf16.msra.mxu0 %v8175
        %9408 = vmatprep.subr.bf16.mxu0 %v8172
        %9409 = vmatpush2.bf16.msra.mxu0 %v8171
        %9410 = vmatprep.subr.bf16.mxu0 %v8168
        %9411 = vmatpush2.bf16.msra.mxu0 %v8167
        %9412 = vmatprep.subr.bf16.mxu0 %v8164
        %9413 = vmatpush2.bf16.msra.mxu0 %v8163
        %9414 = vmatprep.subr.bf16.mxu0 %v8160
        %9415 = vmatpush2.bf16.msra.mxu0 %v8159
        %9416 = vmatprep.subr.bf16.mxu0 %v8156
        %9417 = vmatpush2.bf16.msra.mxu0 %v8155
        %9418 = vmatprep.subr.bf16.mxu0 %v8152
        %9419 = vmatpush2.bf16.msra.mxu0 %v8151
        %9420 = vmatprep.mubr.bf16.mxu0 %v5634
        %9421 = vmatmul.mubr.bf16.gmra.mxu0 %v5633
        %v9422 = vpop.f32.mrf.mxu0
        %v9423 = vadd.f32 %v9310, %v9422
        %v9424 = vpop.f32.mrf.mxu0
        %v9425 = vadd.f32 %v9312, %v9424
        %v9426 = vpop.f32.mrf.mxu0
        %v9427 = vadd.f32 %v9314, %v9426
        %v9428 = vpop.f32.mrf.mxu0
        %v9429 = vadd.f32 %v9316, %v9428
        %9430 = vmatprep.mubr.bf16.mxu0 %v5650
        %9431 = vmatmul.mubr.bf16.gmra.mxu0 %v5649
        %v9432 = vpop.f32.mrf.mxu0
        %v9433 = vadd.f32 %v9320, %v9432
        %v9434 = vpop.f32.mrf.mxu0
        %v9435 = vadd.f32 %v9322, %v9434
        %v9436 = vpop.f32.mrf.mxu0
        %v9437 = vadd.f32 %v9324, %v9436
        %v9438 = vpop.f32.mrf.mxu0
        %v9439 = vadd.f32 %v9326, %v9438
        %9440 = vmatprep.mubr.bf16.mxu0 %v5666
        %9441 = vmatmul.mubr.bf16.gmra.mxu0 %v5665
        %v9442 = vpop.f32.mrf.mxu0
        %v9443 = vadd.f32 %v9330, %v9442
        %v9444 = vpop.f32.mrf.mxu0
        %v9445 = vadd.f32 %v9332, %v9444
        %v9446 = vpop.f32.mrf.mxu0
        %v9447 = vadd.f32 %v9334, %v9446
        %v9448 = vpop.f32.mrf.mxu0
        %v9449 = vadd.f32 %v9336, %v9448
        %9450 = vmatprep.mubr.bf16.mxu0 %v5682
        %9451 = vmatmul.mubr.bf16.gmra.mxu0 %v5681
        %v9452 = vpop.f32.mrf.mxu0
        %v9453 = vadd.f32 %v9340, %v9452
        %v9454 = vpop.f32.mrf.mxu0
        %v9455 = vadd.f32 %v9342, %v9454
        %v9456 = vpop.f32.mrf.mxu0
        %v9457 = vadd.f32 %v9344, %v9456
        %v9458 = vpop.f32.mrf.mxu0
        %v9459 = vadd.f32 %v9346, %v9458
        %9460 = vmatprep.mubr.bf16.mxu0 %v5698
        %9461 = vmatmul.mubr.bf16.gmra.mxu0 %v5697
        %v9462 = vpop.f32.mrf.mxu0
        %v9463 = vadd.f32 %v9350, %v9462
        %v9464 = vpop.f32.mrf.mxu0
        %v9465 = vadd.f32 %v9352, %v9464
        %v9466 = vpop.f32.mrf.mxu0
        %v9467 = vadd.f32 %v9354, %v9466
        %v9468 = vpop.f32.mrf.mxu0
        %v9469 = vadd.f32 %v9356, %v9468
        %9470 = vmatprep.mubr.bf16.mxu0 %v5714
        %9471 = vmatmul.mubr.bf16.gmra.mxu0 %v5713
        %v9472 = vpop.f32.mrf.mxu0
        %v9473 = vadd.f32 %v9360, %v9472
        %v9474 = vpop.f32.mrf.mxu0
        %v9475 = vadd.f32 %v9362, %v9474
        %v9476 = vpop.f32.mrf.mxu0
        %v9477 = vadd.f32 %v9364, %v9476
        %v9478 = vpop.f32.mrf.mxu0
        %v9479 = vadd.f32 %v9366, %v9478
        %9480 = vmatprep.mubr.bf16.mxu0 %v5730
        %9481 = vmatmul.mubr.bf16.gmra.mxu0 %v5729
        %v9482 = vpop.f32.mrf.mxu0
        %v9483 = vadd.f32 %v9370, %v9482
        %v9484 = vpop.f32.mrf.mxu0
        %v9485 = vadd.f32 %v9372, %v9484
        %v9486 = vpop.f32.mrf.mxu0
        %v9487 = vadd.f32 %v9374, %v9486
        %v9488 = vpop.f32.mrf.mxu0
        %v9489 = vadd.f32 %v9376, %v9488
        %9490 = vmatprep.mubr.bf16.mxu0 %v5746
        %9491 = vmatmul.mubr.bf16.gmra.mxu0 %v5745
        %v9492 = vpop.f32.mrf.mxu0
        %v9493 = vadd.f32 %v9380, %v9492
        %v9494 = vpop.f32.mrf.mxu0
        %v9495 = vadd.f32 %v9382, %v9494
        %v9496 = vpop.f32.mrf.mxu0
        %v9497 = vadd.f32 %v9384, %v9496
        %v9498 = vpop.f32.mrf.mxu0
        %v9499 = vadd.f32 %v9386, %v9498
        %9500 = vdwg.mxu0
        %9501 = vmatprep.subr.bf16.mxu0 %v8212
        %9502 = vmatpush1.bf16.msra.mxu0 %v8211
        %9503 = vmatprep.subr.bf16.mxu0 %v8208
        %9504 = vmatpush1.bf16.msra.mxu0 %v8207
        %9505 = vmatprep.subr.bf16.mxu0 %v8204
        %9506 = vmatpush1.bf16.msra.mxu0 %v8203
        %9507 = vmatprep.subr.bf16.mxu0 %v8200
        %9508 = vmatpush1.bf16.msra.mxu0 %v8199
        %9509 = vmatprep.subr.bf16.mxu0 %v8196
        %9510 = vmatpush1.bf16.msra.mxu0 %v8195
        %9511 = vmatprep.subr.bf16.mxu0 %v8192
        %9512 = vmatpush1.bf16.msra.mxu0 %v8191
        %9513 = vmatprep.subr.bf16.mxu0 %v8188
        %9514 = vmatpush1.bf16.msra.mxu0 %v8187
        %9515 = vmatprep.subr.bf16.mxu0 %v8184
        %9516 = vmatpush1.bf16.msra.mxu0 %v8183
        %9517 = vmatprep.subr.bf16.mxu0 %v8244
        %9518 = vmatpush2.bf16.msra.mxu0 %v8243
        %9519 = vmatprep.subr.bf16.mxu0 %v8240
        %9520 = vmatpush2.bf16.msra.mxu0 %v8239
        %9521 = vmatprep.subr.bf16.mxu0 %v8236
        %9522 = vmatpush2.bf16.msra.mxu0 %v8235
        %9523 = vmatprep.subr.bf16.mxu0 %v8232
        %9524 = vmatpush2.bf16.msra.mxu0 %v8231
        %9525 = vmatprep.subr.bf16.mxu0 %v8228
        %9526 = vmatpush2.bf16.msra.mxu0 %v8227
        %9527 = vmatprep.subr.bf16.mxu0 %v8224
        %9528 = vmatpush2.bf16.msra.mxu0 %v8223
        %9529 = vmatprep.subr.bf16.mxu0 %v8220
        %9530 = vmatpush2.bf16.msra.mxu0 %v8219
        %9531 = vmatprep.subr.bf16.mxu0 %v8216
        %9532 = vmatpush2.bf16.msra.mxu0 %v8215
        %9533 = vmatprep.mubr.bf16.mxu0 %v5636
        %9534 = vmatmul.mubr.bf16.gmra.mxu0 %v5635
        %v9535 = vpop.f32.mrf.mxu0
        %v9536 = vadd.f32 %v9423, %v9535
        %v9537 = vpop.f32.mrf.mxu0
        %v9538 = vadd.f32 %v9425, %v9537
        %v9539 = vpop.f32.mrf.mxu0
        %v9540 = vadd.f32 %v9427, %v9539
        %v9541 = vpop.f32.mrf.mxu0
        %v9542 = vadd.f32 %v9429, %v9541
        %9543 = vmatprep.mubr.bf16.mxu0 %v5652
        %9544 = vmatmul.mubr.bf16.gmra.mxu0 %v5651
        %v9545 = vpop.f32.mrf.mxu0
        %v9546 = vadd.f32 %v9433, %v9545
        %v9547 = vpop.f32.mrf.mxu0
        %v9548 = vadd.f32 %v9435, %v9547
        %v9549 = vpop.f32.mrf.mxu0
        %v9550 = vadd.f32 %v9437, %v9549
        %v9551 = vpop.f32.mrf.mxu0
        %v9552 = vadd.f32 %v9439, %v9551
        %9553 = vmatprep.mubr.bf16.mxu0 %v5668
        %9554 = vmatmul.mubr.bf16.gmra.mxu0 %v5667
        %v9555 = vpop.f32.mrf.mxu0
        %v9556 = vadd.f32 %v9443, %v9555
        %v9557 = vpop.f32.mrf.mxu0
        %v9558 = vadd.f32 %v9445, %v9557
        %v9559 = vpop.f32.mrf.mxu0
        %v9560 = vadd.f32 %v9447, %v9559
        %v9561 = vpop.f32.mrf.mxu0
        %v9562 = vadd.f32 %v9449, %v9561
        %9563 = vmatprep.mubr.bf16.mxu0 %v5684
        %9564 = vmatmul.mubr.bf16.gmra.mxu0 %v5683
        %v9565 = vpop.f32.mrf.mxu0
        %v9566 = vadd.f32 %v9453, %v9565
        %v9567 = vpop.f32.mrf.mxu0
        %v9568 = vadd.f32 %v9455, %v9567
        %v9569 = vpop.f32.mrf.mxu0
        %v9570 = vadd.f32 %v9457, %v9569
        %v9571 = vpop.f32.mrf.mxu0
        %v9572 = vadd.f32 %v9459, %v9571
        %9573 = vmatprep.mubr.bf16.mxu0 %v5700
        %9574 = vmatmul.mubr.bf16.gmra.mxu0 %v5699
        %v9575 = vpop.f32.mrf.mxu0
        %v9576 = vadd.f32 %v9463, %v9575
        %v9577 = vpop.f32.mrf.mxu0
        %v9578 = vadd.f32 %v9465, %v9577
        %v9579 = vpop.f32.mrf.mxu0
        %v9580 = vadd.f32 %v9467, %v9579
        %v9581 = vpop.f32.mrf.mxu0
        %v9582 = vadd.f32 %v9469, %v9581
        %9583 = vmatprep.mubr.bf16.mxu0 %v5716
        %9584 = vmatmul.mubr.bf16.gmra.mxu0 %v5715
        %v9585 = vpop.f32.mrf.mxu0
        %v9586 = vadd.f32 %v9473, %v9585
        %v9587 = vpop.f32.mrf.mxu0
        %v9588 = vadd.f32 %v9475, %v9587
        %v9589 = vpop.f32.mrf.mxu0
        %v9590 = vadd.f32 %v9477, %v9589
        %v9591 = vpop.f32.mrf.mxu0
        %v9592 = vadd.f32 %v9479, %v9591
        %9593 = vmatprep.mubr.bf16.mxu0 %v5732
        %9594 = vmatmul.mubr.bf16.gmra.mxu0 %v5731
        %v9595 = vpop.f32.mrf.mxu0
        %v9596 = vadd.f32 %v9483, %v9595
        %v9597 = vpop.f32.mrf.mxu0
        %v9598 = vadd.f32 %v9485, %v9597
        %v9599 = vpop.f32.mrf.mxu0
        %v9600 = vadd.f32 %v9487, %v9599
        %v9601 = vpop.f32.mrf.mxu0
        %v9602 = vadd.f32 %v9489, %v9601
        %9603 = vmatprep.mubr.bf16.mxu0 %v5748
        %9604 = vmatmul.mubr.bf16.gmra.mxu0 %v5747
        %v9605 = vpop.f32.mrf.mxu0
        %v9606 = vadd.f32 %v9493, %v9605
        %v9607 = vpop.f32.mrf.mxu0
        %v9608 = vadd.f32 %v9495, %v9607
        %v9609 = vpop.f32.mrf.mxu0
        %v9610 = vadd.f32 %v9497, %v9609
        %v9611 = vpop.f32.mrf.mxu0
        %v9612 = vadd.f32 %v9499, %v9611
        %9613 = vdwg.mxu0
        %9614 = vmatprep.subr.bf16.mxu0 %v8276
        %9615 = vmatpush1.bf16.msra.mxu0 %v8275
        %9616 = vmatprep.subr.bf16.mxu0 %v8272
        %9617 = vmatpush1.bf16.msra.mxu0 %v8271
        %9618 = vmatprep.subr.bf16.mxu0 %v8268
        %9619 = vmatpush1.bf16.msra.mxu0 %v8267
        %9620 = vmatprep.subr.bf16.mxu0 %v8264
        %9621 = vmatpush1.bf16.msra.mxu0 %v8263
        %9622 = vmatprep.subr.bf16.mxu0 %v8260
        %9623 = vmatpush1.bf16.msra.mxu0 %v8259
        %9624 = vmatprep.subr.bf16.mxu0 %v8256
        %9625 = vmatpush1.bf16.msra.mxu0 %v8255
        %9626 = vmatprep.subr.bf16.mxu0 %v8252
        %9627 = vmatpush1.bf16.msra.mxu0 %v8251
        %9628 = vmatprep.subr.bf16.mxu0 %v8248
        %9629 = vmatpush1.bf16.msra.mxu0 %v8247
        %9630 = vmatprep.subr.bf16.mxu0 %v8308
        %9631 = vmatpush2.bf16.msra.mxu0 %v8307
        %9632 = vmatprep.subr.bf16.mxu0 %v8304
        %9633 = vmatpush2.bf16.msra.mxu0 %v8303
        %9634 = vmatprep.subr.bf16.mxu0 %v8300
        %9635 = vmatpush2.bf16.msra.mxu0 %v8299
        %9636 = vmatprep.subr.bf16.mxu0 %v8296
        %9637 = vmatpush2.bf16.msra.mxu0 %v8295
        %9638 = vmatprep.subr.bf16.mxu0 %v8292
        %9639 = vmatpush2.bf16.msra.mxu0 %v8291
        %9640 = vmatprep.subr.bf16.mxu0 %v8288
        %9641 = vmatpush2.bf16.msra.mxu0 %v8287
        %9642 = vmatprep.subr.bf16.mxu0 %v8284
        %9643 = vmatpush2.bf16.msra.mxu0 %v8283
        %9644 = vmatprep.subr.bf16.mxu0 %v8280
        %9645 = vmatpush2.bf16.msra.mxu0 %v8279
        %9646 = vmatprep.mubr.bf16.mxu0 %v5638
        %9647 = vmatmul.mubr.bf16.gmra.mxu0 %v5637
        %v9648 = vpop.f32.mrf.mxu0
        %v9649 = vadd.f32 %v9536, %v9648
        %v9650 = vpop.f32.mrf.mxu0
        %v9651 = vadd.f32 %v9538, %v9650
        %v9652 = vpop.f32.mrf.mxu0
        %v9653 = vadd.f32 %v9540, %v9652
        %v9654 = vpop.f32.mrf.mxu0
        %v9655 = vadd.f32 %v9542, %v9654
        %9656 = vmatprep.mubr.bf16.mxu0 %v5654
        %9657 = vmatmul.mubr.bf16.gmra.mxu0 %v5653
        %v9658 = vpop.f32.mrf.mxu0
        %v9659 = vadd.f32 %v9546, %v9658
        %v9660 = vpop.f32.mrf.mxu0
        %v9661 = vadd.f32 %v9548, %v9660
        %v9662 = vpop.f32.mrf.mxu0
        %v9663 = vadd.f32 %v9550, %v9662
        %v9664 = vpop.f32.mrf.mxu0
        %v9665 = vadd.f32 %v9552, %v9664
        %9666 = vmatprep.mubr.bf16.mxu0 %v5670
        %9667 = vmatmul.mubr.bf16.gmra.mxu0 %v5669
        %v9668 = vpop.f32.mrf.mxu0
        %v9669 = vadd.f32 %v9556, %v9668
        %v9670 = vpop.f32.mrf.mxu0
        %v9671 = vadd.f32 %v9558, %v9670
        %v9672 = vpop.f32.mrf.mxu0
        %v9673 = vadd.f32 %v9560, %v9672
        %v9674 = vpop.f32.mrf.mxu0
        %v9675 = vadd.f32 %v9562, %v9674
        %9676 = vmatprep.mubr.bf16.mxu0 %v5686
        %9677 = vmatmul.mubr.bf16.gmra.mxu0 %v5685
        %v9678 = vpop.f32.mrf.mxu0
        %v9679 = vadd.f32 %v9566, %v9678
        %v9680 = vpop.f32.mrf.mxu0
        %v9681 = vadd.f32 %v9568, %v9680
        %v9682 = vpop.f32.mrf.mxu0
        %v9683 = vadd.f32 %v9570, %v9682
        %v9684 = vpop.f32.mrf.mxu0
        %v9685 = vadd.f32 %v9572, %v9684
        %9686 = vmatprep.mubr.bf16.mxu0 %v5702
        %9687 = vmatmul.mubr.bf16.gmra.mxu0 %v5701
        %v9688 = vpop.f32.mrf.mxu0
        %v9689 = vadd.f32 %v9576, %v9688
        %v9690 = vpop.f32.mrf.mxu0
        %v9691 = vadd.f32 %v9578, %v9690
        %v9692 = vpop.f32.mrf.mxu0
        %v9693 = vadd.f32 %v9580, %v9692
        %v9694 = vpop.f32.mrf.mxu0
        %v9695 = vadd.f32 %v9582, %v9694
        %9696 = vmatprep.mubr.bf16.mxu0 %v5718
        %9697 = vmatmul.mubr.bf16.gmra.mxu0 %v5717
        %v9698 = vpop.f32.mrf.mxu0
        %v9699 = vadd.f32 %v9586, %v9698
        %v9700 = vpop.f32.mrf.mxu0
        %v9701 = vadd.f32 %v9588, %v9700
        %v9702 = vpop.f32.mrf.mxu0
        %v9703 = vadd.f32 %v9590, %v9702
        %v9704 = vpop.f32.mrf.mxu0
        %v9705 = vadd.f32 %v9592, %v9704
        %9706 = vmatprep.mubr.bf16.mxu0 %v5734
        %9707 = vmatmul.mubr.bf16.gmra.mxu0 %v5733
        %v9708 = vpop.f32.mrf.mxu0
        %v9709 = vadd.f32 %v9596, %v9708
        %v9710 = vpop.f32.mrf.mxu0
        %v9711 = vadd.f32 %v9598, %v9710
        %v9712 = vpop.f32.mrf.mxu0
        %v9713 = vadd.f32 %v9600, %v9712
        %v9714 = vpop.f32.mrf.mxu0
        %v9715 = vadd.f32 %v9602, %v9714
        %9716 = vmatprep.mubr.bf16.mxu0 %v5750
        %9717 = vmatmul.mubr.bf16.gmra.mxu0 %v5749
        %v9718 = vpop.f32.mrf.mxu0
        %v9719 = vadd.f32 %v9606, %v9718
        %v9720 = vpop.f32.mrf.mxu0
        %v9721 = vadd.f32 %v9608, %v9720
        %v9722 = vpop.f32.mrf.mxu0
        %v9723 = vadd.f32 %v9610, %v9722
        %v9724 = vpop.f32.mrf.mxu0
        %v9725 = vadd.f32 %v9612, %v9724
        %9726 = vdwg.mxu0
        %9727 = vmatprep.subr.bf16.mxu0 %v7830
        %9728 = vmatpush1.bf16.msra.mxu0 %v7829
        %9729 = vmatprep.subr.bf16.mxu0 %v7826
        %9730 = vmatpush1.bf16.msra.mxu0 %v7825
        %9731 = vmatprep.subr.bf16.mxu0 %v7822
        %9732 = vmatpush1.bf16.msra.mxu0 %v7821
        %9733 = vmatprep.subr.bf16.mxu0 %v7818
        %9734 = vmatpush1.bf16.msra.mxu0 %v7817
        %9735 = vmatprep.subr.bf16.mxu0 %v7814
        %9736 = vmatpush1.bf16.msra.mxu0 %v7813
        %9737 = vmatprep.subr.bf16.mxu0 %v7810
        %9738 = vmatpush1.bf16.msra.mxu0 %v7809
        %9739 = vmatprep.subr.bf16.mxu0 %v7806
        %9740 = vmatpush1.bf16.msra.mxu0 %v7805
        %9741 = vmatprep.subr.bf16.mxu0 %v7802
        %9742 = vmatpush1.bf16.msra.mxu0 %v7801
        %9743 = vmatprep.subr.bf16.mxu0 %v7862
        %9744 = vmatpush2.bf16.msra.mxu0 %v7861
        %9745 = vmatprep.subr.bf16.mxu0 %v7858
        %9746 = vmatpush2.bf16.msra.mxu0 %v7857
        %9747 = vmatprep.subr.bf16.mxu0 %v7854
        %9748 = vmatpush2.bf16.msra.mxu0 %v7853
        %9749 = vmatprep.subr.bf16.mxu0 %v7850
        %9750 = vmatpush2.bf16.msra.mxu0 %v7849
        %9751 = vmatprep.subr.bf16.mxu0 %v7846
        %9752 = vmatpush2.bf16.msra.mxu0 %v7845
        %9753 = vmatprep.subr.bf16.mxu0 %v7842
        %9754 = vmatpush2.bf16.msra.mxu0 %v7841
        %9755 = vmatprep.subr.bf16.mxu0 %v7838
        %9756 = vmatpush2.bf16.msra.mxu0 %v7837
        %9757 = vmatprep.subr.bf16.mxu0 %v7834
        %9758 = vmatpush2.bf16.msra.mxu0 %v7833
        %9759 = vmatprep.mubr.bf16.mxu0 %v5624
        %9760 = vmatmul.mubr.bf16.gmra.mxu0 %v5623
        %v9761 = vpop.f32.mrf.mxu0
        %v9762 = vadd.f32 0.0, %v9761
        %v9763 = vpop.f32.mrf.mxu0
        %v9764 = vadd.f32 0.0, %v9763
        %v9765 = vpop.f32.mrf.mxu0
        %v9766 = vadd.f32 0.0, %v9765
        %v9767 = vpop.f32.mrf.mxu0
        %v9768 = vadd.f32 0.0, %v9767
        %9769 = vmatprep.mubr.bf16.mxu0 %v5640
        %9770 = vmatmul.mubr.bf16.gmra.mxu0 %v5639
        %v9771 = vpop.f32.mrf.mxu0
        %v9772 = vadd.f32 0.0, %v9771
        %v9773 = vpop.f32.mrf.mxu0
        %v9774 = vadd.f32 0.0, %v9773
        %v9775 = vpop.f32.mrf.mxu0
        %v9776 = vadd.f32 0.0, %v9775
        %v9777 = vpop.f32.mrf.mxu0
        %v9778 = vadd.f32 0.0, %v9777
        %9779 = vmatprep.mubr.bf16.mxu0 %v5656
        %9780 = vmatmul.mubr.bf16.gmra.mxu0 %v5655
        %v9781 = vpop.f32.mrf.mxu0
        %v9782 = vadd.f32 0.0, %v9781
        %v9783 = vpop.f32.mrf.mxu0
        %v9784 = vadd.f32 0.0, %v9783
        %v9785 = vpop.f32.mrf.mxu0
        %v9786 = vadd.f32 0.0, %v9785
        %v9787 = vpop.f32.mrf.mxu0
        %v9788 = vadd.f32 0.0, %v9787
        %9789 = vmatprep.mubr.bf16.mxu0 %v5672
        %9790 = vmatmul.mubr.bf16.gmra.mxu0 %v5671
        %v9791 = vpop.f32.mrf.mxu0
        %v9792 = vadd.f32 0.0, %v9791
        %v9793 = vpop.f32.mrf.mxu0
        %v9794 = vadd.f32 0.0, %v9793
        %v9795 = vpop.f32.mrf.mxu0
        %v9796 = vadd.f32 0.0, %v9795
        %v9797 = vpop.f32.mrf.mxu0
        %v9798 = vadd.f32 0.0, %v9797
        %9799 = vmatprep.mubr.bf16.mxu0 %v5688
        %9800 = vmatmul.mubr.bf16.gmra.mxu0 %v5687
        %v9801 = vpop.f32.mrf.mxu0
        %v9802 = vadd.f32 0.0, %v9801
        %v9803 = vpop.f32.mrf.mxu0
        %v9804 = vadd.f32 0.0, %v9803
        %v9805 = vpop.f32.mrf.mxu0
        %v9806 = vadd.f32 0.0, %v9805
        %v9807 = vpop.f32.mrf.mxu0
        %v9808 = vadd.f32 0.0, %v9807
        %9809 = vmatprep.mubr.bf16.mxu0 %v5704
        %9810 = vmatmul.mubr.bf16.gmra.mxu0 %v5703
        %v9811 = vpop.f32.mrf.mxu0
        %v9812 = vadd.f32 0.0, %v9811
        %v9813 = vpop.f32.mrf.mxu0
        %v9814 = vadd.f32 0.0, %v9813
        %v9815 = vpop.f32.mrf.mxu0
        %v9816 = vadd.f32 0.0, %v9815
        %v9817 = vpop.f32.mrf.mxu0
        %v9818 = vadd.f32 0.0, %v9817
        %9819 = vmatprep.mubr.bf16.mxu0 %v5720
        %9820 = vmatmul.mubr.bf16.gmra.mxu0 %v5719
        %v9821 = vpop.f32.mrf.mxu0
        %v9822 = vadd.f32 0.0, %v9821
        %v9823 = vpop.f32.mrf.mxu0
        %v9824 = vadd.f32 0.0, %v9823
        %v9825 = vpop.f32.mrf.mxu0
        %v9826 = vadd.f32 0.0, %v9825
        %v9827 = vpop.f32.mrf.mxu0
        %v9828 = vadd.f32 0.0, %v9827
        %9829 = vmatprep.mubr.bf16.mxu0 %v5736
        %9830 = vmatmul.mubr.bf16.gmra.mxu0 %v5735
        %v9831 = vpop.f32.mrf.mxu0
        %v9832 = vadd.f32 0.0, %v9831
        %v9833 = vpop.f32.mrf.mxu0
        %v9834 = vadd.f32 0.0, %v9833
        %v9835 = vpop.f32.mrf.mxu0
        %v9836 = vadd.f32 0.0, %v9835
        %v9837 = vpop.f32.mrf.mxu0
        %v9838 = vadd.f32 0.0, %v9837
        %9839 = vdwg.mxu0
        %9840 = vmatprep.subr.bf16.mxu0 %v7894
        %9841 = vmatpush1.bf16.msra.mxu0 %v7893
        %9842 = vmatprep.subr.bf16.mxu0 %v7890
        %9843 = vmatpush1.bf16.msra.mxu0 %v7889
        %9844 = vmatprep.subr.bf16.mxu0 %v7886
        %9845 = vmatpush1.bf16.msra.mxu0 %v7885
        %9846 = vmatprep.subr.bf16.mxu0 %v7882
        %9847 = vmatpush1.bf16.msra.mxu0 %v7881
        %9848 = vmatprep.subr.bf16.mxu0 %v7878
        %9849 = vmatpush1.bf16.msra.mxu0 %v7877
        %9850 = vmatprep.subr.bf16.mxu0 %v7874
        %9851 = vmatpush1.bf16.msra.mxu0 %v7873
        %9852 = vmatprep.subr.bf16.mxu0 %v7870
        %9853 = vmatpush1.bf16.msra.mxu0 %v7869
        %9854 = vmatprep.subr.bf16.mxu0 %v7866
        %9855 = vmatpush1.bf16.msra.mxu0 %v7865
        %9856 = vmatprep.subr.bf16.mxu0 %v7926
        %9857 = vmatpush2.bf16.msra.mxu0 %v7925
        %9858 = vmatprep.subr.bf16.mxu0 %v7922
        %9859 = vmatpush2.bf16.msra.mxu0 %v7921
        %9860 = vmatprep.subr.bf16.mxu0 %v7918
        %9861 = vmatpush2.bf16.msra.mxu0 %v7917
        %9862 = vmatprep.subr.bf16.mxu0 %v7914
        %9863 = vmatpush2.bf16.msra.mxu0 %v7913
        %9864 = vmatprep.subr.bf16.mxu0 %v7910
        %9865 = vmatpush2.bf16.msra.mxu0 %v7909
        %9866 = vmatprep.subr.bf16.mxu0 %v7906
        %9867 = vmatpush2.bf16.msra.mxu0 %v7905
        %9868 = vmatprep.subr.bf16.mxu0 %v7902
        %9869 = vmatpush2.bf16.msra.mxu0 %v7901
        %9870 = vmatprep.subr.bf16.mxu0 %v7898
        %9871 = vmatpush2.bf16.msra.mxu0 %v7897
        %9872 = vmatprep.mubr.bf16.mxu0 %v5626
        %9873 = vmatmul.mubr.bf16.gmra.mxu0 %v5625
        %v9874 = vpop.f32.mrf.mxu0
        %v9875 = vadd.f32 %v9762, %v9874
        %v9876 = vpop.f32.mrf.mxu0
        %v9877 = vadd.f32 %v9764, %v9876
        %v9878 = vpop.f32.mrf.mxu0
        %v9879 = vadd.f32 %v9766, %v9878
        %v9880 = vpop.f32.mrf.mxu0
        %v9881 = vadd.f32 %v9768, %v9880
        %9882 = vmatprep.mubr.bf16.mxu0 %v5642
        %9883 = vmatmul.mubr.bf16.gmra.mxu0 %v5641
        %v9884 = vpop.f32.mrf.mxu0
        %v9885 = vadd.f32 %v9772, %v9884
        %v9886 = vpop.f32.mrf.mxu0
        %v9887 = vadd.f32 %v9774, %v9886
        %v9888 = vpop.f32.mrf.mxu0
        %v9889 = vadd.f32 %v9776, %v9888
        %v9890 = vpop.f32.mrf.mxu0
        %v9891 = vadd.f32 %v9778, %v9890
        %9892 = vmatprep.mubr.bf16.mxu0 %v5658
        %9893 = vmatmul.mubr.bf16.gmra.mxu0 %v5657
        %v9894 = vpop.f32.mrf.mxu0
        %v9895 = vadd.f32 %v9782, %v9894
        %v9896 = vpop.f32.mrf.mxu0
        %v9897 = vadd.f32 %v9784, %v9896
        %v9898 = vpop.f32.mrf.mxu0
        %v9899 = vadd.f32 %v9786, %v9898
        %v9900 = vpop.f32.mrf.mxu0
        %v9901 = vadd.f32 %v9788, %v9900
        %9902 = vmatprep.mubr.bf16.mxu0 %v5674
        %9903 = vmatmul.mubr.bf16.gmra.mxu0 %v5673
        %v9904 = vpop.f32.mrf.mxu0
        %v9905 = vadd.f32 %v9792, %v9904
        %v9906 = vpop.f32.mrf.mxu0
        %v9907 = vadd.f32 %v9794, %v9906
        %v9908 = vpop.f32.mrf.mxu0
        %v9909 = vadd.f32 %v9796, %v9908
        %v9910 = vpop.f32.mrf.mxu0
        %v9911 = vadd.f32 %v9798, %v9910
        %9912 = vmatprep.mubr.bf16.mxu0 %v5690
        %9913 = vmatmul.mubr.bf16.gmra.mxu0 %v5689
        %v9914 = vpop.f32.mrf.mxu0
        %v9915 = vadd.f32 %v9802, %v9914
        %v9916 = vpop.f32.mrf.mxu0
        %v9917 = vadd.f32 %v9804, %v9916
        %v9918 = vpop.f32.mrf.mxu0
        %v9919 = vadd.f32 %v9806, %v9918
        %v9920 = vpop.f32.mrf.mxu0
        %v9921 = vadd.f32 %v9808, %v9920
        %9922 = vmatprep.mubr.bf16.mxu0 %v5706
        %9923 = vmatmul.mubr.bf16.gmra.mxu0 %v5705
        %v9924 = vpop.f32.mrf.mxu0
        %v9925 = vadd.f32 %v9812, %v9924
        %v9926 = vpop.f32.mrf.mxu0
        %v9927 = vadd.f32 %v9814, %v9926
        %v9928 = vpop.f32.mrf.mxu0
        %v9929 = vadd.f32 %v9816, %v9928
        %v9930 = vpop.f32.mrf.mxu0
        %v9931 = vadd.f32 %v9818, %v9930
        %9932 = vmatprep.mubr.bf16.mxu0 %v5722
        %9933 = vmatmul.mubr.bf16.gmra.mxu0 %v5721
        %v9934 = vpop.f32.mrf.mxu0
        %v9935 = vadd.f32 %v9822, %v9934
        %v9936 = vpop.f32.mrf.mxu0
        %v9937 = vadd.f32 %v9824, %v9936
        %v9938 = vpop.f32.mrf.mxu0
        %v9939 = vadd.f32 %v9826, %v9938
        %v9940 = vpop.f32.mrf.mxu0
        %v9941 = vadd.f32 %v9828, %v9940
        %9942 = vmatprep.mubr.bf16.mxu0 %v5738
        %9943 = vmatmul.mubr.bf16.gmra.mxu0 %v5737
        %v9944 = vpop.f32.mrf.mxu0
        %v9945 = vadd.f32 %v9832, %v9944
        %v9946 = vpop.f32.mrf.mxu0
        %v9947 = vadd.f32 %v9834, %v9946
        %v9948 = vpop.f32.mrf.mxu0
        %v9949 = vadd.f32 %v9836, %v9948
        %v9950 = vpop.f32.mrf.mxu0
        %v9951 = vadd.f32 %v9838, %v9950
        %9952 = vdwg.mxu0
        %9953 = vmatprep.subr.bf16.mxu0 %v7958
        %9954 = vmatpush1.bf16.msra.mxu0 %v7957
        %9955 = vmatprep.subr.bf16.mxu0 %v7954
        %9956 = vmatpush1.bf16.msra.mxu0 %v7953
        %9957 = vmatprep.subr.bf16.mxu0 %v7950
        %9958 = vmatpush1.bf16.msra.mxu0 %v7949
        %9959 = vmatprep.subr.bf16.mxu0 %v7946
        %9960 = vmatpush1.bf16.msra.mxu0 %v7945
        %9961 = vmatprep.subr.bf16.mxu0 %v7942
        %9962 = vmatpush1.bf16.msra.mxu0 %v7941
        %9963 = vmatprep.subr.bf16.mxu0 %v7938
        %9964 = vmatpush1.bf16.msra.mxu0 %v7937
        %9965 = vmatprep.subr.bf16.mxu0 %v7934
        %9966 = vmatpush1.bf16.msra.mxu0 %v7933
        %9967 = vmatprep.subr.bf16.mxu0 %v7930
        %9968 = vmatpush1.bf16.msra.mxu0 %v7929
        %9969 = vmatprep.subr.bf16.mxu0 %v7990
        %9970 = vmatpush2.bf16.msra.mxu0 %v7989
        %9971 = vmatprep.subr.bf16.mxu0 %v7986
        %9972 = vmatpush2.bf16.msra.mxu0 %v7985
        %9973 = vmatprep.subr.bf16.mxu0 %v7982
        %9974 = vmatpush2.bf16.msra.mxu0 %v7981
        %9975 = vmatprep.subr.bf16.mxu0 %v7978
        %9976 = vmatpush2.bf16.msra.mxu0 %v7977
        %9977 = vmatprep.subr.bf16.mxu0 %v7974
        %9978 = vmatpush2.bf16.msra.mxu0 %v7973
        %9979 = vmatprep.subr.bf16.mxu0 %v7970
        %9980 = vmatpush2.bf16.msra.mxu0 %v7969
        %9981 = vmatprep.subr.bf16.mxu0 %v7966
        %9982 = vmatpush2.bf16.msra.mxu0 %v7965
        %9983 = vmatprep.subr.bf16.mxu0 %v7962
        %9984 = vmatpush2.bf16.msra.mxu0 %v7961
        %9985 = vmatprep.mubr.bf16.mxu0 %v5628
        %9986 = vmatmul.mubr.bf16.gmra.mxu0 %v5627
        %v9987 = vpop.f32.mrf.mxu0
        %v9988 = vadd.f32 %v9875, %v9987
        %v9989 = vpop.f32.mrf.mxu0
        %v9990 = vadd.f32 %v9877, %v9989
        %v9991 = vpop.f32.mrf.mxu0
        %v9992 = vadd.f32 %v9879, %v9991
        %v9993 = vpop.f32.mrf.mxu0
        %v9994 = vadd.f32 %v9881, %v9993
        %9995 = vmatprep.mubr.bf16.mxu0 %v5644
        %9996 = vmatmul.mubr.bf16.gmra.mxu0 %v5643
        %v9997 = vpop.f32.mrf.mxu0
        %v9998 = vadd.f32 %v9885, %v9997
        %v9999 = vpop.f32.mrf.mxu0
        %v10000 = vadd.f32 %v9887, %v9999
        %v10001 = vpop.f32.mrf.mxu0
        %v10002 = vadd.f32 %v9889, %v10001
        %v10003 = vpop.f32.mrf.mxu0
        %v10004 = vadd.f32 %v9891, %v10003
        %10005 = vmatprep.mubr.bf16.mxu0 %v5660
        %10006 = vmatmul.mubr.bf16.gmra.mxu0 %v5659
        %v10007 = vpop.f32.mrf.mxu0
        %v10008 = vadd.f32 %v9895, %v10007
        %v10009 = vpop.f32.mrf.mxu0
        %v10010 = vadd.f32 %v9897, %v10009
        %v10011 = vpop.f32.mrf.mxu0
        %v10012 = vadd.f32 %v9899, %v10011
        %v10013 = vpop.f32.mrf.mxu0
        %v10014 = vadd.f32 %v9901, %v10013
        %10015 = vmatprep.mubr.bf16.mxu0 %v5676
        %10016 = vmatmul.mubr.bf16.gmra.mxu0 %v5675
        %v10017 = vpop.f32.mrf.mxu0
        %v10018 = vadd.f32 %v9905, %v10017
        %v10019 = vpop.f32.mrf.mxu0
        %v10020 = vadd.f32 %v9907, %v10019
        %v10021 = vpop.f32.mrf.mxu0
        %v10022 = vadd.f32 %v9909, %v10021
        %v10023 = vpop.f32.mrf.mxu0
        %v10024 = vadd.f32 %v9911, %v10023
        %10025 = vmatprep.mubr.bf16.mxu0 %v5692
        %10026 = vmatmul.mubr.bf16.gmra.mxu0 %v5691
        %v10027 = vpop.f32.mrf.mxu0
        %v10028 = vadd.f32 %v9915, %v10027
        %v10029 = vpop.f32.mrf.mxu0
        %v10030 = vadd.f32 %v9917, %v10029
        %v10031 = vpop.f32.mrf.mxu0
        %v10032 = vadd.f32 %v9919, %v10031
        %v10033 = vpop.f32.mrf.mxu0
        %v10034 = vadd.f32 %v9921, %v10033
        %10035 = vmatprep.mubr.bf16.mxu0 %v5708
        %10036 = vmatmul.mubr.bf16.gmra.mxu0 %v5707
        %v10037 = vpop.f32.mrf.mxu0
        %v10038 = vadd.f32 %v9925, %v10037
        %v10039 = vpop.f32.mrf.mxu0
        %v10040 = vadd.f32 %v9927, %v10039
        %v10041 = vpop.f32.mrf.mxu0
        %v10042 = vadd.f32 %v9929, %v10041
        %v10043 = vpop.f32.mrf.mxu0
        %v10044 = vadd.f32 %v9931, %v10043
        %10045 = vmatprep.mubr.bf16.mxu0 %v5724
        %10046 = vmatmul.mubr.bf16.gmra.mxu0 %v5723
        %v10047 = vpop.f32.mrf.mxu0
        %v10048 = vadd.f32 %v9935, %v10047
        %v10049 = vpop.f32.mrf.mxu0
        %v10050 = vadd.f32 %v9937, %v10049
        %v10051 = vpop.f32.mrf.mxu0
        %v10052 = vadd.f32 %v9939, %v10051
        %v10053 = vpop.f32.mrf.mxu0
        %v10054 = vadd.f32 %v9941, %v10053
        %10055 = vmatprep.mubr.bf16.mxu0 %v5740
        %10056 = vmatmul.mubr.bf16.gmra.mxu0 %v5739
        %v10057 = vpop.f32.mrf.mxu0
        %v10058 = vadd.f32 %v9945, %v10057
        %v10059 = vpop.f32.mrf.mxu0
        %v10060 = vadd.f32 %v9947, %v10059
        %v10061 = vpop.f32.mrf.mxu0
        %v10062 = vadd.f32 %v9949, %v10061
        %v10063 = vpop.f32.mrf.mxu0
        %v10064 = vadd.f32 %v9951, %v10063
        %10065 = vdwg.mxu0
        %10066 = vmatprep.subr.bf16.mxu0 %v8022
        %10067 = vmatpush1.bf16.msra.mxu0 %v8021
        %10068 = vmatprep.subr.bf16.mxu0 %v8018
        %10069 = vmatpush1.bf16.msra.mxu0 %v8017
        %10070 = vmatprep.subr.bf16.mxu0 %v8014
        %10071 = vmatpush1.bf16.msra.mxu0 %v8013
        %10072 = vmatprep.subr.bf16.mxu0 %v8010
        %10073 = vmatpush1.bf16.msra.mxu0 %v8009
        %10074 = vmatprep.subr.bf16.mxu0 %v8006
        %10075 = vmatpush1.bf16.msra.mxu0 %v8005
        %10076 = vmatprep.subr.bf16.mxu0 %v8002
        %10077 = vmatpush1.bf16.msra.mxu0 %v8001
        %10078 = vmatprep.subr.bf16.mxu0 %v7998
        %10079 = vmatpush1.bf16.msra.mxu0 %v7997
        %10080 = vmatprep.subr.bf16.mxu0 %v7994
        %10081 = vmatpush1.bf16.msra.mxu0 %v7993
        %10082 = vmatprep.subr.bf16.mxu0 %v8054
        %10083 = vmatpush2.bf16.msra.mxu0 %v8053
        %10084 = vmatprep.subr.bf16.mxu0 %v8050
        %10085 = vmatpush2.bf16.msra.mxu0 %v8049
        %10086 = vmatprep.subr.bf16.mxu0 %v8046
        %10087 = vmatpush2.bf16.msra.mxu0 %v8045
        %10088 = vmatprep.subr.bf16.mxu0 %v8042
        %10089 = vmatpush2.bf16.msra.mxu0 %v8041
        %10090 = vmatprep.subr.bf16.mxu0 %v8038
        %10091 = vmatpush2.bf16.msra.mxu0 %v8037
        %10092 = vmatprep.subr.bf16.mxu0 %v8034
        %10093 = vmatpush2.bf16.msra.mxu0 %v8033
        %10094 = vmatprep.subr.bf16.mxu0 %v8030
        %10095 = vmatpush2.bf16.msra.mxu0 %v8029
        %10096 = vmatprep.subr.bf16.mxu0 %v8026
        %10097 = vmatpush2.bf16.msra.mxu0 %v8025
        %10098 = vmatprep.mubr.bf16.mxu0 %v5630
        %10099 = vmatmul.mubr.bf16.gmra.mxu0 %v5629
        %v10100 = vpop.f32.mrf.mxu0
        %v10101 = vadd.f32 %v9988, %v10100
        %v10102 = vpop.f32.mrf.mxu0
        %v10103 = vadd.f32 %v9990, %v10102
        %v10104 = vpop.f32.mrf.mxu0
        %v10105 = vadd.f32 %v9992, %v10104
        %v10106 = vpop.f32.mrf.mxu0
        %v10107 = vadd.f32 %v9994, %v10106
        %10108 = vmatprep.mubr.bf16.mxu0 %v5646
        %10109 = vmatmul.mubr.bf16.gmra.mxu0 %v5645
        %v10110 = vpop.f32.mrf.mxu0
        %v10111 = vadd.f32 %v9998, %v10110
        %v10112 = vpop.f32.mrf.mxu0
        %v10113 = vadd.f32 %v10000, %v10112
        %v10114 = vpop.f32.mrf.mxu0
        %v10115 = vadd.f32 %v10002, %v10114
        %v10116 = vpop.f32.mrf.mxu0
        %v10117 = vadd.f32 %v10004, %v10116
        %10118 = vmatprep.mubr.bf16.mxu0 %v5662
        %10119 = vmatmul.mubr.bf16.gmra.mxu0 %v5661
        %v10120 = vpop.f32.mrf.mxu0
        %v10121 = vadd.f32 %v10008, %v10120
        %v10122 = vpop.f32.mrf.mxu0
        %v10123 = vadd.f32 %v10010, %v10122
        %v10124 = vpop.f32.mrf.mxu0
        %v10125 = vadd.f32 %v10012, %v10124
        %v10126 = vpop.f32.mrf.mxu0
        %v10127 = vadd.f32 %v10014, %v10126
        %10128 = vmatprep.mubr.bf16.mxu0 %v5678
        %10129 = vmatmul.mubr.bf16.gmra.mxu0 %v5677
        %v10130 = vpop.f32.mrf.mxu0
        %v10131 = vadd.f32 %v10018, %v10130
        %v10132 = vpop.f32.mrf.mxu0
        %v10133 = vadd.f32 %v10020, %v10132
        %v10134 = vpop.f32.mrf.mxu0
        %v10135 = vadd.f32 %v10022, %v10134
        %v10136 = vpop.f32.mrf.mxu0
        %v10137 = vadd.f32 %v10024, %v10136
        %10138 = vmatprep.mubr.bf16.mxu0 %v5694
        %10139 = vmatmul.mubr.bf16.gmra.mxu0 %v5693
        %v10140 = vpop.f32.mrf.mxu0
        %v10141 = vadd.f32 %v10028, %v10140
        %v10142 = vpop.f32.mrf.mxu0
        %v10143 = vadd.f32 %v10030, %v10142
        %v10144 = vpop.f32.mrf.mxu0
        %v10145 = vadd.f32 %v10032, %v10144
        %v10146 = vpop.f32.mrf.mxu0
        %v10147 = vadd.f32 %v10034, %v10146
        %10148 = vmatprep.mubr.bf16.mxu0 %v5710
        %10149 = vmatmul.mubr.bf16.gmra.mxu0 %v5709
        %v10150 = vpop.f32.mrf.mxu0
        %v10151 = vadd.f32 %v10038, %v10150
        %v10152 = vpop.f32.mrf.mxu0
        %v10153 = vadd.f32 %v10040, %v10152
        %v10154 = vpop.f32.mrf.mxu0
        %v10155 = vadd.f32 %v10042, %v10154
        %v10156 = vpop.f32.mrf.mxu0
        %v10157 = vadd.f32 %v10044, %v10156
        %10158 = vmatprep.mubr.bf16.mxu0 %v5726
        %10159 = vmatmul.mubr.bf16.gmra.mxu0 %v5725
        %v10160 = vpop.f32.mrf.mxu0
        %v10161 = vadd.f32 %v10048, %v10160
        %v10162 = vpop.f32.mrf.mxu0
        %v10163 = vadd.f32 %v10050, %v10162
        %v10164 = vpop.f32.mrf.mxu0
        %v10165 = vadd.f32 %v10052, %v10164
        %v10166 = vpop.f32.mrf.mxu0
        %v10167 = vadd.f32 %v10054, %v10166
        %10168 = vmatprep.mubr.bf16.mxu0 %v5742
        %10169 = vmatmul.mubr.bf16.gmra.mxu0 %v5741
        %v10170 = vpop.f32.mrf.mxu0
        %v10171 = vadd.f32 %v10058, %v10170
        %v10172 = vpop.f32.mrf.mxu0
        %v10173 = vadd.f32 %v10060, %v10172
        %v10174 = vpop.f32.mrf.mxu0
        %v10175 = vadd.f32 %v10062, %v10174
        %v10176 = vpop.f32.mrf.mxu0
        %v10177 = vadd.f32 %v10064, %v10176
        %10178 = vdwg.mxu0
        %10179 = vmatprep.subr.bf16.mxu0 %v8086
        %10180 = vmatpush1.bf16.msra.mxu0 %v8085
        %10181 = vmatprep.subr.bf16.mxu0 %v8082
        %10182 = vmatpush1.bf16.msra.mxu0 %v8081
        %10183 = vmatprep.subr.bf16.mxu0 %v8078
        %10184 = vmatpush1.bf16.msra.mxu0 %v8077
        %10185 = vmatprep.subr.bf16.mxu0 %v8074
        %10186 = vmatpush1.bf16.msra.mxu0 %v8073
        %10187 = vmatprep.subr.bf16.mxu0 %v8070
        %10188 = vmatpush1.bf16.msra.mxu0 %v8069
        %10189 = vmatprep.subr.bf16.mxu0 %v8066
        %10190 = vmatpush1.bf16.msra.mxu0 %v8065
        %10191 = vmatprep.subr.bf16.mxu0 %v8062
        %10192 = vmatpush1.bf16.msra.mxu0 %v8061
        %10193 = vmatprep.subr.bf16.mxu0 %v8058
        %10194 = vmatpush1.bf16.msra.mxu0 %v8057
        %10195 = vmatprep.subr.bf16.mxu0 %v8118
        %10196 = vmatpush2.bf16.msra.mxu0 %v8117
        %10197 = vmatprep.subr.bf16.mxu0 %v8114
        %10198 = vmatpush2.bf16.msra.mxu0 %v8113
        %10199 = vmatprep.subr.bf16.mxu0 %v8110
        %10200 = vmatpush2.bf16.msra.mxu0 %v8109
        %10201 = vmatprep.subr.bf16.mxu0 %v8106
        %10202 = vmatpush2.bf16.msra.mxu0 %v8105
        %10203 = vmatprep.subr.bf16.mxu0 %v8102
        %10204 = vmatpush2.bf16.msra.mxu0 %v8101
        %10205 = vmatprep.subr.bf16.mxu0 %v8098
        %10206 = vmatpush2.bf16.msra.mxu0 %v8097
        %10207 = vmatprep.subr.bf16.mxu0 %v8094
        %10208 = vmatpush2.bf16.msra.mxu0 %v8093
        %10209 = vmatprep.subr.bf16.mxu0 %v8090
        %10210 = vmatpush2.bf16.msra.mxu0 %v8089
        %10211 = vmatprep.mubr.bf16.mxu0 %v5632
        %10212 = vmatmul.mubr.bf16.gmra.mxu0 %v5631
        %v10213 = vpop.f32.mrf.mxu0
        %v10214 = vadd.f32 %v10101, %v10213
        %v10215 = vpop.f32.mrf.mxu0
        %v10216 = vadd.f32 %v10103, %v10215
        %v10217 = vpop.f32.mrf.mxu0
        %v10218 = vadd.f32 %v10105, %v10217
        %v10219 = vpop.f32.mrf.mxu0
        %v10220 = vadd.f32 %v10107, %v10219
        %10221 = vmatprep.mubr.bf16.mxu0 %v5648
        %10222 = vmatmul.mubr.bf16.gmra.mxu0 %v5647
        %v10223 = vpop.f32.mrf.mxu0
        %v10224 = vadd.f32 %v10111, %v10223
        %v10225 = vpop.f32.mrf.mxu0
        %v10226 = vadd.f32 %v10113, %v10225
        %v10227 = vpop.f32.mrf.mxu0
        %v10228 = vadd.f32 %v10115, %v10227
        %v10229 = vpop.f32.mrf.mxu0
        %v10230 = vadd.f32 %v10117, %v10229
        %10231 = vmatprep.mubr.bf16.mxu0 %v5664
        %10232 = vmatmul.mubr.bf16.gmra.mxu0 %v5663
        %v10233 = vpop.f32.mrf.mxu0
        %v10234 = vadd.f32 %v10121, %v10233
        %v10235 = vpop.f32.mrf.mxu0
        %v10236 = vadd.f32 %v10123, %v10235
        %v10237 = vpop.f32.mrf.mxu0
        %v10238 = vadd.f32 %v10125, %v10237
        %v10239 = vpop.f32.mrf.mxu0
        %v10240 = vadd.f32 %v10127, %v10239
        %10241 = vmatprep.mubr.bf16.mxu0 %v5680
        %10242 = vmatmul.mubr.bf16.gmra.mxu0 %v5679
        %v10243 = vpop.f32.mrf.mxu0
        %v10244 = vadd.f32 %v10131, %v10243
        %v10245 = vpop.f32.mrf.mxu0
        %v10246 = vadd.f32 %v10133, %v10245
        %v10247 = vpop.f32.mrf.mxu0
        %v10248 = vadd.f32 %v10135, %v10247
        %v10249 = vpop.f32.mrf.mxu0
        %v10250 = vadd.f32 %v10137, %v10249
        %10251 = vmatprep.mubr.bf16.mxu0 %v5696
        %10252 = vmatmul.mubr.bf16.gmra.mxu0 %v5695
        %v10253 = vpop.f32.mrf.mxu0
        %v10254 = vadd.f32 %v10141, %v10253
        %v10255 = vpop.f32.mrf.mxu0
        %v10256 = vadd.f32 %v10143, %v10255
        %v10257 = vpop.f32.mrf.mxu0
        %v10258 = vadd.f32 %v10145, %v10257
        %v10259 = vpop.f32.mrf.mxu0
        %v10260 = vadd.f32 %v10147, %v10259
        %10261 = vmatprep.mubr.bf16.mxu0 %v5712
        %10262 = vmatmul.mubr.bf16.gmra.mxu0 %v5711
        %v10263 = vpop.f32.mrf.mxu0
        %v10264 = vadd.f32 %v10151, %v10263
        %v10265 = vpop.f32.mrf.mxu0
        %v10266 = vadd.f32 %v10153, %v10265
        %v10267 = vpop.f32.mrf.mxu0
        %v10268 = vadd.f32 %v10155, %v10267
        %v10269 = vpop.f32.mrf.mxu0
        %v10270 = vadd.f32 %v10157, %v10269
        %10271 = vmatprep.mubr.bf16.mxu0 %v5728
        %10272 = vmatmul.mubr.bf16.gmra.mxu0 %v5727
        %v10273 = vpop.f32.mrf.mxu0
        %v10274 = vadd.f32 %v10161, %v10273
        %v10275 = vpop.f32.mrf.mxu0
        %v10276 = vadd.f32 %v10163, %v10275
        %v10277 = vpop.f32.mrf.mxu0
        %v10278 = vadd.f32 %v10165, %v10277
        %v10279 = vpop.f32.mrf.mxu0
        %v10280 = vadd.f32 %v10167, %v10279
        %10281 = vmatprep.mubr.bf16.mxu0 %v5744
        %10282 = vmatmul.mubr.bf16.gmra.mxu0 %v5743
        %v10283 = vpop.f32.mrf.mxu0
        %v10284 = vadd.f32 %v10171, %v10283
        %v10285 = vpop.f32.mrf.mxu0
        %v10286 = vadd.f32 %v10173, %v10285
        %v10287 = vpop.f32.mrf.mxu0
        %v10288 = vadd.f32 %v10175, %v10287
        %v10289 = vpop.f32.mrf.mxu0
        %v10290 = vadd.f32 %v10177, %v10289
        %10291 = vdwg.mxu0
        %10292 = vmatprep.subr.bf16.mxu0 %v8150
        %10293 = vmatpush1.bf16.msra.mxu0 %v8149
        %10294 = vmatprep.subr.bf16.mxu0 %v8146
        %10295 = vmatpush1.bf16.msra.mxu0 %v8145
        %10296 = vmatprep.subr.bf16.mxu0 %v8142
        %10297 = vmatpush1.bf16.msra.mxu0 %v8141
        %10298 = vmatprep.subr.bf16.mxu0 %v8138
        %10299 = vmatpush1.bf16.msra.mxu0 %v8137
        %10300 = vmatprep.subr.bf16.mxu0 %v8134
        %10301 = vmatpush1.bf16.msra.mxu0 %v8133
        %10302 = vmatprep.subr.bf16.mxu0 %v8130
        %10303 = vmatpush1.bf16.msra.mxu0 %v8129
        %10304 = vmatprep.subr.bf16.mxu0 %v8126
        %10305 = vmatpush1.bf16.msra.mxu0 %v8125
        %10306 = vmatprep.subr.bf16.mxu0 %v8122
        %10307 = vmatpush1.bf16.msra.mxu0 %v8121
        %10308 = vmatprep.subr.bf16.mxu0 %v8182
        %10309 = vmatpush2.bf16.msra.mxu0 %v8181
        %10310 = vmatprep.subr.bf16.mxu0 %v8178
        %10311 = vmatpush2.bf16.msra.mxu0 %v8177
        %10312 = vmatprep.subr.bf16.mxu0 %v8174
        %10313 = vmatpush2.bf16.msra.mxu0 %v8173
        %10314 = vmatprep.subr.bf16.mxu0 %v8170
        %10315 = vmatpush2.bf16.msra.mxu0 %v8169
        %10316 = vmatprep.subr.bf16.mxu0 %v8166
        %10317 = vmatpush2.bf16.msra.mxu0 %v8165
        %10318 = vmatprep.subr.bf16.mxu0 %v8162
        %10319 = vmatpush2.bf16.msra.mxu0 %v8161
        %10320 = vmatprep.subr.bf16.mxu0 %v8158
        %10321 = vmatpush2.bf16.msra.mxu0 %v8157
        %10322 = vmatprep.subr.bf16.mxu0 %v8154
        %10323 = vmatpush2.bf16.msra.mxu0 %v8153
        %10324 = vmatprep.mubr.bf16.mxu0 %v5634
        %10325 = vmatmul.mubr.bf16.gmra.mxu0 %v5633
        %v10326 = vpop.f32.mrf.mxu0
        %v10327 = vadd.f32 %v10214, %v10326
        %v10328 = vpop.f32.mrf.mxu0
        %v10329 = vadd.f32 %v10216, %v10328
        %v10330 = vpop.f32.mrf.mxu0
        %v10331 = vadd.f32 %v10218, %v10330
        %v10332 = vpop.f32.mrf.mxu0
        %v10333 = vadd.f32 %v10220, %v10332
        %10334 = vmatprep.mubr.bf16.mxu0 %v5650
        %10335 = vmatmul.mubr.bf16.gmra.mxu0 %v5649
        %v10336 = vpop.f32.mrf.mxu0
        %v10337 = vadd.f32 %v10224, %v10336
        %v10338 = vpop.f32.mrf.mxu0
        %v10339 = vadd.f32 %v10226, %v10338
        %v10340 = vpop.f32.mrf.mxu0
        %v10341 = vadd.f32 %v10228, %v10340
        %v10342 = vpop.f32.mrf.mxu0
        %v10343 = vadd.f32 %v10230, %v10342
        %10344 = vmatprep.mubr.bf16.mxu0 %v5666
        %10345 = vmatmul.mubr.bf16.gmra.mxu0 %v5665
        %v10346 = vpop.f32.mrf.mxu0
        %v10347 = vadd.f32 %v10234, %v10346
        %v10348 = vpop.f32.mrf.mxu0
        %v10349 = vadd.f32 %v10236, %v10348
        %v10350 = vpop.f32.mrf.mxu0
        %v10351 = vadd.f32 %v10238, %v10350
        %v10352 = vpop.f32.mrf.mxu0
        %v10353 = vadd.f32 %v10240, %v10352
        %10354 = vmatprep.mubr.bf16.mxu0 %v5682
        %10355 = vmatmul.mubr.bf16.gmra.mxu0 %v5681
        %v10356 = vpop.f32.mrf.mxu0
        %v10357 = vadd.f32 %v10244, %v10356
        %v10358 = vpop.f32.mrf.mxu0
        %v10359 = vadd.f32 %v10246, %v10358
        %v10360 = vpop.f32.mrf.mxu0
        %v10361 = vadd.f32 %v10248, %v10360
        %v10362 = vpop.f32.mrf.mxu0
        %v10363 = vadd.f32 %v10250, %v10362
        %10364 = vmatprep.mubr.bf16.mxu0 %v5698
        %10365 = vmatmul.mubr.bf16.gmra.mxu0 %v5697
        %v10366 = vpop.f32.mrf.mxu0
        %v10367 = vadd.f32 %v10254, %v10366
        %v10368 = vpop.f32.mrf.mxu0
        %v10369 = vadd.f32 %v10256, %v10368
        %v10370 = vpop.f32.mrf.mxu0
        %v10371 = vadd.f32 %v10258, %v10370
        %v10372 = vpop.f32.mrf.mxu0
        %v10373 = vadd.f32 %v10260, %v10372
        %10374 = vmatprep.mubr.bf16.mxu0 %v5714
        %10375 = vmatmul.mubr.bf16.gmra.mxu0 %v5713
        %v10376 = vpop.f32.mrf.mxu0
        %v10377 = vadd.f32 %v10264, %v10376
        %v10378 = vpop.f32.mrf.mxu0
        %v10379 = vadd.f32 %v10266, %v10378
        %v10380 = vpop.f32.mrf.mxu0
        %v10381 = vadd.f32 %v10268, %v10380
        %v10382 = vpop.f32.mrf.mxu0
        %v10383 = vadd.f32 %v10270, %v10382
        %10384 = vmatprep.mubr.bf16.mxu0 %v5730
        %10385 = vmatmul.mubr.bf16.gmra.mxu0 %v5729
        %v10386 = vpop.f32.mrf.mxu0
        %v10387 = vadd.f32 %v10274, %v10386
        %v10388 = vpop.f32.mrf.mxu0
        %v10389 = vadd.f32 %v10276, %v10388
        %v10390 = vpop.f32.mrf.mxu0
        %v10391 = vadd.f32 %v10278, %v10390
        %v10392 = vpop.f32.mrf.mxu0
        %v10393 = vadd.f32 %v10280, %v10392
        %10394 = vmatprep.mubr.bf16.mxu0 %v5746
        %10395 = vmatmul.mubr.bf16.gmra.mxu0 %v5745
        %v10396 = vpop.f32.mrf.mxu0
        %v10397 = vadd.f32 %v10284, %v10396
        %v10398 = vpop.f32.mrf.mxu0
        %v10399 = vadd.f32 %v10286, %v10398
        %v10400 = vpop.f32.mrf.mxu0
        %v10401 = vadd.f32 %v10288, %v10400
        %v10402 = vpop.f32.mrf.mxu0
        %v10403 = vadd.f32 %v10290, %v10402
        %10404 = vdwg.mxu0
        %10405 = vmatprep.subr.bf16.mxu0 %v8214
        %10406 = vmatpush1.bf16.msra.mxu0 %v8213
        %10407 = vmatprep.subr.bf16.mxu0 %v8210
        %10408 = vmatpush1.bf16.msra.mxu0 %v8209
        %10409 = vmatprep.subr.bf16.mxu0 %v8206
        %10410 = vmatpush1.bf16.msra.mxu0 %v8205
        %10411 = vmatprep.subr.bf16.mxu0 %v8202
        %10412 = vmatpush1.bf16.msra.mxu0 %v8201
        %10413 = vmatprep.subr.bf16.mxu0 %v8198
        %10414 = vmatpush1.bf16.msra.mxu0 %v8197
        %10415 = vmatprep.subr.bf16.mxu0 %v8194
        %10416 = vmatpush1.bf16.msra.mxu0 %v8193
        %10417 = vmatprep.subr.bf16.mxu0 %v8190
        %10418 = vmatpush1.bf16.msra.mxu0 %v8189
        %10419 = vmatprep.subr.bf16.mxu0 %v8186
        %10420 = vmatpush1.bf16.msra.mxu0 %v8185
        %10421 = vmatprep.subr.bf16.mxu0 %v8246
        %10422 = vmatpush2.bf16.msra.mxu0 %v8245
        %10423 = vmatprep.subr.bf16.mxu0 %v8242
        %10424 = vmatpush2.bf16.msra.mxu0 %v8241
        %10425 = vmatprep.subr.bf16.mxu0 %v8238
        %10426 = vmatpush2.bf16.msra.mxu0 %v8237
        %10427 = vmatprep.subr.bf16.mxu0 %v8234
        %10428 = vmatpush2.bf16.msra.mxu0 %v8233
        %10429 = vmatprep.subr.bf16.mxu0 %v8230
        %10430 = vmatpush2.bf16.msra.mxu0 %v8229
        %10431 = vmatprep.subr.bf16.mxu0 %v8226
        %10432 = vmatpush2.bf16.msra.mxu0 %v8225
        %10433 = vmatprep.subr.bf16.mxu0 %v8222
        %10434 = vmatpush2.bf16.msra.mxu0 %v8221
        %10435 = vmatprep.subr.bf16.mxu0 %v8218
        %10436 = vmatpush2.bf16.msra.mxu0 %v8217
        %10437 = vmatprep.mubr.bf16.mxu0 %v5636
        %10438 = vmatmul.mubr.bf16.gmra.mxu0 %v5635
        %v10439 = vpop.f32.mrf.mxu0
        %v10440 = vadd.f32 %v10327, %v10439
        %v10441 = vpop.f32.mrf.mxu0
        %v10442 = vadd.f32 %v10329, %v10441
        %v10443 = vpop.f32.mrf.mxu0
        %v10444 = vadd.f32 %v10331, %v10443
        %v10445 = vpop.f32.mrf.mxu0
        %v10446 = vadd.f32 %v10333, %v10445
        %10447 = vmatprep.mubr.bf16.mxu0 %v5652
        %10448 = vmatmul.mubr.bf16.gmra.mxu0 %v5651
        %v10449 = vpop.f32.mrf.mxu0
        %v10450 = vadd.f32 %v10337, %v10449
        %v10451 = vpop.f32.mrf.mxu0
        %v10452 = vadd.f32 %v10339, %v10451
        %v10453 = vpop.f32.mrf.mxu0
        %v10454 = vadd.f32 %v10341, %v10453
        %v10455 = vpop.f32.mrf.mxu0
        %v10456 = vadd.f32 %v10343, %v10455
        %10457 = vmatprep.mubr.bf16.mxu0 %v5668
        %10458 = vmatmul.mubr.bf16.gmra.mxu0 %v5667
        %v10459 = vpop.f32.mrf.mxu0
        %v10460 = vadd.f32 %v10347, %v10459
        %v10461 = vpop.f32.mrf.mxu0
        %v10462 = vadd.f32 %v10349, %v10461
        %v10463 = vpop.f32.mrf.mxu0
        %v10464 = vadd.f32 %v10351, %v10463
        %v10465 = vpop.f32.mrf.mxu0
        %v10466 = vadd.f32 %v10353, %v10465
        %10467 = vmatprep.mubr.bf16.mxu0 %v5684
        %10468 = vmatmul.mubr.bf16.gmra.mxu0 %v5683
        %v10469 = vpop.f32.mrf.mxu0
        %v10470 = vadd.f32 %v10357, %v10469
        %v10471 = vpop.f32.mrf.mxu0
        %v10472 = vadd.f32 %v10359, %v10471
        %v10473 = vpop.f32.mrf.mxu0
        %v10474 = vadd.f32 %v10361, %v10473
        %v10475 = vpop.f32.mrf.mxu0
        %v10476 = vadd.f32 %v10363, %v10475
        %10477 = vmatprep.mubr.bf16.mxu0 %v5700
        %10478 = vmatmul.mubr.bf16.gmra.mxu0 %v5699
        %v10479 = vpop.f32.mrf.mxu0
        %v10480 = vadd.f32 %v10367, %v10479
        %v10481 = vpop.f32.mrf.mxu0
        %v10482 = vadd.f32 %v10369, %v10481
        %v10483 = vpop.f32.mrf.mxu0
        %v10484 = vadd.f32 %v10371, %v10483
        %v10485 = vpop.f32.mrf.mxu0
        %v10486 = vadd.f32 %v10373, %v10485
        %10487 = vmatprep.mubr.bf16.mxu0 %v5716
        %10488 = vmatmul.mubr.bf16.gmra.mxu0 %v5715
        %v10489 = vpop.f32.mrf.mxu0
        %v10490 = vadd.f32 %v10377, %v10489
        %v10491 = vpop.f32.mrf.mxu0
        %v10492 = vadd.f32 %v10379, %v10491
        %v10493 = vpop.f32.mrf.mxu0
        %v10494 = vadd.f32 %v10381, %v10493
        %v10495 = vpop.f32.mrf.mxu0
        %v10496 = vadd.f32 %v10383, %v10495
        %10497 = vmatprep.mubr.bf16.mxu0 %v5732
        %10498 = vmatmul.mubr.bf16.gmra.mxu0 %v5731
        %v10499 = vpop.f32.mrf.mxu0
        %v10500 = vadd.f32 %v10387, %v10499
        %v10501 = vpop.f32.mrf.mxu0
        %v10502 = vadd.f32 %v10389, %v10501
        %v10503 = vpop.f32.mrf.mxu0
        %v10504 = vadd.f32 %v10391, %v10503
        %v10505 = vpop.f32.mrf.mxu0
        %v10506 = vadd.f32 %v10393, %v10505
        %10507 = vmatprep.mubr.bf16.mxu0 %v5748
        %10508 = vmatmul.mubr.bf16.gmra.mxu0 %v5747
        %v10509 = vpop.f32.mrf.mxu0
        %v10510 = vadd.f32 %v10397, %v10509
        %v10511 = vpop.f32.mrf.mxu0
        %v10512 = vadd.f32 %v10399, %v10511
        %v10513 = vpop.f32.mrf.mxu0
        %v10514 = vadd.f32 %v10401, %v10513
        %v10515 = vpop.f32.mrf.mxu0
        %v10516 = vadd.f32 %v10403, %v10515
        %10517 = vdwg.mxu0
        %10518 = vmatprep.subr.bf16.mxu0 %v8278
        %10519 = vmatpush1.bf16.msra.mxu0 %v8277
        %10520 = vmatprep.subr.bf16.mxu0 %v8274
        %10521 = vmatpush1.bf16.msra.mxu0 %v8273
        %10522 = vmatprep.subr.bf16.mxu0 %v8270
        %10523 = vmatpush1.bf16.msra.mxu0 %v8269
        %10524 = vmatprep.subr.bf16.mxu0 %v8266
        %10525 = vmatpush1.bf16.msra.mxu0 %v8265
        %10526 = vmatprep.subr.bf16.mxu0 %v8262
        %10527 = vmatpush1.bf16.msra.mxu0 %v8261
        %10528 = vmatprep.subr.bf16.mxu0 %v8258
        %10529 = vmatpush1.bf16.msra.mxu0 %v8257
        %10530 = vmatprep.subr.bf16.mxu0 %v8254
        %10531 = vmatpush1.bf16.msra.mxu0 %v8253
        %10532 = vmatprep.subr.bf16.mxu0 %v8250
        %10533 = vmatpush1.bf16.msra.mxu0 %v8249
        %10534 = vmatprep.subr.bf16.mxu0 %v8310
        %10535 = vmatpush2.bf16.msra.mxu0 %v8309
        %10536 = vmatprep.subr.bf16.mxu0 %v8306
        %10537 = vmatpush2.bf16.msra.mxu0 %v8305
        %10538 = vmatprep.subr.bf16.mxu0 %v8302
        %10539 = vmatpush2.bf16.msra.mxu0 %v8301
        %10540 = vmatprep.subr.bf16.mxu0 %v8298
        %10541 = vmatpush2.bf16.msra.mxu0 %v8297
        %10542 = vmatprep.subr.bf16.mxu0 %v8294
        %10543 = vmatpush2.bf16.msra.mxu0 %v8293
        %10544 = vmatprep.subr.bf16.mxu0 %v8290
        %10545 = vmatpush2.bf16.msra.mxu0 %v8289
        %10546 = vmatprep.subr.bf16.mxu0 %v8286
        %10547 = vmatpush2.bf16.msra.mxu0 %v8285
        %10548 = vmatprep.subr.bf16.mxu0 %v8282
        %10549 = vmatpush2.bf16.msra.mxu0 %v8281
        %10550 = vmatprep.mubr.bf16.mxu0 %v5638
        %10551 = vmatmul.mubr.bf16.gmra.mxu0 %v5637
        %v10552 = vpop.f32.mrf.mxu0
        %v10553 = vadd.f32 %v10440, %v10552
        %v10554 = vpop.f32.mrf.mxu0
        %v10555 = vadd.f32 %v10442, %v10554
        %v10556 = vpop.f32.mrf.mxu0
        %v10557 = vadd.f32 %v10444, %v10556
        %v10558 = vpop.f32.mrf.mxu0
        %v10559 = vadd.f32 %v10446, %v10558
        %10560 = vmatprep.mubr.bf16.mxu0 %v5654
        %10561 = vmatmul.mubr.bf16.gmra.mxu0 %v5653
        %v10562 = vpop.f32.mrf.mxu0
        %v10563 = vadd.f32 %v10450, %v10562
        %v10564 = vpop.f32.mrf.mxu0
        %v10565 = vadd.f32 %v10452, %v10564
        %v10566 = vpop.f32.mrf.mxu0
        %v10567 = vadd.f32 %v10454, %v10566
        %v10568 = vpop.f32.mrf.mxu0
        %v10569 = vadd.f32 %v10456, %v10568
        %10570 = vmatprep.mubr.bf16.mxu0 %v5670
        %10571 = vmatmul.mubr.bf16.gmra.mxu0 %v5669
        %v10572 = vpop.f32.mrf.mxu0
        %v10573 = vadd.f32 %v10460, %v10572
        %v10574 = vpop.f32.mrf.mxu0
        %v10575 = vadd.f32 %v10462, %v10574
        %v10576 = vpop.f32.mrf.mxu0
        %v10577 = vadd.f32 %v10464, %v10576
        %v10578 = vpop.f32.mrf.mxu0
        %v10579 = vadd.f32 %v10466, %v10578
        %10580 = vmatprep.mubr.bf16.mxu0 %v5686
        %10581 = vmatmul.mubr.bf16.gmra.mxu0 %v5685
        %v10582 = vpop.f32.mrf.mxu0
        %v10583 = vadd.f32 %v10470, %v10582
        %v10584 = vpop.f32.mrf.mxu0
        %v10585 = vadd.f32 %v10472, %v10584
        %v10586 = vpop.f32.mrf.mxu0
        %v10587 = vadd.f32 %v10474, %v10586
        %v10588 = vpop.f32.mrf.mxu0
        %v10589 = vadd.f32 %v10476, %v10588
        %10590 = vmatprep.mubr.bf16.mxu0 %v5702
        %10591 = vmatmul.mubr.bf16.gmra.mxu0 %v5701
        %v10592 = vpop.f32.mrf.mxu0
        %v10593 = vadd.f32 %v10480, %v10592
        %v10594 = vpop.f32.mrf.mxu0
        %v10595 = vadd.f32 %v10482, %v10594
        %v10596 = vpop.f32.mrf.mxu0
        %v10597 = vadd.f32 %v10484, %v10596
        %v10598 = vpop.f32.mrf.mxu0
        %v10599 = vadd.f32 %v10486, %v10598
        %10600 = vmatprep.mubr.bf16.mxu0 %v5718
        %10601 = vmatmul.mubr.bf16.gmra.mxu0 %v5717
        %v10602 = vpop.f32.mrf.mxu0
        %v10603 = vadd.f32 %v10490, %v10602
        %v10604 = vpop.f32.mrf.mxu0
        %v10605 = vadd.f32 %v10492, %v10604
        %v10606 = vpop.f32.mrf.mxu0
        %v10607 = vadd.f32 %v10494, %v10606
        %v10608 = vpop.f32.mrf.mxu0
        %v10609 = vadd.f32 %v10496, %v10608
        %10610 = vmatprep.mubr.bf16.mxu0 %v5734
        %10611 = vmatmul.mubr.bf16.gmra.mxu0 %v5733
        %v10612 = vpop.f32.mrf.mxu0
        %v10613 = vadd.f32 %v10500, %v10612
        %v10614 = vpop.f32.mrf.mxu0
        %v10615 = vadd.f32 %v10502, %v10614
        %v10616 = vpop.f32.mrf.mxu0
        %v10617 = vadd.f32 %v10504, %v10616
        %v10618 = vpop.f32.mrf.mxu0
        %v10619 = vadd.f32 %v10506, %v10618
        %10620 = vmatprep.mubr.bf16.mxu0 %v5750
        %10621 = vmatmul.mubr.bf16.gmra.mxu0 %v5749
        %v10622 = vpop.f32.mrf.mxu0
        %v10623 = vadd.f32 %v10510, %v10622
        %v10624 = vpop.f32.mrf.mxu0
        %v10625 = vadd.f32 %v10512, %v10624
        %v10626 = vpop.f32.mrf.mxu0
        %v10627 = vadd.f32 %v10514, %v10626
        %v10628 = vpop.f32.mrf.mxu0
        %v10629 = vadd.f32 %v10516, %v10628
        %10630 = vdwg.mxu0
        %p10631 = scmp.eq.s32.totalorder %s24, 0
        // Predicated region
        $region41: #{feed_forward.1} parent=39 // pred_check
          %p10632 = pneg %p10631
        $region42: #{feed_forward.1} parent=39 // pred_check_branch
          %10634 = sbr.rel (%p10632) target = $region44
        $region43: #{feed_forward.1} parent=39 // pred_region
          %v10635 = vld [vmem:[%s4] sm:$0xf]
          %v10637 = vlaneseq
          %v10638 = vshrl.u32 %v10637, 7
          %v10639 = vsub.s32 0, %v10638
          %v10640 = vrot.slane %v10635, %v10639
          %v10641 = vlaneseq
          %v10642 = vshrl.u32 %v10641, 7
          %v10643 = vsub.s32 1, %v10642
          %v10644 = vrot.slane %v10635, %v10643
          %v10645 = vlaneseq
          %v10646 = vshrl.u32 %v10645, 7
          %v10647 = vsub.s32 2, %v10646
          %v10648 = vrot.slane %v10635, %v10647
          %v10649 = vlaneseq
          %v10650 = vshrl.u32 %v10649, 7
          %v10651 = vsub.s32 3, %v10650
          %v10652 = vrot.slane %v10635, %v10651
          %v10657 = vadd.f32 %v9649, %v10640
          %v10658 = vadd.f32 %v9651, %v10644
          %v10659 = vadd.f32 %v10553, %v10648
          %v10660 = vadd.f32 %v10555, %v10652
          %v10661 = vadd.f32 %v9653, %v10640
          %v10662 = vadd.f32 %v9655, %v10644
          %v10663 = vadd.f32 %v10557, %v10648
          %v10664 = vadd.f32 %v10559, %v10652
          %v10665 = vadd.f32 %v9659, %v10640
          %v10666 = vadd.f32 %v9661, %v10644
          %v10667 = vadd.f32 %v10563, %v10648
          %v10668 = vadd.f32 %v10565, %v10652
          %v10669 = vadd.f32 %v9663, %v10640
          %v10670 = vadd.f32 %v9665, %v10644
          %v10671 = vadd.f32 %v10567, %v10648
          %v10672 = vadd.f32 %v10569, %v10652
          %v10673 = vadd.f32 %v9669, %v10640
          %v10674 = vadd.f32 %v9671, %v10644
          %v10675 = vadd.f32 %v10573, %v10648
          %v10676 = vadd.f32 %v10575, %v10652
          %v10677 = vadd.f32 %v9673, %v10640
          %v10678 = vadd.f32 %v9675, %v10644
          %v10679 = vadd.f32 %v10577, %v10648
          %v10680 = vadd.f32 %v10579, %v10652
          %v10681 = vadd.f32 %v9679, %v10640
          %v10682 = vadd.f32 %v9681, %v10644
          %v10683 = vadd.f32 %v10583, %v10648
          %v10684 = vadd.f32 %v10585, %v10652
          %v10685 = vadd.f32 %v9683, %v10640
          %v10686 = vadd.f32 %v9685, %v10644
          %v10687 = vadd.f32 %v10587, %v10648
          %v10688 = vadd.f32 %v10589, %v10652
          %v10689 = vadd.f32 %v9689, %v10640
          %v10690 = vadd.f32 %v9691, %v10644
          %v10691 = vadd.f32 %v10593, %v10648
          %v10692 = vadd.f32 %v10595, %v10652
          %v10693 = vadd.f32 %v9693, %v10640
          %v10694 = vadd.f32 %v9695, %v10644
          %v10695 = vadd.f32 %v10597, %v10648
          %v10696 = vadd.f32 %v10599, %v10652
          %v10697 = vadd.f32 %v9699, %v10640
          %v10698 = vadd.f32 %v9701, %v10644
          %v10699 = vadd.f32 %v10603, %v10648
          %v10700 = vadd.f32 %v10605, %v10652
          %v10701 = vadd.f32 %v9703, %v10640
          %v10702 = vadd.f32 %v9705, %v10644
          %v10703 = vadd.f32 %v10607, %v10648
          %v10704 = vadd.f32 %v10609, %v10652
          %v10705 = vadd.f32 %v9709, %v10640
          %v10706 = vadd.f32 %v9711, %v10644
          %v10707 = vadd.f32 %v10613, %v10648
          %v10708 = vadd.f32 %v10615, %v10652
          %v10709 = vadd.f32 %v9713, %v10640
          %v10710 = vadd.f32 %v9715, %v10644
          %v10711 = vadd.f32 %v10617, %v10648
          %v10712 = vadd.f32 %v10619, %v10652
          %v10713 = vadd.f32 %v9719, %v10640
          %v10714 = vadd.f32 %v9721, %v10644
          %v10715 = vadd.f32 %v10623, %v10648
          %v10716 = vadd.f32 %v10625, %v10652
          %v10717 = vadd.f32 %v9723, %v10640
          %v10718 = vadd.f32 %v9725, %v10644
          %v10719 = vadd.f32 %v10627, %v10648
          %v10720 = vadd.f32 %v10629, %v10652
          %10721 = vst [vmem:[%s280] sm:$0xff] %v10657
          %10722 = vst [vmem:[%s280 + $0x8] sm:$0xff] %v10658
          %10723 = vst [vmem:[%s280 + $0x10] sm:$0xff] %v10659
          %10724 = vst [vmem:[%s280 + $0x18] sm:$0xff] %v10660
          %10725 = vst [vmem:[%s280 + $0x20] sm:$0xff] %v10661
          %10726 = vst [vmem:[%s280 + $0x28] sm:$0xff] %v10662
          %10727 = vst [vmem:[%s280 + $0x30] sm:$0xff] %v10663
          %10728 = vst [vmem:[%s280 + $0x38] sm:$0xff] %v10664
          %10729 = vst [vmem:[%s280 + $0x40] sm:$0xff] %v10665
          %10730 = vst [vmem:[%s280 + $0x48] sm:$0xff] %v10666
          %10731 = vst [vmem:[%s280 + $0x50] sm:$0xff] %v10667
          %10732 = vst [vmem:[%s280 + $0x58] sm:$0xff] %v10668
          %10733 = vst [vmem:[%s280 + $0x60] sm:$0xff] %v10669
          %10734 = vst [vmem:[%s280 + $0x68] sm:$0xff] %v10670
          %10735 = vst [vmem:[%s280 + $0x70] sm:$0xff] %v10671
          %10736 = vst [vmem:[%s280 + $0x78] sm:$0xff] %v10672
          %10737 = vst [vmem:[%s280 + $0x80] sm:$0xff] %v10673
          %10738 = vst [vmem:[%s280 + $0x88] sm:$0xff] %v10674
          %10739 = vst [vmem:[%s280 + $0x90] sm:$0xff] %v10675
          %10740 = vst [vmem:[%s280 + $0x98] sm:$0xff] %v10676
          %10741 = vst [vmem:[%s280 + $0xa0] sm:$0xff] %v10677
          %10742 = vst [vmem:[%s280 + $0xa8] sm:$0xff] %v10678
          %10743 = vst [vmem:[%s280 + $0xb0] sm:$0xff] %v10679
          %10744 = vst [vmem:[%s280 + $0xb8] sm:$0xff] %v10680
          %10745 = vst [vmem:[%s280 + $0xc0] sm:$0xff] %v10681
          %10746 = vst [vmem:[%s280 + $0xc8] sm:$0xff] %v10682
          %10747 = vst [vmem:[%s280 + $0xd0] sm:$0xff] %v10683
          %10748 = vst [vmem:[%s280 + $0xd8] sm:$0xff] %v10684
          %10749 = vst [vmem:[%s280 + $0xe0] sm:$0xff] %v10685
          %10750 = vst [vmem:[%s280 + $0xe8] sm:$0xff] %v10686
          %10751 = vst [vmem:[%s280 + $0xf0] sm:$0xff] %v10687
          %10752 = vst [vmem:[%s280 + $0xf8] sm:$0xff] %v10688
          %10753 = vst [vmem:[%s280 + $0x100] sm:$0xff] %v10689
          %10754 = vst [vmem:[%s280 + $0x108] sm:$0xff] %v10690
          %10755 = vst [vmem:[%s280 + $0x110] sm:$0xff] %v10691
          %10756 = vst [vmem:[%s280 + $0x118] sm:$0xff] %v10692
          %10757 = vst [vmem:[%s280 + $0x120] sm:$0xff] %v10693
          %10758 = vst [vmem:[%s280 + $0x128] sm:$0xff] %v10694
          %10759 = vst [vmem:[%s280 + $0x130] sm:$0xff] %v10695
          %10760 = vst [vmem:[%s280 + $0x138] sm:$0xff] %v10696
          %10761 = vst [vmem:[%s280 + $0x140] sm:$0xff] %v10697
          %10762 = vst [vmem:[%s280 + $0x148] sm:$0xff] %v10698
          %10763 = vst [vmem:[%s280 + $0x150] sm:$0xff] %v10699
          %10764 = vst [vmem:[%s280 + $0x158] sm:$0xff] %v10700
          %10765 = vst [vmem:[%s280 + $0x160] sm:$0xff] %v10701
          %10766 = vst [vmem:[%s280 + $0x168] sm:$0xff] %v10702
          %10767 = vst [vmem:[%s280 + $0x170] sm:$0xff] %v10703
          %10768 = vst [vmem:[%s280 + $0x178] sm:$0xff] %v10704
          %10769 = vst [vmem:[%s280 + $0x180] sm:$0xff] %v10705
          %10770 = vst [vmem:[%s280 + $0x188] sm:$0xff] %v10706
          %10771 = vst [vmem:[%s280 + $0x190] sm:$0xff] %v10707
          %10772 = vst [vmem:[%s280 + $0x198] sm:$0xff] %v10708
          %10773 = vst [vmem:[%s280 + $0x1a0] sm:$0xff] %v10709
          %10774 = vst [vmem:[%s280 + $0x1a8] sm:$0xff] %v10710
          %10775 = vst [vmem:[%s280 + $0x1b0] sm:$0xff] %v10711
          %10776 = vst [vmem:[%s280 + $0x1b8] sm:$0xff] %v10712
          %10777 = vst [vmem:[%s280 + $0x1c0] sm:$0xff] %v10713
          %10778 = vst [vmem:[%s280 + $0x1c8] sm:$0xff] %v10714
          %10779 = vst [vmem:[%s280 + $0x1d0] sm:$0xff] %v10715
          %10780 = vst [vmem:[%s280 + $0x1d8] sm:$0xff] %v10716
          %10781 = vst [vmem:[%s280 + $0x1e0] sm:$0xff] %v10717
          %10782 = vst [vmem:[%s280 + $0x1e8] sm:$0xff] %v10718
          %10783 = vst [vmem:[%s280 + $0x1f0] sm:$0xff] %v10719
          %10784 = vst [vmem:[%s280 + $0x1f8] sm:$0xff] %v10720
        $region44: #{feed_forward.1} parent=39 // pred_fallthru
          _
        %p10785 = scmp.gt.s32.totalorder %s24, 0
        // Predicated region
        $region45: #{feed_forward.1} parent=39 // pred_check
          %p10786 = pneg %p10785
        $region46: #{feed_forward.1} parent=39 // pred_check_branch
          %10788 = sbr.rel (%p10786) target = $region48
        $region47: #{feed_forward.1} parent=39 // pred_region
          %v10789 = vld [vmem:[%s280] sm:$0xff]
          %v10790 = vld [vmem:[%s280 + $0x8] sm:$0xff]
          %v10791 = vld [vmem:[%s280 + $0x10] sm:$0xff]
          %v10792 = vld [vmem:[%s280 + $0x18] sm:$0xff]
          %v10793 = vld [vmem:[%s280 + $0x20] sm:$0xff]
          %v10794 = vld [vmem:[%s280 + $0x28] sm:$0xff]
          %v10795 = vld [vmem:[%s280 + $0x30] sm:$0xff]
          %v10796 = vld [vmem:[%s280 + $0x38] sm:$0xff]
          %v10797 = vld [vmem:[%s280 + $0x40] sm:$0xff]
          %v10798 = vld [vmem:[%s280 + $0x48] sm:$0xff]
          %v10799 = vld [vmem:[%s280 + $0x50] sm:$0xff]
          %v10800 = vld [vmem:[%s280 + $0x58] sm:$0xff]
          %v10801 = vld [vmem:[%s280 + $0x60] sm:$0xff]
          %v10802 = vld [vmem:[%s280 + $0x68] sm:$0xff]
          %v10803 = vld [vmem:[%s280 + $0x70] sm:$0xff]
          %v10804 = vld [vmem:[%s280 + $0x78] sm:$0xff]
          %v10805 = vld [vmem:[%s280 + $0x80] sm:$0xff]
          %v10806 = vld [vmem:[%s280 + $0x88] sm:$0xff]
          %v10807 = vld [vmem:[%s280 + $0x90] sm:$0xff]
          %v10808 = vld [vmem:[%s280 + $0x98] sm:$0xff]
          %v10809 = vld [vmem:[%s280 + $0xa0] sm:$0xff]
          %v10810 = vld [vmem:[%s280 + $0xa8] sm:$0xff]
          %v10811 = vld [vmem:[%s280 + $0xb0] sm:$0xff]
          %v10812 = vld [vmem:[%s280 + $0xb8] sm:$0xff]
          %v10813 = vld [vmem:[%s280 + $0xc0] sm:$0xff]
          %v10814 = vld [vmem:[%s280 + $0xc8] sm:$0xff]
          %v10815 = vld [vmem:[%s280 + $0xd0] sm:$0xff]
          %v10816 = vld [vmem:[%s280 + $0xd8] sm:$0xff]
          %v10817 = vld [vmem:[%s280 + $0xe0] sm:$0xff]
          %v10818 = vld [vmem:[%s280 + $0xe8] sm:$0xff]
          %v10819 = vld [vmem:[%s280 + $0xf0] sm:$0xff]
          %v10820 = vld [vmem:[%s280 + $0xf8] sm:$0xff]
          %v10821 = vld [vmem:[%s280 + $0x100] sm:$0xff]
          %v10822 = vld [vmem:[%s280 + $0x108] sm:$0xff]
          %v10823 = vld [vmem:[%s280 + $0x110] sm:$0xff]
          %v10824 = vld [vmem:[%s280 + $0x118] sm:$0xff]
          %v10825 = vld [vmem:[%s280 + $0x120] sm:$0xff]
          %v10826 = vld [vmem:[%s280 + $0x128] sm:$0xff]
          %v10827 = vld [vmem:[%s280 + $0x130] sm:$0xff]
          %v10828 = vld [vmem:[%s280 + $0x138] sm:$0xff]
          %v10829 = vld [vmem:[%s280 + $0x140] sm:$0xff]
          %v10830 = vld [vmem:[%s280 + $0x148] sm:$0xff]
          %v10831 = vld [vmem:[%s280 + $0x150] sm:$0xff]
          %v10832 = vld [vmem:[%s280 + $0x158] sm:$0xff]
          %v10833 = vld [vmem:[%s280 + $0x160] sm:$0xff]
          %v10834 = vld [vmem:[%s280 + $0x168] sm:$0xff]
          %v10835 = vld [vmem:[%s280 + $0x170] sm:$0xff]
          %v10836 = vld [vmem:[%s280 + $0x178] sm:$0xff]
          %v10837 = vld [vmem:[%s280 + $0x180] sm:$0xff]
          %v10838 = vld [vmem:[%s280 + $0x188] sm:$0xff]
          %v10839 = vld [vmem:[%s280 + $0x190] sm:$0xff]
          %v10840 = vld [vmem:[%s280 + $0x198] sm:$0xff]
          %v10841 = vld [vmem:[%s280 + $0x1a0] sm:$0xff]
          %v10842 = vld [vmem:[%s280 + $0x1a8] sm:$0xff]
          %v10843 = vld [vmem:[%s280 + $0x1b0] sm:$0xff]
          %v10844 = vld [vmem:[%s280 + $0x1b8] sm:$0xff]
          %v10845 = vld [vmem:[%s280 + $0x1c0] sm:$0xff]
          %v10846 = vld [vmem:[%s280 + $0x1c8] sm:$0xff]
          %v10847 = vld [vmem:[%s280 + $0x1d0] sm:$0xff]
          %v10848 = vld [vmem:[%s280 + $0x1d8] sm:$0xff]
          %v10849 = vld [vmem:[%s280 + $0x1e0] sm:$0xff]
          %v10850 = vld [vmem:[%s280 + $0x1e8] sm:$0xff]
          %v10851 = vld [vmem:[%s280 + $0x1f0] sm:$0xff]
          %v10852 = vld [vmem:[%s280 + $0x1f8] sm:$0xff]
          %v10853 = vadd.f32 %v10789, %v9649
          %v10854 = vadd.f32 %v10790, %v9651
          %v10855 = vadd.f32 %v10791, %v10553
          %v10856 = vadd.f32 %v10792, %v10555
          %v10857 = vadd.f32 %v10793, %v9653
          %v10858 = vadd.f32 %v10794, %v9655
          %v10859 = vadd.f32 %v10795, %v10557
          %v10860 = vadd.f32 %v10796, %v10559
          %v10861 = vadd.f32 %v10797, %v9659
          %v10862 = vadd.f32 %v10798, %v9661
          %v10863 = vadd.f32 %v10799, %v10563
          %v10864 = vadd.f32 %v10800, %v10565
          %v10865 = vadd.f32 %v10801, %v9663
          %v10866 = vadd.f32 %v10802, %v9665
          %v10867 = vadd.f32 %v10803, %v10567
          %v10868 = vadd.f32 %v10804, %v10569
          %v10869 = vadd.f32 %v10805, %v9669
          %v10870 = vadd.f32 %v10806, %v9671
          %v10871 = vadd.f32 %v10807, %v10573
          %v10872 = vadd.f32 %v10808, %v10575
          %v10873 = vadd.f32 %v10809, %v9673
          %v10874 = vadd.f32 %v10810, %v9675
          %v10875 = vadd.f32 %v10811, %v10577
          %v10876 = vadd.f32 %v10812, %v10579
          %v10877 = vadd.f32 %v10813, %v9679
          %v10878 = vadd.f32 %v10814, %v9681
          %v10879 = vadd.f32 %v10815, %v10583
          %v10880 = vadd.f32 %v10816, %v10585
          %v10881 = vadd.f32 %v10817, %v9683
          %v10882 = vadd.f32 %v10818, %v9685
          %v10883 = vadd.f32 %v10819, %v10587
          %v10884 = vadd.f32 %v10820, %v10589
          %v10885 = vadd.f32 %v10821, %v9689
          %v10886 = vadd.f32 %v10822, %v9691
          %v10887 = vadd.f32 %v10823, %v10593
          %v10888 = vadd.f32 %v10824, %v10595
          %v10889 = vadd.f32 %v10825, %v9693
          %v10890 = vadd.f32 %v10826, %v9695
          %v10891 = vadd.f32 %v10827, %v10597
          %v10892 = vadd.f32 %v10828, %v10599
          %v10893 = vadd.f32 %v10829, %v9699
          %v10894 = vadd.f32 %v10830, %v9701
          %v10895 = vadd.f32 %v10831, %v10603
          %v10896 = vadd.f32 %v10832, %v10605
          %v10897 = vadd.f32 %v10833, %v9703
          %v10898 = vadd.f32 %v10834, %v9705
          %v10899 = vadd.f32 %v10835, %v10607
          %v10900 = vadd.f32 %v10836, %v10609
          %v10901 = vadd.f32 %v10837, %v9709
          %v10902 = vadd.f32 %v10838, %v9711
          %v10903 = vadd.f32 %v10839, %v10613
          %v10904 = vadd.f32 %v10840, %v10615
          %v10905 = vadd.f32 %v10841, %v9713
          %v10906 = vadd.f32 %v10842, %v9715
          %v10907 = vadd.f32 %v10843, %v10617
          %v10908 = vadd.f32 %v10844, %v10619
          %v10909 = vadd.f32 %v10845, %v9719
          %v10910 = vadd.f32 %v10846, %v9721
          %v10911 = vadd.f32 %v10847, %v10623
          %v10912 = vadd.f32 %v10848, %v10625
          %v10913 = vadd.f32 %v10849, %v9723
          %v10914 = vadd.f32 %v10850, %v9725
          %v10915 = vadd.f32 %v10851, %v10627
          %v10916 = vadd.f32 %v10852, %v10629
          %10917 = vst [vmem:[%s280] sm:$0xff] %v10853
          %10918 = vst [vmem:[%s280 + $0x8] sm:$0xff] %v10854
          %10919 = vst [vmem:[%s280 + $0x10] sm:$0xff] %v10855
          %10920 = vst [vmem:[%s280 + $0x18] sm:$0xff] %v10856
          %10921 = vst [vmem:[%s280 + $0x20] sm:$0xff] %v10857
          %10922 = vst [vmem:[%s280 + $0x28] sm:$0xff] %v10858
          %10923 = vst [vmem:[%s280 + $0x30] sm:$0xff] %v10859
          %10924 = vst [vmem:[%s280 + $0x38] sm:$0xff] %v10860
          %10925 = vst [vmem:[%s280 + $0x40] sm:$0xff] %v10861
          %10926 = vst [vmem:[%s280 + $0x48] sm:$0xff] %v10862
          %10927 = vst [vmem:[%s280 + $0x50] sm:$0xff] %v10863
          %10928 = vst [vmem:[%s280 + $0x58] sm:$0xff] %v10864
          %10929 = vst [vmem:[%s280 + $0x60] sm:$0xff] %v10865
          %10930 = vst [vmem:[%s280 + $0x68] sm:$0xff] %v10866
          %10931 = vst [vmem:[%s280 + $0x70] sm:$0xff] %v10867
          %10932 = vst [vmem:[%s280 + $0x78] sm:$0xff] %v10868
          %10933 = vst [vmem:[%s280 + $0x80] sm:$0xff] %v10869
          %10934 = vst [vmem:[%s280 + $0x88] sm:$0xff] %v10870
          %10935 = vst [vmem:[%s280 + $0x90] sm:$0xff] %v10871
          %10936 = vst [vmem:[%s280 + $0x98] sm:$0xff] %v10872
          %10937 = vst [vmem:[%s280 + $0xa0] sm:$0xff] %v10873
          %10938 = vst [vmem:[%s280 + $0xa8] sm:$0xff] %v10874
          %10939 = vst [vmem:[%s280 + $0xb0] sm:$0xff] %v10875
          %10940 = vst [vmem:[%s280 + $0xb8] sm:$0xff] %v10876
          %10941 = vst [vmem:[%s280 + $0xc0] sm:$0xff] %v10877
          %10942 = vst [vmem:[%s280 + $0xc8] sm:$0xff] %v10878
          %10943 = vst [vmem:[%s280 + $0xd0] sm:$0xff] %v10879
          %10944 = vst [vmem:[%s280 + $0xd8] sm:$0xff] %v10880
          %10945 = vst [vmem:[%s280 + $0xe0] sm:$0xff] %v10881
          %10946 = vst [vmem:[%s280 + $0xe8] sm:$0xff] %v10882
          %10947 = vst [vmem:[%s280 + $0xf0] sm:$0xff] %v10883
          %10948 = vst [vmem:[%s280 + $0xf8] sm:$0xff] %v10884
          %10949 = vst [vmem:[%s280 + $0x100] sm:$0xff] %v10885
          %10950 = vst [vmem:[%s280 + $0x108] sm:$0xff] %v10886
          %10951 = vst [vmem:[%s280 + $0x110] sm:$0xff] %v10887
          %10952 = vst [vmem:[%s280 + $0x118] sm:$0xff] %v10888
          %10953 = vst [vmem:[%s280 + $0x120] sm:$0xff] %v10889
          %10954 = vst [vmem:[%s280 + $0x128] sm:$0xff] %v10890
          %10955 = vst [vmem:[%s280 + $0x130] sm:$0xff] %v10891
          %10956 = vst [vmem:[%s280 + $0x138] sm:$0xff] %v10892
          %10957 = vst [vmem:[%s280 + $0x140] sm:$0xff] %v10893
          %10958 = vst [vmem:[%s280 + $0x148] sm:$0xff] %v10894
          %10959 = vst [vmem:[%s280 + $0x150] sm:$0xff] %v10895
          %10960 = vst [vmem:[%s280 + $0x158] sm:$0xff] %v10896
          %10961 = vst [vmem:[%s280 + $0x160] sm:$0xff] %v10897
          %10962 = vst [vmem:[%s280 + $0x168] sm:$0xff] %v10898
          %10963 = vst [vmem:[%s280 + $0x170] sm:$0xff] %v10899
          %10964 = vst [vmem:[%s280 + $0x178] sm:$0xff] %v10900
          %10965 = vst [vmem:[%s280 + $0x180] sm:$0xff] %v10901
          %10966 = vst [vmem:[%s280 + $0x188] sm:$0xff] %v10902
          %10967 = vst [vmem:[%s280 + $0x190] sm:$0xff] %v10903
          %10968 = vst [vmem:[%s280 + $0x198] sm:$0xff] %v10904
          %10969 = vst [vmem:[%s280 + $0x1a0] sm:$0xff] %v10905
          %10970 = vst [vmem:[%s280 + $0x1a8] sm:$0xff] %v10906
          %10971 = vst [vmem:[%s280 + $0x1b0] sm:$0xff] %v10907
          %10972 = vst [vmem:[%s280 + $0x1b8] sm:$0xff] %v10908
          %10973 = vst [vmem:[%s280 + $0x1c0] sm:$0xff] %v10909
          %10974 = vst [vmem:[%s280 + $0x1c8] sm:$0xff] %v10910
          %10975 = vst [vmem:[%s280 + $0x1d0] sm:$0xff] %v10911
          %10976 = vst [vmem:[%s280 + $0x1d8] sm:$0xff] %v10912
          %10977 = vst [vmem:[%s280 + $0x1e0] sm:$0xff] %v10913
          %10978 = vst [vmem:[%s280 + $0x1e8] sm:$0xff] %v10914
          %10979 = vst [vmem:[%s280 + $0x1f0] sm:$0xff] %v10915
          %10980 = vst [vmem:[%s280 + $0x1f8] sm:$0xff] %v10916
        $region48: #{feed_forward.1} parent=39 // pred_fallthru
          _
        %s10981 = sand.u32 %s164, 1
        %s10982 = scalar_lea.sflag [#allocation3], %s10981
        %s10983 = sand.u32 %s164, 1
        %s10984 = smul.addr %s10983, 512
        %s10985 = scalar_lea.vmem [#allocation2], %s10984
        // Predicated region
        $region49: #{feed_forward.1} parent=39 // pred_check
          %p10986 = pneg %p174
        $region50: #{feed_forward.1} parent=39 // pred_check_branch
          %10988 = sbr.rel (%p10986) target = $region52
        $region51: #{feed_forward.1} parent=39 // pred_region
          %s10989 = smul.u32 16, %s23
          %s10991 = ssub.s32 8192, 8192
          %10992 = vsyncadd %s10982, %s10991
          %s10993 = smul.addr %s10989, 4
          %s10994 = smul.addr %s10993, 128
          %s10995 = scalar_lea.hbm %s5, %s10994
          %s10996 = sshll.u32 %s10985, 4
          %s10997 = int_to_ptr.vmem [resolvable:$true] %s10996
          %11002 = dma.vmem_to_hbm [thread:$0]  %s10997, 8192, %s10995, %s10982, 512, 512, 32
        $region52: #{feed_forward.1} parent=39 // pred_fallthru
          _
      $region40: #{feed_forward.1} parent=5 // pred_fallthru
        _
      %p11003 = scmp.le.s32.totalorder 2, %s14
      // Predicated region
      $region53: #{feed_forward.1} parent=5 // pred_check
        %p11004 = pneg %p11003
      $region54: #{feed_forward.1} parent=5 // pred_check_branch
        %11006 = sbr.rel (%p11004) target = $region56
      $region55: #{feed_forward.1} parent=5 // pred_region
        %s11007 = ssub.s32 %s14, 2
        // Predicated region
        $region57: #{feed_forward.1} parent=55 // pred_check
          %p11008 = pneg %p180
        $region58: #{feed_forward.1} parent=55 // pred_check_branch
          %11010 = sbr.rel (%p11008) target = $region60
        $region59: #{feed_forward.1} parent=55 // pred_region
          %s11011 = sand.u32 %s165, 1
          %s11012 = scalar_lea.sflag [#allocation3], %s11011
          %s11013 = sand.u32 %s165, 1
          %s11014 = smul.addr %s11013, 512
          %s11015 = scalar_lea.vmem [#allocation2], %s11014
          %11016 = dma.done %s11012, 8192
        $region60: #{feed_forward.1} parent=55 // pred_fallthru
          _
      $region56: #{feed_forward.1} parent=5 // pred_fallthru
        _
    $region6: #{feed_forward.1} parent=1 // loop_footer
      %s18 = sadd.s32 1, %s14
    $region7: #{feed_forward.1} parent=1 // loop_footer_branch
      %13 = sbr.rel target = $region3
    $region8: #{feed_forward.1} parent=1 // loop_exit
      _
    %11017 = vsyncpa [#allocation3], 1
    %s11018 = scalar_lea.sflag [#allocation3], 1
    %11019 = vsyncpa %s11018, 1

</llo_original>
